<compile_context>
chip_gen: v7x
topology: tpu7x:2x2x1
jax: 0.10.0
libtpu: 0.0.40
codegen_flags: <defaults>
</compile_context>

<pallas_src>
import functools

import jax
import jax.numpy as jnp
from jax import lax
from jax.experimental import pallas as pl
from jax.experimental.pallas import tpu as pltpu


def _round_up(x, m):
    return (x + m - 1) // m * m


def _cdiv(a, b):
    return (a + b - 1) // b


# ----------------------- per-generation VMEM budgeting -----------------------

@functools.lru_cache(maxsize=1)
def _vmem_limits():
    """Return (chunk_budget_bytes, vmem_limit_bytes) derived from the chip.

    v5e/v6e: 128 MiB physical VMEM -> limit 96 MiB, budget ~77 MiB.
    v7x    :  64 MiB per TC        -> limit 48 MiB, budget ~38 MiB.
    Unknown / query failure        -> conservative v7x-sized values.
    """
    cap = None
    try:
        cap = getattr(pltpu.get_tpu_info(), "vmem_capacity_bytes", None)
    except Exception:
        cap = None
    if not cap:
        cap = 64 * 1024 * 1024
    limit = min(cap * 3 // 4, 100 * 1024 * 1024)
    budget = limit * 4 // 5
    return int(budget), int(limit)


def _const_block_spec(block_shape, index_map):
    """Single-buffered BlockSpec for inputs whose block index never changes
    (weights / biases).  Falls back to the default spec if pipeline_mode is
    unavailable in this JAX version."""
    try:
        return pl.BlockSpec(block_shape, index_map,
                            pipeline_mode=pl.Buffered(1))
    except (TypeError, ValueError):
        return pl.BlockSpec(block_shape, index_map)


# ----------------------------- Pallas kernels ------------------------------

def _lstm_recurrence(x_ref, wih_ref, whh_ref, b_ref, h_scr, c_scr, g_scr,
                     out_seq_ref, *, t_chunk, hp, seq_len, ragged):
    """Shared body: hoisted input projection + per-step recurrence.

    x_ref   : (Tc, Bb, Din_p) bf16   time-major input chunk
    wih_ref : (Din_p, 4*Hp)   bf16   pre-transposed, gate-padded
    whh_ref : (Hp, 4*Hp)      bf16   pre-transposed, gate-padded
    b_ref   : (1, 4*Hp)       f32    combined (b_ih + b_hh), gate-padded
    h_scr/c_scr : (Bb, Hp)    f32    persistent recurrent state (scratch)
    g_scr   : (Tc, Bb, 4*Hp)  bf16   hoisted input projection (scratch)
    out_seq_ref : (Tc, Bb, Hp) bf16 or None  per-step hidden-state output
    """
    t_pid = pl.program_id(1)

    # NOTE: correctness of the h/c scratch carry relies on the time axis being
    # the innermost ("arbitrary") grid axis: state resets at t_pid == 0 and is
    # carried across t for a fixed batch block.  Do not reorder the grid.
    @pl.when(t_pid == 0)
    def _():
        h_scr[...] = jnp.zeros_like(h_scr)
        c_scr[...] = jnp.zeros_like(c_scr)

    bb = x_ref.shape[1]
    din_p = x_ref.shape[2]

    # Hoisted input projection: one MXU-efficient matmul per time-chunk, bias
    # folded in once.  Stored bf16 to halve the dominant per-(t,b) VMEM term.
    x_2d = x_ref[...].reshape(t_chunk * bb, din_p)
    g_in = jnp.dot(x_2d, wih_ref[...], preferred_element_type=jnp.float32)
    g_scr[...] = (g_in + b_ref[...]).astype(g_scr.dtype).reshape(
        t_chunk, bb, 4 * hp)

    # TODO(synk): drive the MXU weight-stationary (pltpu.matmul_push_rhs /
    # matmul_acc_lhs / matmul_pop) so the (Hp,4Hp) RHS is pushed once per chunk
    # instead of once per step; kept on jnp.dot here for robustness.
    def step(t, carry):
        h_prev = h_scr[...]
        c_prev = c_scr[...]
        # Only the small recurrent matmul stays on the serial critical path.
        gates = g_scr[t].astype(jnp.float32) + jnp.dot(
            h_prev.astype(jnp.bfloat16), whh_ref[...],
            preferred_element_type=jnp.float32)
        # PyTorch gate ordering: i, f, g, o (Hp-aligned => full-vreg slices).
        i_g = jax.nn.sigmoid(gates[:, 0 * hp:1 * hp])
        f_g = jax.nn.sigmoid(gates[:, 1 * hp:2 * hp])
        g_g = jnp.tanh(gates[:, 2 * hp:3 * hp])
        o_g = jax.nn.sigmoid(gates[:, 3 * hp:4 * hp])
        c_new = f_g * c_prev + i_g * g_g
        h_new = o_g * jnp.tanh(c_new)
        if ragged:
            # Masked tail: steps past the real sequence length keep h/c.
            valid = (t_pid * t_chunk + t) < seq_len
            h_new = jnp.where(valid, h_new, h_prev)
            c_new = jnp.where(valid, c_new, c_prev)
        h_scr[...] = h_new
        c_scr[...] = c_new
        if out_seq_ref is not None:
            out_seq_ref[t] = h_new.astype(out_seq_ref.dtype)
        return carry

    if t_chunk <= 32:
        # Fully unrolled for short fixed chunks (LLO scheduler visibility).
        for t in range(t_chunk):
            step(t, 0)
    else:
        # Partial unroll: lets the scheduler overlap step t+1's g_scr load and
        # EUP gate chain with step t's MXU pop, without full-unroll blowup.
        lax.fori_loop(0, t_chunk, step, 0, unroll=8)


def _lstm_seq_kernel(x_ref, wih_ref, whh_ref, b_ref, out_ref,
                     h_scr, c_scr, g_scr, *, t_chunk, hp, seq_len, ragged):
    """Intermediate LSTM layer: emits the full hidden-state sequence (bf16)."""
    _lstm_recurrence(x_ref, wih_ref, whh_ref, b_ref, h_scr, c_scr, g_scr,
                     out_ref, t_chunk=t_chunk, hp=hp, seq_len=seq_len,
                     ragged=ragged)


def _lstm_last_fc_kernel(x_ref, wih_ref, whh_ref, b_ref, fcw_ref, fcb_ref,
                         out_ref, h_scr, c_scr, g_scr, *, t_chunk, hp,
                         seq_len, ragged):
    """Final LSTM layer: no sequence writeback; fused Linear on h_T."""
    _lstm_recurrence(x_ref, wih_ref, whh_ref, b_ref, h_scr, c_scr, g_scr,
                     None, t_chunk=t_chunk, hp=hp, seq_len=seq_len,
                     ragged=ragged)

    @pl.when(pl.program_id(1) == pl.num_programs(1) - 1)
    def _():
        out_ref[...] = (jnp.dot(h_scr[...].astype(jnp.bfloat16), fcw_ref[...],
                                preferred_element_type=jnp.float32)
                        + fcb_ref[...])


# ------------------------------ JAX wrappers --------------------------------

def _choose_time_chunk(seq_len, b_block, din_p, hp, budget):
    """Largest time-chunk whose working set fits the per-generation budget."""
    weight_bytes = (din_p + hp) * 4 * hp * 2       # bf16, single-buffered
    fixed = (weight_bytes
             + 2 * b_block * hp * 4                # h/c f32 scratch
             + 512 * 1024)                         # misc / compiler scratch
    per_step = b_block * (2 * din_p * 2            # x bf16, double-buffered
                          + 2 * hp * 2             # out bf16, double-buffered
                          + 4 * hp * 2)            # g_scr bf16 (single copy)
    avail = budget - fixed
    assert avail >= per_step, (
        "LSTM weight footprint exceeds the VMEM budget; K-tile the weights "
        "or reduce hidden size")
    tc = max(1, min(seq_len, avail // per_step))
    return int(min(tc, 256))       # no DMA-amortization benefit past this


def _lstm_layer_seq(x_tm, wih_t, whh_t, bias, *, b_block, t_chunk, seq_len,
                    vmem_limit):
    """x_tm: (T_pad, Bp, Din_p) bf16 -> (T_pad, Bp, Hp) bf16 hidden sequence."""
    t_pad, bp, din_p = x_tm.shape
    hp = whh_t.shape[0]
    grid = (bp // b_block, t_pad // t_chunk)
    ragged = (t_pad != seq_len)
    kernel = functools.partial(_lstm_seq_kernel, t_chunk=t_chunk, hp=hp,
                               seq_len=seq_len, ragged=ragged)
    return pl.pallas_call(
        kernel,
        out_shape=jax.ShapeDtypeStruct((t_pad, bp, hp), jnp.bfloat16),
        grid_spec=pltpu.PrefetchScalarGridSpec(
            num_scalar_prefetch=0,
            grid=grid,
            in_specs=[
                pl.BlockSpec((t_chunk, b_block, din_p),
                             lambda b, t: (t, b, 0)),
                _const_block_spec((din_p, 4 * hp), lambda b, t: (0, 0)),
                _const_block_spec((hp, 4 * hp), lambda b, t: (0, 0)),
                _const_block_spec((1, 4 * hp), lambda b, t: (0, 0)),
            ],
            out_specs=pl.BlockSpec((t_chunk, b_block, hp),
                                   lambda b, t: (t, b, 0)),
            scratch_shapes=[
                pltpu.VMEM((b_block, hp), jnp.float32),
                pltpu.VMEM((b_block, hp), jnp.float32),
                pltpu.VMEM((t_chunk, b_block, 4 * hp), jnp.bfloat16),
            ]),
        compiler_params=pltpu.CompilerParams(
            dimension_semantics=("parallel", "arbitrary"),
            vmem_limit_bytes=vmem_limit),
    )(x_tm, wih_t, whh_t, bias)


def _lstm_last_layer_fc(x_tm, wih_t, whh_t, bias, fcw_t, fcb, *, b_block,
                        t_chunk, seq_len, vmem_limit):
    """Final layer + fused FC. Returns (Bp, Op) f32 = fc(h_T)."""
    t_pad, bp, din_p = x_tm.shape
    hp = whh_t.shape[0]
    op = fcw_t.shape[1]
    grid = (bp // b_block, t_pad // t_chunk)
    ragged = (t_pad != seq_len)
    kernel = functools.partial(_lstm_last_fc_kernel, t_chunk=t_chunk, hp=hp,
                               seq_len=seq_len, ragged=ragged)
    return pl.pallas_call(
        kernel,
        out_shape=jax.ShapeDtypeStruct((bp, op), jnp.float32),
        grid_spec=pltpu.PrefetchScalarGridSpec(
            num_scalar_prefetch=0,
            grid=grid,
            in_specs=[
                pl.BlockSpec((t_chunk, b_block, din_p),
                             lambda b, t: (t, b, 0)),
                _const_block_spec((din_p, 4 * hp), lambda b, t: (0, 0)),
                _const_block_spec((hp, 4 * hp), lambda b, t: (0, 0)),
                _const_block_spec((1, 4 * hp), lambda b, t: (0, 0)),
                _const_block_spec((hp, op), lambda b, t: (0, 0)),
                _const_block_spec((1, op), lambda b, t: (0, 0)),
            ],
            out_specs=pl.BlockSpec((b_block, op), lambda b, t: (b, 0)),
            scratch_shapes=[
                pltpu.VMEM((b_block, hp), jnp.float32),
                pltpu.VMEM((b_block, hp), jnp.float32),
                pltpu.VMEM((t_chunk, b_block, 4 * hp), jnp.bfloat16),
            ]),
        compiler_params=pltpu.CompilerParams(
            dimension_semantics=("parallel", "arbitrary"),
            vmem_limit_bytes=vmem_limit),
    )(x_tm, wih_t, whh_t, bias, fcw_t, fcb)


def _pad_gate_mats(w_ih, w_hh, b_ih, b_hh, din_p, hp):
    """Pre-transpose + gate-block pad (H -> Hp per gate) + bf16 cast."""
    H = w_hh.shape[1]
    d_in = w_ih.shape[1]
    b = (b_ih + b_hh).reshape(1, 4 * H)
    wih_t = jnp.zeros((din_p, 4 * hp), jnp.float32)
    whh_t = jnp.zeros((hp, 4 * hp), jnp.float32)
    bias = jnp.zeros((1, 4 * hp), jnp.float32)
    for k in range(4):
        wih_t = wih_t.at[:d_in, k * hp:k * hp + H].set(
            w_ih[k * H:(k + 1) * H, :].T)
        whh_t = whh_t.at[:H, k * hp:k * hp + H].set(
            w_hh[k * H:(k + 1) * H, :].T)
        bias = bias.at[:, k * hp:k * hp + H].set(b[:, k * H:(k + 1) * H])
    return wih_t.astype(jnp.bfloat16), whh_t.astype(jnp.bfloat16), bias


@jax.jit
def lstm_model_forward(x, params):
    """Forward pass matching LSTMModel.forward.

    x: (B, T, input_size) batch-first. Returns (B, output_size) float32.
    """
    B, T, input_size = x.shape
    H = params["lstm"][0]["w_hh"].shape[1]
    O = params["fc_w"].shape[0]
    num_layers = len(params["lstm"])

    hp = _round_up(H, 128)
    op = _round_up(O, 128)
    din0_p = _round_up(input_size, 128)

    budget, vmem_limit = _vmem_limits()

    # ---- batch block: lane-dense, vreg-pressure capped, megacore-friendly ---
    b_block = 128 if B > 128 else _round_up(B, 16)
    if hp >= 128:
        b_block = min(b_block, 64)     # keep the f32 gates live-set in vregs
    bp = _round_up(B, b_block)
    if bp // b_block == 1 and B >= 32:
        # v7x has 2 TensorCores: guarantee >= 2 blocks on the "parallel" batch
        # axis so the second core isn't idle (a no-op on v5e/v6e).
        b_block = max(16, _round_up(bp // 2, 16))
        bp = _round_up(B, b_block)

    # ---- time chunk: as large as the per-generation VMEM budget allows ------
    tc = _choose_time_chunk(T, b_block, max(din0_p, hp), hp, budget)
    grid_t = _cdiv(T, tc)
    t_pad = grid_t * tc                 # ragged tail is masked in-kernel

    # Layout plumbing (once, outside the kernels): time-major, pad batch /
    # feature / time dims to block-dense shapes, cast MXU operands to bf16.
    seq = jnp.transpose(x, (1, 0, 2)).astype(jnp.float32)        # (T, B, Din)
    seq = jnp.pad(seq, ((0, t_pad - T), (0, bp - B),
                        (0, din0_p - input_size)))
    seq = seq.astype(jnp.bfloat16)

    layer_w = []
    for i, lyr in enumerate(params["lstm"]):
        din_p = din0_p if i == 0 else hp
        layer_w.append(_pad_gate_mats(lyr["w_ih"], lyr["w_hh"],
                                      lyr["b_ih"], lyr["b_hh"], din_p, hp))
    fcw_t = jnp.zeros((hp, op), jnp.float32).at[:H, :O].set(params["fc_w"].T)
    fcw_t = fcw_t.astype(jnp.bfloat16)
    fcb = jnp.zeros((1, op), jnp.float32).at[:, :O].set(
        params["fc_b"].reshape(1, O))

    # TODO(synk): on v5e, fuse adjacent layers into one (layer, time) wavefront
    # kernel to avoid the (T,Bp,Hp) HBM round-trip at each layer boundary.
    for i in range(num_layers - 1):
        wih_t, whh_t, bias = layer_w[i]
        seq = _lstm_layer_seq(seq, wih_t, whh_t, bias, b_block=b_block,
                              t_chunk=tc, seq_len=T, vmem_limit=vmem_limit)

    wih_t, whh_t, bias = layer_w[-1]
    out = _lstm_last_layer_fc(seq, wih_t, whh_t, bias, fcw_t, fcb,
                              b_block=b_block, t_chunk=tc, seq_len=T,
                              vmem_limit=vmem_limit)
    return out[:B, :O]


# ------------------------------ init + reference ----------------------------

def init_params(key, input_size, hidden_size, num_layers, output_size):
    """Deterministic init mimicking PyTorch's U(-1/sqrt(H), 1/sqrt(H))."""
    params = {"lstm": []}
    bound = 1.0 / float(hidden_size) ** 0.5
    for layer in range(num_layers):
        d_in = input_size if layer == 0 else hidden_size
        key, k1, k2, k3, k4 = jax.random.split(key, 5)
        params["lstm"].append({
            "w_ih": jax.random.uniform(k1, (4 * hidden_size, d_in),
                                       jnp.float32, -bound, bound),
            "w_hh": jax.random.uniform(k2, (4 * hidden_size, hidden_size),
                                       jnp.float32, -bound, bound),
            "b_ih": jax.random.uniform(k3, (4 * hidden_size,),
                                       jnp.float32, -bound, bound),
            "b_hh": jax.random.uniform(k4, (4 * hidden_size,),
                                       jnp.float32, -bound, bound),
        })
    key, kw, kb = jax.random.split(key, 3)
    params["fc_w"] = jax.random.uniform(kw, (output_size, hidden_size),
                                        jnp.float32, -bound, bound)
    params["fc_b"] = jax.random.uniform(kb, (output_size,),
                                        jnp.float32, -bound, bound)
    return params


def _reference_forward(x, params):
    """Pure-JAX f32 reference (same math as PyTorch LSTM + Linear)."""
    seq = jnp.transpose(x, (1, 0, 2)).astype(jnp.float32)
    T, B, _ = seq.shape
    for lyr in params["lstm"]:
        H = lyr["w_hh"].shape[1]
        b = (lyr["b_ih"] + lyr["b_hh"]).reshape(1, 4 * H)
        h = jnp.zeros((B, H), jnp.float32)
        c = jnp.zeros((B, H), jnp.float32)
        outs = []
        for t in range(T):
            gates = seq[t] @ lyr["w_ih"].T + h @ lyr["w_hh"].T + b
            i_g = jax.nn.sigmoid(gates[:, 0 * H:1 * H])
            f_g = jax.nn.sigmoid(gates[:, 1 * H:2 * H])
            g_g = jnp.tanh(gates[:, 2 * H:3 * H])
            o_g = jax.nn.sigmoid(gates[:, 3 * H:4 * H])
            c = f_g * c + i_g * g_g
            h = o_g * jnp.tanh(c)
            outs.append(h)
        seq = jnp.stack(outs, axis=0)
    return seq[-1] @ params["fc_w"].T + params["fc_b"].reshape(1, -1)


if __name__ == "__main__":
    batch, seq_len = 2, 8
    input_size, hidden_size, num_layers, output_size = 16, 32, 2, 4

    root = jax.random.PRNGKey(0)
    k_x, k_p = jax.random.split(root)
    x = jax.random.normal(k_x, (batch, seq_len, input_size), jnp.float32)
    params = init_params(k_p, input_size, hidden_size, num_layers, output_size)

    out = lstm_model_forward(x, params)
    out = jax.block_until_ready(out)

    ref = _reference_forward(x, params)
    assert out.shape == (batch, output_size)
    # bf16 MXU operands / bf16 projection scratch -> looser tolerance than f32.
    assert jnp.allclose(out, ref, atol=3e-2, rtol=3e-2), "mismatch vs reference"

    print("KERNEL_OK")
</pallas_src>

<mosaic_0001>
module attributes {stable_mosaic.version = 11 : i64} {
  func.func @_lstm_seq_kernel(%arg0: i32, %arg1: i32, %arg2: memref<8x16x128xbf16, #tpu.memory_space<vmem>>, %arg3: memref<128x512xbf16, #tpu.memory_space<vmem>>, %arg4: memref<128x512xbf16, #tpu.memory_space<vmem>>, %arg5: memref<1x512xf32, #tpu.memory_space<vmem>>, %arg6: memref<8x16x128xbf16, #tpu.memory_space<vmem>>, %arg7: memref<16x128xf32, #tpu.memory_space<vmem>>, %arg8: memref<16x128xf32, #tpu.memory_space<vmem>>, %arg9: memref<8x16x512xbf16, #tpu.memory_space<vmem>>) attributes {dimension_semantics = [#tpu.dimension_semantics<parallel>, #tpu.dimension_semantics<arbitrary>], iteration_bounds = array<i64: 1, 1>, scalar_prefetch = 0 : i64, scratch_operands = 3 : i64, tpu.core_type = #tpu.core_type<tc>, window_params = [{transform_indices = @transform_0, window_bounds = array<i64: 8, 16, 128>}, {pipeline_mode = #tpu.pipeline_mode<synchronous>, transform_indices = @transform_1, window_bounds = array<i64: 128, 512>}, {pipeline_mode = #tpu.pipeline_mode<synchronous>, transform_indices = @transform_2, window_bounds = array<i64: 128, 512>}, {pipeline_mode = #tpu.pipeline_mode<synchronous>, transform_indices = @transform_3, window_bounds = array<i64: 1, 512>}, {transform_indices = @transform_4, window_bounds = array<i64: 8, 16, 128>}]} {
    %c0_i32 = arith.constant 0 : i32
    %0 = arith.cmpi eq, %arg1, %c0_i32 : i32
    %1 = arith.extui %0 : i1 to i32
    %c0_i32_0 = arith.constant 0 : i32
    %2 = arith.cmpi ne, %1, %c0_i32_0 : i32
    scf.if %2 {
      %cst_163 = arith.constant 0.000000e+00 : f32
      %333 = vector.broadcast %cst_163 : f32 to vector<16x128xf32>
      %c0_164 = arith.constant 0 : index
      %c0_165 = arith.constant 0 : index
      %334 = vector.load %arg7[%c0_164, %c0_165] : memref<16x128xf32, #tpu.memory_space<vmem>>, vector<16x128xf32>
      tpu.vector_store %arg7[%c0_164, %c0_165], %333 {strides = array<i32>} : memref<16x128xf32, #tpu.memory_space<vmem>>, vector<16x128xf32>,
      %cst_166 = arith.constant 0.000000e+00 : f32
      %335 = vector.broadcast %cst_166 : f32 to vector<16x128xf32>
      %c0_167 = arith.constant 0 : index
      %c0_168 = arith.constant 0 : index
      %336 = vector.load %arg8[%c0_167, %c0_168] : memref<16x128xf32, #tpu.memory_space<vmem>>, vector<16x128xf32>
      tpu.vector_store %arg8[%c0_167, %c0_168], %335 {strides = array<i32>} : memref<16x128xf32, #tpu.memory_space<vmem>>, vector<16x128xf32>,
    } else {
    }
    %c0 = arith.constant 0 : index
    %c0_1 = arith.constant 0 : index
    %c0_2 = arith.constant 0 : index
    %3 = vector.load %arg2[%c0, %c0_1, %c0_2] : memref<8x16x128xbf16, #tpu.memory_space<vmem>>, vector<8x16x128xbf16>
    %4 = vector.shape_cast %3 : vector<8x16x128xbf16> to vector<128x128xbf16>
    %c0_3 = arith.constant 0 : index
    %c0_4 = arith.constant 0 : index
    %5 = vector.load %arg3[%c0_3, %c0_4] : memref<128x512xbf16, #tpu.memory_space<vmem>>, vector<128x512xbf16>
    %cst = arith.constant dense<0.000000e+00> : vector<128x512xf32>
    %6 = tpu.matmul %4, %5, %cst {dimension_numbers = #tpu.dot_dimension_numbers<[1], [0], [0], [1], [0, 0, 1, 1], [], []>} : vector<128x128xbf16>, vector<128x512xbf16>, vector<128x512xf32> -> vector<128x512xf32>
    %c0_5 = arith.constant 0 : index
    %c0_6 = arith.constant 0 : index
    %7 = vector.load %arg5[%c0_5, %c0_6] : memref<1x512xf32, #tpu.memory_space<vmem>>, vector<1x512xf32>
    %8 = vector.broadcast %7 : vector<1x512xf32> to vector<128x512xf32>
    %9 = arith.addf %6, %8 : vector<128x512xf32>
    %10 = arith.truncf %9 : vector<128x512xf32> to vector<128x512xbf16>
    %11 = vector.shape_cast %10 : vector<128x512xbf16> to vector<8x16x512xbf16>
    %c0_7 = arith.constant 0 : index
    %c0_8 = arith.constant 0 : index
    %c0_9 = arith.constant 0 : index
    %12 = vector.load %arg9[%c0_7, %c0_8, %c0_9] : memref<8x16x512xbf16, #tpu.memory_space<vmem>>, vector<8x16x512xbf16>
    tpu.vector_store %arg9[%c0_7, %c0_8, %c0_9], %11 {strides = array<i32>} : memref<8x16x512xbf16, #tpu.memory_space<vmem>>, vector<8x16x512xbf16>,
    %c0_10 = arith.constant 0 : index
    %c0_11 = arith.constant 0 : index
    %13 = vector.load %arg7[%c0_10, %c0_11] : memref<16x128xf32, #tpu.memory_space<vmem>>, vector<16x128xf32>
    %c0_12 = arith.constant 0 : index
    %c0_13 = arith.constant 0 : index
    %14 = vector.load %arg8[%c0_12, %c0_13] : memref<16x128xf32, #tpu.memory_space<vmem>>, vector<16x128xf32>
    %c0_14 = arith.constant 0 : index
    %c0_15 = arith.constant 0 : index
    %c0_16 = arith.constant 0 : index
    %15 = vector.load %arg9[%c0_14, %c0_15, %c0_16] : memref<8x16x512xbf16, #tpu.memory_space<vmem>>, vector<1x16x512xbf16>
    %16 = vector.shape_cast %15 : vector<1x16x512xbf16> to vector<16x512xbf16>
    %17 = arith.extf %16 : vector<16x512xbf16> to vector<16x512xf32>
    %18 = arith.truncf %13 : vector<16x128xf32> to vector<16x128xbf16>
    %c0_17 = arith.constant 0 : index
    %c0_18 = arith.constant 0 : index
    %19 = vector.load %arg4[%c0_17, %c0_18] : memref<128x512xbf16, #tpu.memory_space<vmem>>, vector<128x512xbf16>
    %cst_19 = arith.constant dense<0.000000e+00> : vector<16x512xf32>
    %20 = tpu.matmul %18, %19, %cst_19 {dimension_numbers = #tpu.dot_dimension_numbers<[1], [0], [0], [1], [0, 0, 1, 1], [], []>} : vector<16x128xbf16>, vector<128x512xbf16>, vector<16x512xf32> -> vector<16x512xf32>
    %21 = arith.addf %17, %20 : vector<16x512xf32>
    %22 = vector.extract_strided_slice %21 {offsets = [0, 0], sizes = [16, 128], strides = [1, 1]} : vector<16x512xf32> to vector<16x128xf32>
    %23 = arith.negf %22 : vector<16x128xf32>
    %24 = math.exp %23 : vector<16x128xf32>
    %cst_20 = arith.constant 1.000000e+00 : f32
    %25 = vector.broadcast %cst_20 : f32 to vector<16x128xf32>
    %26 = arith.addf %25, %24 : vector<16x128xf32>
    %27 = arith.divf %25, %26 : vector<16x128xf32>
    %28 = vector.extract_strided_slice %21 {offsets = [0, 128], sizes = [16, 128], strides = [1, 1]} : vector<16x512xf32> to vector<16x128xf32>
    %29 = arith.negf %28 : vector<16x128xf32>
    %30 = math.exp %29 : vector<16x128xf32>
    %cst_21 = arith.constant 1.000000e+00 : f32
    %31 = vector.broadcast %cst_21 : f32 to vector<16x128xf32>
    %32 = arith.addf %31, %30 : vector<16x128xf32>
    %33 = arith.divf %31, %32 : vector<16x128xf32>
    %34 = vector.extract_strided_slice %21 {offsets = [0, 256], sizes = [16, 128], strides = [1, 1]} : vector<16x512xf32> to vector<16x128xf32>
    %35 = math.tanh %34 : vector<16x128xf32>
    %36 = vector.extract_strided_slice %21 {offsets = [0, 384], sizes = [16, 128], strides = [1, 1]} : vector<16x512xf32> to vector<16x128xf32>
    %37 = arith.negf %36 : vector<16x128xf32>
    %38 = math.exp %37 : vector<16x128xf32>
    %cst_22 = arith.constant 1.000000e+00 : f32
    %39 = vector.broadcast %cst_22 : f32 to vector<16x128xf32>
    %40 = arith.addf %39, %38 : vector<16x128xf32>
    %41 = arith.divf %39, %40 : vector<16x128xf32>
    %42 = arith.mulf %33, %14 : vector<16x128xf32>
    %43 = arith.mulf %27, %35 : vector<16x128xf32>
    %44 = arith.addf %42, %43 : vector<16x128xf32>
    %45 = math.tanh %44 : vector<16x128xf32>
    %46 = arith.mulf %41, %45 : vector<16x128xf32>
    %c0_23 = arith.constant 0 : index
    %c0_24 = arith.constant 0 : index
    %47 = vector.load %arg7[%c0_23, %c0_24] : memref<16x128xf32, #tpu.memory_space<vmem>>, vector<16x128xf32>
    tpu.vector_store %arg7[%c0_23, %c0_24], %46 {strides = array<i32>} : memref<16x128xf32, #tpu.memory_space<vmem>>, vector<16x128xf32>,
    %c0_25 = arith.constant 0 : index
    %c0_26 = arith.constant 0 : index
    %48 = vector.load %arg8[%c0_25, %c0_26] : memref<16x128xf32, #tpu.memory_space<vmem>>, vector<16x128xf32>
    tpu.vector_store %arg8[%c0_25, %c0_26], %44 {strides = array<i32>} : memref<16x128xf32, #tpu.memory_space<vmem>>, vector<16x128xf32>,
    %49 = arith.truncf %46 : vector<16x128xf32> to vector<16x128xbf16>
    %c0_27 = arith.constant 0 : index
    %c0_28 = arith.constant 0 : index
    %c0_29 = arith.constant 0 : index
    %50 = vector.load %arg6[%c0_27, %c0_28, %c0_29] : memref<8x16x128xbf16, #tpu.memory_space<vmem>>, vector<1x16x128xbf16>
    %51 = vector.shape_cast %50 : vector<1x16x128xbf16> to vector<16x128xbf16>
    %52 = vector.shape_cast %49 : vector<16x128xbf16> to vector<1x16x128xbf16>
    tpu.vector_store %arg6[%c0_27, %c0_28, %c0_29], %52 {strides = array<i32>} : memref<8x16x128xbf16, #tpu.memory_space<vmem>>, vector<1x16x128xbf16>,
    %c0_30 = arith.constant 0 : index
    %c0_31 = arith.constant 0 : index
    %53 = vector.load %arg7[%c0_30, %c0_31] : memref<16x128xf32, #tpu.memory_space<vmem>>, vector<16x128xf32>
    %c0_32 = arith.constant 0 : index
    %c0_33 = arith.constant 0 : index
    %54 = vector.load %arg8[%c0_32, %c0_33] : memref<16x128xf32, #tpu.memory_space<vmem>>, vector<16x128xf32>
    %c1 = arith.constant 1 : index
    %c0_34 = arith.constant 0 : index
    %c0_35 = arith.constant 0 : index
    %55 = vector.load %arg9[%c1, %c0_34, %c0_35] : memref<8x16x512xbf16, #tpu.memory_space<vmem>>, vector<1x16x512xbf16>
    %56 = vector.shape_cast %55 : vector<1x16x512xbf16> to vector<16x512xbf16>
    %57 = arith.extf %56 : vector<16x512xbf16> to vector<16x512xf32>
    %58 = arith.truncf %53 : vector<16x128xf32> to vector<16x128xbf16>
    %c0_36 = arith.constant 0 : index
    %c0_37 = arith.constant 0 : index
    %59 = vector.load %arg4[%c0_36, %c0_37] : memref<128x512xbf16, #tpu.memory_space<vmem>>, vector<128x512xbf16>
    %cst_38 = arith.constant dense<0.000000e+00> : vector<16x512xf32>
    %60 = tpu.matmul %58, %59, %cst_38 {dimension_numbers = #tpu.dot_dimension_numbers<[1], [0], [0], [1], [0, 0, 1, 1], [], []>} : vector<16x128xbf16>, vector<128x512xbf16>, vector<16x512xf32> -> vector<16x512xf32>
    %61 = arith.addf %57, %60 : vector<16x512xf32>
    %62 = vector.extract_strided_slice %61 {offsets = [0, 0], sizes = [16, 128], strides = [1, 1]} : vector<16x512xf32> to vector<16x128xf32>
    %63 = arith.negf %62 : vector<16x128xf32>
    %64 = math.exp %63 : vector<16x128xf32>
    %cst_39 = arith.constant 1.000000e+00 : f32
    %65 = vector.broadcast %cst_39 : f32 to vector<16x128xf32>
    %66 = arith.addf %65, %64 : vector<16x128xf32>
    %67 = arith.divf %65, %66 : vector<16x128xf32>
    %68 = vector.extract_strided_slice %61 {offsets = [0, 128], sizes = [16, 128], strides = [1, 1]} : vector<16x512xf32> to vector<16x128xf32>
    %69 = arith.negf %68 : vector<16x128xf32>
    %70 = math.exp %69 : vector<16x128xf32>
    %cst_40 = arith.constant 1.000000e+00 : f32
    %71 = vector.broadcast %cst_40 : f32 to vector<16x128xf32>
    %72 = arith.addf %71, %70 : vector<16x128xf32>
    %73 = arith.divf %71, %72 : vector<16x128xf32>
    %74 = vector.extract_strided_slice %61 {offsets = [0, 256], sizes = [16, 128], strides = [1, 1]} : vector<16x512xf32> to vector<16x128xf32>
    %75 = math.tanh %74 : vector<16x128xf32>
    %76 = vector.extract_strided_slice %61 {offsets = [0, 384], sizes = [16, 128], strides = [1, 1]} : vector<16x512xf32> to vector<16x128xf32>
    %77 = arith.negf %76 : vector<16x128xf32>
    %78 = math.exp %77 : vector<16x128xf32>
    %cst_41 = arith.constant 1.000000e+00 : f32
    %79 = vector.broadcast %cst_41 : f32 to vector<16x128xf32>
    %80 = arith.addf %79, %78 : vector<16x128xf32>
    %81 = arith.divf %79, %80 : vector<16x128xf32>
    %82 = arith.mulf %73, %54 : vector<16x128xf32>
    %83 = arith.mulf %67, %75 : vector<16x128xf32>
    %84 = arith.addf %82, %83 : vector<16x128xf32>
    %85 = math.tanh %84 : vector<16x128xf32>
    %86 = arith.mulf %81, %85 : vector<16x128xf32>
    %c0_42 = arith.constant 0 : index
    %c0_43 = arith.constant 0 : index
    %87 = vector.load %arg7[%c0_42, %c0_43] : memref<16x128xf32, #tpu.memory_space<vmem>>, vector<16x128xf32>
    tpu.vector_store %arg7[%c0_42, %c0_43], %86 {strides = array<i32>} : memref<16x128xf32, #tpu.memory_space<vmem>>, vector<16x128xf32>,
    %c0_44 = arith.constant 0 : index
    %c0_45 = arith.constant 0 : index
    %88 = vector.load %arg8[%c0_44, %c0_45] : memref<16x128xf32, #tpu.memory_space<vmem>>, vector<16x128xf32>
    tpu.vector_store %arg8[%c0_44, %c0_45], %84 {strides = array<i32>} : memref<16x128xf32, #tpu.memory_space<vmem>>, vector<16x128xf32>,
    %89 = arith.truncf %86 : vector<16x128xf32> to vector<16x128xbf16>
    %c1_46 = arith.constant 1 : index
    %c0_47 = arith.constant 0 : index
    %c0_48 = arith.constant 0 : index
    %90 = vector.load %arg6[%c1_46, %c0_47, %c0_48] : memref<8x16x128xbf16, #tpu.memory_space<vmem>>, vector<1x16x128xbf16>
    %91 = vector.shape_cast %90 : vector<1x16x128xbf16> to vector<16x128xbf16>
    %92 = vector.shape_cast %89 : vector<16x128xbf16> to vector<1x16x128xbf16>
    tpu.vector_store %arg6[%c1_46, %c0_47, %c0_48], %92 {strides = array<i32>} : memref<8x16x128xbf16, #tpu.memory_space<vmem>>, vector<1x16x128xbf16>,
    %c0_49 = arith.constant 0 : index
    %c0_50 = arith.constant 0 : index
    %93 = vector.load %arg7[%c0_49, %c0_50] : memref<16x128xf32, #tpu.memory_space<vmem>>, vector<16x128xf32>
    %c0_51 = arith.constant 0 : index
    %c0_52 = arith.constant 0 : index
    %94 = vector.load %arg8[%c0_51, %c0_52] : memref<16x128xf32, #tpu.memory_space<vmem>>, vector<16x128xf32>
    %c2 = arith.constant 2 : index
    %c0_53 = arith.constant 0 : index
    %c0_54 = arith.constant 0 : index
    %95 = vector.load %arg9[%c2, %c0_53, %c0_54] : memref<8x16x512xbf16, #tpu.memory_space<vmem>>, vector<1x16x512xbf16>
    %96 = vector.shape_cast %95 : vector<1x16x512xbf16> to vector<16x512xbf16>
    %97 = arith.extf %96 : vector<16x512xbf16> to vector<16x512xf32>
    %98 = arith.truncf %93 : vector<16x128xf32> to vector<16x128xbf16>
    %c0_55 = arith.constant 0 : index
    %c0_56 = arith.constant 0 : index
    %99 = vector.load %arg4[%c0_55, %c0_56] : memref<128x512xbf16, #tpu.memory_space<vmem>>, vector<128x512xbf16>
    %cst_57 = arith.constant dense<0.000000e+00> : vector<16x512xf32>
    %100 = tpu.matmul %98, %99, %cst_57 {dimension_numbers = #tpu.dot_dimension_numbers<[1], [0], [0], [1], [0, 0, 1, 1], [], []>} : vector<16x128xbf16>, vector<128x512xbf16>, vector<16x512xf32> -> vector<16x512xf32>
    %101 = arith.addf %97, %100 : vector<16x512xf32>
    %102 = vector.extract_strided_slice %101 {offsets = [0, 0], sizes = [16, 128], strides = [1, 1]} : vector<16x512xf32> to vector<16x128xf32>
    %103 = arith.negf %102 : vector<16x128xf32>
    %104 = math.exp %103 : vector<16x128xf32>
    %cst_58 = arith.constant 1.000000e+00 : f32
    %105 = vector.broadcast %cst_58 : f32 to vector<16x128xf32>
    %106 = arith.addf %105, %104 : vector<16x128xf32>
    %107 = arith.divf %105, %106 : vector<16x128xf32>
    %108 = vector.extract_strided_slice %101 {offsets = [0, 128], sizes = [16, 128], strides = [1, 1]} : vector<16x512xf32> to vector<16x128xf32>
    %109 = arith.negf %108 : vector<16x128xf32>
    %110 = math.exp %109 : vector<16x128xf32>
    %cst_59 = arith.constant 1.000000e+00 : f32
    %111 = vector.broadcast %cst_59 : f32 to vector<16x128xf32>
    %112 = arith.addf %111, %110 : vector<16x128xf32>
    %113 = arith.divf %111, %112 : vector<16x128xf32>
    %114 = vector.extract_strided_slice %101 {offsets = [0, 256], sizes = [16, 128], strides = [1, 1]} : vector<16x512xf32> to vector<16x128xf32>
    %115 = math.tanh %114 : vector<16x128xf32>
    %116 = vector.extract_strided_slice %101 {offsets = [0, 384], sizes = [16, 128], strides = [1, 1]} : vector<16x512xf32> to vector<16x128xf32>
    %117 = arith.negf %116 : vector<16x128xf32>
    %118 = math.exp %117 : vector<16x128xf32>
    %cst_60 = arith.constant 1.000000e+00 : f32
    %119 = vector.broadcast %cst_60 : f32 to vector<16x128xf32>
    %120 = arith.addf %119, %118 : vector<16x128xf32>
    %121 = arith.divf %119, %120 : vector<16x128xf32>
    %122 = arith.mulf %113, %94 : vector<16x128xf32>
    %123 = arith.mulf %107, %115 : vector<16x128xf32>
    %124 = arith.addf %122, %123 : vector<16x128xf32>
    %125 = math.tanh %124 : vector<16x128xf32>
    %126 = arith.mulf %121, %125 : vector<16x128xf32>
    %c0_61 = arith.constant 0 : index
    %c0_62 = arith.constant 0 : index
    %127 = vector.load %arg7[%c0_61, %c0_62] : memref<16x128xf32, #tpu.memory_space<vmem>>, vector<16x128xf32>
    tpu.vector_store %arg7[%c0_61, %c0_62], %126 {strides = array<i32>} : memref<16x128xf32, #tpu.memory_space<vmem>>, vector<16x128xf32>,
    %c0_63 = arith.constant 0 : index
    %c0_64 = arith.constant 0 : index
    %128 = vector.load %arg8[%c0_63, %c0_64] : memref<16x128xf32, #tpu.memory_space<vmem>>, vector<16x128xf32>
    tpu.vector_store %arg8[%c0_63, %c0_64], %124 {strides = array<i32>} : memref<16x128xf32, #tpu.memory_space<vmem>>, vector<16x128xf32>,
    %129 = arith.truncf %126 : vector<16x128xf32> to vector<16x128xbf16>
    %c2_65 = arith.constant 2 : index
    %c0_66 = arith.constant 0 : index
    %c0_67 = arith.constant 0 : index
    %130 = vector.load %arg6[%c2_65, %c0_66, %c0_67] : memref<8x16x128xbf16, #tpu.memory_space<vmem>>, vector<1x16x128xbf16>
    %131 = vector.shape_cast %130 : vector<1x16x128xbf16> to vector<16x128xbf16>
    %132 = vector.shape_cast %129 : vector<16x128xbf16> to vector<1x16x128xbf16>
    tpu.vector_store %arg6[%c2_65, %c0_66, %c0_67], %132 {strides = array<i32>} : memref<8x16x128xbf16, #tpu.memory_space<vmem>>, vector<1x16x128xbf16>,
    %c0_68 = arith.constant 0 : index
    %c0_69 = arith.constant 0 : index
    %133 = vector.load %arg7[%c0_68, %c0_69] : memref<16x128xf32, #tpu.memory_space<vmem>>, vector<16x128xf32>
    %c0_70 = arith.constant 0 : index
    %c0_71 = arith.constant 0 : index
    %134 = vector.load %arg8[%c0_70, %c0_71] : memref<16x128xf32, #tpu.memory_space<vmem>>, vector<16x128xf32>
    %c3 = arith.constant 3 : index
    %c0_72 = arith.constant 0 : index
    %c0_73 = arith.constant 0 : index
    %135 = vector.load %arg9[%c3, %c0_72, %c0_73] : memref<8x16x512xbf16, #tpu.memory_space<vmem>>, vector<1x16x512xbf16>
    %136 = vector.shape_cast %135 : vector<1x16x512xbf16> to vector<16x512xbf16>
    %137 = arith.extf %136 : vector<16x512xbf16> to vector<16x512xf32>
    %138 = arith.truncf %133 : vector<16x128xf32> to vector<16x128xbf16>
    %c0_74 = arith.constant 0 : index
    %c0_75 = arith.constant 0 : index
    %139 = vector.load %arg4[%c0_74, %c0_75] : memref<128x512xbf16, #tpu.memory_space<vmem>>, vector<128x512xbf16>
    %cst_76 = arith.constant dense<0.000000e+00> : vector<16x512xf32>
    %140 = tpu.matmul %138, %139, %cst_76 {dimension_numbers = #tpu.dot_dimension_numbers<[1], [0], [0], [1], [0, 0, 1, 1], [], []>} : vector<16x128xbf16>, vector<128x512xbf16>, vector<16x512xf32> -> vector<16x512xf32>
    %141 = arith.addf %137, %140 : vector<16x512xf32>
    %142 = vector.extract_strided_slice %141 {offsets = [0, 0], sizes = [16, 128], strides = [1, 1]} : vector<16x512xf32> to vector<16x128xf32>
    %143 = arith.negf %142 : vector<16x128xf32>
    %144 = math.exp %143 : vector<16x128xf32>
    %cst_77 = arith.constant 1.000000e+00 : f32
    %145 = vector.broadcast %cst_77 : f32 to vector<16x128xf32>
    %146 = arith.addf %145, %144 : vector<16x128xf32>
    %147 = arith.divf %145, %146 : vector<16x128xf32>
    %148 = vector.extract_strided_slice %141 {offsets = [0, 128], sizes = [16, 128], strides = [1, 1]} : vector<16x512xf32> to vector<16x128xf32>
    %149 = arith.negf %148 : vector<16x128xf32>
    %150 = math.exp %149 : vector<16x128xf32>
    %cst_78 = arith.constant 1.000000e+00 : f32
    %151 = vector.broadcast %cst_78 : f32 to vector<16x128xf32>
    %152 = arith.addf %151, %150 : vector<16x128xf32>
    %153 = arith.divf %151, %152 : vector<16x128xf32>
    %154 = vector.extract_strided_slice %141 {offsets = [0, 256], sizes = [16, 128], strides = [1, 1]} : vector<16x512xf32> to vector<16x128xf32>
    %155 = math.tanh %154 : vector<16x128xf32>
    %156 = vector.extract_strided_slice %141 {offsets = [0, 384], sizes = [16, 128], strides = [1, 1]} : vector<16x512xf32> to vector<16x128xf32>
    %157 = arith.negf %156 : vector<16x128xf32>
    %158 = math.exp %157 : vector<16x128xf32>
    %cst_79 = arith.constant 1.000000e+00 : f32
    %159 = vector.broadcast %cst_79 : f32 to vector<16x128xf32>
    %160 = arith.addf %159, %158 : vector<16x128xf32>
    %161 = arith.divf %159, %160 : vector<16x128xf32>
    %162 = arith.mulf %153, %134 : vector<16x128xf32>
    %163 = arith.mulf %147, %155 : vector<16x128xf32>
    %164 = arith.addf %162, %163 : vector<16x128xf32>
    %165 = math.tanh %164 : vector<16x128xf32>
    %166 = arith.mulf %161, %165 : vector<16x128xf32>
    %c0_80 = arith.constant 0 : index
    %c0_81 = arith.constant 0 : index
    %167 = vector.load %arg7[%c0_80, %c0_81] : memref<16x128xf32, #tpu.memory_space<vmem>>, vector<16x128xf32>
    tpu.vector_store %arg7[%c0_80, %c0_81], %166 {strides = array<i32>} : memref<16x128xf32, #tpu.memory_space<vmem>>, vector<16x128xf32>,
    %c0_82 = arith.constant 0 : index
    %c0_83 = arith.constant 0 : index
    %168 = vector.load %arg8[%c0_82, %c0_83] : memref<16x128xf32, #tpu.memory_space<vmem>>, vector<16x128xf32>
    tpu.vector_store %arg8[%c0_82, %c0_83], %164 {strides = array<i32>} : memref<16x128xf32, #tpu.memory_space<vmem>>, vector<16x128xf32>,
    %169 = arith.truncf %166 : vector<16x128xf32> to vector<16x128xbf16>
    %c3_84 = arith.constant 3 : index
    %c0_85 = arith.constant 0 : index
    %c0_86 = arith.constant 0 : index
    %170 = vector.load %arg6[%c3_84, %c0_85, %c0_86] : memref<8x16x128xbf16, #tpu.memory_space<vmem>>, vector<1x16x128xbf16>
    %171 = vector.shape_cast %170 : vector<1x16x128xbf16> to vector<16x128xbf16>
    %172 = vector.shape_cast %169 : vector<16x128xbf16> to vector<1x16x128xbf16>
    tpu.vector_store %arg6[%c3_84, %c0_85, %c0_86], %172 {strides = array<i32>} : memref<8x16x128xbf16, #tpu.memory_space<vmem>>, vector<1x16x128xbf16>,
    %c0_87 = arith.constant 0 : index
    %c0_88 = arith.constant 0 : index
    %173 = vector.load %arg7[%c0_87, %c0_88] : memref<16x128xf32, #tpu.memory_space<vmem>>, vector<16x128xf32>
    %c0_89 = arith.constant 0 : index
    %c0_90 = arith.constant 0 : index
    %174 = vector.load %arg8[%c0_89, %c0_90] : memref<16x128xf32, #tpu.memory_space<vmem>>, vector<16x128xf32>
    %c4 = arith.constant 4 : index
    %c0_91 = arith.constant 0 : index
    %c0_92 = arith.constant 0 : index
    %175 = vector.load %arg9[%c4, %c0_91, %c0_92] : memref<8x16x512xbf16, #tpu.memory_space<vmem>>, vector<1x16x512xbf16>
    %176 = vector.shape_cast %175 : vector<1x16x512xbf16> to vector<16x512xbf16>
    %177 = arith.extf %176 : vector<16x512xbf16> to vector<16x512xf32>
    %178 = arith.truncf %173 : vector<16x128xf32> to vector<16x128xbf16>
    %c0_93 = arith.constant 0 : index
    %c0_94 = arith.constant 0 : index
    %179 = vector.load %arg4[%c0_93, %c0_94] : memref<128x512xbf16, #tpu.memory_space<vmem>>, vector<128x512xbf16>
    %cst_95 = arith.constant dense<0.000000e+00> : vector<16x512xf32>
    %180 = tpu.matmul %178, %179, %cst_95 {dimension_numbers = #tpu.dot_dimension_numbers<[1], [0], [0], [1], [0, 0, 1, 1], [], []>} : vector<16x128xbf16>, vector<128x512xbf16>, vector<16x512xf32> -> vector<16x512xf32>
    %181 = arith.addf %177, %180 : vector<16x512xf32>
    %182 = vector.extract_strided_slice %181 {offsets = [0, 0], sizes = [16, 128], strides = [1, 1]} : vector<16x512xf32> to vector<16x128xf32>
    %183 = arith.negf %182 : vector<16x128xf32>
    %184 = math.exp %183 : vector<16x128xf32>
    %cst_96 = arith.constant 1.000000e+00 : f32
    %185 = vector.broadcast %cst_96 : f32 to vector<16x128xf32>
    %186 = arith.addf %185, %184 : vector<16x128xf32>
    %187 = arith.divf %185, %186 : vector<16x128xf32>
    %188 = vector.extract_strided_slice %181 {offsets = [0, 128], sizes = [16, 128], strides = [1, 1]} : vector<16x512xf32> to vector<16x128xf32>
    %189 = arith.negf %188 : vector<16x128xf32>
    %190 = math.exp %189 : vector<16x128xf32>
    %cst_97 = arith.constant 1.000000e+00 : f32
    %191 = vector.broadcast %cst_97 : f32 to vector<16x128xf32>
    %192 = arith.addf %191, %190 : vector<16x128xf32>
    %193 = arith.divf %191, %192 : vector<16x128xf32>
    %194 = vector.extract_strided_slice %181 {offsets = [0, 256], sizes = [16, 128], strides = [1, 1]} : vector<16x512xf32> to vector<16x128xf32>
    %195 = math.tanh %194 : vector<16x128xf32>
    %196 = vector.extract_strided_slice %181 {offsets = [0, 384], sizes = [16, 128], strides = [1, 1]} : vector<16x512xf32> to vector<16x128xf32>
    %197 = arith.negf %196 : vector<16x128xf32>
    %198 = math.exp %197 : vector<16x128xf32>
    %cst_98 = arith.constant 1.000000e+00 : f32
    %199 = vector.broadcast %cst_98 : f32 to vector<16x128xf32>
    %200 = arith.addf %199, %198 : vector<16x128xf32>
    %201 = arith.divf %199, %200 : vector<16x128xf32>
    %202 = arith.mulf %193, %174 : vector<16x128xf32>
    %203 = arith.mulf %187, %195 : vector<16x128xf32>
    %204 = arith.addf %202, %203 : vector<16x128xf32>
    %205 = math.tanh %204 : vector<16x128xf32>
    %206 = arith.mulf %201, %205 : vector<16x128xf32>
    %c0_99 = arith.constant 0 : index
    %c0_100 = arith.constant 0 : index
    %207 = vector.load %arg7[%c0_99, %c0_100] : memref<16x128xf32, #tpu.memory_space<vmem>>, vector<16x128xf32>
    tpu.vector_store %arg7[%c0_99, %c0_100], %206 {strides = array<i32>} : memref<16x128xf32, #tpu.memory_space<vmem>>, vector<16x128xf32>,
    %c0_101 = arith.constant 0 : index
    %c0_102 = arith.constant 0 : index
    %208 = vector.load %arg8[%c0_101, %c0_102] : memref<16x128xf32, #tpu.memory_space<vmem>>, vector<16x128xf32>
    tpu.vector_store %arg8[%c0_101, %c0_102], %204 {strides = array<i32>} : memref<16x128xf32, #tpu.memory_space<vmem>>, vector<16x128xf32>,
    %209 = arith.truncf %206 : vector<16x128xf32> to vector<16x128xbf16>
    %c4_103 = arith.constant 4 : index
    %c0_104 = arith.constant 0 : index
    %c0_105 = arith.constant 0 : index
    %210 = vector.load %arg6[%c4_103, %c0_104, %c0_105] : memref<8x16x128xbf16, #tpu.memory_space<vmem>>, vector<1x16x128xbf16>
    %211 = vector.shape_cast %210 : vector<1x16x128xbf16> to vector<16x128xbf16>
    %212 = vector.shape_cast %209 : vector<16x128xbf16> to vector<1x16x128xbf16>
    tpu.vector_store %arg6[%c4_103, %c0_104, %c0_105], %212 {strides = array<i32>} : memref<8x16x128xbf16, #tpu.memory_space<vmem>>, vector<1x16x128xbf16>,
    %c0_106 = arith.constant 0 : index
    %c0_107 = arith.constant 0 : index
    %213 = vector.load %arg7[%c0_106, %c0_107] : memref<16x128xf32, #tpu.memory_space<vmem>>, vector<16x128xf32>
    %c0_108 = arith.constant 0 : index
    %c0_109 = arith.constant 0 : index
    %214 = vector.load %arg8[%c0_108, %c0_109] : memref<16x128xf32, #tpu.memory_space<vmem>>, vector<16x128xf32>
    %c5 = arith.constant 5 : index
    %c0_110 = arith.constant 0 : index
    %c0_111 = arith.constant 0 : index
    %215 = vector.load %arg9[%c5, %c0_110, %c0_111] : memref<8x16x512xbf16, #tpu.memory_space<vmem>>, vector<1x16x512xbf16>
    %216 = vector.shape_cast %215 : vector<1x16x512xbf16> to vector<16x512xbf16>
    %217 = arith.extf %216 : vector<16x512xbf16> to vector<16x512xf32>
    %218 = arith.truncf %213 : vector<16x128xf32> to vector<16x128xbf16>
    %c0_112 = arith.constant 0 : index
    %c0_113 = arith.constant 0 : index
    %219 = vector.load %arg4[%c0_112, %c0_113] : memref<128x512xbf16, #tpu.memory_space<vmem>>, vector<128x512xbf16>
    %cst_114 = arith.constant dense<0.000000e+00> : vector<16x512xf32>
    %220 = tpu.matmul %218, %219, %cst_114 {dimension_numbers = #tpu.dot_dimension_numbers<[1], [0], [0], [1], [0, 0, 1, 1], [], []>} : vector<16x128xbf16>, vector<128x512xbf16>, vector<16x512xf32> -> vector<16x512xf32>
    %221 = arith.addf %217, %220 : vector<16x512xf32>
    %222 = vector.extract_strided_slice %221 {offsets = [0, 0], sizes = [16, 128], strides = [1, 1]} : vector<16x512xf32> to vector<16x128xf32>
    %223 = arith.negf %222 : vector<16x128xf32>
    %224 = math.exp %223 : vector<16x128xf32>
    %cst_115 = arith.constant 1.000000e+00 : f32
    %225 = vector.broadcast %cst_115 : f32 to vector<16x128xf32>
    %226 = arith.addf %225, %224 : vector<16x128xf32>
    %227 = arith.divf %225, %226 : vector<16x128xf32>
    %228 = vector.extract_strided_slice %221 {offsets = [0, 128], sizes = [16, 128], strides = [1, 1]} : vector<16x512xf32> to vector<16x128xf32>
    %229 = arith.negf %228 : vector<16x128xf32>
    %230 = math.exp %229 : vector<16x128xf32>
    %cst_116 = arith.constant 1.000000e+00 : f32
    %231 = vector.broadcast %cst_116 : f32 to vector<16x128xf32>
    %232 = arith.addf %231, %230 : vector<16x128xf32>
    %233 = arith.divf %231, %232 : vector<16x128xf32>
    %234 = vector.extract_strided_slice %221 {offsets = [0, 256], sizes = [16, 128], strides = [1, 1]} : vector<16x512xf32> to vector<16x128xf32>
    %235 = math.tanh %234 : vector<16x128xf32>
    %236 = vector.extract_strided_slice %221 {offsets = [0, 384], sizes = [16, 128], strides = [1, 1]} : vector<16x512xf32> to vector<16x128xf32>
    %237 = arith.negf %236 : vector<16x128xf32>
    %238 = math.exp %237 : vector<16x128xf32>
    %cst_117 = arith.constant 1.000000e+00 : f32
    %239 = vector.broadcast %cst_117 : f32 to vector<16x128xf32>
    %240 = arith.addf %239, %238 : vector<16x128xf32>
    %241 = arith.divf %239, %240 : vector<16x128xf32>
    %242 = arith.mulf %233, %214 : vector<16x128xf32>
    %243 = arith.mulf %227, %235 : vector<16x128xf32>
    %244 = arith.addf %242, %243 : vector<16x128xf32>
    %245 = math.tanh %244 : vector<16x128xf32>
    %246 = arith.mulf %241, %245 : vector<16x128xf32>
    %c0_118 = arith.constant 0 : index
    %c0_119 = arith.constant 0 : index
    %247 = vector.load %arg7[%c0_118, %c0_119] : memref<16x128xf32, #tpu.memory_space<vmem>>, vector<16x128xf32>
    tpu.vector_store %arg7[%c0_118, %c0_119], %246 {strides = array<i32>} : memref<16x128xf32, #tpu.memory_space<vmem>>, vector<16x128xf32>,
    %c0_120 = arith.constant 0 : index
    %c0_121 = arith.constant 0 : index
    %248 = vector.load %arg8[%c0_120, %c0_121] : memref<16x128xf32, #tpu.memory_space<vmem>>, vector<16x128xf32>
    tpu.vector_store %arg8[%c0_120, %c0_121], %244 {strides = array<i32>} : memref<16x128xf32, #tpu.memory_space<vmem>>, vector<16x128xf32>,
    %249 = arith.truncf %246 : vector<16x128xf32> to vector<16x128xbf16>
    %c5_122 = arith.constant 5 : index
    %c0_123 = arith.constant 0 : index
    %c0_124 = arith.constant 0 : index
    %250 = vector.load %arg6[%c5_122, %c0_123, %c0_124] : memref<8x16x128xbf16, #tpu.memory_space<vmem>>, vector<1x16x128xbf16>
    %251 = vector.shape_cast %250 : vector<1x16x128xbf16> to vector<16x128xbf16>
    %252 = vector.shape_cast %249 : vector<16x128xbf16> to vector<1x16x128xbf16>
    tpu.vector_store %arg6[%c5_122, %c0_123, %c0_124], %252 {strides = array<i32>} : memref<8x16x128xbf16, #tpu.memory_space<vmem>>, vector<1x16x128xbf16>,
    %c0_125 = arith.constant 0 : index
    %c0_126 = arith.constant 0 : index
    %253 = vector.load %arg7[%c0_125, %c0_126] : memref<16x128xf32, #tpu.memory_space<vmem>>, vector<16x128xf32>
    %c0_127 = arith.constant 0 : index
    %c0_128 = arith.constant 0 : index
    %254 = vector.load %arg8[%c0_127, %c0_128] : memref<16x128xf32, #tpu.memory_space<vmem>>, vector<16x128xf32>
    %c6 = arith.constant 6 : index
    %c0_129 = arith.constant 0 : index
    %c0_130 = arith.constant 0 : index
    %255 = vector.load %arg9[%c6, %c0_129, %c0_130] : memref<8x16x512xbf16, #tpu.memory_space<vmem>>, vector<1x16x512xbf16>
    %256 = vector.shape_cast %255 : vector<1x16x512xbf16> to vector<16x512xbf16>
    %257 = arith.extf %256 : vector<16x512xbf16> to vector<16x512xf32>
    %258 = arith.truncf %253 : vector<16x128xf32> to vector<16x128xbf16>
    %c0_131 = arith.constant 0 : index
    %c0_132 = arith.constant 0 : index
    %259 = vector.load %arg4[%c0_131, %c0_132] : memref<128x512xbf16, #tpu.memory_space<vmem>>, vector<128x512xbf16>
    %cst_133 = arith.constant dense<0.000000e+00> : vector<16x512xf32>
    %260 = tpu.matmul %258, %259, %cst_133 {dimension_numbers = #tpu.dot_dimension_numbers<[1], [0], [0], [1], [0, 0, 1, 1], [], []>} : vector<16x128xbf16>, vector<128x512xbf16>, vector<16x512xf32> -> vector<16x512xf32>
    %261 = arith.addf %257, %260 : vector<16x512xf32>
    %262 = vector.extract_strided_slice %261 {offsets = [0, 0], sizes = [16, 128], strides = [1, 1]} : vector<16x512xf32> to vector<16x128xf32>
    %263 = arith.negf %262 : vector<16x128xf32>
    %264 = math.exp %263 : vector<16x128xf32>
    %cst_134 = arith.constant 1.000000e+00 : f32
    %265 = vector.broadcast %cst_134 : f32 to vector<16x128xf32>
    %266 = arith.addf %265, %264 : vector<16x128xf32>
    %267 = arith.divf %265, %266 : vector<16x128xf32>
    %268 = vector.extract_strided_slice %261 {offsets = [0, 128], sizes = [16, 128], strides = [1, 1]} : vector<16x512xf32> to vector<16x128xf32>
    %269 = arith.negf %268 : vector<16x128xf32>
    %270 = math.exp %269 : vector<16x128xf32>
    %cst_135 = arith.constant 1.000000e+00 : f32
    %271 = vector.broadcast %cst_135 : f32 to vector<16x128xf32>
    %272 = arith.addf %271, %270 : vector<16x128xf32>
    %273 = arith.divf %271, %272 : vector<16x128xf32>
    %274 = vector.extract_strided_slice %261 {offsets = [0, 256], sizes = [16, 128], strides = [1, 1]} : vector<16x512xf32> to vector<16x128xf32>
    %275 = math.tanh %274 : vector<16x128xf32>
    %276 = vector.extract_strided_slice %261 {offsets = [0, 384], sizes = [16, 128], strides = [1, 1]} : vector<16x512xf32> to vector<16x128xf32>
    %277 = arith.negf %276 : vector<16x128xf32>
    %278 = math.exp %277 : vector<16x128xf32>
    %cst_136 = arith.constant 1.000000e+00 : f32
    %279 = vector.broadcast %cst_136 : f32 to vector<16x128xf32>
    %280 = arith.addf %279, %278 : vector<16x128xf32>
    %281 = arith.divf %279, %280 : vector<16x128xf32>
    %282 = arith.mulf %273, %254 : vector<16x128xf32>
    %283 = arith.mulf %267, %275 : vector<16x128xf32>
    %284 = arith.addf %282, %283 : vector<16x128xf32>
    %285 = math.tanh %284 : vector<16x128xf32>
    %286 = arith.mulf %281, %285 : vector<16x128xf32>
    %c0_137 = arith.constant 0 : index
    %c0_138 = arith.constant 0 : index
    %287 = vector.load %arg7[%c0_137, %c0_138] : memref<16x128xf32, #tpu.memory_space<vmem>>, vector<16x128xf32>
    tpu.vector_store %arg7[%c0_137, %c0_138], %286 {strides = array<i32>} : memref<16x128xf32, #tpu.memory_space<vmem>>, vector<16x128xf32>,
    %c0_139 = arith.constant 0 : index
    %c0_140 = arith.constant 0 : index
    %288 = vector.load %arg8[%c0_139, %c0_140] : memref<16x128xf32, #tpu.memory_space<vmem>>, vector<16x128xf32>
    tpu.vector_store %arg8[%c0_139, %c0_140], %284 {strides = array<i32>} : memref<16x128xf32, #tpu.memory_space<vmem>>, vector<16x128xf32>,
    %289 = arith.truncf %286 : vector<16x128xf32> to vector<16x128xbf16>
    %c6_141 = arith.constant 6 : index
    %c0_142 = arith.constant 0 : index
    %c0_143 = arith.constant 0 : index
    %290 = vector.load %arg6[%c6_141, %c0_142, %c0_143] : memref<8x16x128xbf16, #tpu.memory_space<vmem>>, vector<1x16x128xbf16>
    %291 = vector.shape_cast %290 : vector<1x16x128xbf16> to vector<16x128xbf16>
    %292 = vector.shape_cast %289 : vector<16x128xbf16> to vector<1x16x128xbf16>
    tpu.vector_store %arg6[%c6_141, %c0_142, %c0_143], %292 {strides = array<i32>} : memref<8x16x128xbf16, #tpu.memory_space<vmem>>, vector<1x16x128xbf16>,
    %c0_144 = arith.constant 0 : index
    %c0_145 = arith.constant 0 : index
    %293 = vector.load %arg7[%c0_144, %c0_145] : memref<16x128xf32, #tpu.memory_space<vmem>>, vector<16x128xf32>
    %c0_146 = arith.constant 0 : index
    %c0_147 = arith.constant 0 : index
    %294 = vector.load %arg8[%c0_146, %c0_147] : memref<16x128xf32, #tpu.memory_space<vmem>>, vector<16x128xf32>
    %c7 = arith.constant 7 : index
    %c0_148 = arith.constant 0 : index
    %c0_149 = arith.constant 0 : index
    %295 = vector.load %arg9[%c7, %c0_148, %c0_149] : memref<8x16x512xbf16, #tpu.memory_space<vmem>>, vector<1x16x512xbf16>
    %296 = vector.shape_cast %295 : vector<1x16x512xbf16> to vector<16x512xbf16>
    %297 = arith.extf %296 : vector<16x512xbf16> to vector<16x512xf32>
    %298 = arith.truncf %293 : vector<16x128xf32> to vector<16x128xbf16>
    %c0_150 = arith.constant 0 : index
    %c0_151 = arith.constant 0 : index
    %299 = vector.load %arg4[%c0_150, %c0_151] : memref<128x512xbf16, #tpu.memory_space<vmem>>, vector<128x512xbf16>
    %cst_152 = arith.constant dense<0.000000e+00> : vector<16x512xf32>
    %300 = tpu.matmul %298, %299, %cst_152 {dimension_numbers = #tpu.dot_dimension_numbers<[1], [0], [0], [1], [0, 0, 1, 1], [], []>} : vector<16x128xbf16>, vector<128x512xbf16>, vector<16x512xf32> -> vector<16x512xf32>
    %301 = arith.addf %297, %300 : vector<16x512xf32>
    %302 = vector.extract_strided_slice %301 {offsets = [0, 0], sizes = [16, 128], strides = [1, 1]} : vector<16x512xf32> to vector<16x128xf32>
    %303 = arith.negf %302 : vector<16x128xf32>
    %304 = math.exp %303 : vector<16x128xf32>
    %cst_153 = arith.constant 1.000000e+00 : f32
    %305 = vector.broadcast %cst_153 : f32 to vector<16x128xf32>
    %306 = arith.addf %305, %304 : vector<16x128xf32>
    %307 = arith.divf %305, %306 : vector<16x128xf32>
    %308 = vector.extract_strided_slice %301 {offsets = [0, 128], sizes = [16, 128], strides = [1, 1]} : vector<16x512xf32> to vector<16x128xf32>
    %309 = arith.negf %308 : vector<16x128xf32>
    %310 = math.exp %309 : vector<16x128xf32>
    %cst_154 = arith.constant 1.000000e+00 : f32
    %311 = vector.broadcast %cst_154 : f32 to vector<16x128xf32>
    %312 = arith.addf %311, %310 : vector<16x128xf32>
    %313 = arith.divf %311, %312 : vector<16x128xf32>
    %314 = vector.extract_strided_slice %301 {offsets = [0, 256], sizes = [16, 128], strides = [1, 1]} : vector<16x512xf32> to vector<16x128xf32>
    %315 = math.tanh %314 : vector<16x128xf32>
    %316 = vector.extract_strided_slice %301 {offsets = [0, 384], sizes = [16, 128], strides = [1, 1]} : vector<16x512xf32> to vector<16x128xf32>
    %317 = arith.negf %316 : vector<16x128xf32>
    %318 = math.exp %317 : vector<16x128xf32>
    %cst_155 = arith.constant 1.000000e+00 : f32
    %319 = vector.broadcast %cst_155 : f32 to vector<16x128xf32>
    %320 = arith.addf %319, %318 : vector<16x128xf32>
    %321 = arith.divf %319, %320 : vector<16x128xf32>
    %322 = arith.mulf %313, %294 : vector<16x128xf32>
    %323 = arith.mulf %307, %315 : vector<16x128xf32>
    %324 = arith.addf %322, %323 : vector<16x128xf32>
    %325 = math.tanh %324 : vector<16x128xf32>
    %326 = arith.mulf %321, %325 : vector<16x128xf32>
    %c0_156 = arith.constant 0 : index
    %c0_157 = arith.constant 0 : index
    %327 = vector.load %arg7[%c0_156, %c0_157] : memref<16x128xf32, #tpu.memory_space<vmem>>, vector<16x128xf32>
    tpu.vector_store %arg7[%c0_156, %c0_157], %326 {strides = array<i32>} : memref<16x128xf32, #tpu.memory_space<vmem>>, vector<16x128xf32>,
    %c0_158 = arith.constant 0 : index
    %c0_159 = arith.constant 0 : index
    %328 = vector.load %arg8[%c0_158, %c0_159] : memref<16x128xf32, #tpu.memory_space<vmem>>, vector<16x128xf32>
    tpu.vector_store %arg8[%c0_158, %c0_159], %324 {strides = array<i32>} : memref<16x128xf32, #tpu.memory_space<vmem>>, vector<16x128xf32>,
    %329 = arith.truncf %326 : vector<16x128xf32> to vector<16x128xbf16>
    %c7_160 = arith.constant 7 : index
    %c0_161 = arith.constant 0 : index
    %c0_162 = arith.constant 0 : index
    %330 = vector.load %arg6[%c7_160, %c0_161, %c0_162] : memref<8x16x128xbf16, #tpu.memory_space<vmem>>, vector<1x16x128xbf16>
    %331 = vector.shape_cast %330 : vector<1x16x128xbf16> to vector<16x128xbf16>
    %332 = vector.shape_cast %329 : vector<16x128xbf16> to vector<1x16x128xbf16>
    tpu.vector_store %arg6[%c7_160, %c0_161, %c0_162], %332 {strides = array<i32>} : memref<8x16x128xbf16, #tpu.memory_space<vmem>>, vector<1x16x128xbf16>,
    return
  }
  func.func @transform_0(%arg0: i32, %arg1: i32) -> (i32, i32, i32) {
    %c0_i32 = arith.constant 0 : i32
    %c0_i32_0 = arith.constant 0 : i32
    return %arg1, %arg0, %c0_i32 : i32, i32, i32
  }
  func.func @transform_1(%arg0: i32, %arg1: i32) -> (i32, i32) {
    %c0_i32 = arith.constant 0 : i32
    %c0_i32_0 = arith.constant 0 : i32
    %c0_i32_1 = arith.constant 0 : i32
    return %c0_i32, %c0_i32_0 : i32, i32
  }
  func.func @transform_2(%arg0: i32, %arg1: i32) -> (i32, i32) {
    %c0_i32 = arith.constant 0 : i32
    %c0_i32_0 = arith.constant 0 : i32
    %c0_i32_1 = arith.constant 0 : i32
    return %c0_i32, %c0_i32_0 : i32, i32
  }
  func.func @transform_3(%arg0: i32, %arg1: i32) -> (i32, i32) {
    %c0_i32 = arith.constant 0 : i32
    %c0_i32_0 = arith.constant 0 : i32
    %c0_i32_1 = arith.constant 0 : i32
    return %c0_i32, %c0_i32_0 : i32, i32
  }
  func.func @transform_4(%arg0: i32, %arg1: i32) -> (i32, i32, i32) {
    %c0_i32 = arith.constant 0 : i32
    %c0_i32_0 = arith.constant 0 : i32
    return %arg1, %arg0, %c0_i32 : i32, i32, i32
  }
}

module attributes {stable_mosaic.version = 11 : i64} {
  func.func @_lstm_last_fc_kernel(%arg0: i32, %arg1: i32, %arg2: memref<8x16x128xbf16, #tpu.memory_space<vmem>>, %arg3: memref<128x512xbf16, #tpu.memory_space<vmem>>, %arg4: memref<128x512xbf16, #tpu.memory_space<vmem>>, %arg5: memref<1x512xf32, #tpu.memory_space<vmem>>, %arg6: memref<128x128xbf16, #tpu.memory_space<vmem>>, %arg7: memref<1x128xf32, #tpu.memory_space<vmem>>, %arg8: memref<16x128xf32, #tpu.memory_space<vmem>>, %arg9: memref<16x128xf32, #tpu.memory_space<vmem>>, %arg10: memref<16x128xf32, #tpu.memory_space<vmem>>, %arg11: memref<8x16x512xbf16, #tpu.memory_space<vmem>>) attributes {dimension_semantics = [#tpu.dimension_semantics<parallel>, #tpu.dimension_semantics<arbitrary>], iteration_bounds = array<i64: 1, 1>, scalar_prefetch = 0 : i64, scratch_operands = 3 : i64, tpu.core_type = #tpu.core_type<tc>, window_params = [{transform_indices = @transform_0, window_bounds = array<i64: 8, 16, 128>}, {pipeline_mode = #tpu.pipeline_mode<synchronous>, transform_indices = @transform_1, window_bounds = array<i64: 128, 512>}, {pipeline_mode = #tpu.pipeline_mode<synchronous>, transform_indices = @transform_2, window_bounds = array<i64: 128, 512>}, {pipeline_mode = #tpu.pipeline_mode<synchronous>, transform_indices = @transform_3, window_bounds = array<i64: 1, 512>}, {pipeline_mode = #tpu.pipeline_mode<synchronous>, transform_indices = @transform_4, window_bounds = array<i64: 128, 128>}, {pipeline_mode = #tpu.pipeline_mode<synchronous>, transform_indices = @transform_5, window_bounds = array<i64: 1, 128>}, {transform_indices = @transform_6, window_bounds = array<i64: 16, 128>}]} {
    %c0_i32 = arith.constant 0 : i32
    %0 = arith.cmpi eq, %arg1, %c0_i32 : i32
    %1 = arith.extui %0 : i1 to i32
    %c0_i32_0 = arith.constant 0 : i32
    %2 = arith.cmpi ne, %1, %c0_i32_0 : i32
    scf.if %2 {
      %cst_141 = arith.constant 0.000000e+00 : f32
      %304 = vector.broadcast %cst_141 : f32 to vector<16x128xf32>
      %c0_142 = arith.constant 0 : index
      %c0_143 = arith.constant 0 : index
      %305 = vector.load %arg9[%c0_142, %c0_143] : memref<16x128xf32, #tpu.memory_space<vmem>>, vector<16x128xf32>
      tpu.vector_store %arg9[%c0_142, %c0_143], %304 {strides = array<i32>} : memref<16x128xf32, #tpu.memory_space<vmem>>, vector<16x128xf32>,
      %cst_144 = arith.constant 0.000000e+00 : f32
      %306 = vector.broadcast %cst_144 : f32 to vector<16x128xf32>
      %c0_145 = arith.constant 0 : index
      %c0_146 = arith.constant 0 : index
      %307 = vector.load %arg10[%c0_145, %c0_146] : memref<16x128xf32, #tpu.memory_space<vmem>>, vector<16x128xf32>
      tpu.vector_store %arg10[%c0_145, %c0_146], %306 {strides = array<i32>} : memref<16x128xf32, #tpu.memory_space<vmem>>, vector<16x128xf32>,
    } else {
    }
    %c0 = arith.constant 0 : index
    %c0_1 = arith.constant 0 : index
    %c0_2 = arith.constant 0 : index
    %3 = vector.load %arg2[%c0, %c0_1, %c0_2] : memref<8x16x128xbf16, #tpu.memory_space<vmem>>, vector<8x16x128xbf16>
    %4 = vector.shape_cast %3 : vector<8x16x128xbf16> to vector<128x128xbf16>
    %c0_3 = arith.constant 0 : index
    %c0_4 = arith.constant 0 : index
    %5 = vector.load %arg3[%c0_3, %c0_4] : memref<128x512xbf16, #tpu.memory_space<vmem>>, vector<128x512xbf16>
    %cst = arith.constant dense<0.000000e+00> : vector<128x512xf32>
    %6 = tpu.matmul %4, %5, %cst {dimension_numbers = #tpu.dot_dimension_numbers<[1], [0], [0], [1], [0, 0, 1, 1], [], []>} : vector<128x128xbf16>, vector<128x512xbf16>, vector<128x512xf32> -> vector<128x512xf32>
    %c0_5 = arith.constant 0 : index
    %c0_6 = arith.constant 0 : index
    %7 = vector.load %arg5[%c0_5, %c0_6] : memref<1x512xf32, #tpu.memory_space<vmem>>, vector<1x512xf32>
    %8 = vector.broadcast %7 : vector<1x512xf32> to vector<128x512xf32>
    %9 = arith.addf %6, %8 : vector<128x512xf32>
    %10 = arith.truncf %9 : vector<128x512xf32> to vector<128x512xbf16>
    %11 = vector.shape_cast %10 : vector<128x512xbf16> to vector<8x16x512xbf16>
    %c0_7 = arith.constant 0 : index
    %c0_8 = arith.constant 0 : index
    %c0_9 = arith.constant 0 : index
    %12 = vector.load %arg11[%c0_7, %c0_8, %c0_9] : memref<8x16x512xbf16, #tpu.memory_space<vmem>>, vector<8x16x512xbf16>
    tpu.vector_store %arg11[%c0_7, %c0_8, %c0_9], %11 {strides = array<i32>} : memref<8x16x512xbf16, #tpu.memory_space<vmem>>, vector<8x16x512xbf16>,
    %c0_10 = arith.constant 0 : index
    %c0_11 = arith.constant 0 : index
    %13 = vector.load %arg9[%c0_10, %c0_11] : memref<16x128xf32, #tpu.memory_space<vmem>>, vector<16x128xf32>
    %c0_12 = arith.constant 0 : index
    %c0_13 = arith.constant 0 : index
    %14 = vector.load %arg10[%c0_12, %c0_13] : memref<16x128xf32, #tpu.memory_space<vmem>>, vector<16x128xf32>
    %c0_14 = arith.constant 0 : index
    %c0_15 = arith.constant 0 : index
    %c0_16 = arith.constant 0 : index
    %15 = vector.load %arg11[%c0_14, %c0_15, %c0_16] : memref<8x16x512xbf16, #tpu.memory_space<vmem>>, vector<1x16x512xbf16>
    %16 = vector.shape_cast %15 : vector<1x16x512xbf16> to vector<16x512xbf16>
    %17 = arith.extf %16 : vector<16x512xbf16> to vector<16x512xf32>
    %18 = arith.truncf %13 : vector<16x128xf32> to vector<16x128xbf16>
    %c0_17 = arith.constant 0 : index
    %c0_18 = arith.constant 0 : index
    %19 = vector.load %arg4[%c0_17, %c0_18] : memref<128x512xbf16, #tpu.memory_space<vmem>>, vector<128x512xbf16>
    %cst_19 = arith.constant dense<0.000000e+00> : vector<16x512xf32>
    %20 = tpu.matmul %18, %19, %cst_19 {dimension_numbers = #tpu.dot_dimension_numbers<[1], [0], [0], [1], [0, 0, 1, 1], [], []>} : vector<16x128xbf16>, vector<128x512xbf16>, vector<16x512xf32> -> vector<16x512xf32>
    %21 = arith.addf %17, %20 : vector<16x512xf32>
    %22 = vector.extract_strided_slice %21 {offsets = [0, 0], sizes = [16, 128], strides = [1, 1]} : vector<16x512xf32> to vector<16x128xf32>
    %23 = arith.negf %22 : vector<16x128xf32>
    %24 = math.exp %23 : vector<16x128xf32>
    %cst_20 = arith.constant 1.000000e+00 : f32
    %25 = vector.broadcast %cst_20 : f32 to vector<16x128xf32>
    %26 = arith.addf %25, %24 : vector<16x128xf32>
    %27 = arith.divf %25, %26 : vector<16x128xf32>
    %28 = vector.extract_strided_slice %21 {offsets = [0, 128], sizes = [16, 128], strides = [1, 1]} : vector<16x512xf32> to vector<16x128xf32>
    %29 = arith.negf %28 : vector<16x128xf32>
    %30 = math.exp %29 : vector<16x128xf32>
    %cst_21 = arith.constant 1.000000e+00 : f32
    %31 = vector.broadcast %cst_21 : f32 to vector<16x128xf32>
    %32 = arith.addf %31, %30 : vector<16x128xf32>
    %33 = arith.divf %31, %32 : vector<16x128xf32>
    %34 = vector.extract_strided_slice %21 {offsets = [0, 256], sizes = [16, 128], strides = [1, 1]} : vector<16x512xf32> to vector<16x128xf32>
    %35 = math.tanh %34 : vector<16x128xf32>
    %36 = vector.extract_strided_slice %21 {offsets = [0, 384], sizes = [16, 128], strides = [1, 1]} : vector<16x512xf32> to vector<16x128xf32>
    %37 = arith.negf %36 : vector<16x128xf32>
    %38 = math.exp %37 : vector<16x128xf32>
    %cst_22 = arith.constant 1.000000e+00 : f32
    %39 = vector.broadcast %cst_22 : f32 to vector<16x128xf32>
    %40 = arith.addf %39, %38 : vector<16x128xf32>
    %41 = arith.divf %39, %40 : vector<16x128xf32>
    %42 = arith.mulf %33, %14 : vector<16x128xf32>
    %43 = arith.mulf %27, %35 : vector<16x128xf32>
    %44 = arith.addf %42, %43 : vector<16x128xf32>
    %45 = math.tanh %44 : vector<16x128xf32>
    %46 = arith.mulf %41, %45 : vector<16x128xf32>
    %c0_23 = arith.constant 0 : index
    %c0_24 = arith.constant 0 : index
    %47 = vector.load %arg9[%c0_23, %c0_24] : memref<16x128xf32, #tpu.memory_space<vmem>>, vector<16x128xf32>
    tpu.vector_store %arg9[%c0_23, %c0_24], %46 {strides = array<i32>} : memref<16x128xf32, #tpu.memory_space<vmem>>, vector<16x128xf32>,
    %c0_25 = arith.constant 0 : index
    %c0_26 = arith.constant 0 : index
    %48 = vector.load %arg10[%c0_25, %c0_26] : memref<16x128xf32, #tpu.memory_space<vmem>>, vector<16x128xf32>
    tpu.vector_store %arg10[%c0_25, %c0_26], %44 {strides = array<i32>} : memref<16x128xf32, #tpu.memory_space<vmem>>, vector<16x128xf32>,
    %c0_27 = arith.constant 0 : index
    %c0_28 = arith.constant 0 : index
    %49 = vector.load %arg9[%c0_27, %c0_28] : memref<16x128xf32, #tpu.memory_space<vmem>>, vector<16x128xf32>
    %c0_29 = arith.constant 0 : index
    %c0_30 = arith.constant 0 : index
    %50 = vector.load %arg10[%c0_29, %c0_30] : memref<16x128xf32, #tpu.memory_space<vmem>>, vector<16x128xf32>
    %c1 = arith.constant 1 : index
    %c0_31 = arith.constant 0 : index
    %c0_32 = arith.constant 0 : index
    %51 = vector.load %arg11[%c1, %c0_31, %c0_32] : memref<8x16x512xbf16, #tpu.memory_space<vmem>>, vector<1x16x512xbf16>
    %52 = vector.shape_cast %51 : vector<1x16x512xbf16> to vector<16x512xbf16>
    %53 = arith.extf %52 : vector<16x512xbf16> to vector<16x512xf32>
    %54 = arith.truncf %49 : vector<16x128xf32> to vector<16x128xbf16>
    %c0_33 = arith.constant 0 : index
    %c0_34 = arith.constant 0 : index
    %55 = vector.load %arg4[%c0_33, %c0_34] : memref<128x512xbf16, #tpu.memory_space<vmem>>, vector<128x512xbf16>
    %cst_35 = arith.constant dense<0.000000e+00> : vector<16x512xf32>
    %56 = tpu.matmul %54, %55, %cst_35 {dimension_numbers = #tpu.dot_dimension_numbers<[1], [0], [0], [1], [0, 0, 1, 1], [], []>} : vector<16x128xbf16>, vector<128x512xbf16>, vector<16x512xf32> -> vector<16x512xf32>
    %57 = arith.addf %53, %56 : vector<16x512xf32>
    %58 = vector.extract_strided_slice %57 {offsets = [0, 0], sizes = [16, 128], strides = [1, 1]} : vector<16x512xf32> to vector<16x128xf32>
    %59 = arith.negf %58 : vector<16x128xf32>
    %60 = math.exp %59 : vector<16x128xf32>
    %cst_36 = arith.constant 1.000000e+00 : f32
    %61 = vector.broadcast %cst_36 : f32 to vector<16x128xf32>
    %62 = arith.addf %61, %60 : vector<16x128xf32>
    %63 = arith.divf %61, %62 : vector<16x128xf32>
    %64 = vector.extract_strided_slice %57 {offsets = [0, 128], sizes = [16, 128], strides = [1, 1]} : vector<16x512xf32> to vector<16x128xf32>
    %65 = arith.negf %64 : vector<16x128xf32>
    %66 = math.exp %65 : vector<16x128xf32>
    %cst_37 = arith.constant 1.000000e+00 : f32
    %67 = vector.broadcast %cst_37 : f32 to vector<16x128xf32>
    %68 = arith.addf %67, %66 : vector<16x128xf32>
    %69 = arith.divf %67, %68 : vector<16x128xf32>
    %70 = vector.extract_strided_slice %57 {offsets = [0, 256], sizes = [16, 128], strides = [1, 1]} : vector<16x512xf32> to vector<16x128xf32>
    %71 = math.tanh %70 : vector<16x128xf32>
    %72 = vector.extract_strided_slice %57 {offsets = [0, 384], sizes = [16, 128], strides = [1, 1]} : vector<16x512xf32> to vector<16x128xf32>
    %73 = arith.negf %72 : vector<16x128xf32>
    %74 = math.exp %73 : vector<16x128xf32>
    %cst_38 = arith.constant 1.000000e+00 : f32
    %75 = vector.broadcast %cst_38 : f32 to vector<16x128xf32>
    %76 = arith.addf %75, %74 : vector<16x128xf32>
    %77 = arith.divf %75, %76 : vector<16x128xf32>
    %78 = arith.mulf %69, %50 : vector<16x128xf32>
    %79 = arith.mulf %63, %71 : vector<16x128xf32>
    %80 = arith.addf %78, %79 : vector<16x128xf32>
    %81 = math.tanh %80 : vector<16x128xf32>
    %82 = arith.mulf %77, %81 : vector<16x128xf32>
    %c0_39 = arith.constant 0 : index
    %c0_40 = arith.constant 0 : index
    %83 = vector.load %arg9[%c0_39, %c0_40] : memref<16x128xf32, #tpu.memory_space<vmem>>, vector<16x128xf32>
    tpu.vector_store %arg9[%c0_39, %c0_40], %82 {strides = array<i32>} : memref<16x128xf32, #tpu.memory_space<vmem>>, vector<16x128xf32>,
    %c0_41 = arith.constant 0 : index
    %c0_42 = arith.constant 0 : index
    %84 = vector.load %arg10[%c0_41, %c0_42] : memref<16x128xf32, #tpu.memory_space<vmem>>, vector<16x128xf32>
    tpu.vector_store %arg10[%c0_41, %c0_42], %80 {strides = array<i32>} : memref<16x128xf32, #tpu.memory_space<vmem>>, vector<16x128xf32>,
    %c0_43 = arith.constant 0 : index
    %c0_44 = arith.constant 0 : index
    %85 = vector.load %arg9[%c0_43, %c0_44] : memref<16x128xf32, #tpu.memory_space<vmem>>, vector<16x128xf32>
    %c0_45 = arith.constant 0 : index
    %c0_46 = arith.constant 0 : index
    %86 = vector.load %arg10[%c0_45, %c0_46] : memref<16x128xf32, #tpu.memory_space<vmem>>, vector<16x128xf32>
    %c2 = arith.constant 2 : index
    %c0_47 = arith.constant 0 : index
    %c0_48 = arith.constant 0 : index
    %87 = vector.load %arg11[%c2, %c0_47, %c0_48] : memref<8x16x512xbf16, #tpu.memory_space<vmem>>, vector<1x16x512xbf16>
    %88 = vector.shape_cast %87 : vector<1x16x512xbf16> to vector<16x512xbf16>
    %89 = arith.extf %88 : vector<16x512xbf16> to vector<16x512xf32>
    %90 = arith.truncf %85 : vector<16x128xf32> to vector<16x128xbf16>
    %c0_49 = arith.constant 0 : index
    %c0_50 = arith.constant 0 : index
    %91 = vector.load %arg4[%c0_49, %c0_50] : memref<128x512xbf16, #tpu.memory_space<vmem>>, vector<128x512xbf16>
    %cst_51 = arith.constant dense<0.000000e+00> : vector<16x512xf32>
    %92 = tpu.matmul %90, %91, %cst_51 {dimension_numbers = #tpu.dot_dimension_numbers<[1], [0], [0], [1], [0, 0, 1, 1], [], []>} : vector<16x128xbf16>, vector<128x512xbf16>, vector<16x512xf32> -> vector<16x512xf32>
    %93 = arith.addf %89, %92 : vector<16x512xf32>
    %94 = vector.extract_strided_slice %93 {offsets = [0, 0], sizes = [16, 128], strides = [1, 1]} : vector<16x512xf32> to vector<16x128xf32>
    %95 = arith.negf %94 : vector<16x128xf32>
    %96 = math.exp %95 : vector<16x128xf32>
    %cst_52 = arith.constant 1.000000e+00 : f32
    %97 = vector.broadcast %cst_52 : f32 to vector<16x128xf32>
    %98 = arith.addf %97, %96 : vector<16x128xf32>
    %99 = arith.divf %97, %98 : vector<16x128xf32>
    %100 = vector.extract_strided_slice %93 {offsets = [0, 128], sizes = [16, 128], strides = [1, 1]} : vector<16x512xf32> to vector<16x128xf32>
    %101 = arith.negf %100 : vector<16x128xf32>
    %102 = math.exp %101 : vector<16x128xf32>
    %cst_53 = arith.constant 1.000000e+00 : f32
    %103 = vector.broadcast %cst_53 : f32 to vector<16x128xf32>
    %104 = arith.addf %103, %102 : vector<16x128xf32>
    %105 = arith.divf %103, %104 : vector<16x128xf32>
    %106 = vector.extract_strided_slice %93 {offsets = [0, 256], sizes = [16, 128], strides = [1, 1]} : vector<16x512xf32> to vector<16x128xf32>
    %107 = math.tanh %106 : vector<16x128xf32>
    %108 = vector.extract_strided_slice %93 {offsets = [0, 384], sizes = [16, 128], strides = [1, 1]} : vector<16x512xf32> to vector<16x128xf32>
    %109 = arith.negf %108 : vector<16x128xf32>
    %110 = math.exp %109 : vector<16x128xf32>
    %cst_54 = arith.constant 1.000000e+00 : f32
    %111 = vector.broadcast %cst_54 : f32 to vector<16x128xf32>
    %112 = arith.addf %111, %110 : vector<16x128xf32>
    %113 = arith.divf %111, %112 : vector<16x128xf32>
    %114 = arith.mulf %105, %86 : vector<16x128xf32>
    %115 = arith.mulf %99, %107 : vector<16x128xf32>
    %116 = arith.addf %114, %115 : vector<16x128xf32>
    %117 = math.tanh %116 : vector<16x128xf32>
    %118 = arith.mulf %113, %117 : vector<16x128xf32>
    %c0_55 = arith.constant 0 : index
    %c0_56 = arith.constant 0 : index
    %119 = vector.load %arg9[%c0_55, %c0_56] : memref<16x128xf32, #tpu.memory_space<vmem>>, vector<16x128xf32>
    tpu.vector_store %arg9[%c0_55, %c0_56], %118 {strides = array<i32>} : memref<16x128xf32, #tpu.memory_space<vmem>>, vector<16x128xf32>,
    %c0_57 = arith.constant 0 : index
    %c0_58 = arith.constant 0 : index
    %120 = vector.load %arg10[%c0_57, %c0_58] : memref<16x128xf32, #tpu.memory_space<vmem>>, vector<16x128xf32>
    tpu.vector_store %arg10[%c0_57, %c0_58], %116 {strides = array<i32>} : memref<16x128xf32, #tpu.memory_space<vmem>>, vector<16x128xf32>,
    %c0_59 = arith.constant 0 : index
    %c0_60 = arith.constant 0 : index
    %121 = vector.load %arg9[%c0_59, %c0_60] : memref<16x128xf32, #tpu.memory_space<vmem>>, vector<16x128xf32>
    %c0_61 = arith.constant 0 : index
    %c0_62 = arith.constant 0 : index
    %122 = vector.load %arg10[%c0_61, %c0_62] : memref<16x128xf32, #tpu.memory_space<vmem>>, vector<16x128xf32>
    %c3 = arith.constant 3 : index
    %c0_63 = arith.constant 0 : index
    %c0_64 = arith.constant 0 : index
    %123 = vector.load %arg11[%c3, %c0_63, %c0_64] : memref<8x16x512xbf16, #tpu.memory_space<vmem>>, vector<1x16x512xbf16>
    %124 = vector.shape_cast %123 : vector<1x16x512xbf16> to vector<16x512xbf16>
    %125 = arith.extf %124 : vector<16x512xbf16> to vector<16x512xf32>
    %126 = arith.truncf %121 : vector<16x128xf32> to vector<16x128xbf16>
    %c0_65 = arith.constant 0 : index
    %c0_66 = arith.constant 0 : index
    %127 = vector.load %arg4[%c0_65, %c0_66] : memref<128x512xbf16, #tpu.memory_space<vmem>>, vector<128x512xbf16>
    %cst_67 = arith.constant dense<0.000000e+00> : vector<16x512xf32>
    %128 = tpu.matmul %126, %127, %cst_67 {dimension_numbers = #tpu.dot_dimension_numbers<[1], [0], [0], [1], [0, 0, 1, 1], [], []>} : vector<16x128xbf16>, vector<128x512xbf16>, vector<16x512xf32> -> vector<16x512xf32>
    %129 = arith.addf %125, %128 : vector<16x512xf32>
    %130 = vector.extract_strided_slice %129 {offsets = [0, 0], sizes = [16, 128], strides = [1, 1]} : vector<16x512xf32> to vector<16x128xf32>
    %131 = arith.negf %130 : vector<16x128xf32>
    %132 = math.exp %131 : vector<16x128xf32>
    %cst_68 = arith.constant 1.000000e+00 : f32
    %133 = vector.broadcast %cst_68 : f32 to vector<16x128xf32>
    %134 = arith.addf %133, %132 : vector<16x128xf32>
    %135 = arith.divf %133, %134 : vector<16x128xf32>
    %136 = vector.extract_strided_slice %129 {offsets = [0, 128], sizes = [16, 128], strides = [1, 1]} : vector<16x512xf32> to vector<16x128xf32>
    %137 = arith.negf %136 : vector<16x128xf32>
    %138 = math.exp %137 : vector<16x128xf32>
    %cst_69 = arith.constant 1.000000e+00 : f32
    %139 = vector.broadcast %cst_69 : f32 to vector<16x128xf32>
    %140 = arith.addf %139, %138 : vector<16x128xf32>
    %141 = arith.divf %139, %140 : vector<16x128xf32>
    %142 = vector.extract_strided_slice %129 {offsets = [0, 256], sizes = [16, 128], strides = [1, 1]} : vector<16x512xf32> to vector<16x128xf32>
    %143 = math.tanh %142 : vector<16x128xf32>
    %144 = vector.extract_strided_slice %129 {offsets = [0, 384], sizes = [16, 128], strides = [1, 1]} : vector<16x512xf32> to vector<16x128xf32>
    %145 = arith.negf %144 : vector<16x128xf32>
    %146 = math.exp %145 : vector<16x128xf32>
    %cst_70 = arith.constant 1.000000e+00 : f32
    %147 = vector.broadcast %cst_70 : f32 to vector<16x128xf32>
    %148 = arith.addf %147, %146 : vector<16x128xf32>
    %149 = arith.divf %147, %148 : vector<16x128xf32>
    %150 = arith.mulf %141, %122 : vector<16x128xf32>
    %151 = arith.mulf %135, %143 : vector<16x128xf32>
    %152 = arith.addf %150, %151 : vector<16x128xf32>
    %153 = math.tanh %152 : vector<16x128xf32>
    %154 = arith.mulf %149, %153 : vector<16x128xf32>
    %c0_71 = arith.constant 0 : index
    %c0_72 = arith.constant 0 : index
    %155 = vector.load %arg9[%c0_71, %c0_72] : memref<16x128xf32, #tpu.memory_space<vmem>>, vector<16x128xf32>
    tpu.vector_store %arg9[%c0_71, %c0_72], %154 {strides = array<i32>} : memref<16x128xf32, #tpu.memory_space<vmem>>, vector<16x128xf32>,
    %c0_73 = arith.constant 0 : index
    %c0_74 = arith.constant 0 : index
    %156 = vector.load %arg10[%c0_73, %c0_74] : memref<16x128xf32, #tpu.memory_space<vmem>>, vector<16x128xf32>
    tpu.vector_store %arg10[%c0_73, %c0_74], %152 {strides = array<i32>} : memref<16x128xf32, #tpu.memory_space<vmem>>, vector<16x128xf32>,
    %c0_75 = arith.constant 0 : index
    %c0_76 = arith.constant 0 : index
    %157 = vector.load %arg9[%c0_75, %c0_76] : memref<16x128xf32, #tpu.memory_space<vmem>>, vector<16x128xf32>
    %c0_77 = arith.constant 0 : index
    %c0_78 = arith.constant 0 : index
    %158 = vector.load %arg10[%c0_77, %c0_78] : memref<16x128xf32, #tpu.memory_space<vmem>>, vector<16x128xf32>
    %c4 = arith.constant 4 : index
    %c0_79 = arith.constant 0 : index
    %c0_80 = arith.constant 0 : index
    %159 = vector.load %arg11[%c4, %c0_79, %c0_80] : memref<8x16x512xbf16, #tpu.memory_space<vmem>>, vector<1x16x512xbf16>
    %160 = vector.shape_cast %159 : vector<1x16x512xbf16> to vector<16x512xbf16>
    %161 = arith.extf %160 : vector<16x512xbf16> to vector<16x512xf32>
    %162 = arith.truncf %157 : vector<16x128xf32> to vector<16x128xbf16>
    %c0_81 = arith.constant 0 : index
    %c0_82 = arith.constant 0 : index
    %163 = vector.load %arg4[%c0_81, %c0_82] : memref<128x512xbf16, #tpu.memory_space<vmem>>, vector<128x512xbf16>
    %cst_83 = arith.constant dense<0.000000e+00> : vector<16x512xf32>
    %164 = tpu.matmul %162, %163, %cst_83 {dimension_numbers = #tpu.dot_dimension_numbers<[1], [0], [0], [1], [0, 0, 1, 1], [], []>} : vector<16x128xbf16>, vector<128x512xbf16>, vector<16x512xf32> -> vector<16x512xf32>
    %165 = arith.addf %161, %164 : vector<16x512xf32>
    %166 = vector.extract_strided_slice %165 {offsets = [0, 0], sizes = [16, 128], strides = [1, 1]} : vector<16x512xf32> to vector<16x128xf32>
    %167 = arith.negf %166 : vector<16x128xf32>
    %168 = math.exp %167 : vector<16x128xf32>
    %cst_84 = arith.constant 1.000000e+00 : f32
    %169 = vector.broadcast %cst_84 : f32 to vector<16x128xf32>
    %170 = arith.addf %169, %168 : vector<16x128xf32>
    %171 = arith.divf %169, %170 : vector<16x128xf32>
    %172 = vector.extract_strided_slice %165 {offsets = [0, 128], sizes = [16, 128], strides = [1, 1]} : vector<16x512xf32> to vector<16x128xf32>
    %173 = arith.negf %172 : vector<16x128xf32>
    %174 = math.exp %173 : vector<16x128xf32>
    %cst_85 = arith.constant 1.000000e+00 : f32
    %175 = vector.broadcast %cst_85 : f32 to vector<16x128xf32>
    %176 = arith.addf %175, %174 : vector<16x128xf32>
    %177 = arith.divf %175, %176 : vector<16x128xf32>
    %178 = vector.extract_strided_slice %165 {offsets = [0, 256], sizes = [16, 128], strides = [1, 1]} : vector<16x512xf32> to vector<16x128xf32>
    %179 = math.tanh %178 : vector<16x128xf32>
    %180 = vector.extract_strided_slice %165 {offsets = [0, 384], sizes = [16, 128], strides = [1, 1]} : vector<16x512xf32> to vector<16x128xf32>
    %181 = arith.negf %180 : vector<16x128xf32>
    %182 = math.exp %181 : vector<16x128xf32>
    %cst_86 = arith.constant 1.000000e+00 : f32
    %183 = vector.broadcast %cst_86 : f32 to vector<16x128xf32>
    %184 = arith.addf %183, %182 : vector<16x128xf32>
    %185 = arith.divf %183, %184 : vector<16x128xf32>
    %186 = arith.mulf %177, %158 : vector<16x128xf32>
    %187 = arith.mulf %171, %179 : vector<16x128xf32>
    %188 = arith.addf %186, %187 : vector<16x128xf32>
    %189 = math.tanh %188 : vector<16x128xf32>
    %190 = arith.mulf %185, %189 : vector<16x128xf32>
    %c0_87 = arith.constant 0 : index
    %c0_88 = arith.constant 0 : index
    %191 = vector.load %arg9[%c0_87, %c0_88] : memref<16x128xf32, #tpu.memory_space<vmem>>, vector<16x128xf32>
    tpu.vector_store %arg9[%c0_87, %c0_88], %190 {strides = array<i32>} : memref<16x128xf32, #tpu.memory_space<vmem>>, vector<16x128xf32>,
    %c0_89 = arith.constant 0 : index
    %c0_90 = arith.constant 0 : index
    %192 = vector.load %arg10[%c0_89, %c0_90] : memref<16x128xf32, #tpu.memory_space<vmem>>, vector<16x128xf32>
    tpu.vector_store %arg10[%c0_89, %c0_90], %188 {strides = array<i32>} : memref<16x128xf32, #tpu.memory_space<vmem>>, vector<16x128xf32>,
    %c0_91 = arith.constant 0 : index
    %c0_92 = arith.constant 0 : index
    %193 = vector.load %arg9[%c0_91, %c0_92] : memref<16x128xf32, #tpu.memory_space<vmem>>, vector<16x128xf32>
    %c0_93 = arith.constant 0 : index
    %c0_94 = arith.constant 0 : index
    %194 = vector.load %arg10[%c0_93, %c0_94] : memref<16x128xf32, #tpu.memory_space<vmem>>, vector<16x128xf32>
    %c5 = arith.constant 5 : index
    %c0_95 = arith.constant 0 : index
    %c0_96 = arith.constant 0 : index
    %195 = vector.load %arg11[%c5, %c0_95, %c0_96] : memref<8x16x512xbf16, #tpu.memory_space<vmem>>, vector<1x16x512xbf16>
    %196 = vector.shape_cast %195 : vector<1x16x512xbf16> to vector<16x512xbf16>
    %197 = arith.extf %196 : vector<16x512xbf16> to vector<16x512xf32>
    %198 = arith.truncf %193 : vector<16x128xf32> to vector<16x128xbf16>
    %c0_97 = arith.constant 0 : index
    %c0_98 = arith.constant 0 : index
    %199 = vector.load %arg4[%c0_97, %c0_98] : memref<128x512xbf16, #tpu.memory_space<vmem>>, vector<128x512xbf16>
    %cst_99 = arith.constant dense<0.000000e+00> : vector<16x512xf32>
    %200 = tpu.matmul %198, %199, %cst_99 {dimension_numbers = #tpu.dot_dimension_numbers<[1], [0], [0], [1], [0, 0, 1, 1], [], []>} : vector<16x128xbf16>, vector<128x512xbf16>, vector<16x512xf32> -> vector<16x512xf32>
    %201 = arith.addf %197, %200 : vector<16x512xf32>
    %202 = vector.extract_strided_slice %201 {offsets = [0, 0], sizes = [16, 128], strides = [1, 1]} : vector<16x512xf32> to vector<16x128xf32>
    %203 = arith.negf %202 : vector<16x128xf32>
    %204 = math.exp %203 : vector<16x128xf32>
    %cst_100 = arith.constant 1.000000e+00 : f32
    %205 = vector.broadcast %cst_100 : f32 to vector<16x128xf32>
    %206 = arith.addf %205, %204 : vector<16x128xf32>
    %207 = arith.divf %205, %206 : vector<16x128xf32>
    %208 = vector.extract_strided_slice %201 {offsets = [0, 128], sizes = [16, 128], strides = [1, 1]} : vector<16x512xf32> to vector<16x128xf32>
    %209 = arith.negf %208 : vector<16x128xf32>
    %210 = math.exp %209 : vector<16x128xf32>
    %cst_101 = arith.constant 1.000000e+00 : f32
    %211 = vector.broadcast %cst_101 : f32 to vector<16x128xf32>
    %212 = arith.addf %211, %210 : vector<16x128xf32>
    %213 = arith.divf %211, %212 : vector<16x128xf32>
    %214 = vector.extract_strided_slice %201 {offsets = [0, 256], sizes = [16, 128], strides = [1, 1]} : vector<16x512xf32> to vector<16x128xf32>
    %215 = math.tanh %214 : vector<16x128xf32>
    %216 = vector.extract_strided_slice %201 {offsets = [0, 384], sizes = [16, 128], strides = [1, 1]} : vector<16x512xf32> to vector<16x128xf32>
    %217 = arith.negf %216 : vector<16x128xf32>
    %218 = math.exp %217 : vector<16x128xf32>
    %cst_102 = arith.constant 1.000000e+00 : f32
    %219 = vector.broadcast %cst_102 : f32 to vector<16x128xf32>
    %220 = arith.addf %219, %218 : vector<16x128xf32>
    %221 = arith.divf %219, %220 : vector<16x128xf32>
    %222 = arith.mulf %213, %194 : vector<16x128xf32>
    %223 = arith.mulf %207, %215 : vector<16x128xf32>
    %224 = arith.addf %222, %223 : vector<16x128xf32>
    %225 = math.tanh %224 : vector<16x128xf32>
    %226 = arith.mulf %221, %225 : vector<16x128xf32>
    %c0_103 = arith.constant 0 : index
    %c0_104 = arith.constant 0 : index
    %227 = vector.load %arg9[%c0_103, %c0_104] : memref<16x128xf32, #tpu.memory_space<vmem>>, vector<16x128xf32>
    tpu.vector_store %arg9[%c0_103, %c0_104], %226 {strides = array<i32>} : memref<16x128xf32, #tpu.memory_space<vmem>>, vector<16x128xf32>,
    %c0_105 = arith.constant 0 : index
    %c0_106 = arith.constant 0 : index
    %228 = vector.load %arg10[%c0_105, %c0_106] : memref<16x128xf32, #tpu.memory_space<vmem>>, vector<16x128xf32>
    tpu.vector_store %arg10[%c0_105, %c0_106], %224 {strides = array<i32>} : memref<16x128xf32, #tpu.memory_space<vmem>>, vector<16x128xf32>,
    %c0_107 = arith.constant 0 : index
    %c0_108 = arith.constant 0 : index
    %229 = vector.load %arg9[%c0_107, %c0_108] : memref<16x128xf32, #tpu.memory_space<vmem>>, vector<16x128xf32>
    %c0_109 = arith.constant 0 : index
    %c0_110 = arith.constant 0 : index
    %230 = vector.load %arg10[%c0_109, %c0_110] : memref<16x128xf32, #tpu.memory_space<vmem>>, vector<16x128xf32>
    %c6 = arith.constant 6 : index
    %c0_111 = arith.constant 0 : index
    %c0_112 = arith.constant 0 : index
    %231 = vector.load %arg11[%c6, %c0_111, %c0_112] : memref<8x16x512xbf16, #tpu.memory_space<vmem>>, vector<1x16x512xbf16>
    %232 = vector.shape_cast %231 : vector<1x16x512xbf16> to vector<16x512xbf16>
    %233 = arith.extf %232 : vector<16x512xbf16> to vector<16x512xf32>
    %234 = arith.truncf %229 : vector<16x128xf32> to vector<16x128xbf16>
    %c0_113 = arith.constant 0 : index
    %c0_114 = arith.constant 0 : index
    %235 = vector.load %arg4[%c0_113, %c0_114] : memref<128x512xbf16, #tpu.memory_space<vmem>>, vector<128x512xbf16>
    %cst_115 = arith.constant dense<0.000000e+00> : vector<16x512xf32>
    %236 = tpu.matmul %234, %235, %cst_115 {dimension_numbers = #tpu.dot_dimension_numbers<[1], [0], [0], [1], [0, 0, 1, 1], [], []>} : vector<16x128xbf16>, vector<128x512xbf16>, vector<16x512xf32> -> vector<16x512xf32>
    %237 = arith.addf %233, %236 : vector<16x512xf32>
    %238 = vector.extract_strided_slice %237 {offsets = [0, 0], sizes = [16, 128], strides = [1, 1]} : vector<16x512xf32> to vector<16x128xf32>
    %239 = arith.negf %238 : vector<16x128xf32>
    %240 = math.exp %239 : vector<16x128xf32>
    %cst_116 = arith.constant 1.000000e+00 : f32
    %241 = vector.broadcast %cst_116 : f32 to vector<16x128xf32>
    %242 = arith.addf %241, %240 : vector<16x128xf32>
    %243 = arith.divf %241, %242 : vector<16x128xf32>
    %244 = vector.extract_strided_slice %237 {offsets = [0, 128], sizes = [16, 128], strides = [1, 1]} : vector<16x512xf32> to vector<16x128xf32>
    %245 = arith.negf %244 : vector<16x128xf32>
    %246 = math.exp %245 : vector<16x128xf32>
    %cst_117 = arith.constant 1.000000e+00 : f32
    %247 = vector.broadcast %cst_117 : f32 to vector<16x128xf32>
    %248 = arith.addf %247, %246 : vector<16x128xf32>
    %249 = arith.divf %247, %248 : vector<16x128xf32>
    %250 = vector.extract_strided_slice %237 {offsets = [0, 256], sizes = [16, 128], strides = [1, 1]} : vector<16x512xf32> to vector<16x128xf32>
    %251 = math.tanh %250 : vector<16x128xf32>
    %252 = vector.extract_strided_slice %237 {offsets = [0, 384], sizes = [16, 128], strides = [1, 1]} : vector<16x512xf32> to vector<16x128xf32>
    %253 = arith.negf %252 : vector<16x128xf32>
    %254 = math.exp %253 : vector<16x128xf32>
    %cst_118 = arith.constant 1.000000e+00 : f32
    %255 = vector.broadcast %cst_118 : f32 to vector<16x128xf32>
    %256 = arith.addf %255, %254 : vector<16x128xf32>
    %257 = arith.divf %255, %256 : vector<16x128xf32>
    %258 = arith.mulf %249, %230 : vector<16x128xf32>
    %259 = arith.mulf %243, %251 : vector<16x128xf32>
    %260 = arith.addf %258, %259 : vector<16x128xf32>
    %261 = math.tanh %260 : vector<16x128xf32>
    %262 = arith.mulf %257, %261 : vector<16x128xf32>
    %c0_119 = arith.constant 0 : index
    %c0_120 = arith.constant 0 : index
    %263 = vector.load %arg9[%c0_119, %c0_120] : memref<16x128xf32, #tpu.memory_space<vmem>>, vector<16x128xf32>
    tpu.vector_store %arg9[%c0_119, %c0_120], %262 {strides = array<i32>} : memref<16x128xf32, #tpu.memory_space<vmem>>, vector<16x128xf32>,
    %c0_121 = arith.constant 0 : index
    %c0_122 = arith.constant 0 : index
    %264 = vector.load %arg10[%c0_121, %c0_122] : memref<16x128xf32, #tpu.memory_space<vmem>>, vector<16x128xf32>
    tpu.vector_store %arg10[%c0_121, %c0_122], %260 {strides = array<i32>} : memref<16x128xf32, #tpu.memory_space<vmem>>, vector<16x128xf32>,
    %c0_123 = arith.constant 0 : index
    %c0_124 = arith.constant 0 : index
    %265 = vector.load %arg9[%c0_123, %c0_124] : memref<16x128xf32, #tpu.memory_space<vmem>>, vector<16x128xf32>
    %c0_125 = arith.constant 0 : index
    %c0_126 = arith.constant 0 : index
    %266 = vector.load %arg10[%c0_125, %c0_126] : memref<16x128xf32, #tpu.memory_space<vmem>>, vector<16x128xf32>
    %c7 = arith.constant 7 : index
    %c0_127 = arith.constant 0 : index
    %c0_128 = arith.constant 0 : index
    %267 = vector.load %arg11[%c7, %c0_127, %c0_128] : memref<8x16x512xbf16, #tpu.memory_space<vmem>>, vector<1x16x512xbf16>
    %268 = vector.shape_cast %267 : vector<1x16x512xbf16> to vector<16x512xbf16>
    %269 = arith.extf %268 : vector<16x512xbf16> to vector<16x512xf32>
    %270 = arith.truncf %265 : vector<16x128xf32> to vector<16x128xbf16>
    %c0_129 = arith.constant 0 : index
    %c0_130 = arith.constant 0 : index
    %271 = vector.load %arg4[%c0_129, %c0_130] : memref<128x512xbf16, #tpu.memory_space<vmem>>, vector<128x512xbf16>
    %cst_131 = arith.constant dense<0.000000e+00> : vector<16x512xf32>
    %272 = tpu.matmul %270, %271, %cst_131 {dimension_numbers = #tpu.dot_dimension_numbers<[1], [0], [0], [1], [0, 0, 1, 1], [], []>} : vector<16x128xbf16>, vector<128x512xbf16>, vector<16x512xf32> -> vector<16x512xf32>
    %273 = arith.addf %269, %272 : vector<16x512xf32>
    %274 = vector.extract_strided_slice %273 {offsets = [0, 0], sizes = [16, 128], strides = [1, 1]} : vector<16x512xf32> to vector<16x128xf32>
    %275 = arith.negf %274 : vector<16x128xf32>
    %276 = math.exp %275 : vector<16x128xf32>
    %cst_132 = arith.constant 1.000000e+00 : f32
    %277 = vector.broadcast %cst_132 : f32 to vector<16x128xf32>
    %278 = arith.addf %277, %276 : vector<16x128xf32>
    %279 = arith.divf %277, %278 : vector<16x128xf32>
    %280 = vector.extract_strided_slice %273 {offsets = [0, 128], sizes = [16, 128], strides = [1, 1]} : vector<16x512xf32> to vector<16x128xf32>
    %281 = arith.negf %280 : vector<16x128xf32>
    %282 = math.exp %281 : vector<16x128xf32>
    %cst_133 = arith.constant 1.000000e+00 : f32
    %283 = vector.broadcast %cst_133 : f32 to vector<16x128xf32>
    %284 = arith.addf %283, %282 : vector<16x128xf32>
    %285 = arith.divf %283, %284 : vector<16x128xf32>
    %286 = vector.extract_strided_slice %273 {offsets = [0, 256], sizes = [16, 128], strides = [1, 1]} : vector<16x512xf32> to vector<16x128xf32>
    %287 = math.tanh %286 : vector<16x128xf32>
    %288 = vector.extract_strided_slice %273 {offsets = [0, 384], sizes = [16, 128], strides = [1, 1]} : vector<16x512xf32> to vector<16x128xf32>
    %289 = arith.negf %288 : vector<16x128xf32>
    %290 = math.exp %289 : vector<16x128xf32>
    %cst_134 = arith.constant 1.000000e+00 : f32
    %291 = vector.broadcast %cst_134 : f32 to vector<16x128xf32>
    %292 = arith.addf %291, %290 : vector<16x128xf32>
    %293 = arith.divf %291, %292 : vector<16x128xf32>
    %294 = arith.mulf %285, %266 : vector<16x128xf32>
    %295 = arith.mulf %279, %287 : vector<16x128xf32>
    %296 = arith.addf %294, %295 : vector<16x128xf32>
    %297 = math.tanh %296 : vector<16x128xf32>
    %298 = arith.mulf %293, %297 : vector<16x128xf32>
    %c0_135 = arith.constant 0 : index
    %c0_136 = arith.constant 0 : index
    %299 = vector.load %arg9[%c0_135, %c0_136] : memref<16x128xf32, #tpu.memory_space<vmem>>, vector<16x128xf32>
    tpu.vector_store %arg9[%c0_135, %c0_136], %298 {strides = array<i32>} : memref<16x128xf32, #tpu.memory_space<vmem>>, vector<16x128xf32>,
    %c0_137 = arith.constant 0 : index
    %c0_138 = arith.constant 0 : index
    %300 = vector.load %arg10[%c0_137, %c0_138] : memref<16x128xf32, #tpu.memory_space<vmem>>, vector<16x128xf32>
    tpu.vector_store %arg10[%c0_137, %c0_138], %296 {strides = array<i32>} : memref<16x128xf32, #tpu.memory_space<vmem>>, vector<16x128xf32>,
    %c0_i32_139 = arith.constant 0 : i32
    %301 = arith.cmpi eq, %arg1, %c0_i32_139 : i32
    %302 = arith.extui %301 : i1 to i32
    %c0_i32_140 = arith.constant 0 : i32
    %303 = arith.cmpi ne, %302, %c0_i32_140 : i32
    scf.if %303 {
      %c0_141 = arith.constant 0 : index
      %c0_142 = arith.constant 0 : index
      %304 = vector.load %arg9[%c0_141, %c0_142] : memref<16x128xf32, #tpu.memory_space<vmem>>, vector<16x128xf32>
      %305 = arith.truncf %304 : vector<16x128xf32> to vector<16x128xbf16>
      %c0_143 = arith.constant 0 : index
      %c0_144 = arith.constant 0 : index
      %306 = vector.load %arg6[%c0_143, %c0_144] : memref<128x128xbf16, #tpu.memory_space<vmem>>, vector<128x128xbf16>
      %cst_145 = arith.constant dense<0.000000e+00> : vector<16x128xf32>
      %307 = tpu.matmul %305, %306, %cst_145 {dimension_numbers = #tpu.dot_dimension_numbers<[1], [0], [0], [1], [0, 0, 1, 1], [], []>} : vector<16x128xbf16>, vector<128x128xbf16>, vector<16x128xf32> -> vector<16x128xf32>
      %c0_146 = arith.constant 0 : index
      %c0_147 = arith.constant 0 : index
      %308 = vector.load %arg7[%c0_146, %c0_147] : memref<1x128xf32, #tpu.memory_space<vmem>>, vector<1x128xf32>
      %309 = vector.broadcast %308 : vector<1x128xf32> to vector<16x128xf32>
      %310 = arith.addf %307, %309 : vector<16x128xf32>
      %c0_148 = arith.constant 0 : index
      %c0_149 = arith.constant 0 : index
      %311 = vector.load %arg8[%c0_148, %c0_149] : memref<16x128xf32, #tpu.memory_space<vmem>>, vector<16x128xf32>
      tpu.vector_store %arg8[%c0_148, %c0_149], %310 {strides = array<i32>} : memref<16x128xf32, #tpu.memory_space<vmem>>, vector<16x128xf32>,
    } else {
    }
    return
  }
  func.func @transform_0(%arg0: i32, %arg1: i32) -> (i32, i32, i32) {
    %c0_i32 = arith.constant 0 : i32
    %c0_i32_0 = arith.constant 0 : i32
    return %arg1, %arg0, %c0_i32 : i32, i32, i32
  }
  func.func @transform_1(%arg0: i32, %arg1: i32) -> (i32, i32) {
    %c0_i32 = arith.constant 0 : i32
    %c0_i32_0 = arith.constant 0 : i32
    %c0_i32_1 = arith.constant 0 : i32
    return %c0_i32, %c0_i32_0 : i32, i32
  }
  func.func @transform_2(%arg0: i32, %arg1: i32) -> (i32, i32) {
    %c0_i32 = arith.constant 0 : i32
    %c0_i32_0 = arith.constant 0 : i32
    %c0_i32_1 = arith.constant 0 : i32
    return %c0_i32, %c0_i32_0 : i32, i32
  }
  func.func @transform_3(%arg0: i32, %arg1: i32) -> (i32, i32) {
    %c0_i32 = arith.constant 0 : i32
    %c0_i32_0 = arith.constant 0 : i32
    %c0_i32_1 = arith.constant 0 : i32
    return %c0_i32, %c0_i32_0 : i32, i32
  }
  func.func @transform_4(%arg0: i32, %arg1: i32) -> (i32, i32) {
    %c0_i32 = arith.constant 0 : i32
    %c0_i32_0 = arith.constant 0 : i32
    %c0_i32_1 = arith.constant 0 : i32
    return %c0_i32, %c0_i32_0 : i32, i32
  }
  func.func @transform_5(%arg0: i32, %arg1: i32) -> (i32, i32) {
    %c0_i32 = arith.constant 0 : i32
    %c0_i32_0 = arith.constant 0 : i32
    %c0_i32_1 = arith.constant 0 : i32
    return %c0_i32, %c0_i32_0 : i32, i32
  }
  func.func @transform_6(%arg0: i32, %arg1: i32) -> (i32, i32) {
    %c0_i32 = arith.constant 0 : i32
    %c0_i32_0 = arith.constant 0 : i32
    return %arg0, %c0_i32 : i32, i32
  }
}

</mosaic_0001>

<llo_original>
// kernel: lstm_model_forward.2
$region0: #{lstm_model_forward.2}
  #allocation0 [shape = 'u32[]', space=smem, size = 0x4, offset = 0x4, fixed_abs, tag = 'smem constant byte address 0x4 - core index']
  #allocation1 [shape = 'u32[144,128]{1,0:T(1,128)}', space=vmem, size = 0x12000, scoped, tag = 'internal scratch']
  #allocation2 [shape = 'f32[16,128]{1,0:T(8,128)}', space=vmem, size = 0x2000, scoped, tag = 'scratch operand']
  #allocation3 [shape = 'f32[16,128]{1,0:T(8,128)}', space=vmem, size = 0x2000, scoped, tag = 'scratch operand']
  #allocation4 [shape = 'bf16[8,16,512]{2,1,0:T(16,128)(2,1)}', space=vmem, size = 0x20000, scoped, tag = 'scratch operand']
  %s0 = inlined_call_operand.vmem [shape: bf16[8,16,128], index: 0, kind: input, shape index: {}]
  %s1 = inlined_call_operand.vmem [shape: bf16[128,512], index: 1, kind: input, shape index: {}]
  %s2 = inlined_call_operand.vmem [shape: bf16[128,512], index: 2, kind: input, shape index: {}]
  %s3 = inlined_call_operand.vmem [shape: f32[1,512], index: 3, kind: input, shape index: {}]
  %s4 = inlined_call_operand.vmem [shape: bf16[8,16,128], index: 4, kind: output, shape index: {}]
  %s5 = sld [smem:[#allocation0]]
  $region30: #{lstm_model_forward.2} parent=0
    _
  %s7 = ssub.s32 1, %s5
  %s8 = scalar_select 0, %s7, %s5
  // Predicated region
  $region2: #{lstm_model_forward.2} parent=0 // pred_check
    _
  $region3: #{lstm_model_forward.2} parent=0 // pred_check_branch
    %10 = sbr.rel (0) target = $region5
  $region4: #{lstm_model_forward.2} parent=0 // pred_region
    _
  $region5: #{lstm_model_forward.2} parent=0 // pred_fallthru
    _
  // Predicated region
  $region6: #{lstm_model_forward.2} parent=0 // pred_check
    _
  $region7: #{lstm_model_forward.2} parent=0 // pred_check_branch
    %12 = sbr.rel (0) target = $region9
  $region8: #{lstm_model_forward.2} parent=0 // pred_region
    _
  $region9: #{lstm_model_forward.2} parent=0 // pred_fallthru
    _
  // Predicated region
  $region10: #{lstm_model_forward.2} parent=0 // pred_check
    _
  $region11: #{lstm_model_forward.2} parent=0 // pred_check_branch
    %14 = sbr.rel (0) target = $region13
  $region12: #{lstm_model_forward.2} parent=0 // pred_region
    _
  $region13: #{lstm_model_forward.2} parent=0 // pred_fallthru
    _
  // Predicated region
  $region14: #{lstm_model_forward.2} parent=0 // pred_check
    _
  $region15: #{lstm_model_forward.2} parent=0 // pred_check_branch
    %16 = sbr.rel (0) target = $region17
  $region16: #{lstm_model_forward.2} parent=0 // pred_region
    _
  $region17: #{lstm_model_forward.2} parent=0 // pred_fallthru
    _
  %p18 = scmp.eq.s32.totalorder 0, 0
  // Predicated region
  $region18: #{lstm_model_forward.2} parent=0 // pred_check
    %p19 = pneg %p18
  $region19: #{lstm_model_forward.2} parent=0 // pred_check_branch
    %21 = sbr.rel (%p19) target = $region21
  $region20: #{lstm_model_forward.2} parent=0 // pred_region
    %22 = vst [vmem:[#allocation2] sm:$0xff] 0.0
    %23 = vst [vmem:[#allocation2 + $0x8] sm:$0xff] 0.0
    %24 = vst [vmem:[#allocation3] sm:$0xff] 0.0
    %25 = vst [vmem:[#allocation3 + $0x8] sm:$0xff] 0.0
  $region21: #{lstm_model_forward.2} parent=0 // pred_fallthru
    _
  %v26 = vld [vmem:[%s0] sm:$0xf]
  %v27 = vld [vmem:[%s0 + $0x4] sm:$0xf]
  %v28 = vld [vmem:[%s0 + $0x8] sm:$0xf]
  %v29 = vld [vmem:[%s0 + $0xc] sm:$0xf]
  %v30 = vld [vmem:[%s0 + $0x10] sm:$0xf]
  %v31 = vld [vmem:[%s0 + $0x14] sm:$0xf]
  %v32 = vld [vmem:[%s0 + $0x18] sm:$0xf]
  %v33 = vld [vmem:[%s0 + $0x1c] sm:$0xf]
  %v34 = vld [vmem:[%s0 + $0x20] sm:$0xf]
  %v35 = vld [vmem:[%s0 + $0x24] sm:$0xf]
  %v36 = vld [vmem:[%s0 + $0x28] sm:$0xf]
  %v37 = vld [vmem:[%s0 + $0x2c] sm:$0xf]
  %v38 = vld [vmem:[%s0 + $0x30] sm:$0xf]
  %v39 = vld [vmem:[%s0 + $0x34] sm:$0xf]
  %v40 = vld [vmem:[%s0 + $0x38] sm:$0xf]
  %v41 = vld [vmem:[%s0 + $0x3c] sm:$0xf]
  %v42 = vld [vmem:[%s1] sm:$0xff]
  %v43 = vld [vmem:[%s1 + $0x8] sm:$0xff]
  %v44 = vld [vmem:[%s1 + $0x10] sm:$0xff]
  %v45 = vld [vmem:[%s1 + $0x18] sm:$0xff]
  %v46 = vld [vmem:[%s1 + $0x20] sm:$0xff]
  %v47 = vld [vmem:[%s1 + $0x28] sm:$0xff]
  %v48 = vld [vmem:[%s1 + $0x30] sm:$0xff]
  %v49 = vld [vmem:[%s1 + $0x38] sm:$0xff]
  %v50 = vld [vmem:[%s1 + $0x40] sm:$0xff]
  %v51 = vld [vmem:[%s1 + $0x48] sm:$0xff]
  %v52 = vld [vmem:[%s1 + $0x50] sm:$0xff]
  %v53 = vld [vmem:[%s1 + $0x58] sm:$0xff]
  %v54 = vld [vmem:[%s1 + $0x60] sm:$0xff]
  %v55 = vld [vmem:[%s1 + $0x68] sm:$0xff]
  %v56 = vld [vmem:[%s1 + $0x70] sm:$0xff]
  %v57 = vld [vmem:[%s1 + $0x78] sm:$0xff]
  %v58 = vld [vmem:[%s1 + $0x80] sm:$0xff]
  %v59 = vld [vmem:[%s1 + $0x88] sm:$0xff]
  %v60 = vld [vmem:[%s1 + $0x90] sm:$0xff]
  %v61 = vld [vmem:[%s1 + $0x98] sm:$0xff]
  %v62 = vld [vmem:[%s1 + $0xa0] sm:$0xff]
  %v63 = vld [vmem:[%s1 + $0xa8] sm:$0xff]
  %v64 = vld [vmem:[%s1 + $0xb0] sm:$0xff]
  %v65 = vld [vmem:[%s1 + $0xb8] sm:$0xff]
  %v66 = vld [vmem:[%s1 + $0xc0] sm:$0xff]
  %v67 = vld [vmem:[%s1 + $0xc8] sm:$0xff]
  %v68 = vld [vmem:[%s1 + $0xd0] sm:$0xff]
  %v69 = vld [vmem:[%s1 + $0xd8] sm:$0xff]
  %v70 = vld [vmem:[%s1 + $0xe0] sm:$0xff]
  %v71 = vld [vmem:[%s1 + $0xe8] sm:$0xff]
  %v72 = vld [vmem:[%s1 + $0xf0] sm:$0xff]
  %v73 = vld [vmem:[%s1 + $0xf8] sm:$0xff]
  %v74 = vld [vmem:[%s3] sm:$0xf]
  %v76 = vlaneseq
  %v77 = vshrl.u32 %v76, 7
  %v78 = vsub.s32 0, %v77
  %v79 = vrot.slane %v74, %v78
  %v80 = vlaneseq
  %v81 = vshrl.u32 %v80, 7
  %v82 = vsub.s32 1, %v81
  %v83 = vrot.slane %v74, %v82
  %v84 = vlaneseq
  %v85 = vshrl.u32 %v84, 7
  %v86 = vsub.s32 2, %v85
  %v87 = vrot.slane %v74, %v86
  %v88 = vlaneseq
  %v89 = vshrl.u32 %v88, 7
  %v90 = vsub.s32 3, %v89
  %v91 = vrot.slane %v74, %v90
  %v112 = vunpack.c.l.b16 %v26
  %v113 = vunpack.c.l.b16 %v27
  %v114 = vunpack.c.l.b16 %v28
  %v115 = vunpack.c.l.b16 %v29
  %v116 = vunpack.c.l.b16 %v30
  %v117 = vunpack.c.l.b16 %v31
  %v118 = vunpack.c.l.b16 %v32
  %v119 = vunpack.c.l.b16 %v33
  %v120 = vunpack.c.l.b16 %v34
  %v121 = vunpack.c.l.b16 %v35
  %v122 = vunpack.c.l.b16 %v36
  %v123 = vunpack.c.l.b16 %v37
  %v124 = vunpack.c.l.b16 %v38
  %v125 = vunpack.c.l.b16 %v39
  %v126 = vunpack.c.l.b16 %v40
  %v127 = vunpack.c.l.b16 %v41
  %v128 = vpack.c.b16 %v113, %v112
  %v129 = vpack.c.b16 %v115, %v114
  %v130 = vpack.c.b16 %v117, %v116
  %v131 = vpack.c.b16 %v119, %v118
  %v132 = vpack.c.b16 %v121, %v120
  %v133 = vpack.c.b16 %v123, %v122
  %v134 = vpack.c.b16 %v125, %v124
  %v135 = vpack.c.b16 %v127, %v126
  %v176 = vunpack.c.l.b16 %v42
  %v177 = vunpack.c.h.b16 %v42
  %v178 = vunpack.c.l.b16 %v43
  %v179 = vunpack.c.h.b16 %v43
  %v180 = vunpack.c.l.b16 %v44
  %v181 = vunpack.c.h.b16 %v44
  %v182 = vunpack.c.l.b16 %v45
  %v183 = vunpack.c.h.b16 %v45
  %v184 = vunpack.c.l.b16 %v46
  %v185 = vunpack.c.h.b16 %v46
  %v186 = vunpack.c.l.b16 %v47
  %v187 = vunpack.c.h.b16 %v47
  %v188 = vunpack.c.l.b16 %v48
  %v189 = vunpack.c.h.b16 %v48
  %v190 = vunpack.c.l.b16 %v49
  %v191 = vunpack.c.h.b16 %v49
  %v192 = vunpack.c.l.b16 %v50
  %v193 = vunpack.c.h.b16 %v50
  %v194 = vunpack.c.l.b16 %v51
  %v195 = vunpack.c.h.b16 %v51
  %v196 = vunpack.c.l.b16 %v52
  %v197 = vunpack.c.h.b16 %v52
  %v198 = vunpack.c.l.b16 %v53
  %v199 = vunpack.c.h.b16 %v53
  %v200 = vunpack.c.l.b16 %v54
  %v201 = vunpack.c.h.b16 %v54
  %v202 = vunpack.c.l.b16 %v55
  %v203 = vunpack.c.h.b16 %v55
  %v204 = vunpack.c.l.b16 %v56
  %v205 = vunpack.c.h.b16 %v56
  %v206 = vunpack.c.l.b16 %v57
  %v207 = vunpack.c.h.b16 %v57
  %v208 = vunpack.c.l.b16 %v58
  %v209 = vunpack.c.h.b16 %v58
  %v210 = vunpack.c.l.b16 %v59
  %v211 = vunpack.c.h.b16 %v59
  %v212 = vunpack.c.l.b16 %v60
  %v213 = vunpack.c.h.b16 %v60
  %v214 = vunpack.c.l.b16 %v61
  %v215 = vunpack.c.h.b16 %v61
  %v216 = vunpack.c.l.b16 %v62
  %v217 = vunpack.c.h.b16 %v62
  %v218 = vunpack.c.l.b16 %v63
  %v219 = vunpack.c.h.b16 %v63
  %v220 = vunpack.c.l.b16 %v64
  %v221 = vunpack.c.h.b16 %v64
  %v222 = vunpack.c.l.b16 %v65
  %v223 = vunpack.c.h.b16 %v65
  %v224 = vunpack.c.l.b16 %v66
  %v225 = vunpack.c.h.b16 %v66
  %v226 = vunpack.c.l.b16 %v67
  %v227 = vunpack.c.h.b16 %v67
  %v228 = vunpack.c.l.b16 %v68
  %v229 = vunpack.c.h.b16 %v68
  %v230 = vunpack.c.l.b16 %v69
  %v231 = vunpack.c.h.b16 %v69
  %v232 = vunpack.c.l.b16 %v70
  %v233 = vunpack.c.h.b16 %v70
  %v234 = vunpack.c.l.b16 %v71
  %v235 = vunpack.c.h.b16 %v71
  %v236 = vunpack.c.l.b16 %v72
  %v237 = vunpack.c.h.b16 %v72
  %v238 = vunpack.c.l.b16 %v73
  %v239 = vunpack.c.h.b16 %v73
  %v240 = vpack.c.b16 %v180, %v176
  %v241 = vpack.c.b16 %v181, %v177
  %v242 = vpack.c.b16 %v182, %v178
  %v243 = vpack.c.b16 %v183, %v179
  %v244 = vpack.c.b16 %v188, %v184
  %v245 = vpack.c.b16 %v189, %v185
  %v246 = vpack.c.b16 %v190, %v186
  %v247 = vpack.c.b16 %v191, %v187
  %v248 = vpack.c.b16 %v196, %v192
  %v249 = vpack.c.b16 %v197, %v193
  %v250 = vpack.c.b16 %v198, %v194
  %v251 = vpack.c.b16 %v199, %v195
  %v252 = vpack.c.b16 %v204, %v200
  %v253 = vpack.c.b16 %v205, %v201
  %v254 = vpack.c.b16 %v206, %v202
  %v255 = vpack.c.b16 %v207, %v203
  %v256 = vpack.c.b16 %v212, %v208
  %v257 = vpack.c.b16 %v213, %v209
  %v258 = vpack.c.b16 %v214, %v210
  %v259 = vpack.c.b16 %v215, %v211
  %v260 = vpack.c.b16 %v220, %v216
  %v261 = vpack.c.b16 %v221, %v217
  %v262 = vpack.c.b16 %v222, %v218
  %v263 = vpack.c.b16 %v223, %v219
  %v264 = vpack.c.b16 %v228, %v224
  %v265 = vpack.c.b16 %v229, %v225
  %v266 = vpack.c.b16 %v230, %v226
  %v267 = vpack.c.b16 %v231, %v227
  %v268 = vpack.c.b16 %v236, %v232
  %v269 = vpack.c.b16 %v237, %v233
  %v270 = vpack.c.b16 %v238, %v234
  %v271 = vpack.c.b16 %v239, %v235
  %304 = vmatprep.subr.bf16.mxu0 %v241
  %305 = vmatpush1.bf16.msra.mxu0 %v240
  %306 = vmatprep.subr.bf16.mxu0 %v245
  %307 = vmatpush1.bf16.msra.mxu0 %v244
  %308 = vmatprep.subr.bf16.mxu0 %v249
  %309 = vmatpush1.bf16.msra.mxu0 %v248
  %310 = vmatprep.subr.bf16.mxu0 %v253
  %311 = vmatpush1.bf16.msra.mxu0 %v252
  %312 = vmatprep.subr.bf16.mxu0 %v257
  %313 = vmatpush1.bf16.msra.mxu0 %v256
  %314 = vmatprep.subr.bf16.mxu0 %v261
  %315 = vmatpush1.bf16.msra.mxu0 %v260
  %316 = vmatprep.subr.bf16.mxu0 %v265
  %317 = vmatpush1.bf16.msra.mxu0 %v264
  %318 = vmatprep.subr.bf16.mxu0 %v269
  %319 = vmatpush1.bf16.msra.mxu0 %v268
  %320 = vmatprep.subr.bf16.mxu0 0
  %321 = vmatpush1.bf16.msra.mxu0 0
  %322 = vmatprep.subr.bf16.mxu0 0
  %323 = vmatpush1.bf16.msra.mxu0 0
  %324 = vmatprep.subr.bf16.mxu0 0
  %325 = vmatpush1.bf16.msra.mxu0 0
  %326 = vmatprep.subr.bf16.mxu0 0
  %327 = vmatpush1.bf16.msra.mxu0 0
  %328 = vmatprep.subr.bf16.mxu0 0
  %329 = vmatpush1.bf16.msra.mxu0 0
  %330 = vmatprep.subr.bf16.mxu0 0
  %331 = vmatpush1.bf16.msra.mxu0 0
  %332 = vmatprep.subr.bf16.mxu0 0
  %333 = vmatpush1.bf16.msra.mxu0 0
  %334 = vmatprep.subr.bf16.mxu0 0
  %335 = vmatpush1.bf16.msra.mxu0 0
  %336 = vmatprep.mubr.bf16.mxu0 0
  %337 = vmatmul.mubr.bf16.gmra.mrb[0].mxu0 %v128
  %v338 = vpop.f32.mrb[0].mxu0
  %v339 = vadd.f32 %v79, %v338
  %v340 = vpop.f32.mrb[0].mxu0
  %v341 = vadd.f32 %v83, %v340
  %v342 = vpop.f32.mrb[0].mxu0
  %v343 = vadd.f32 %v79, %v342
  %v344 = vpop.f32.mrb[0].mxu0
  %v345 = vadd.f32 %v83, %v344
  %346 = vmatprep.mubr.bf16.mxu0 0
  %347 = vmatmul.mubr.bf16.gmra.mrb[0].mxu0 %v129
  %v348 = vpop.f32.mrb[0].mxu0
  %v349 = vadd.f32 %v79, %v348
  %v350 = vpop.f32.mrb[0].mxu0
  %v351 = vadd.f32 %v83, %v350
  %v352 = vpop.f32.mrb[0].mxu0
  %v353 = vadd.f32 %v79, %v352
  %v354 = vpop.f32.mrb[0].mxu0
  %v355 = vadd.f32 %v83, %v354
  %356 = vmatprep.mubr.bf16.mxu0 0
  %357 = vmatmul.mubr.bf16.gmra.mrb[0].mxu0 %v130
  %v358 = vpop.f32.mrb[0].mxu0
  %v359 = vadd.f32 %v79, %v358
  %v360 = vpop.f32.mrb[0].mxu0
  %v361 = vadd.f32 %v83, %v360
  %v362 = vpop.f32.mrb[0].mxu0
  %v363 = vadd.f32 %v79, %v362
  %v364 = vpop.f32.mrb[0].mxu0
  %v365 = vadd.f32 %v83, %v364
  %366 = vmatprep.mubr.bf16.mxu0 0
  %367 = vmatmul.mubr.bf16.gmra.mrb[0].mxu0 %v131
  %v368 = vpop.f32.mrb[0].mxu0
  %v369 = vadd.f32 %v79, %v368
  %v370 = vpop.f32.mrb[0].mxu0
  %v371 = vadd.f32 %v83, %v370
  %v372 = vpop.f32.mrb[0].mxu0
  %v373 = vadd.f32 %v79, %v372
  %v374 = vpop.f32.mrb[0].mxu0
  %v375 = vadd.f32 %v83, %v374
  %376 = vmatprep.mubr.bf16.mxu0 0
  %377 = vmatmul.mubr.bf16.gmra.mrb[0].mxu0 %v132
  %v378 = vpop.f32.mrb[0].mxu0
  %v379 = vadd.f32 %v79, %v378
  %v380 = vpop.f32.mrb[0].mxu0
  %v381 = vadd.f32 %v83, %v380
  %v382 = vpop.f32.mrb[0].mxu0
  %v383 = vadd.f32 %v79, %v382
  %v384 = vpop.f32.mrb[0].mxu0
  %v385 = vadd.f32 %v83, %v384
  %386 = vmatprep.mubr.bf16.mxu0 0
  %387 = vmatmul.mubr.bf16.gmra.mrb[0].mxu0 %v133
  %v388 = vpop.f32.mrb[0].mxu0
  %v389 = vadd.f32 %v79, %v388
  %v390 = vpop.f32.mrb[0].mxu0
  %v391 = vadd.f32 %v83, %v390
  %v392 = vpop.f32.mrb[0].mxu0
  %v393 = vadd.f32 %v79, %v392
  %v394 = vpop.f32.mrb[0].mxu0
  %v395 = vadd.f32 %v83, %v394
  %396 = vmatprep.mubr.bf16.mxu0 0
  %397 = vmatmul.mubr.bf16.gmra.mrb[0].mxu0 %v134
  %v398 = vpop.f32.mrb[0].mxu0
  %v399 = vadd.f32 %v79, %v398
  %v400 = vpop.f32.mrb[0].mxu0
  %v401 = vadd.f32 %v83, %v400
  %v402 = vpop.f32.mrb[0].mxu0
  %v403 = vadd.f32 %v79, %v402
  %v404 = vpop.f32.mrb[0].mxu0
  %v405 = vadd.f32 %v83, %v404
  %406 = vmatprep.mubr.bf16.mxu0 0
  %407 = vmatmul.mubr.bf16.gmra.mrb[0].mxu0 %v135
  %v408 = vpop.f32.mrb[0].mxu0
  %v409 = vadd.f32 %v79, %v408
  %v410 = vpop.f32.mrb[0].mxu0
  %v411 = vadd.f32 %v83, %v410
  %v412 = vpop.f32.mrb[0].mxu0
  %v413 = vadd.f32 %v79, %v412
  %v414 = vpop.f32.mrb[0].mxu0
  %v415 = vadd.f32 %v83, %v414
  %416 = vdwg.mxu0
  %417 = vmatprep.subr.bf16.mxu0 %v243
  %418 = vmatpush1.bf16.msra.mxu0 %v242
  %419 = vmatprep.subr.bf16.mxu0 %v247
  %420 = vmatpush1.bf16.msra.mxu0 %v246
  %421 = vmatprep.subr.bf16.mxu0 %v251
  %422 = vmatpush1.bf16.msra.mxu0 %v250
  %423 = vmatprep.subr.bf16.mxu0 %v255
  %424 = vmatpush1.bf16.msra.mxu0 %v254
  %425 = vmatprep.subr.bf16.mxu0 %v259
  %426 = vmatpush1.bf16.msra.mxu0 %v258
  %427 = vmatprep.subr.bf16.mxu0 %v263
  %428 = vmatpush1.bf16.msra.mxu0 %v262
  %429 = vmatprep.subr.bf16.mxu0 %v267
  %430 = vmatpush1.bf16.msra.mxu0 %v266
  %431 = vmatprep.subr.bf16.mxu0 %v271
  %432 = vmatpush1.bf16.msra.mxu0 %v270
  %433 = vmatprep.subr.bf16.mxu0 0
  %434 = vmatpush1.bf16.msra.mxu0 0
  %435 = vmatprep.subr.bf16.mxu0 0
  %436 = vmatpush1.bf16.msra.mxu0 0
  %437 = vmatprep.subr.bf16.mxu0 0
  %438 = vmatpush1.bf16.msra.mxu0 0
  %439 = vmatprep.subr.bf16.mxu0 0
  %440 = vmatpush1.bf16.msra.mxu0 0
  %441 = vmatprep.subr.bf16.mxu0 0
  %442 = vmatpush1.bf16.msra.mxu0 0
  %443 = vmatprep.subr.bf16.mxu0 0
  %444 = vmatpush1.bf16.msra.mxu0 0
  %445 = vmatprep.subr.bf16.mxu0 0
  %446 = vmatpush1.bf16.msra.mxu0 0
  %447 = vmatprep.subr.bf16.mxu0 0
  %448 = vmatpush1.bf16.msra.mxu0 0
  %449 = vmatprep.mubr.bf16.mxu0 0
  %450 = vmatmul.mubr.bf16.gmra.mrb[0].mxu0 %v128
  %v451 = vpop.f32.mrb[0].mxu0
  %v452 = vadd.f32 %v87, %v451
  %v453 = vpop.f32.mrb[0].mxu0
  %v454 = vadd.f32 %v91, %v453
  %v455 = vpop.f32.mrb[0].mxu0
  %v456 = vadd.f32 %v87, %v455
  %v457 = vpop.f32.mrb[0].mxu0
  %v458 = vadd.f32 %v91, %v457
  %459 = vmatprep.mubr.bf16.mxu0 0
  %460 = vmatmul.mubr.bf16.gmra.mrb[0].mxu0 %v129
  %v461 = vpop.f32.mrb[0].mxu0
  %v462 = vadd.f32 %v87, %v461
  %v463 = vpop.f32.mrb[0].mxu0
  %v464 = vadd.f32 %v91, %v463
  %v465 = vpop.f32.mrb[0].mxu0
  %v466 = vadd.f32 %v87, %v465
  %v467 = vpop.f32.mrb[0].mxu0
  %v468 = vadd.f32 %v91, %v467
  %469 = vmatprep.mubr.bf16.mxu0 0
  %470 = vmatmul.mubr.bf16.gmra.mrb[0].mxu0 %v130
  %v471 = vpop.f32.mrb[0].mxu0
  %v472 = vadd.f32 %v87, %v471
  %v473 = vpop.f32.mrb[0].mxu0
  %v474 = vadd.f32 %v91, %v473
  %v475 = vpop.f32.mrb[0].mxu0
  %v476 = vadd.f32 %v87, %v475
  %v477 = vpop.f32.mrb[0].mxu0
  %v478 = vadd.f32 %v91, %v477
  %479 = vmatprep.mubr.bf16.mxu0 0
  %480 = vmatmul.mubr.bf16.gmra.mrb[0].mxu0 %v131
  %v481 = vpop.f32.mrb[0].mxu0
  %v482 = vadd.f32 %v87, %v481
  %v483 = vpop.f32.mrb[0].mxu0
  %v484 = vadd.f32 %v91, %v483
  %v485 = vpop.f32.mrb[0].mxu0
  %v486 = vadd.f32 %v87, %v485
  %v487 = vpop.f32.mrb[0].mxu0
  %v488 = vadd.f32 %v91, %v487
  %489 = vmatprep.mubr.bf16.mxu0 0
  %490 = vmatmul.mubr.bf16.gmra.mrb[0].mxu0 %v132
  %v491 = vpop.f32.mrb[0].mxu0
  %v492 = vadd.f32 %v87, %v491
  %v493 = vpop.f32.mrb[0].mxu0
  %v494 = vadd.f32 %v91, %v493
  %v495 = vpop.f32.mrb[0].mxu0
  %v496 = vadd.f32 %v87, %v495
  %v497 = vpop.f32.mrb[0].mxu0
  %v498 = vadd.f32 %v91, %v497
  %499 = vmatprep.mubr.bf16.mxu0 0
  %500 = vmatmul.mubr.bf16.gmra.mrb[0].mxu0 %v133
  %v501 = vpop.f32.mrb[0].mxu0
  %v502 = vadd.f32 %v87, %v501
  %v503 = vpop.f32.mrb[0].mxu0
  %v504 = vadd.f32 %v91, %v503
  %v505 = vpop.f32.mrb[0].mxu0
  %v506 = vadd.f32 %v87, %v505
  %v507 = vpop.f32.mrb[0].mxu0
  %v508 = vadd.f32 %v91, %v507
  %509 = vmatprep.mubr.bf16.mxu0 0
  %510 = vmatmul.mubr.bf16.gmra.mrb[0].mxu0 %v134
  %v511 = vpop.f32.mrb[0].mxu0
  %v512 = vadd.f32 %v87, %v511
  %v513 = vpop.f32.mrb[0].mxu0
  %v514 = vadd.f32 %v91, %v513
  %v515 = vpop.f32.mrb[0].mxu0
  %v516 = vadd.f32 %v87, %v515
  %v517 = vpop.f32.mrb[0].mxu0
  %v518 = vadd.f32 %v91, %v517
  %519 = vmatprep.mubr.bf16.mxu0 0
  %520 = vmatmul.mubr.bf16.gmra.mrb[0].mxu0 %v135
  %v521 = vpop.f32.mrb[0].mxu0
  %v522 = vadd.f32 %v87, %v521
  %v523 = vpop.f32.mrb[0].mxu0
  %v524 = vadd.f32 %v91, %v523
  %v525 = vpop.f32.mrb[0].mxu0
  %v526 = vadd.f32 %v87, %v525
  %v527 = vpop.f32.mrb[0].mxu0
  %v528 = vadd.f32 %v91, %v527
  %529 = vdwg.mxu0
  %v530 = vpack.c.bf16 %v343, %v339
  %v531 = vpack.c.bf16 %v345, %v341
  %v532 = vpack.c.bf16 %v456, %v452
  %v533 = vpack.c.bf16 %v458, %v454
  %v534 = vpack.c.bf16 %v353, %v349
  %v535 = vpack.c.bf16 %v355, %v351
  %v536 = vpack.c.bf16 %v466, %v462
  %v537 = vpack.c.bf16 %v468, %v464
  %v538 = vpack.c.bf16 %v363, %v359
  %v539 = vpack.c.bf16 %v365, %v361
  %v540 = vpack.c.bf16 %v476, %v472
  %v541 = vpack.c.bf16 %v478, %v474
  %v542 = vpack.c.bf16 %v373, %v369
  %v543 = vpack.c.bf16 %v375, %v371
  %v544 = vpack.c.bf16 %v486, %v482
  %v545 = vpack.c.bf16 %v488, %v484
  %v546 = vpack.c.bf16 %v383, %v379
  %v547 = vpack.c.bf16 %v385, %v381
  %v548 = vpack.c.bf16 %v496, %v492
  %v549 = vpack.c.bf16 %v498, %v494
  %v550 = vpack.c.bf16 %v393, %v389
  %v551 = vpack.c.bf16 %v395, %v391
  %v552 = vpack.c.bf16 %v506, %v502
  %v553 = vpack.c.bf16 %v508, %v504
  %v554 = vpack.c.bf16 %v403, %v399
  %v555 = vpack.c.bf16 %v405, %v401
  %v556 = vpack.c.bf16 %v516, %v512
  %v557 = vpack.c.bf16 %v518, %v514
  %v558 = vpack.c.bf16 %v413, %v409
  %v559 = vpack.c.bf16 %v415, %v411
  %v560 = vpack.c.bf16 %v526, %v522
  %v561 = vpack.c.bf16 %v528, %v524
  %562 = vst [vmem:[#allocation4] sm:$0xff] %v530
  %563 = vst [vmem:[#allocation4 + $0x8] sm:$0xff] %v531
  %564 = vst [vmem:[#allocation4 + $0x10] sm:$0xff] %v532
  %565 = vst [vmem:[#allocation4 + $0x18] sm:$0xff] %v533
  %566 = vst [vmem:[#allocation4 + $0x20] sm:$0xff] %v534
  %567 = vst [vmem:[#allocation4 + $0x28] sm:$0xff] %v535
  %568 = vst [vmem:[#allocation4 + $0x30] sm:$0xff] %v536
  %569 = vst [vmem:[#allocation4 + $0x38] sm:$0xff] %v537
  %570 = vst [vmem:[#allocation4 + $0x40] sm:$0xff] %v538
  %571 = vst [vmem:[#allocation4 + $0x48] sm:$0xff] %v539
  %572 = vst [vmem:[#allocation4 + $0x50] sm:$0xff] %v540
  %573 = vst [vmem:[#allocation4 + $0x58] sm:$0xff] %v541
  %574 = vst [vmem:[#allocation4 + $0x60] sm:$0xff] %v542
  %575 = vst [vmem:[#allocation4 + $0x68] sm:$0xff] %v543
  %576 = vst [vmem:[#allocation4 + $0x70] sm:$0xff] %v544
  %577 = vst [vmem:[#allocation4 + $0x78] sm:$0xff] %v545
  %578 = vst [vmem:[#allocation4 + $0x80] sm:$0xff] %v546
  %579 = vst [vmem:[#allocation4 + $0x88] sm:$0xff] %v547
  %580 = vst [vmem:[#allocation4 + $0x90] sm:$0xff] %v548
  %581 = vst [vmem:[#allocation4 + $0x98] sm:$0xff] %v549
  %582 = vst [vmem:[#allocation4 + $0xa0] sm:$0xff] %v550
  %583 = vst [vmem:[#allocation4 + $0xa8] sm:$0xff] %v551
  %584 = vst [vmem:[#allocation4 + $0xb0] sm:$0xff] %v552
  %585 = vst [vmem:[#allocation4 + $0xb8] sm:$0xff] %v553
  %586 = vst [vmem:[#allocation4 + $0xc0] sm:$0xff] %v554
  %587 = vst [vmem:[#allocation4 + $0xc8] sm:$0xff] %v555
  %588 = vst [vmem:[#allocation4 + $0xd0] sm:$0xff] %v556
  %589 = vst [vmem:[#allocation4 + $0xd8] sm:$0xff] %v557
  %590 = vst [vmem:[#allocation4 + $0xe0] sm:$0xff] %v558
  %591 = vst [vmem:[#allocation4 + $0xe8] sm:$0xff] %v559
  %592 = vst [vmem:[#allocation4 + $0xf0] sm:$0xff] %v560
  %593 = vst [vmem:[#allocation4 + $0xf8] sm:$0xff] %v561
  %v594 = vld [vmem:[#allocation2] sm:$0xff]
  %v595 = vld [vmem:[#allocation2 + $0x8] sm:$0xff]
  %v596 = vld [vmem:[#allocation3] sm:$0xff]
  %v597 = vld [vmem:[#allocation3 + $0x8] sm:$0xff]
  %v598 = vld [vmem:[#allocation4] sm:$0xff]
  %v599 = vld [vmem:[#allocation4 + $0x8] sm:$0xff]
  %v600 = vld [vmem:[#allocation4 + $0x10] sm:$0xff]
  %v601 = vld [vmem:[#allocation4 + $0x18] sm:$0xff]
  %v602 = vunpack.c.l.bf16 %v598
  %v603 = vunpack.c.l.bf16 %v599
  %v604 = vunpack.c.l.bf16 %v600
  %v605 = vunpack.c.l.bf16 %v601
  %v606 = vunpack.c.h.bf16 %v598
  %v607 = vunpack.c.h.bf16 %v599
  %v608 = vunpack.c.h.bf16 %v600
  %v609 = vunpack.c.h.bf16 %v601
  %v610 = vpack.c.bf16 %v595, %v594
  %v611 = vld [vmem:[%s2] sm:$0xff]
  %v612 = vld [vmem:[%s2 + $0x8] sm:$0xff]
  %v613 = vld [vmem:[%s2 + $0x10] sm:$0xff]
  %v614 = vld [vmem:[%s2 + $0x18] sm:$0xff]
  %v615 = vld [vmem:[%s2 + $0x20] sm:$0xff]
  %v616 = vld [vmem:[%s2 + $0x28] sm:$0xff]
  %v617 = vld [vmem:[%s2 + $0x30] sm:$0xff]
  %v618 = vld [vmem:[%s2 + $0x38] sm:$0xff]
  %v619 = vld [vmem:[%s2 + $0x40] sm:$0xff]
  %v620 = vld [vmem:[%s2 + $0x48] sm:$0xff]
  %v621 = vld [vmem:[%s2 + $0x50] sm:$0xff]
  %v622 = vld [vmem:[%s2 + $0x58] sm:$0xff]
  %v623 = vld [vmem:[%s2 + $0x60] sm:$0xff]
  %v624 = vld [vmem:[%s2 + $0x68] sm:$0xff]
  %v625 = vld [vmem:[%s2 + $0x70] sm:$0xff]
  %v626 = vld [vmem:[%s2 + $0x78] sm:$0xff]
  %v627 = vld [vmem:[%s2 + $0x80] sm:$0xff]
  %v628 = vld [vmem:[%s2 + $0x88] sm:$0xff]
  %v629 = vld [vmem:[%s2 + $0x90] sm:$0xff]
  %v630 = vld [vmem:[%s2 + $0x98] sm:$0xff]
  %v631 = vld [vmem:[%s2 + $0xa0] sm:$0xff]
  %v632 = vld [vmem:[%s2 + $0xa8] sm:$0xff]
  %v633 = vld [vmem:[%s2 + $0xb0] sm:$0xff]
  %v634 = vld [vmem:[%s2 + $0xb8] sm:$0xff]
  %v635 = vld [vmem:[%s2 + $0xc0] sm:$0xff]
  %v636 = vld [vmem:[%s2 + $0xc8] sm:$0xff]
  %v637 = vld [vmem:[%s2 + $0xd0] sm:$0xff]
  %v638 = vld [vmem:[%s2 + $0xd8] sm:$0xff]
  %v639 = vld [vmem:[%s2 + $0xe0] sm:$0xff]
  %v640 = vld [vmem:[%s2 + $0xe8] sm:$0xff]
  %v641 = vld [vmem:[%s2 + $0xf0] sm:$0xff]
  %v642 = vld [vmem:[%s2 + $0xf8] sm:$0xff]
  %v675 = vunpack.c.l.b16 %v611
  %v676 = vunpack.c.h.b16 %v611
  %v677 = vunpack.c.l.b16 %v612
  %v678 = vunpack.c.h.b16 %v612
  %v679 = vunpack.c.l.b16 %v613
  %v680 = vunpack.c.h.b16 %v613
  %v681 = vunpack.c.l.b16 %v614
  %v682 = vunpack.c.h.b16 %v614
  %v683 = vunpack.c.l.b16 %v615
  %v684 = vunpack.c.h.b16 %v615
  %v685 = vunpack.c.l.b16 %v616
  %v686 = vunpack.c.h.b16 %v616
  %v687 = vunpack.c.l.b16 %v617
  %v688 = vunpack.c.h.b16 %v617
  %v689 = vunpack.c.l.b16 %v618
  %v690 = vunpack.c.h.b16 %v618
  %v691 = vunpack.c.l.b16 %v619
  %v692 = vunpack.c.h.b16 %v619
  %v693 = vunpack.c.l.b16 %v620
  %v694 = vunpack.c.h.b16 %v620
  %v695 = vunpack.c.l.b16 %v621
  %v696 = vunpack.c.h.b16 %v621
  %v697 = vunpack.c.l.b16 %v622
  %v698 = vunpack.c.h.b16 %v622
  %v699 = vunpack.c.l.b16 %v623
  %v700 = vunpack.c.h.b16 %v623
  %v701 = vunpack.c.l.b16 %v624
  %v702 = vunpack.c.h.b16 %v624
  %v703 = vunpack.c.l.b16 %v625
  %v704 = vunpack.c.h.b16 %v625
  %v705 = vunpack.c.l.b16 %v626
  %v706 = vunpack.c.h.b16 %v626
  %v707 = vunpack.c.l.b16 %v627
  %v708 = vunpack.c.h.b16 %v627
  %v709 = vunpack.c.l.b16 %v628
  %v710 = vunpack.c.h.b16 %v628
  %v711 = vunpack.c.l.b16 %v629
  %v712 = vunpack.c.h.b16 %v629
  %v713 = vunpack.c.l.b16 %v630
  %v714 = vunpack.c.h.b16 %v630
  %v715 = vunpack.c.l.b16 %v631
  %v716 = vunpack.c.h.b16 %v631
  %v717 = vunpack.c.l.b16 %v632
  %v718 = vunpack.c.h.b16 %v632
  %v719 = vunpack.c.l.b16 %v633
  %v720 = vunpack.c.h.b16 %v633
  %v721 = vunpack.c.l.b16 %v634
  %v722 = vunpack.c.h.b16 %v634
  %v723 = vunpack.c.l.b16 %v635
  %v724 = vunpack.c.h.b16 %v635
  %v725 = vunpack.c.l.b16 %v636
  %v726 = vunpack.c.h.b16 %v636
  %v727 = vunpack.c.l.b16 %v637
  %v728 = vunpack.c.h.b16 %v637
  %v729 = vunpack.c.l.b16 %v638
  %v730 = vunpack.c.h.b16 %v638
  %v731 = vunpack.c.l.b16 %v639
  %v732 = vunpack.c.h.b16 %v639
  %v733 = vunpack.c.l.b16 %v640
  %v734 = vunpack.c.h.b16 %v640
  %v735 = vunpack.c.l.b16 %v641
  %v736 = vunpack.c.h.b16 %v641
  %v737 = vunpack.c.l.b16 %v642
  %v738 = vunpack.c.h.b16 %v642
  %v739 = vpack.c.b16 %v679, %v675
  %v740 = vpack.c.b16 %v680, %v676
  %v741 = vpack.c.b16 %v681, %v677
  %v742 = vpack.c.b16 %v682, %v678
  %v743 = vpack.c.b16 %v687, %v683
  %v744 = vpack.c.b16 %v688, %v684
  %v745 = vpack.c.b16 %v689, %v685
  %v746 = vpack.c.b16 %v690, %v686
  %v747 = vpack.c.b16 %v695, %v691
  %v748 = vpack.c.b16 %v696, %v692
  %v749 = vpack.c.b16 %v697, %v693
  %v750 = vpack.c.b16 %v698, %v694
  %v751 = vpack.c.b16 %v703, %v699
  %v752 = vpack.c.b16 %v704, %v700
  %v753 = vpack.c.b16 %v705, %v701
  %v754 = vpack.c.b16 %v706, %v702
  %v755 = vpack.c.b16 %v711, %v707
  %v756 = vpack.c.b16 %v712, %v708
  %v757 = vpack.c.b16 %v713, %v709
  %v758 = vpack.c.b16 %v714, %v710
  %v759 = vpack.c.b16 %v719, %v715
  %v760 = vpack.c.b16 %v720, %v716
  %v761 = vpack.c.b16 %v721, %v717
  %v762 = vpack.c.b16 %v722, %v718
  %v763 = vpack.c.b16 %v727, %v723
  %v764 = vpack.c.b16 %v728, %v724
  %v765 = vpack.c.b16 %v729, %v725
  %v766 = vpack.c.b16 %v730, %v726
  %v767 = vpack.c.b16 %v735, %v731
  %v768 = vpack.c.b16 %v736, %v732
  %v769 = vpack.c.b16 %v737, %v733
  %v770 = vpack.c.b16 %v738, %v734
  %803 = vmatprep.subr.bf16.mxu0 %v740
  %804 = vmatpush1.bf16.msra.mxu0 %v739
  %805 = vmatprep.subr.bf16.mxu0 %v744
  %806 = vmatpush1.bf16.msra.mxu0 %v743
  %807 = vmatprep.subr.bf16.mxu0 %v748
  %808 = vmatpush1.bf16.msra.mxu0 %v747
  %809 = vmatprep.subr.bf16.mxu0 %v752
  %810 = vmatpush1.bf16.msra.mxu0 %v751
  %811 = vmatprep.subr.bf16.mxu0 %v756
  %812 = vmatpush1.bf16.msra.mxu0 %v755
  %813 = vmatprep.subr.bf16.mxu0 %v760
  %814 = vmatpush1.bf16.msra.mxu0 %v759
  %815 = vmatprep.subr.bf16.mxu0 %v764
  %816 = vmatpush1.bf16.msra.mxu0 %v763
  %817 = vmatprep.subr.bf16.mxu0 %v768
  %818 = vmatpush1.bf16.msra.mxu0 %v767
  %819 = vmatprep.subr.bf16.mxu0 0
  %820 = vmatpush1.bf16.msra.mxu0 0
  %821 = vmatprep.subr.bf16.mxu0 0
  %822 = vmatpush1.bf16.msra.mxu0 0
  %823 = vmatprep.subr.bf16.mxu0 0
  %824 = vmatpush1.bf16.msra.mxu0 0
  %825 = vmatprep.subr.bf16.mxu0 0
  %826 = vmatpush1.bf16.msra.mxu0 0
  %827 = vmatprep.subr.bf16.mxu0 0
  %828 = vmatpush1.bf16.msra.mxu0 0
  %829 = vmatprep.subr.bf16.mxu0 0
  %830 = vmatpush1.bf16.msra.mxu0 0
  %831 = vmatprep.subr.bf16.mxu0 0
  %832 = vmatpush1.bf16.msra.mxu0 0
  %833 = vmatprep.subr.bf16.mxu0 0
  %834 = vmatpush1.bf16.msra.mxu0 0
  %835 = vmatprep.mubr.bf16.mxu0 0
  %836 = vmatmul.mubr.bf16.gmra.mrb[0].mxu0 %v610
  %v837 = vpop.f32.mrb[0].mxu0
  %v838 = vadd.f32 0.0, %v837
  %v839 = vpop.f32.mrb[0].mxu0
  %v840 = vadd.f32 0.0, %v839
  %v841 = vpop.f32.mrb[0].mxu0
  %v842 = vadd.f32 0.0, %v841
  %v843 = vpop.f32.mrb[0].mxu0
  %v844 = vadd.f32 0.0, %v843
  %845 = vdwg.mxu0
  %846 = vmatprep.subr.bf16.mxu0 %v742
  %847 = vmatpush1.bf16.msra.mxu0 %v741
  %848 = vmatprep.subr.bf16.mxu0 %v746
  %849 = vmatpush1.bf16.msra.mxu0 %v745
  %850 = vmatprep.subr.bf16.mxu0 %v750
  %851 = vmatpush1.bf16.msra.mxu0 %v749
  %852 = vmatprep.subr.bf16.mxu0 %v754
  %853 = vmatpush1.bf16.msra.mxu0 %v753
  %854 = vmatprep.subr.bf16.mxu0 %v758
  %855 = vmatpush1.bf16.msra.mxu0 %v757
  %856 = vmatprep.subr.bf16.mxu0 %v762
  %857 = vmatpush1.bf16.msra.mxu0 %v761
  %858 = vmatprep.subr.bf16.mxu0 %v766
  %859 = vmatpush1.bf16.msra.mxu0 %v765
  %860 = vmatprep.subr.bf16.mxu0 %v770
  %861 = vmatpush1.bf16.msra.mxu0 %v769
  %862 = vmatprep.subr.bf16.mxu0 0
  %863 = vmatpush1.bf16.msra.mxu0 0
  %864 = vmatprep.subr.bf16.mxu0 0
  %865 = vmatpush1.bf16.msra.mxu0 0
  %866 = vmatprep.subr.bf16.mxu0 0
  %867 = vmatpush1.bf16.msra.mxu0 0
  %868 = vmatprep.subr.bf16.mxu0 0
  %869 = vmatpush1.bf16.msra.mxu0 0
  %870 = vmatprep.subr.bf16.mxu0 0
  %871 = vmatpush1.bf16.msra.mxu0 0
  %872 = vmatprep.subr.bf16.mxu0 0
  %873 = vmatpush1.bf16.msra.mxu0 0
  %874 = vmatprep.subr.bf16.mxu0 0
  %875 = vmatpush1.bf16.msra.mxu0 0
  %876 = vmatprep.subr.bf16.mxu0 0
  %877 = vmatpush1.bf16.msra.mxu0 0
  %878 = vmatprep.mubr.bf16.mxu0 0
  %879 = vmatmul.mubr.bf16.gmra.mrb[0].mxu0 %v610
  %v880 = vpop.f32.mrb[0].mxu0
  %v881 = vadd.f32 0.0, %v880
  %v882 = vpop.f32.mrb[0].mxu0
  %v883 = vadd.f32 0.0, %v882
  %v884 = vpop.f32.mrb[0].mxu0
  %v885 = vadd.f32 0.0, %v884
  %v886 = vpop.f32.mrb[0].mxu0
  %v887 = vadd.f32 0.0, %v886
  %888 = vdwg.mxu0
  %v889 = vadd.f32 %v602, %v838
  %v890 = vadd.f32 %v603, %v840
  %v891 = vadd.f32 %v604, %v881
  %v892 = vadd.f32 %v605, %v883
  %v893 = vadd.f32 %v606, %v842
  %v894 = vadd.f32 %v607, %v844
  %v895 = vadd.f32 %v608, %v885
  %v896 = vadd.f32 %v609, %v887
  %v897 = vxor.u32 %v889, 2147483648
  %v898 = vxor.u32 %v893, 2147483648
  %v899 = vmul.f32 %v897, 1.442695
  %v900 = vpow.pop %v899
  %v901 = vmul.f32 %v898, 1.442695
  %v902 = vpow.pop %v901
  %v903 = vadd.f32 %v900, 1.0
  %v904 = vadd.f32 %v902, 1.0
  %v905 = vrcp.pop %v903
  %v906 = vmul.f32 1.0, %v905
  %v907 = vrcp.pop %v904
  %v908 = vmul.f32 1.0, %v907
  %v909 = vxor.u32 %v890, 2147483648
  %v910 = vxor.u32 %v894, 2147483648
  %v911 = vmul.f32 %v909, 1.442695
  %v912 = vpow.pop %v911
  %v913 = vmul.f32 %v910, 1.442695
  %v914 = vpow.pop %v913
  %v915 = vadd.f32 %v912, 1.0
  %v916 = vadd.f32 %v914, 1.0
  %v917 = vrcp.pop %v915
  %v918 = vmul.f32 1.0, %v917
  %v919 = vrcp.pop %v916
  %v920 = vmul.f32 1.0, %v919
  %v921 = vtanh.pop %v891
  %v922 = vtanh.pop %v895
  %v923 = vxor.u32 %v892, 2147483648
  %v924 = vxor.u32 %v896, 2147483648
  %v925 = vmul.f32 %v923, 1.442695
  %v926 = vpow.pop %v925
  %v927 = vmul.f32 %v924, 1.442695
  %v928 = vpow.pop %v927
  %v929 = vadd.f32 %v926, 1.0
  %v930 = vadd.f32 %v928, 1.0
  %v931 = vrcp.pop %v929
  %v932 = vmul.f32 1.0, %v931
  %v933 = vrcp.pop %v930
  %v934 = vmul.f32 1.0, %v933
  %v935 = vmul.f32 %v918, %v596
  %v936 = vmul.f32 %v920, %v597
  %v937 = vmul.f32 %v906, %v921
  %v938 = vmul.f32 %v908, %v922
  %v939 = vadd.f32 %v935, %v937
  %v940 = vadd.f32 %v936, %v938
  %v941 = vtanh.pop %v939
  %v942 = vtanh.pop %v940
  %v943 = vmul.f32 %v932, %v941
  %v944 = vmul.f32 %v934, %v942
  %945 = vst [vmem:[#allocation2] sm:$0xff] %v943
  %946 = vst [vmem:[#allocation2 + $0x8] sm:$0xff] %v944
  %947 = vst [vmem:[#allocation3] sm:$0xff] %v939
  %948 = vst [vmem:[#allocation3 + $0x8] sm:$0xff] %v940
  %v949 = vpack.c.bf16 %v944, %v943
  %v951 = vunpack.c.l.b16 %v949
  %v952 = vunpack.c.h.b16 %v949
  %v953 = vpack.c.b16 %v951, %v951
  %v954 = vpack.c.b16 %v952, %v952
  %957 = vst [vmem:[%s4] sm:$0xf] %v953
  %958 = vst [vmem:[%s4 + $0x4] sm:$0xf] %v954
  %v959 = vld [vmem:[#allocation2] sm:$0xff]
  %v960 = vld [vmem:[#allocation2 + $0x8] sm:$0xff]
  %v961 = vld [vmem:[#allocation3] sm:$0xff]
  %v962 = vld [vmem:[#allocation3 + $0x8] sm:$0xff]
  %s963 = scalar_lea.vmem [#allocation4], 32
  %v964 = vld [vmem:[%s963] sm:$0xff]
  %v965 = vld [vmem:[%s963 + $0x8] sm:$0xff]
  %v966 = vld [vmem:[%s963 + $0x10] sm:$0xff]
  %v967 = vld [vmem:[%s963 + $0x18] sm:$0xff]
  %v968 = vunpack.c.l.bf16 %v964
  %v969 = vunpack.c.l.bf16 %v965
  %v970 = vunpack.c.l.bf16 %v966
  %v971 = vunpack.c.l.bf16 %v967
  %v972 = vunpack.c.h.bf16 %v964
  %v973 = vunpack.c.h.bf16 %v965
  %v974 = vunpack.c.h.bf16 %v966
  %v975 = vunpack.c.h.bf16 %v967
  %v976 = vpack.c.bf16 %v960, %v959
  %v977 = vld [vmem:[%s2] sm:$0xff]
  %v978 = vld [vmem:[%s2 + $0x8] sm:$0xff]
  %v979 = vld [vmem:[%s2 + $0x10] sm:$0xff]
  %v980 = vld [vmem:[%s2 + $0x18] sm:$0xff]
  %v981 = vld [vmem:[%s2 + $0x20] sm:$0xff]
  %v982 = vld [vmem:[%s2 + $0x28] sm:$0xff]
  %v983 = vld [vmem:[%s2 + $0x30] sm:$0xff]
  %v984 = vld [vmem:[%s2 + $0x38] sm:$0xff]
  %v985 = vld [vmem:[%s2 + $0x40] sm:$0xff]
  %v986 = vld [vmem:[%s2 + $0x48] sm:$0xff]
  %v987 = vld [vmem:[%s2 + $0x50] sm:$0xff]
  %v988 = vld [vmem:[%s2 + $0x58] sm:$0xff]
  %v989 = vld [vmem:[%s2 + $0x60] sm:$0xff]
  %v990 = vld [vmem:[%s2 + $0x68] sm:$0xff]
  %v991 = vld [vmem:[%s2 + $0x70] sm:$0xff]
  %v992 = vld [vmem:[%s2 + $0x78] sm:$0xff]
  %v993 = vld [vmem:[%s2 + $0x80] sm:$0xff]
  %v994 = vld [vmem:[%s2 + $0x88] sm:$0xff]
  %v995 = vld [vmem:[%s2 + $0x90] sm:$0xff]
  %v996 = vld [vmem:[%s2 + $0x98] sm:$0xff]
  %v997 = vld [vmem:[%s2 + $0xa0] sm:$0xff]
  %v998 = vld [vmem:[%s2 + $0xa8] sm:$0xff]
  %v999 = vld [vmem:[%s2 + $0xb0] sm:$0xff]
  %v1000 = vld [vmem:[%s2 + $0xb8] sm:$0xff]
  %v1001 = vld [vmem:[%s2 + $0xc0] sm:$0xff]
  %v1002 = vld [vmem:[%s2 + $0xc8] sm:$0xff]
  %v1003 = vld [vmem:[%s2 + $0xd0] sm:$0xff]
  %v1004 = vld [vmem:[%s2 + $0xd8] sm:$0xff]
  %v1005 = vld [vmem:[%s2 + $0xe0] sm:$0xff]
  %v1006 = vld [vmem:[%s2 + $0xe8] sm:$0xff]
  %v1007 = vld [vmem:[%s2 + $0xf0] sm:$0xff]
  %v1008 = vld [vmem:[%s2 + $0xf8] sm:$0xff]
  %v1041 = vunpack.c.l.b16 %v977
  %v1042 = vunpack.c.h.b16 %v977
  %v1043 = vunpack.c.l.b16 %v978
  %v1044 = vunpack.c.h.b16 %v978
  %v1045 = vunpack.c.l.b16 %v979
  %v1046 = vunpack.c.h.b16 %v979
  %v1047 = vunpack.c.l.b16 %v980
  %v1048 = vunpack.c.h.b16 %v980
  %v1049 = vunpack.c.l.b16 %v981
  %v1050 = vunpack.c.h.b16 %v981
  %v1051 = vunpack.c.l.b16 %v982
  %v1052 = vunpack.c.h.b16 %v982
  %v1053 = vunpack.c.l.b16 %v983
  %v1054 = vunpack.c.h.b16 %v983
  %v1055 = vunpack.c.l.b16 %v984
  %v1056 = vunpack.c.h.b16 %v984
  %v1057 = vunpack.c.l.b16 %v985
  %v1058 = vunpack.c.h.b16 %v985
  %v1059 = vunpack.c.l.b16 %v986
  %v1060 = vunpack.c.h.b16 %v986
  %v1061 = vunpack.c.l.b16 %v987
  %v1062 = vunpack.c.h.b16 %v987
  %v1063 = vunpack.c.l.b16 %v988
  %v1064 = vunpack.c.h.b16 %v988
  %v1065 = vunpack.c.l.b16 %v989
  %v1066 = vunpack.c.h.b16 %v989
  %v1067 = vunpack.c.l.b16 %v990
  %v1068 = vunpack.c.h.b16 %v990
  %v1069 = vunpack.c.l.b16 %v991
  %v1070 = vunpack.c.h.b16 %v991
  %v1071 = vunpack.c.l.b16 %v992
  %v1072 = vunpack.c.h.b16 %v992
  %v1073 = vunpack.c.l.b16 %v993
  %v1074 = vunpack.c.h.b16 %v993
  %v1075 = vunpack.c.l.b16 %v994
  %v1076 = vunpack.c.h.b16 %v994
  %v1077 = vunpack.c.l.b16 %v995
  %v1078 = vunpack.c.h.b16 %v995
  %v1079 = vunpack.c.l.b16 %v996
  %v1080 = vunpack.c.h.b16 %v996
  %v1081 = vunpack.c.l.b16 %v997
  %v1082 = vunpack.c.h.b16 %v997
  %v1083 = vunpack.c.l.b16 %v998
  %v1084 = vunpack.c.h.b16 %v998
  %v1085 = vunpack.c.l.b16 %v999
  %v1086 = vunpack.c.h.b16 %v999
  %v1087 = vunpack.c.l.b16 %v1000
  %v1088 = vunpack.c.h.b16 %v1000
  %v1089 = vunpack.c.l.b16 %v1001
  %v1090 = vunpack.c.h.b16 %v1001
  %v1091 = vunpack.c.l.b16 %v1002
  %v1092 = vunpack.c.h.b16 %v1002
  %v1093 = vunpack.c.l.b16 %v1003
  %v1094 = vunpack.c.h.b16 %v1003
  %v1095 = vunpack.c.l.b16 %v1004
  %v1096 = vunpack.c.h.b16 %v1004
  %v1097 = vunpack.c.l.b16 %v1005
  %v1098 = vunpack.c.h.b16 %v1005
  %v1099 = vunpack.c.l.b16 %v1006
  %v1100 = vunpack.c.h.b16 %v1006
  %v1101 = vunpack.c.l.b16 %v1007
  %v1102 = vunpack.c.h.b16 %v1007
  %v1103 = vunpack.c.l.b16 %v1008
  %v1104 = vunpack.c.h.b16 %v1008
  %v1105 = vpack.c.b16 %v1045, %v1041
  %v1106 = vpack.c.b16 %v1046, %v1042
  %v1107 = vpack.c.b16 %v1047, %v1043
  %v1108 = vpack.c.b16 %v1048, %v1044
  %v1109 = vpack.c.b16 %v1053, %v1049
  %v1110 = vpack.c.b16 %v1054, %v1050
  %v1111 = vpack.c.b16 %v1055, %v1051
  %v1112 = vpack.c.b16 %v1056, %v1052
  %v1113 = vpack.c.b16 %v1061, %v1057
  %v1114 = vpack.c.b16 %v1062, %v1058
  %v1115 = vpack.c.b16 %v1063, %v1059
  %v1116 = vpack.c.b16 %v1064, %v1060
  %v1117 = vpack.c.b16 %v1069, %v1065
  %v1118 = vpack.c.b16 %v1070, %v1066
  %v1119 = vpack.c.b16 %v1071, %v1067
  %v1120 = vpack.c.b16 %v1072, %v1068
  %v1121 = vpack.c.b16 %v1077, %v1073
  %v1122 = vpack.c.b16 %v1078, %v1074
  %v1123 = vpack.c.b16 %v1079, %v1075
  %v1124 = vpack.c.b16 %v1080, %v1076
  %v1125 = vpack.c.b16 %v1085, %v1081
  %v1126 = vpack.c.b16 %v1086, %v1082
  %v1127 = vpack.c.b16 %v1087, %v1083
  %v1128 = vpack.c.b16 %v1088, %v1084
  %v1129 = vpack.c.b16 %v1093, %v1089
  %v1130 = vpack.c.b16 %v1094, %v1090
  %v1131 = vpack.c.b16 %v1095, %v1091
  %v1132 = vpack.c.b16 %v1096, %v1092
  %v1133 = vpack.c.b16 %v1101, %v1097
  %v1134 = vpack.c.b16 %v1102, %v1098
  %v1135 = vpack.c.b16 %v1103, %v1099
  %v1136 = vpack.c.b16 %v1104, %v1100
  %1169 = vmatprep.subr.bf16.mxu0 %v1106
  %1170 = vmatpush1.bf16.msra.mxu0 %v1105
  %1171 = vmatprep.subr.bf16.mxu0 %v1110
  %1172 = vmatpush1.bf16.msra.mxu0 %v1109
  %1173 = vmatprep.subr.bf16.mxu0 %v1114
  %1174 = vmatpush1.bf16.msra.mxu0 %v1113
  %1175 = vmatprep.subr.bf16.mxu0 %v1118
  %1176 = vmatpush1.bf16.msra.mxu0 %v1117
  %1177 = vmatprep.subr.bf16.mxu0 %v1122
  %1178 = vmatpush1.bf16.msra.mxu0 %v1121
  %1179 = vmatprep.subr.bf16.mxu0 %v1126
  %1180 = vmatpush1.bf16.msra.mxu0 %v1125
  %1181 = vmatprep.subr.bf16.mxu0 %v1130
  %1182 = vmatpush1.bf16.msra.mxu0 %v1129
  %1183 = vmatprep.subr.bf16.mxu0 %v1134
  %1184 = vmatpush1.bf16.msra.mxu0 %v1133
  %1185 = vmatprep.subr.bf16.mxu0 0
  %1186 = vmatpush1.bf16.msra.mxu0 0
  %1187 = vmatprep.subr.bf16.mxu0 0
  %1188 = vmatpush1.bf16.msra.mxu0 0
  %1189 = vmatprep.subr.bf16.mxu0 0
  %1190 = vmatpush1.bf16.msra.mxu0 0
  %1191 = vmatprep.subr.bf16.mxu0 0
  %1192 = vmatpush1.bf16.msra.mxu0 0
  %1193 = vmatprep.subr.bf16.mxu0 0
  %1194 = vmatpush1.bf16.msra.mxu0 0
  %1195 = vmatprep.subr.bf16.mxu0 0
  %1196 = vmatpush1.bf16.msra.mxu0 0
  %1197 = vmatprep.subr.bf16.mxu0 0
  %1198 = vmatpush1.bf16.msra.mxu0 0
  %1199 = vmatprep.subr.bf16.mxu0 0
  %1200 = vmatpush1.bf16.msra.mxu0 0
  %1201 = vmatprep.mubr.bf16.mxu0 0
  %1202 = vmatmul.mubr.bf16.gmra.mrb[0].mxu0 %v976
  %v1203 = vpop.f32.mrb[0].mxu0
  %v1204 = vadd.f32 0.0, %v1203
  %v1205 = vpop.f32.mrb[0].mxu0
  %v1206 = vadd.f32 0.0, %v1205
  %v1207 = vpop.f32.mrb[0].mxu0
  %v1208 = vadd.f32 0.0, %v1207
  %v1209 = vpop.f32.mrb[0].mxu0
  %v1210 = vadd.f32 0.0, %v1209
  %1211 = vdwg.mxu0
  %1212 = vmatprep.subr.bf16.mxu0 %v1108
  %1213 = vmatpush1.bf16.msra.mxu0 %v1107
  %1214 = vmatprep.subr.bf16.mxu0 %v1112
  %1215 = vmatpush1.bf16.msra.mxu0 %v1111
  %1216 = vmatprep.subr.bf16.mxu0 %v1116
  %1217 = vmatpush1.bf16.msra.mxu0 %v1115
  %1218 = vmatprep.subr.bf16.mxu0 %v1120
  %1219 = vmatpush1.bf16.msra.mxu0 %v1119
  %1220 = vmatprep.subr.bf16.mxu0 %v1124
  %1221 = vmatpush1.bf16.msra.mxu0 %v1123
  %1222 = vmatprep.subr.bf16.mxu0 %v1128
  %1223 = vmatpush1.bf16.msra.mxu0 %v1127
  %1224 = vmatprep.subr.bf16.mxu0 %v1132
  %1225 = vmatpush1.bf16.msra.mxu0 %v1131
  %1226 = vmatprep.subr.bf16.mxu0 %v1136
  %1227 = vmatpush1.bf16.msra.mxu0 %v1135
  %1228 = vmatprep.subr.bf16.mxu0 0
  %1229 = vmatpush1.bf16.msra.mxu0 0
  %1230 = vmatprep.subr.bf16.mxu0 0
  %1231 = vmatpush1.bf16.msra.mxu0 0
  %1232 = vmatprep.subr.bf16.mxu0 0
  %1233 = vmatpush1.bf16.msra.mxu0 0
  %1234 = vmatprep.subr.bf16.mxu0 0
  %1235 = vmatpush1.bf16.msra.mxu0 0
  %1236 = vmatprep.subr.bf16.mxu0 0
  %1237 = vmatpush1.bf16.msra.mxu0 0
  %1238 = vmatprep.subr.bf16.mxu0 0
  %1239 = vmatpush1.bf16.msra.mxu0 0
  %1240 = vmatprep.subr.bf16.mxu0 0
  %1241 = vmatpush1.bf16.msra.mxu0 0
  %1242 = vmatprep.subr.bf16.mxu0 0
  %1243 = vmatpush1.bf16.msra.mxu0 0
  %1244 = vmatprep.mubr.bf16.mxu0 0
  %1245 = vmatmul.mubr.bf16.gmra.mrb[0].mxu0 %v976
  %v1246 = vpop.f32.mrb[0].mxu0
  %v1247 = vadd.f32 0.0, %v1246
  %v1248 = vpop.f32.mrb[0].mxu0
  %v1249 = vadd.f32 0.0, %v1248
  %v1250 = vpop.f32.mrb[0].mxu0
  %v1251 = vadd.f32 0.0, %v1250
  %v1252 = vpop.f32.mrb[0].mxu0
  %v1253 = vadd.f32 0.0, %v1252
  %1254 = vdwg.mxu0
  %v1255 = vadd.f32 %v968, %v1204
  %v1256 = vadd.f32 %v969, %v1206
  %v1257 = vadd.f32 %v970, %v1247
  %v1258 = vadd.f32 %v971, %v1249
  %v1259 = vadd.f32 %v972, %v1208
  %v1260 = vadd.f32 %v973, %v1210
  %v1261 = vadd.f32 %v974, %v1251
  %v1262 = vadd.f32 %v975, %v1253
  %v1263 = vxor.u32 %v1255, 2147483648
  %v1264 = vxor.u32 %v1259, 2147483648
  %v1265 = vmul.f32 %v1263, 1.442695
  %v1266 = vpow.pop %v1265
  %v1267 = vmul.f32 %v1264, 1.442695
  %v1268 = vpow.pop %v1267
  %v1269 = vadd.f32 %v1266, 1.0
  %v1270 = vadd.f32 %v1268, 1.0
  %v1271 = vrcp.pop %v1269
  %v1272 = vmul.f32 1.0, %v1271
  %v1273 = vrcp.pop %v1270
  %v1274 = vmul.f32 1.0, %v1273
  %v1275 = vxor.u32 %v1256, 2147483648
  %v1276 = vxor.u32 %v1260, 2147483648
  %v1277 = vmul.f32 %v1275, 1.442695
  %v1278 = vpow.pop %v1277
  %v1279 = vmul.f32 %v1276, 1.442695
  %v1280 = vpow.pop %v1279
  %v1281 = vadd.f32 %v1278, 1.0
  %v1282 = vadd.f32 %v1280, 1.0
  %v1283 = vrcp.pop %v1281
  %v1284 = vmul.f32 1.0, %v1283
  %v1285 = vrcp.pop %v1282
  %v1286 = vmul.f32 1.0, %v1285
  %v1287 = vtanh.pop %v1257
  %v1288 = vtanh.pop %v1261
  %v1289 = vxor.u32 %v1258, 2147483648
  %v1290 = vxor.u32 %v1262, 2147483648
  %v1291 = vmul.f32 %v1289, 1.442695
  %v1292 = vpow.pop %v1291
  %v1293 = vmul.f32 %v1290, 1.442695
  %v1294 = vpow.pop %v1293
  %v1295 = vadd.f32 %v1292, 1.0
  %v1296 = vadd.f32 %v1294, 1.0
  %v1297 = vrcp.pop %v1295
  %v1298 = vmul.f32 1.0, %v1297
  %v1299 = vrcp.pop %v1296
  %v1300 = vmul.f32 1.0, %v1299
  %v1301 = vmul.f32 %v1284, %v961
  %v1302 = vmul.f32 %v1286, %v962
  %v1303 = vmul.f32 %v1272, %v1287
  %v1304 = vmul.f32 %v1274, %v1288
  %v1305 = vadd.f32 %v1301, %v1303
  %v1306 = vadd.f32 %v1302, %v1304
  %v1307 = vtanh.pop %v1305
  %v1308 = vtanh.pop %v1306
  %v1309 = vmul.f32 %v1298, %v1307
  %v1310 = vmul.f32 %v1300, %v1308
  %1311 = vst [vmem:[#allocation2] sm:$0xff] %v1309
  %1312 = vst [vmem:[#allocation2 + $0x8] sm:$0xff] %v1310
  %1313 = vst [vmem:[#allocation3] sm:$0xff] %v1305
  %1314 = vst [vmem:[#allocation3 + $0x8] sm:$0xff] %v1306
  %v1315 = vpack.c.bf16 %v1310, %v1309
  %v1317 = vunpack.c.l.b16 %v1315
  %v1318 = vunpack.c.h.b16 %v1315
  %v1319 = vpack.c.b16 %v1317, %v1317
  %v1320 = vpack.c.b16 %v1318, %v1318
  %s1323 = scalar_lea.vmem %s4, 8
  %1324 = vst [vmem:[%s1323] sm:$0xf] %v1319
  %1325 = vst [vmem:[%s1323 + $0x4] sm:$0xf] %v1320
  %v1326 = vld [vmem:[#allocation2] sm:$0xff]
  %v1327 = vld [vmem:[#allocation2 + $0x8] sm:$0xff]
  %v1328 = vld [vmem:[#allocation3] sm:$0xff]
  %v1329 = vld [vmem:[#allocation3 + $0x8] sm:$0xff]
  %s1330 = scalar_lea.vmem [#allocation4], 64
  %v1331 = vld [vmem:[%s1330] sm:$0xff]
  %v1332 = vld [vmem:[%s1330 + $0x8] sm:$0xff]
  %v1333 = vld [vmem:[%s1330 + $0x10] sm:$0xff]
  %v1334 = vld [vmem:[%s1330 + $0x18] sm:$0xff]
  %v1335 = vunpack.c.l.bf16 %v1331
  %v1336 = vunpack.c.l.bf16 %v1332
  %v1337 = vunpack.c.l.bf16 %v1333
  %v1338 = vunpack.c.l.bf16 %v1334
  %v1339 = vunpack.c.h.bf16 %v1331
  %v1340 = vunpack.c.h.bf16 %v1332
  %v1341 = vunpack.c.h.bf16 %v1333
  %v1342 = vunpack.c.h.bf16 %v1334
  %v1343 = vpack.c.bf16 %v1327, %v1326
  %v1344 = vld [vmem:[%s2] sm:$0xff]
  %v1345 = vld [vmem:[%s2 + $0x8] sm:$0xff]
  %v1346 = vld [vmem:[%s2 + $0x10] sm:$0xff]
  %v1347 = vld [vmem:[%s2 + $0x18] sm:$0xff]
  %v1348 = vld [vmem:[%s2 + $0x20] sm:$0xff]
  %v1349 = vld [vmem:[%s2 + $0x28] sm:$0xff]
  %v1350 = vld [vmem:[%s2 + $0x30] sm:$0xff]
  %v1351 = vld [vmem:[%s2 + $0x38] sm:$0xff]
  %v1352 = vld [vmem:[%s2 + $0x40] sm:$0xff]
  %v1353 = vld [vmem:[%s2 + $0x48] sm:$0xff]
  %v1354 = vld [vmem:[%s2 + $0x50] sm:$0xff]
  %v1355 = vld [vmem:[%s2 + $0x58] sm:$0xff]
  %v1356 = vld [vmem:[%s2 + $0x60] sm:$0xff]
  %v1357 = vld [vmem:[%s2 + $0x68] sm:$0xff]
  %v1358 = vld [vmem:[%s2 + $0x70] sm:$0xff]
  %v1359 = vld [vmem:[%s2 + $0x78] sm:$0xff]
  %v1360 = vld [vmem:[%s2 + $0x80] sm:$0xff]
  %v1361 = vld [vmem:[%s2 + $0x88] sm:$0xff]
  %v1362 = vld [vmem:[%s2 + $0x90] sm:$0xff]
  %v1363 = vld [vmem:[%s2 + $0x98] sm:$0xff]
  %v1364 = vld [vmem:[%s2 + $0xa0] sm:$0xff]
  %v1365 = vld [vmem:[%s2 + $0xa8] sm:$0xff]
  %v1366 = vld [vmem:[%s2 + $0xb0] sm:$0xff]
  %v1367 = vld [vmem:[%s2 + $0xb8] sm:$0xff]
  %v1368 = vld [vmem:[%s2 + $0xc0] sm:$0xff]
  %v1369 = vld [vmem:[%s2 + $0xc8] sm:$0xff]
  %v1370 = vld [vmem:[%s2 + $0xd0] sm:$0xff]
  %v1371 = vld [vmem:[%s2 + $0xd8] sm:$0xff]
  %v1372 = vld [vmem:[%s2 + $0xe0] sm:$0xff]
  %v1373 = vld [vmem:[%s2 + $0xe8] sm:$0xff]
  %v1374 = vld [vmem:[%s2 + $0xf0] sm:$0xff]
  %v1375 = vld [vmem:[%s2 + $0xf8] sm:$0xff]
  %v1408 = vunpack.c.l.b16 %v1344
  %v1409 = vunpack.c.h.b16 %v1344
  %v1410 = vunpack.c.l.b16 %v1345
  %v1411 = vunpack.c.h.b16 %v1345
  %v1412 = vunpack.c.l.b16 %v1346
  %v1413 = vunpack.c.h.b16 %v1346
  %v1414 = vunpack.c.l.b16 %v1347
  %v1415 = vunpack.c.h.b16 %v1347
  %v1416 = vunpack.c.l.b16 %v1348
  %v1417 = vunpack.c.h.b16 %v1348
  %v1418 = vunpack.c.l.b16 %v1349
  %v1419 = vunpack.c.h.b16 %v1349
  %v1420 = vunpack.c.l.b16 %v1350
  %v1421 = vunpack.c.h.b16 %v1350
  %v1422 = vunpack.c.l.b16 %v1351
  %v1423 = vunpack.c.h.b16 %v1351
  %v1424 = vunpack.c.l.b16 %v1352
  %v1425 = vunpack.c.h.b16 %v1352
  %v1426 = vunpack.c.l.b16 %v1353
  %v1427 = vunpack.c.h.b16 %v1353
  %v1428 = vunpack.c.l.b16 %v1354
  %v1429 = vunpack.c.h.b16 %v1354
  %v1430 = vunpack.c.l.b16 %v1355
  %v1431 = vunpack.c.h.b16 %v1355
  %v1432 = vunpack.c.l.b16 %v1356
  %v1433 = vunpack.c.h.b16 %v1356
  %v1434 = vunpack.c.l.b16 %v1357
  %v1435 = vunpack.c.h.b16 %v1357
  %v1436 = vunpack.c.l.b16 %v1358
  %v1437 = vunpack.c.h.b16 %v1358
  %v1438 = vunpack.c.l.b16 %v1359
  %v1439 = vunpack.c.h.b16 %v1359
  %v1440 = vunpack.c.l.b16 %v1360
  %v1441 = vunpack.c.h.b16 %v1360
  %v1442 = vunpack.c.l.b16 %v1361
  %v1443 = vunpack.c.h.b16 %v1361
  %v1444 = vunpack.c.l.b16 %v1362
  %v1445 = vunpack.c.h.b16 %v1362
  %v1446 = vunpack.c.l.b16 %v1363
  %v1447 = vunpack.c.h.b16 %v1363
  %v1448 = vunpack.c.l.b16 %v1364
  %v1449 = vunpack.c.h.b16 %v1364
  %v1450 = vunpack.c.l.b16 %v1365
  %v1451 = vunpack.c.h.b16 %v1365
  %v1452 = vunpack.c.l.b16 %v1366
  %v1453 = vunpack.c.h.b16 %v1366
  %v1454 = vunpack.c.l.b16 %v1367
  %v1455 = vunpack.c.h.b16 %v1367
  %v1456 = vunpack.c.l.b16 %v1368
  %v1457 = vunpack.c.h.b16 %v1368
  %v1458 = vunpack.c.l.b16 %v1369
  %v1459 = vunpack.c.h.b16 %v1369
  %v1460 = vunpack.c.l.b16 %v1370
  %v1461 = vunpack.c.h.b16 %v1370
  %v1462 = vunpack.c.l.b16 %v1371
  %v1463 = vunpack.c.h.b16 %v1371
  %v1464 = vunpack.c.l.b16 %v1372
  %v1465 = vunpack.c.h.b16 %v1372
  %v1466 = vunpack.c.l.b16 %v1373
  %v1467 = vunpack.c.h.b16 %v1373
  %v1468 = vunpack.c.l.b16 %v1374
  %v1469 = vunpack.c.h.b16 %v1374
  %v1470 = vunpack.c.l.b16 %v1375
  %v1471 = vunpack.c.h.b16 %v1375
  %v1472 = vpack.c.b16 %v1412, %v1408
  %v1473 = vpack.c.b16 %v1413, %v1409
  %v1474 = vpack.c.b16 %v1414, %v1410
  %v1475 = vpack.c.b16 %v1415, %v1411
  %v1476 = vpack.c.b16 %v1420, %v1416
  %v1477 = vpack.c.b16 %v1421, %v1417
  %v1478 = vpack.c.b16 %v1422, %v1418
  %v1479 = vpack.c.b16 %v1423, %v1419
  %v1480 = vpack.c.b16 %v1428, %v1424
  %v1481 = vpack.c.b16 %v1429, %v1425
  %v1482 = vpack.c.b16 %v1430, %v1426
  %v1483 = vpack.c.b16 %v1431, %v1427
  %v1484 = vpack.c.b16 %v1436, %v1432
  %v1485 = vpack.c.b16 %v1437, %v1433
  %v1486 = vpack.c.b16 %v1438, %v1434
  %v1487 = vpack.c.b16 %v1439, %v1435
  %v1488 = vpack.c.b16 %v1444, %v1440
  %v1489 = vpack.c.b16 %v1445, %v1441
  %v1490 = vpack.c.b16 %v1446, %v1442
  %v1491 = vpack.c.b16 %v1447, %v1443
  %v1492 = vpack.c.b16 %v1452, %v1448
  %v1493 = vpack.c.b16 %v1453, %v1449
  %v1494 = vpack.c.b16 %v1454, %v1450
  %v1495 = vpack.c.b16 %v1455, %v1451
  %v1496 = vpack.c.b16 %v1460, %v1456
  %v1497 = vpack.c.b16 %v1461, %v1457
  %v1498 = vpack.c.b16 %v1462, %v1458
  %v1499 = vpack.c.b16 %v1463, %v1459
  %v1500 = vpack.c.b16 %v1468, %v1464
  %v1501 = vpack.c.b16 %v1469, %v1465
  %v1502 = vpack.c.b16 %v1470, %v1466
  %v1503 = vpack.c.b16 %v1471, %v1467
  %1536 = vmatprep.subr.bf16.mxu0 %v1473
  %1537 = vmatpush1.bf16.msra.mxu0 %v1472
  %1538 = vmatprep.subr.bf16.mxu0 %v1477
  %1539 = vmatpush1.bf16.msra.mxu0 %v1476
  %1540 = vmatprep.subr.bf16.mxu0 %v1481
  %1541 = vmatpush1.bf16.msra.mxu0 %v1480
  %1542 = vmatprep.subr.bf16.mxu0 %v1485
  %1543 = vmatpush1.bf16.msra.mxu0 %v1484
  %1544 = vmatprep.subr.bf16.mxu0 %v1489
  %1545 = vmatpush1.bf16.msra.mxu0 %v1488
  %1546 = vmatprep.subr.bf16.mxu0 %v1493
  %1547 = vmatpush1.bf16.msra.mxu0 %v1492
  %1548 = vmatprep.subr.bf16.mxu0 %v1497
  %1549 = vmatpush1.bf16.msra.mxu0 %v1496
  %1550 = vmatprep.subr.bf16.mxu0 %v1501
  %1551 = vmatpush1.bf16.msra.mxu0 %v1500
  %1552 = vmatprep.subr.bf16.mxu0 0
  %1553 = vmatpush1.bf16.msra.mxu0 0
  %1554 = vmatprep.subr.bf16.mxu0 0
  %1555 = vmatpush1.bf16.msra.mxu0 0
  %1556 = vmatprep.subr.bf16.mxu0 0
  %1557 = vmatpush1.bf16.msra.mxu0 0
  %1558 = vmatprep.subr.bf16.mxu0 0
  %1559 = vmatpush1.bf16.msra.mxu0 0
  %1560 = vmatprep.subr.bf16.mxu0 0
  %1561 = vmatpush1.bf16.msra.mxu0 0
  %1562 = vmatprep.subr.bf16.mxu0 0
  %1563 = vmatpush1.bf16.msra.mxu0 0
  %1564 = vmatprep.subr.bf16.mxu0 0
  %1565 = vmatpush1.bf16.msra.mxu0 0
  %1566 = vmatprep.subr.bf16.mxu0 0
  %1567 = vmatpush1.bf16.msra.mxu0 0
  %1568 = vmatprep.mubr.bf16.mxu0 0
  %1569 = vmatmul.mubr.bf16.gmra.mrb[0].mxu0 %v1343
  %v1570 = vpop.f32.mrb[0].mxu0
  %v1571 = vadd.f32 0.0, %v1570
  %v1572 = vpop.f32.mrb[0].mxu0
  %v1573 = vadd.f32 0.0, %v1572
  %v1574 = vpop.f32.mrb[0].mxu0
  %v1575 = vadd.f32 0.0, %v1574
  %v1576 = vpop.f32.mrb[0].mxu0
  %v1577 = vadd.f32 0.0, %v1576
  %1578 = vdwg.mxu0
  %1579 = vmatprep.subr.bf16.mxu0 %v1475
  %1580 = vmatpush1.bf16.msra.mxu0 %v1474
  %1581 = vmatprep.subr.bf16.mxu0 %v1479
  %1582 = vmatpush1.bf16.msra.mxu0 %v1478
  %1583 = vmatprep.subr.bf16.mxu0 %v1483
  %1584 = vmatpush1.bf16.msra.mxu0 %v1482
  %1585 = vmatprep.subr.bf16.mxu0 %v1487
  %1586 = vmatpush1.bf16.msra.mxu0 %v1486
  %1587 = vmatprep.subr.bf16.mxu0 %v1491
  %1588 = vmatpush1.bf16.msra.mxu0 %v1490
  %1589 = vmatprep.subr.bf16.mxu0 %v1495
  %1590 = vmatpush1.bf16.msra.mxu0 %v1494
  %1591 = vmatprep.subr.bf16.mxu0 %v1499
  %1592 = vmatpush1.bf16.msra.mxu0 %v1498
  %1593 = vmatprep.subr.bf16.mxu0 %v1503
  %1594 = vmatpush1.bf16.msra.mxu0 %v1502
  %1595 = vmatprep.subr.bf16.mxu0 0
  %1596 = vmatpush1.bf16.msra.mxu0 0
  %1597 = vmatprep.subr.bf16.mxu0 0
  %1598 = vmatpush1.bf16.msra.mxu0 0
  %1599 = vmatprep.subr.bf16.mxu0 0
  %1600 = vmatpush1.bf16.msra.mxu0 0
  %1601 = vmatprep.subr.bf16.mxu0 0
  %1602 = vmatpush1.bf16.msra.mxu0 0
  %1603 = vmatprep.subr.bf16.mxu0 0
  %1604 = vmatpush1.bf16.msra.mxu0 0
  %1605 = vmatprep.subr.bf16.mxu0 0
  %1606 = vmatpush1.bf16.msra.mxu0 0
  %1607 = vmatprep.subr.bf16.mxu0 0
  %1608 = vmatpush1.bf16.msra.mxu0 0
  %1609 = vmatprep.subr.bf16.mxu0 0
  %1610 = vmatpush1.bf16.msra.mxu0 0
  %1611 = vmatprep.mubr.bf16.mxu0 0
  %1612 = vmatmul.mubr.bf16.gmra.mrb[0].mxu0 %v1343
  %v1613 = vpop.f32.mrb[0].mxu0
  %v1614 = vadd.f32 0.0, %v1613
  %v1615 = vpop.f32.mrb[0].mxu0
  %v1616 = vadd.f32 0.0, %v1615
  %v1617 = vpop.f32.mrb[0].mxu0
  %v1618 = vadd.f32 0.0, %v1617
  %v1619 = vpop.f32.mrb[0].mxu0
  %v1620 = vadd.f32 0.0, %v1619
  %1621 = vdwg.mxu0
  %v1622 = vadd.f32 %v1335, %v1571
  %v1623 = vadd.f32 %v1336, %v1573
  %v1624 = vadd.f32 %v1337, %v1614
  %v1625 = vadd.f32 %v1338, %v1616
  %v1626 = vadd.f32 %v1339, %v1575
  %v1627 = vadd.f32 %v1340, %v1577
  %v1628 = vadd.f32 %v1341, %v1618
  %v1629 = vadd.f32 %v1342, %v1620
  %v1630 = vxor.u32 %v1622, 2147483648
  %v1631 = vxor.u32 %v1626, 2147483648
  %v1632 = vmul.f32 %v1630, 1.442695
  %v1633 = vpow.pop %v1632
  %v1634 = vmul.f32 %v1631, 1.442695
  %v1635 = vpow.pop %v1634
  %v1636 = vadd.f32 %v1633, 1.0
  %v1637 = vadd.f32 %v1635, 1.0
  %v1638 = vrcp.pop %v1636
  %v1639 = vmul.f32 1.0, %v1638
  %v1640 = vrcp.pop %v1637
  %v1641 = vmul.f32 1.0, %v1640
  %v1642 = vxor.u32 %v1623, 2147483648
  %v1643 = vxor.u32 %v1627, 2147483648
  %v1644 = vmul.f32 %v1642, 1.442695
  %v1645 = vpow.pop %v1644
  %v1646 = vmul.f32 %v1643, 1.442695
  %v1647 = vpow.pop %v1646
  %v1648 = vadd.f32 %v1645, 1.0
  %v1649 = vadd.f32 %v1647, 1.0
  %v1650 = vrcp.pop %v1648
  %v1651 = vmul.f32 1.0, %v1650
  %v1652 = vrcp.pop %v1649
  %v1653 = vmul.f32 1.0, %v1652
  %v1654 = vtanh.pop %v1624
  %v1655 = vtanh.pop %v1628
  %v1656 = vxor.u32 %v1625, 2147483648
  %v1657 = vxor.u32 %v1629, 2147483648
  %v1658 = vmul.f32 %v1656, 1.442695
  %v1659 = vpow.pop %v1658
  %v1660 = vmul.f32 %v1657, 1.442695
  %v1661 = vpow.pop %v1660
  %v1662 = vadd.f32 %v1659, 1.0
  %v1663 = vadd.f32 %v1661, 1.0
  %v1664 = vrcp.pop %v1662
  %v1665 = vmul.f32 1.0, %v1664
  %v1666 = vrcp.pop %v1663
  %v1667 = vmul.f32 1.0, %v1666
  %v1668 = vmul.f32 %v1651, %v1328
  %v1669 = vmul.f32 %v1653, %v1329
  %v1670 = vmul.f32 %v1639, %v1654
  %v1671 = vmul.f32 %v1641, %v1655
  %v1672 = vadd.f32 %v1668, %v1670
  %v1673 = vadd.f32 %v1669, %v1671
  %v1674 = vtanh.pop %v1672
  %v1675 = vtanh.pop %v1673
  %v1676 = vmul.f32 %v1665, %v1674
  %v1677 = vmul.f32 %v1667, %v1675
  %1678 = vst [vmem:[#allocation2] sm:$0xff] %v1676
  %1679 = vst [vmem:[#allocation2 + $0x8] sm:$0xff] %v1677
  %1680 = vst [vmem:[#allocation3] sm:$0xff] %v1672
  %1681 = vst [vmem:[#allocation3 + $0x8] sm:$0xff] %v1673
  %v1682 = vpack.c.bf16 %v1677, %v1676
  %v1684 = vunpack.c.l.b16 %v1682
  %v1685 = vunpack.c.h.b16 %v1682
  %v1686 = vpack.c.b16 %v1684, %v1684
  %v1687 = vpack.c.b16 %v1685, %v1685
  %s1690 = scalar_lea.vmem %s4, 16
  %1691 = vst [vmem:[%s1690] sm:$0xf] %v1686
  %1692 = vst [vmem:[%s1690 + $0x4] sm:$0xf] %v1687
  %v1693 = vld [vmem:[#allocation2] sm:$0xff]
  %v1694 = vld [vmem:[#allocation2 + $0x8] sm:$0xff]
  %v1695 = vld [vmem:[#allocation3] sm:$0xff]
  %v1696 = vld [vmem:[#allocation3 + $0x8] sm:$0xff]
  %s1697 = scalar_lea.vmem [#allocation4], 96
  %v1698 = vld [vmem:[%s1697] sm:$0xff]
  %v1699 = vld [vmem:[%s1697 + $0x8] sm:$0xff]
  %v1700 = vld [vmem:[%s1697 + $0x10] sm:$0xff]
  %v1701 = vld [vmem:[%s1697 + $0x18] sm:$0xff]
  %v1702 = vunpack.c.l.bf16 %v1698
  %v1703 = vunpack.c.l.bf16 %v1699
  %v1704 = vunpack.c.l.bf16 %v1700
  %v1705 = vunpack.c.l.bf16 %v1701
  %v1706 = vunpack.c.h.bf16 %v1698
  %v1707 = vunpack.c.h.bf16 %v1699
  %v1708 = vunpack.c.h.bf16 %v1700
  %v1709 = vunpack.c.h.bf16 %v1701
  %v1710 = vpack.c.bf16 %v1694, %v1693
  %v1711 = vld [vmem:[%s2] sm:$0xff]
  %v1712 = vld [vmem:[%s2 + $0x8] sm:$0xff]
  %v1713 = vld [vmem:[%s2 + $0x10] sm:$0xff]
  %v1714 = vld [vmem:[%s2 + $0x18] sm:$0xff]
  %v1715 = vld [vmem:[%s2 + $0x20] sm:$0xff]
  %v1716 = vld [vmem:[%s2 + $0x28] sm:$0xff]
  %v1717 = vld [vmem:[%s2 + $0x30] sm:$0xff]
  %v1718 = vld [vmem:[%s2 + $0x38] sm:$0xff]
  %v1719 = vld [vmem:[%s2 + $0x40] sm:$0xff]
  %v1720 = vld [vmem:[%s2 + $0x48] sm:$0xff]
  %v1721 = vld [vmem:[%s2 + $0x50] sm:$0xff]
  %v1722 = vld [vmem:[%s2 + $0x58] sm:$0xff]
  %v1723 = vld [vmem:[%s2 + $0x60] sm:$0xff]
  %v1724 = vld [vmem:[%s2 + $0x68] sm:$0xff]
  %v1725 = vld [vmem:[%s2 + $0x70] sm:$0xff]
  %v1726 = vld [vmem:[%s2 + $0x78] sm:$0xff]
  %v1727 = vld [vmem:[%s2 + $0x80] sm:$0xff]
  %v1728 = vld [vmem:[%s2 + $0x88] sm:$0xff]
  %v1729 = vld [vmem:[%s2 + $0x90] sm:$0xff]
  %v1730 = vld [vmem:[%s2 + $0x98] sm:$0xff]
  %v1731 = vld [vmem:[%s2 + $0xa0] sm:$0xff]
  %v1732 = vld [vmem:[%s2 + $0xa8] sm:$0xff]
  %v1733 = vld [vmem:[%s2 + $0xb0] sm:$0xff]
  %v1734 = vld [vmem:[%s2 + $0xb8] sm:$0xff]
  %v1735 = vld [vmem:[%s2 + $0xc0] sm:$0xff]
  %v1736 = vld [vmem:[%s2 + $0xc8] sm:$0xff]
  %v1737 = vld [vmem:[%s2 + $0xd0] sm:$0xff]
  %v1738 = vld [vmem:[%s2 + $0xd8] sm:$0xff]
  %v1739 = vld [vmem:[%s2 + $0xe0] sm:$0xff]
  %v1740 = vld [vmem:[%s2 + $0xe8] sm:$0xff]
  %v1741 = vld [vmem:[%s2 + $0xf0] sm:$0xff]
  %v1742 = vld [vmem:[%s2 + $0xf8] sm:$0xff]
  %v1775 = vunpack.c.l.b16 %v1711
  %v1776 = vunpack.c.h.b16 %v1711
  %v1777 = vunpack.c.l.b16 %v1712
  %v1778 = vunpack.c.h.b16 %v1712
  %v1779 = vunpack.c.l.b16 %v1713
  %v1780 = vunpack.c.h.b16 %v1713
  %v1781 = vunpack.c.l.b16 %v1714
  %v1782 = vunpack.c.h.b16 %v1714
  %v1783 = vunpack.c.l.b16 %v1715
  %v1784 = vunpack.c.h.b16 %v1715
  %v1785 = vunpack.c.l.b16 %v1716
  %v1786 = vunpack.c.h.b16 %v1716
  %v1787 = vunpack.c.l.b16 %v1717
  %v1788 = vunpack.c.h.b16 %v1717
  %v1789 = vunpack.c.l.b16 %v1718
  %v1790 = vunpack.c.h.b16 %v1718
  %v1791 = vunpack.c.l.b16 %v1719
  %v1792 = vunpack.c.h.b16 %v1719
  %v1793 = vunpack.c.l.b16 %v1720
  %v1794 = vunpack.c.h.b16 %v1720
  %v1795 = vunpack.c.l.b16 %v1721
  %v1796 = vunpack.c.h.b16 %v1721
  %v1797 = vunpack.c.l.b16 %v1722
  %v1798 = vunpack.c.h.b16 %v1722
  %v1799 = vunpack.c.l.b16 %v1723
  %v1800 = vunpack.c.h.b16 %v1723
  %v1801 = vunpack.c.l.b16 %v1724
  %v1802 = vunpack.c.h.b16 %v1724
  %v1803 = vunpack.c.l.b16 %v1725
  %v1804 = vunpack.c.h.b16 %v1725
  %v1805 = vunpack.c.l.b16 %v1726
  %v1806 = vunpack.c.h.b16 %v1726
  %v1807 = vunpack.c.l.b16 %v1727
  %v1808 = vunpack.c.h.b16 %v1727
  %v1809 = vunpack.c.l.b16 %v1728
  %v1810 = vunpack.c.h.b16 %v1728
  %v1811 = vunpack.c.l.b16 %v1729
  %v1812 = vunpack.c.h.b16 %v1729
  %v1813 = vunpack.c.l.b16 %v1730
  %v1814 = vunpack.c.h.b16 %v1730
  %v1815 = vunpack.c.l.b16 %v1731
  %v1816 = vunpack.c.h.b16 %v1731
  %v1817 = vunpack.c.l.b16 %v1732
  %v1818 = vunpack.c.h.b16 %v1732
  %v1819 = vunpack.c.l.b16 %v1733
  %v1820 = vunpack.c.h.b16 %v1733
  %v1821 = vunpack.c.l.b16 %v1734
  %v1822 = vunpack.c.h.b16 %v1734
  %v1823 = vunpack.c.l.b16 %v1735
  %v1824 = vunpack.c.h.b16 %v1735
  %v1825 = vunpack.c.l.b16 %v1736
  %v1826 = vunpack.c.h.b16 %v1736
  %v1827 = vunpack.c.l.b16 %v1737
  %v1828 = vunpack.c.h.b16 %v1737
  %v1829 = vunpack.c.l.b16 %v1738
  %v1830 = vunpack.c.h.b16 %v1738
  %v1831 = vunpack.c.l.b16 %v1739
  %v1832 = vunpack.c.h.b16 %v1739
  %v1833 = vunpack.c.l.b16 %v1740
  %v1834 = vunpack.c.h.b16 %v1740
  %v1835 = vunpack.c.l.b16 %v1741
  %v1836 = vunpack.c.h.b16 %v1741
  %v1837 = vunpack.c.l.b16 %v1742
  %v1838 = vunpack.c.h.b16 %v1742
  %v1839 = vpack.c.b16 %v1779, %v1775
  %v1840 = vpack.c.b16 %v1780, %v1776
  %v1841 = vpack.c.b16 %v1781, %v1777
  %v1842 = vpack.c.b16 %v1782, %v1778
  %v1843 = vpack.c.b16 %v1787, %v1783
  %v1844 = vpack.c.b16 %v1788, %v1784
  %v1845 = vpack.c.b16 %v1789, %v1785
  %v1846 = vpack.c.b16 %v1790, %v1786
  %v1847 = vpack.c.b16 %v1795, %v1791
  %v1848 = vpack.c.b16 %v1796, %v1792
  %v1849 = vpack.c.b16 %v1797, %v1793
  %v1850 = vpack.c.b16 %v1798, %v1794
  %v1851 = vpack.c.b16 %v1803, %v1799
  %v1852 = vpack.c.b16 %v1804, %v1800
  %v1853 = vpack.c.b16 %v1805, %v1801
  %v1854 = vpack.c.b16 %v1806, %v1802
  %v1855 = vpack.c.b16 %v1811, %v1807
  %v1856 = vpack.c.b16 %v1812, %v1808
  %v1857 = vpack.c.b16 %v1813, %v1809
  %v1858 = vpack.c.b16 %v1814, %v1810
  %v1859 = vpack.c.b16 %v1819, %v1815
  %v1860 = vpack.c.b16 %v1820, %v1816
  %v1861 = vpack.c.b16 %v1821, %v1817
  %v1862 = vpack.c.b16 %v1822, %v1818
  %v1863 = vpack.c.b16 %v1827, %v1823
  %v1864 = vpack.c.b16 %v1828, %v1824
  %v1865 = vpack.c.b16 %v1829, %v1825
  %v1866 = vpack.c.b16 %v1830, %v1826
  %v1867 = vpack.c.b16 %v1835, %v1831
  %v1868 = vpack.c.b16 %v1836, %v1832
  %v1869 = vpack.c.b16 %v1837, %v1833
  %v1870 = vpack.c.b16 %v1838, %v1834
  %1903 = vmatprep.subr.bf16.mxu0 %v1840
  %1904 = vmatpush1.bf16.msra.mxu0 %v1839
  %1905 = vmatprep.subr.bf16.mxu0 %v1844
  %1906 = vmatpush1.bf16.msra.mxu0 %v1843
  %1907 = vmatprep.subr.bf16.mxu0 %v1848
  %1908 = vmatpush1.bf16.msra.mxu0 %v1847
  %1909 = vmatprep.subr.bf16.mxu0 %v1852
  %1910 = vmatpush1.bf16.msra.mxu0 %v1851
  %1911 = vmatprep.subr.bf16.mxu0 %v1856
  %1912 = vmatpush1.bf16.msra.mxu0 %v1855
  %1913 = vmatprep.subr.bf16.mxu0 %v1860
  %1914 = vmatpush1.bf16.msra.mxu0 %v1859
  %1915 = vmatprep.subr.bf16.mxu0 %v1864
  %1916 = vmatpush1.bf16.msra.mxu0 %v1863
  %1917 = vmatprep.subr.bf16.mxu0 %v1868
  %1918 = vmatpush1.bf16.msra.mxu0 %v1867
  %1919 = vmatprep.subr.bf16.mxu0 0
  %1920 = vmatpush1.bf16.msra.mxu0 0
  %1921 = vmatprep.subr.bf16.mxu0 0
  %1922 = vmatpush1.bf16.msra.mxu0 0
  %1923 = vmatprep.subr.bf16.mxu0 0
  %1924 = vmatpush1.bf16.msra.mxu0 0
  %1925 = vmatprep.subr.bf16.mxu0 0
  %1926 = vmatpush1.bf16.msra.mxu0 0
  %1927 = vmatprep.subr.bf16.mxu0 0
  %1928 = vmatpush1.bf16.msra.mxu0 0
  %1929 = vmatprep.subr.bf16.mxu0 0
  %1930 = vmatpush1.bf16.msra.mxu0 0
  %1931 = vmatprep.subr.bf16.mxu0 0
  %1932 = vmatpush1.bf16.msra.mxu0 0
  %1933 = vmatprep.subr.bf16.mxu0 0
  %1934 = vmatpush1.bf16.msra.mxu0 0
  %1935 = vmatprep.mubr.bf16.mxu0 0
  %1936 = vmatmul.mubr.bf16.gmra.mrb[0].mxu0 %v1710
  %v1937 = vpop.f32.mrb[0].mxu0
  %v1938 = vadd.f32 0.0, %v1937
  %v1939 = vpop.f32.mrb[0].mxu0
  %v1940 = vadd.f32 0.0, %v1939
  %v1941 = vpop.f32.mrb[0].mxu0
  %v1942 = vadd.f32 0.0, %v1941
  %v1943 = vpop.f32.mrb[0].mxu0
  %v1944 = vadd.f32 0.0, %v1943
  %1945 = vdwg.mxu0
  %1946 = vmatprep.subr.bf16.mxu0 %v1842
  %1947 = vmatpush1.bf16.msra.mxu0 %v1841
  %1948 = vmatprep.subr.bf16.mxu0 %v1846
  %1949 = vmatpush1.bf16.msra.mxu0 %v1845
  %1950 = vmatprep.subr.bf16.mxu0 %v1850
  %1951 = vmatpush1.bf16.msra.mxu0 %v1849
  %1952 = vmatprep.subr.bf16.mxu0 %v1854
  %1953 = vmatpush1.bf16.msra.mxu0 %v1853
  %1954 = vmatprep.subr.bf16.mxu0 %v1858
  %1955 = vmatpush1.bf16.msra.mxu0 %v1857
  %1956 = vmatprep.subr.bf16.mxu0 %v1862
  %1957 = vmatpush1.bf16.msra.mxu0 %v1861
  %1958 = vmatprep.subr.bf16.mxu0 %v1866
  %1959 = vmatpush1.bf16.msra.mxu0 %v1865
  %1960 = vmatprep.subr.bf16.mxu0 %v1870
  %1961 = vmatpush1.bf16.msra.mxu0 %v1869
  %1962 = vmatprep.subr.bf16.mxu0 0
  %1963 = vmatpush1.bf16.msra.mxu0 0
  %1964 = vmatprep.subr.bf16.mxu0 0
  %1965 = vmatpush1.bf16.msra.mxu0 0
  %1966 = vmatprep.subr.bf16.mxu0 0
  %1967 = vmatpush1.bf16.msra.mxu0 0
  %1968 = vmatprep.subr.bf16.mxu0 0
  %1969 = vmatpush1.bf16.msra.mxu0 0
  %1970 = vmatprep.subr.bf16.mxu0 0
  %1971 = vmatpush1.bf16.msra.mxu0 0
  %1972 = vmatprep.subr.bf16.mxu0 0
  %1973 = vmatpush1.bf16.msra.mxu0 0
  %1974 = vmatprep.subr.bf16.mxu0 0
  %1975 = vmatpush1.bf16.msra.mxu0 0
  %1976 = vmatprep.subr.bf16.mxu0 0
  %1977 = vmatpush1.bf16.msra.mxu0 0
  %1978 = vmatprep.mubr.bf16.mxu0 0
  %1979 = vmatmul.mubr.bf16.gmra.mrb[0].mxu0 %v1710
  %v1980 = vpop.f32.mrb[0].mxu0
  %v1981 = vadd.f32 0.0, %v1980
  %v1982 = vpop.f32.mrb[0].mxu0
  %v1983 = vadd.f32 0.0, %v1982
  %v1984 = vpop.f32.mrb[0].mxu0
  %v1985 = vadd.f32 0.0, %v1984
  %v1986 = vpop.f32.mrb[0].mxu0
  %v1987 = vadd.f32 0.0, %v1986
  %1988 = vdwg.mxu0
  %v1989 = vadd.f32 %v1702, %v1938
  %v1990 = vadd.f32 %v1703, %v1940
  %v1991 = vadd.f32 %v1704, %v1981
  %v1992 = vadd.f32 %v1705, %v1983
  %v1993 = vadd.f32 %v1706, %v1942
  %v1994 = vadd.f32 %v1707, %v1944
  %v1995 = vadd.f32 %v1708, %v1985
  %v1996 = vadd.f32 %v1709, %v1987
  %v1997 = vxor.u32 %v1989, 2147483648
  %v1998 = vxor.u32 %v1993, 2147483648
  %v1999 = vmul.f32 %v1997, 1.442695
  %v2000 = vpow.pop %v1999
  %v2001 = vmul.f32 %v1998, 1.442695
  %v2002 = vpow.pop %v2001
  %v2003 = vadd.f32 %v2000, 1.0
  %v2004 = vadd.f32 %v2002, 1.0
  %v2005 = vrcp.pop %v2003
  %v2006 = vmul.f32 1.0, %v2005
  %v2007 = vrcp.pop %v2004
  %v2008 = vmul.f32 1.0, %v2007
  %v2009 = vxor.u32 %v1990, 2147483648
  %v2010 = vxor.u32 %v1994, 2147483648
  %v2011 = vmul.f32 %v2009, 1.442695
  %v2012 = vpow.pop %v2011
  %v2013 = vmul.f32 %v2010, 1.442695
  %v2014 = vpow.pop %v2013
  %v2015 = vadd.f32 %v2012, 1.0
  %v2016 = vadd.f32 %v2014, 1.0
  %v2017 = vrcp.pop %v2015
  %v2018 = vmul.f32 1.0, %v2017
  %v2019 = vrcp.pop %v2016
  %v2020 = vmul.f32 1.0, %v2019
  %v2021 = vtanh.pop %v1991
  %v2022 = vtanh.pop %v1995
  %v2023 = vxor.u32 %v1992, 2147483648
  %v2024 = vxor.u32 %v1996, 2147483648
  %v2025 = vmul.f32 %v2023, 1.442695
  %v2026 = vpow.pop %v2025
  %v2027 = vmul.f32 %v2024, 1.442695
  %v2028 = vpow.pop %v2027
  %v2029 = vadd.f32 %v2026, 1.0
  %v2030 = vadd.f32 %v2028, 1.0
  %v2031 = vrcp.pop %v2029
  %v2032 = vmul.f32 1.0, %v2031
  %v2033 = vrcp.pop %v2030
  %v2034 = vmul.f32 1.0, %v2033
  %v2035 = vmul.f32 %v2018, %v1695
  %v2036 = vmul.f32 %v2020, %v1696
  %v2037 = vmul.f32 %v2006, %v2021
  %v2038 = vmul.f32 %v2008, %v2022
  %v2039 = vadd.f32 %v2035, %v2037
  %v2040 = vadd.f32 %v2036, %v2038
  %v2041 = vtanh.pop %v2039
  %v2042 = vtanh.pop %v2040
  %v2043 = vmul.f32 %v2032, %v2041
  %v2044 = vmul.f32 %v2034, %v2042
  %2045 = vst [vmem:[#allocation2] sm:$0xff] %v2043
  %2046 = vst [vmem:[#allocation2 + $0x8] sm:$0xff] %v2044
  %2047 = vst [vmem:[#allocation3] sm:$0xff] %v2039
  %2048 = vst [vmem:[#allocation3 + $0x8] sm:$0xff] %v2040
  %v2049 = vpack.c.bf16 %v2044, %v2043
  %v2051 = vunpack.c.l.b16 %v2049
  %v2052 = vunpack.c.h.b16 %v2049
  %v2053 = vpack.c.b16 %v2051, %v2051
  %v2054 = vpack.c.b16 %v2052, %v2052
  %s2057 = scalar_lea.vmem %s4, 24
  %2058 = vst [vmem:[%s2057] sm:$0xf] %v2053
  %2059 = vst [vmem:[%s2057 + $0x4] sm:$0xf] %v2054
  %v2060 = vld [vmem:[#allocation2] sm:$0xff]
  %v2061 = vld [vmem:[#allocation2 + $0x8] sm:$0xff]
  %v2062 = vld [vmem:[#allocation3] sm:$0xff]
  %v2063 = vld [vmem:[#allocation3 + $0x8] sm:$0xff]
  %s2064 = scalar_lea.vmem [#allocation4], 128
  %v2065 = vld [vmem:[%s2064] sm:$0xff]
  %v2066 = vld [vmem:[%s2064 + $0x8] sm:$0xff]
  %v2067 = vld [vmem:[%s2064 + $0x10] sm:$0xff]
  %v2068 = vld [vmem:[%s2064 + $0x18] sm:$0xff]
  %v2069 = vunpack.c.l.bf16 %v2065
  %v2070 = vunpack.c.l.bf16 %v2066
  %v2071 = vunpack.c.l.bf16 %v2067
  %v2072 = vunpack.c.l.bf16 %v2068
  %v2073 = vunpack.c.h.bf16 %v2065
  %v2074 = vunpack.c.h.bf16 %v2066
  %v2075 = vunpack.c.h.bf16 %v2067
  %v2076 = vunpack.c.h.bf16 %v2068
  %v2077 = vpack.c.bf16 %v2061, %v2060
  %v2078 = vld [vmem:[%s2] sm:$0xff]
  %v2079 = vld [vmem:[%s2 + $0x8] sm:$0xff]
  %v2080 = vld [vmem:[%s2 + $0x10] sm:$0xff]
  %v2081 = vld [vmem:[%s2 + $0x18] sm:$0xff]
  %v2082 = vld [vmem:[%s2 + $0x20] sm:$0xff]
  %v2083 = vld [vmem:[%s2 + $0x28] sm:$0xff]
  %v2084 = vld [vmem:[%s2 + $0x30] sm:$0xff]
  %v2085 = vld [vmem:[%s2 + $0x38] sm:$0xff]
  %v2086 = vld [vmem:[%s2 + $0x40] sm:$0xff]
  %v2087 = vld [vmem:[%s2 + $0x48] sm:$0xff]
  %v2088 = vld [vmem:[%s2 + $0x50] sm:$0xff]
  %v2089 = vld [vmem:[%s2 + $0x58] sm:$0xff]
  %v2090 = vld [vmem:[%s2 + $0x60] sm:$0xff]
  %v2091 = vld [vmem:[%s2 + $0x68] sm:$0xff]
  %v2092 = vld [vmem:[%s2 + $0x70] sm:$0xff]
  %v2093 = vld [vmem:[%s2 + $0x78] sm:$0xff]
  %v2094 = vld [vmem:[%s2 + $0x80] sm:$0xff]
  %v2095 = vld [vmem:[%s2 + $0x88] sm:$0xff]
  %v2096 = vld [vmem:[%s2 + $0x90] sm:$0xff]
  %v2097 = vld [vmem:[%s2 + $0x98] sm:$0xff]
  %v2098 = vld [vmem:[%s2 + $0xa0] sm:$0xff]
  %v2099 = vld [vmem:[%s2 + $0xa8] sm:$0xff]
  %v2100 = vld [vmem:[%s2 + $0xb0] sm:$0xff]
  %v2101 = vld [vmem:[%s2 + $0xb8] sm:$0xff]
  %v2102 = vld [vmem:[%s2 + $0xc0] sm:$0xff]
  %v2103 = vld [vmem:[%s2 + $0xc8] sm:$0xff]
  %v2104 = vld [vmem:[%s2 + $0xd0] sm:$0xff]
  %v2105 = vld [vmem:[%s2 + $0xd8] sm:$0xff]
  %v2106 = vld [vmem:[%s2 + $0xe0] sm:$0xff]
  %v2107 = vld [vmem:[%s2 + $0xe8] sm:$0xff]
  %v2108 = vld [vmem:[%s2 + $0xf0] sm:$0xff]
  %v2109 = vld [vmem:[%s2 + $0xf8] sm:$0xff]
  %v2142 = vunpack.c.l.b16 %v2078
  %v2143 = vunpack.c.h.b16 %v2078
  %v2144 = vunpack.c.l.b16 %v2079
  %v2145 = vunpack.c.h.b16 %v2079
  %v2146 = vunpack.c.l.b16 %v2080
  %v2147 = vunpack.c.h.b16 %v2080
  %v2148 = vunpack.c.l.b16 %v2081
  %v2149 = vunpack.c.h.b16 %v2081
  %v2150 = vunpack.c.l.b16 %v2082
  %v2151 = vunpack.c.h.b16 %v2082
  %v2152 = vunpack.c.l.b16 %v2083
  %v2153 = vunpack.c.h.b16 %v2083
  %v2154 = vunpack.c.l.b16 %v2084
  %v2155 = vunpack.c.h.b16 %v2084
  %v2156 = vunpack.c.l.b16 %v2085
  %v2157 = vunpack.c.h.b16 %v2085
  %v2158 = vunpack.c.l.b16 %v2086
  %v2159 = vunpack.c.h.b16 %v2086
  %v2160 = vunpack.c.l.b16 %v2087
  %v2161 = vunpack.c.h.b16 %v2087
  %v2162 = vunpack.c.l.b16 %v2088
  %v2163 = vunpack.c.h.b16 %v2088
  %v2164 = vunpack.c.l.b16 %v2089
  %v2165 = vunpack.c.h.b16 %v2089
  %v2166 = vunpack.c.l.b16 %v2090
  %v2167 = vunpack.c.h.b16 %v2090
  %v2168 = vunpack.c.l.b16 %v2091
  %v2169 = vunpack.c.h.b16 %v2091
  %v2170 = vunpack.c.l.b16 %v2092
  %v2171 = vunpack.c.h.b16 %v2092
  %v2172 = vunpack.c.l.b16 %v2093
  %v2173 = vunpack.c.h.b16 %v2093
  %v2174 = vunpack.c.l.b16 %v2094
  %v2175 = vunpack.c.h.b16 %v2094
  %v2176 = vunpack.c.l.b16 %v2095
  %v2177 = vunpack.c.h.b16 %v2095
  %v2178 = vunpack.c.l.b16 %v2096
  %v2179 = vunpack.c.h.b16 %v2096
  %v2180 = vunpack.c.l.b16 %v2097
  %v2181 = vunpack.c.h.b16 %v2097
  %v2182 = vunpack.c.l.b16 %v2098
  %v2183 = vunpack.c.h.b16 %v2098
  %v2184 = vunpack.c.l.b16 %v2099
  %v2185 = vunpack.c.h.b16 %v2099
  %v2186 = vunpack.c.l.b16 %v2100
  %v2187 = vunpack.c.h.b16 %v2100
  %v2188 = vunpack.c.l.b16 %v2101
  %v2189 = vunpack.c.h.b16 %v2101
  %v2190 = vunpack.c.l.b16 %v2102
  %v2191 = vunpack.c.h.b16 %v2102
  %v2192 = vunpack.c.l.b16 %v2103
  %v2193 = vunpack.c.h.b16 %v2103
  %v2194 = vunpack.c.l.b16 %v2104
  %v2195 = vunpack.c.h.b16 %v2104
  %v2196 = vunpack.c.l.b16 %v2105
  %v2197 = vunpack.c.h.b16 %v2105
  %v2198 = vunpack.c.l.b16 %v2106
  %v2199 = vunpack.c.h.b16 %v2106
  %v2200 = vunpack.c.l.b16 %v2107
  %v2201 = vunpack.c.h.b16 %v2107
  %v2202 = vunpack.c.l.b16 %v2108
  %v2203 = vunpack.c.h.b16 %v2108
  %v2204 = vunpack.c.l.b16 %v2109
  %v2205 = vunpack.c.h.b16 %v2109
  %v2206 = vpack.c.b16 %v2146, %v2142
  %v2207 = vpack.c.b16 %v2147, %v2143
  %v2208 = vpack.c.b16 %v2148, %v2144
  %v2209 = vpack.c.b16 %v2149, %v2145
  %v2210 = vpack.c.b16 %v2154, %v2150
  %v2211 = vpack.c.b16 %v2155, %v2151
  %v2212 = vpack.c.b16 %v2156, %v2152
  %v2213 = vpack.c.b16 %v2157, %v2153
  %v2214 = vpack.c.b16 %v2162, %v2158
  %v2215 = vpack.c.b16 %v2163, %v2159
  %v2216 = vpack.c.b16 %v2164, %v2160
  %v2217 = vpack.c.b16 %v2165, %v2161
  %v2218 = vpack.c.b16 %v2170, %v2166
  %v2219 = vpack.c.b16 %v2171, %v2167
  %v2220 = vpack.c.b16 %v2172, %v2168
  %v2221 = vpack.c.b16 %v2173, %v2169
  %v2222 = vpack.c.b16 %v2178, %v2174
  %v2223 = vpack.c.b16 %v2179, %v2175
  %v2224 = vpack.c.b16 %v2180, %v2176
  %v2225 = vpack.c.b16 %v2181, %v2177
  %v2226 = vpack.c.b16 %v2186, %v2182
  %v2227 = vpack.c.b16 %v2187, %v2183
  %v2228 = vpack.c.b16 %v2188, %v2184
  %v2229 = vpack.c.b16 %v2189, %v2185
  %v2230 = vpack.c.b16 %v2194, %v2190
  %v2231 = vpack.c.b16 %v2195, %v2191
  %v2232 = vpack.c.b16 %v2196, %v2192
  %v2233 = vpack.c.b16 %v2197, %v2193
  %v2234 = vpack.c.b16 %v2202, %v2198
  %v2235 = vpack.c.b16 %v2203, %v2199
  %v2236 = vpack.c.b16 %v2204, %v2200
  %v2237 = vpack.c.b16 %v2205, %v2201
  %2270 = vmatprep.subr.bf16.mxu0 %v2207
  %2271 = vmatpush1.bf16.msra.mxu0 %v2206
  %2272 = vmatprep.subr.bf16.mxu0 %v2211
  %2273 = vmatpush1.bf16.msra.mxu0 %v2210
  %2274 = vmatprep.subr.bf16.mxu0 %v2215
  %2275 = vmatpush1.bf16.msra.mxu0 %v2214
  %2276 = vmatprep.subr.bf16.mxu0 %v2219
  %2277 = vmatpush1.bf16.msra.mxu0 %v2218
  %2278 = vmatprep.subr.bf16.mxu0 %v2223
  %2279 = vmatpush1.bf16.msra.mxu0 %v2222
  %2280 = vmatprep.subr.bf16.mxu0 %v2227
  %2281 = vmatpush1.bf16.msra.mxu0 %v2226
  %2282 = vmatprep.subr.bf16.mxu0 %v2231
  %2283 = vmatpush1.bf16.msra.mxu0 %v2230
  %2284 = vmatprep.subr.bf16.mxu0 %v2235
  %2285 = vmatpush1.bf16.msra.mxu0 %v2234
  %2286 = vmatprep.subr.bf16.mxu0 0
  %2287 = vmatpush1.bf16.msra.mxu0 0
  %2288 = vmatprep.subr.bf16.mxu0 0
  %2289 = vmatpush1.bf16.msra.mxu0 0
  %2290 = vmatprep.subr.bf16.mxu0 0
  %2291 = vmatpush1.bf16.msra.mxu0 0
  %2292 = vmatprep.subr.bf16.mxu0 0
  %2293 = vmatpush1.bf16.msra.mxu0 0
  %2294 = vmatprep.subr.bf16.mxu0 0
  %2295 = vmatpush1.bf16.msra.mxu0 0
  %2296 = vmatprep.subr.bf16.mxu0 0
  %2297 = vmatpush1.bf16.msra.mxu0 0
  %2298 = vmatprep.subr.bf16.mxu0 0
  %2299 = vmatpush1.bf16.msra.mxu0 0
  %2300 = vmatprep.subr.bf16.mxu0 0
  %2301 = vmatpush1.bf16.msra.mxu0 0
  %2302 = vmatprep.mubr.bf16.mxu0 0
  %2303 = vmatmul.mubr.bf16.gmra.mrb[0].mxu0 %v2077
  %v2304 = vpop.f32.mrb[0].mxu0
  %v2305 = vadd.f32 0.0, %v2304
  %v2306 = vpop.f32.mrb[0].mxu0
  %v2307 = vadd.f32 0.0, %v2306
  %v2308 = vpop.f32.mrb[0].mxu0
  %v2309 = vadd.f32 0.0, %v2308
  %v2310 = vpop.f32.mrb[0].mxu0
  %v2311 = vadd.f32 0.0, %v2310
  %2312 = vdwg.mxu0
  %2313 = vmatprep.subr.bf16.mxu0 %v2209
  %2314 = vmatpush1.bf16.msra.mxu0 %v2208
  %2315 = vmatprep.subr.bf16.mxu0 %v2213
  %2316 = vmatpush1.bf16.msra.mxu0 %v2212
  %2317 = vmatprep.subr.bf16.mxu0 %v2217
  %2318 = vmatpush1.bf16.msra.mxu0 %v2216
  %2319 = vmatprep.subr.bf16.mxu0 %v2221
  %2320 = vmatpush1.bf16.msra.mxu0 %v2220
  %2321 = vmatprep.subr.bf16.mxu0 %v2225
  %2322 = vmatpush1.bf16.msra.mxu0 %v2224
  %2323 = vmatprep.subr.bf16.mxu0 %v2229
  %2324 = vmatpush1.bf16.msra.mxu0 %v2228
  %2325 = vmatprep.subr.bf16.mxu0 %v2233
  %2326 = vmatpush1.bf16.msra.mxu0 %v2232
  %2327 = vmatprep.subr.bf16.mxu0 %v2237
  %2328 = vmatpush1.bf16.msra.mxu0 %v2236
  %2329 = vmatprep.subr.bf16.mxu0 0
  %2330 = vmatpush1.bf16.msra.mxu0 0
  %2331 = vmatprep.subr.bf16.mxu0 0
  %2332 = vmatpush1.bf16.msra.mxu0 0
  %2333 = vmatprep.subr.bf16.mxu0 0
  %2334 = vmatpush1.bf16.msra.mxu0 0
  %2335 = vmatprep.subr.bf16.mxu0 0
  %2336 = vmatpush1.bf16.msra.mxu0 0
  %2337 = vmatprep.subr.bf16.mxu0 0
  %2338 = vmatpush1.bf16.msra.mxu0 0
  %2339 = vmatprep.subr.bf16.mxu0 0
  %2340 = vmatpush1.bf16.msra.mxu0 0
  %2341 = vmatprep.subr.bf16.mxu0 0
  %2342 = vmatpush1.bf16.msra.mxu0 0
  %2343 = vmatprep.subr.bf16.mxu0 0
  %2344 = vmatpush1.bf16.msra.mxu0 0
  %2345 = vmatprep.mubr.bf16.mxu0 0
  %2346 = vmatmul.mubr.bf16.gmra.mrb[0].mxu0 %v2077
  %v2347 = vpop.f32.mrb[0].mxu0
  %v2348 = vadd.f32 0.0, %v2347
  %v2349 = vpop.f32.mrb[0].mxu0
  %v2350 = vadd.f32 0.0, %v2349
  %v2351 = vpop.f32.mrb[0].mxu0
  %v2352 = vadd.f32 0.0, %v2351
  %v2353 = vpop.f32.mrb[0].mxu0
  %v2354 = vadd.f32 0.0, %v2353
  %2355 = vdwg.mxu0
  %v2356 = vadd.f32 %v2069, %v2305
  %v2357 = vadd.f32 %v2070, %v2307
  %v2358 = vadd.f32 %v2071, %v2348
  %v2359 = vadd.f32 %v2072, %v2350
  %v2360 = vadd.f32 %v2073, %v2309
  %v2361 = vadd.f32 %v2074, %v2311
  %v2362 = vadd.f32 %v2075, %v2352
  %v2363 = vadd.f32 %v2076, %v2354
  %v2364 = vxor.u32 %v2356, 2147483648
  %v2365 = vxor.u32 %v2360, 2147483648
  %v2366 = vmul.f32 %v2364, 1.442695
  %v2367 = vpow.pop %v2366
  %v2368 = vmul.f32 %v2365, 1.442695
  %v2369 = vpow.pop %v2368
  %v2370 = vadd.f32 %v2367, 1.0
  %v2371 = vadd.f32 %v2369, 1.0
  %v2372 = vrcp.pop %v2370
  %v2373 = vmul.f32 1.0, %v2372
  %v2374 = vrcp.pop %v2371
  %v2375 = vmul.f32 1.0, %v2374
  %v2376 = vxor.u32 %v2357, 2147483648
  %v2377 = vxor.u32 %v2361, 2147483648
  %v2378 = vmul.f32 %v2376, 1.442695
  %v2379 = vpow.pop %v2378
  %v2380 = vmul.f32 %v2377, 1.442695
  %v2381 = vpow.pop %v2380
  %v2382 = vadd.f32 %v2379, 1.0
  %v2383 = vadd.f32 %v2381, 1.0
  %v2384 = vrcp.pop %v2382
  %v2385 = vmul.f32 1.0, %v2384
  %v2386 = vrcp.pop %v2383
  %v2387 = vmul.f32 1.0, %v2386
  %v2388 = vtanh.pop %v2358
  %v2389 = vtanh.pop %v2362
  %v2390 = vxor.u32 %v2359, 2147483648
  %v2391 = vxor.u32 %v2363, 2147483648
  %v2392 = vmul.f32 %v2390, 1.442695
  %v2393 = vpow.pop %v2392
  %v2394 = vmul.f32 %v2391, 1.442695
  %v2395 = vpow.pop %v2394
  %v2396 = vadd.f32 %v2393, 1.0
  %v2397 = vadd.f32 %v2395, 1.0
  %v2398 = vrcp.pop %v2396
  %v2399 = vmul.f32 1.0, %v2398
  %v2400 = vrcp.pop %v2397
  %v2401 = vmul.f32 1.0, %v2400
  %v2402 = vmul.f32 %v2385, %v2062
  %v2403 = vmul.f32 %v2387, %v2063
  %v2404 = vmul.f32 %v2373, %v2388
  %v2405 = vmul.f32 %v2375, %v2389
  %v2406 = vadd.f32 %v2402, %v2404
  %v2407 = vadd.f32 %v2403, %v2405
  %v2408 = vtanh.pop %v2406
  %v2409 = vtanh.pop %v2407
  %v2410 = vmul.f32 %v2399, %v2408
  %v2411 = vmul.f32 %v2401, %v2409
  %2412 = vst [vmem:[#allocation2] sm:$0xff] %v2410
  %2413 = vst [vmem:[#allocation2 + $0x8] sm:$0xff] %v2411
  %2414 = vst [vmem:[#allocation3] sm:$0xff] %v2406
  %2415 = vst [vmem:[#allocation3 + $0x8] sm:$0xff] %v2407
  %v2416 = vpack.c.bf16 %v2411, %v2410
  %v2418 = vunpack.c.l.b16 %v2416
  %v2419 = vunpack.c.h.b16 %v2416
  %v2420 = vpack.c.b16 %v2418, %v2418
  %v2421 = vpack.c.b16 %v2419, %v2419
  %s2424 = scalar_lea.vmem %s4, 32
  %2425 = vst [vmem:[%s2424] sm:$0xf] %v2420
  %2426 = vst [vmem:[%s2424 + $0x4] sm:$0xf] %v2421
  %v2427 = vld [vmem:[#allocation2] sm:$0xff]
  %v2428 = vld [vmem:[#allocation2 + $0x8] sm:$0xff]
  %v2429 = vld [vmem:[#allocation3] sm:$0xff]
  %v2430 = vld [vmem:[#allocation3 + $0x8] sm:$0xff]
  %s2431 = scalar_lea.vmem [#allocation4], 160
  %v2432 = vld [vmem:[%s2431] sm:$0xff]
  %v2433 = vld [vmem:[%s2431 + $0x8] sm:$0xff]
  %v2434 = vld [vmem:[%s2431 + $0x10] sm:$0xff]
  %v2435 = vld [vmem:[%s2431 + $0x18] sm:$0xff]
  %v2436 = vunpack.c.l.bf16 %v2432
  %v2437 = vunpack.c.l.bf16 %v2433
  %v2438 = vunpack.c.l.bf16 %v2434
  %v2439 = vunpack.c.l.bf16 %v2435
  %v2440 = vunpack.c.h.bf16 %v2432
  %v2441 = vunpack.c.h.bf16 %v2433
  %v2442 = vunpack.c.h.bf16 %v2434
  %v2443 = vunpack.c.h.bf16 %v2435
  %v2444 = vpack.c.bf16 %v2428, %v2427
  %v2445 = vld [vmem:[%s2] sm:$0xff]
  %v2446 = vld [vmem:[%s2 + $0x8] sm:$0xff]
  %v2447 = vld [vmem:[%s2 + $0x10] sm:$0xff]
  %v2448 = vld [vmem:[%s2 + $0x18] sm:$0xff]
  %v2449 = vld [vmem:[%s2 + $0x20] sm:$0xff]
  %v2450 = vld [vmem:[%s2 + $0x28] sm:$0xff]
  %v2451 = vld [vmem:[%s2 + $0x30] sm:$0xff]
  %v2452 = vld [vmem:[%s2 + $0x38] sm:$0xff]
  %v2453 = vld [vmem:[%s2 + $0x40] sm:$0xff]
  %v2454 = vld [vmem:[%s2 + $0x48] sm:$0xff]
  %v2455 = vld [vmem:[%s2 + $0x50] sm:$0xff]
  %v2456 = vld [vmem:[%s2 + $0x58] sm:$0xff]
  %v2457 = vld [vmem:[%s2 + $0x60] sm:$0xff]
  %v2458 = vld [vmem:[%s2 + $0x68] sm:$0xff]
  %v2459 = vld [vmem:[%s2 + $0x70] sm:$0xff]
  %v2460 = vld [vmem:[%s2 + $0x78] sm:$0xff]
  %v2461 = vld [vmem:[%s2 + $0x80] sm:$0xff]
  %v2462 = vld [vmem:[%s2 + $0x88] sm:$0xff]
  %v2463 = vld [vmem:[%s2 + $0x90] sm:$0xff]
  %v2464 = vld [vmem:[%s2 + $0x98] sm:$0xff]
  %v2465 = vld [vmem:[%s2 + $0xa0] sm:$0xff]
  %v2466 = vld [vmem:[%s2 + $0xa8] sm:$0xff]
  %v2467 = vld [vmem:[%s2 + $0xb0] sm:$0xff]
  %v2468 = vld [vmem:[%s2 + $0xb8] sm:$0xff]
  %v2469 = vld [vmem:[%s2 + $0xc0] sm:$0xff]
  %v2470 = vld [vmem:[%s2 + $0xc8] sm:$0xff]
  %v2471 = vld [vmem:[%s2 + $0xd0] sm:$0xff]
  %v2472 = vld [vmem:[%s2 + $0xd8] sm:$0xff]
  %v2473 = vld [vmem:[%s2 + $0xe0] sm:$0xff]
  %v2474 = vld [vmem:[%s2 + $0xe8] sm:$0xff]
  %v2475 = vld [vmem:[%s2 + $0xf0] sm:$0xff]
  %v2476 = vld [vmem:[%s2 + $0xf8] sm:$0xff]
  %v2509 = vunpack.c.l.b16 %v2445
  %v2510 = vunpack.c.h.b16 %v2445
  %v2511 = vunpack.c.l.b16 %v2446
  %v2512 = vunpack.c.h.b16 %v2446
  %v2513 = vunpack.c.l.b16 %v2447
  %v2514 = vunpack.c.h.b16 %v2447
  %v2515 = vunpack.c.l.b16 %v2448
  %v2516 = vunpack.c.h.b16 %v2448
  %v2517 = vunpack.c.l.b16 %v2449
  %v2518 = vunpack.c.h.b16 %v2449
  %v2519 = vunpack.c.l.b16 %v2450
  %v2520 = vunpack.c.h.b16 %v2450
  %v2521 = vunpack.c.l.b16 %v2451
  %v2522 = vunpack.c.h.b16 %v2451
  %v2523 = vunpack.c.l.b16 %v2452
  %v2524 = vunpack.c.h.b16 %v2452
  %v2525 = vunpack.c.l.b16 %v2453
  %v2526 = vunpack.c.h.b16 %v2453
  %v2527 = vunpack.c.l.b16 %v2454
  %v2528 = vunpack.c.h.b16 %v2454
  %v2529 = vunpack.c.l.b16 %v2455
  %v2530 = vunpack.c.h.b16 %v2455
  %v2531 = vunpack.c.l.b16 %v2456
  %v2532 = vunpack.c.h.b16 %v2456
  %v2533 = vunpack.c.l.b16 %v2457
  %v2534 = vunpack.c.h.b16 %v2457
  %v2535 = vunpack.c.l.b16 %v2458
  %v2536 = vunpack.c.h.b16 %v2458
  %v2537 = vunpack.c.l.b16 %v2459
  %v2538 = vunpack.c.h.b16 %v2459
  %v2539 = vunpack.c.l.b16 %v2460
  %v2540 = vunpack.c.h.b16 %v2460
  %v2541 = vunpack.c.l.b16 %v2461
  %v2542 = vunpack.c.h.b16 %v2461
  %v2543 = vunpack.c.l.b16 %v2462
  %v2544 = vunpack.c.h.b16 %v2462
  %v2545 = vunpack.c.l.b16 %v2463
  %v2546 = vunpack.c.h.b16 %v2463
  %v2547 = vunpack.c.l.b16 %v2464
  %v2548 = vunpack.c.h.b16 %v2464
  %v2549 = vunpack.c.l.b16 %v2465
  %v2550 = vunpack.c.h.b16 %v2465
  %v2551 = vunpack.c.l.b16 %v2466
  %v2552 = vunpack.c.h.b16 %v2466
  %v2553 = vunpack.c.l.b16 %v2467
  %v2554 = vunpack.c.h.b16 %v2467
  %v2555 = vunpack.c.l.b16 %v2468
  %v2556 = vunpack.c.h.b16 %v2468
  %v2557 = vunpack.c.l.b16 %v2469
  %v2558 = vunpack.c.h.b16 %v2469
  %v2559 = vunpack.c.l.b16 %v2470
  %v2560 = vunpack.c.h.b16 %v2470
  %v2561 = vunpack.c.l.b16 %v2471
  %v2562 = vunpack.c.h.b16 %v2471
  %v2563 = vunpack.c.l.b16 %v2472
  %v2564 = vunpack.c.h.b16 %v2472
  %v2565 = vunpack.c.l.b16 %v2473
  %v2566 = vunpack.c.h.b16 %v2473
  %v2567 = vunpack.c.l.b16 %v2474
  %v2568 = vunpack.c.h.b16 %v2474
  %v2569 = vunpack.c.l.b16 %v2475
  %v2570 = vunpack.c.h.b16 %v2475
  %v2571 = vunpack.c.l.b16 %v2476
  %v2572 = vunpack.c.h.b16 %v2476
  %v2573 = vpack.c.b16 %v2513, %v2509
  %v2574 = vpack.c.b16 %v2514, %v2510
  %v2575 = vpack.c.b16 %v2515, %v2511
  %v2576 = vpack.c.b16 %v2516, %v2512
  %v2577 = vpack.c.b16 %v2521, %v2517
  %v2578 = vpack.c.b16 %v2522, %v2518
  %v2579 = vpack.c.b16 %v2523, %v2519
  %v2580 = vpack.c.b16 %v2524, %v2520
  %v2581 = vpack.c.b16 %v2529, %v2525
  %v2582 = vpack.c.b16 %v2530, %v2526
  %v2583 = vpack.c.b16 %v2531, %v2527
  %v2584 = vpack.c.b16 %v2532, %v2528
  %v2585 = vpack.c.b16 %v2537, %v2533
  %v2586 = vpack.c.b16 %v2538, %v2534
  %v2587 = vpack.c.b16 %v2539, %v2535
  %v2588 = vpack.c.b16 %v2540, %v2536
  %v2589 = vpack.c.b16 %v2545, %v2541
  %v2590 = vpack.c.b16 %v2546, %v2542
  %v2591 = vpack.c.b16 %v2547, %v2543
  %v2592 = vpack.c.b16 %v2548, %v2544
  %v2593 = vpack.c.b16 %v2553, %v2549
  %v2594 = vpack.c.b16 %v2554, %v2550
  %v2595 = vpack.c.b16 %v2555, %v2551
  %v2596 = vpack.c.b16 %v2556, %v2552
  %v2597 = vpack.c.b16 %v2561, %v2557
  %v2598 = vpack.c.b16 %v2562, %v2558
  %v2599 = vpack.c.b16 %v2563, %v2559
  %v2600 = vpack.c.b16 %v2564, %v2560
  %v2601 = vpack.c.b16 %v2569, %v2565
  %v2602 = vpack.c.b16 %v2570, %v2566
  %v2603 = vpack.c.b16 %v2571, %v2567
  %v2604 = vpack.c.b16 %v2572, %v2568
  %2637 = vmatprep.subr.bf16.mxu0 %v2574
  %2638 = vmatpush1.bf16.msra.mxu0 %v2573
  %2639 = vmatprep.subr.bf16.mxu0 %v2578
  %2640 = vmatpush1.bf16.msra.mxu0 %v2577
  %2641 = vmatprep.subr.bf16.mxu0 %v2582
  %2642 = vmatpush1.bf16.msra.mxu0 %v2581
  %2643 = vmatprep.subr.bf16.mxu0 %v2586
  %2644 = vmatpush1.bf16.msra.mxu0 %v2585
  %2645 = vmatprep.subr.bf16.mxu0 %v2590
  %2646 = vmatpush1.bf16.msra.mxu0 %v2589
  %2647 = vmatprep.subr.bf16.mxu0 %v2594
  %2648 = vmatpush1.bf16.msra.mxu0 %v2593
  %2649 = vmatprep.subr.bf16.mxu0 %v2598
  %2650 = vmatpush1.bf16.msra.mxu0 %v2597
  %2651 = vmatprep.subr.bf16.mxu0 %v2602
  %2652 = vmatpush1.bf16.msra.mxu0 %v2601
  %2653 = vmatprep.subr.bf16.mxu0 0
  %2654 = vmatpush1.bf16.msra.mxu0 0
  %2655 = vmatprep.subr.bf16.mxu0 0
  %2656 = vmatpush1.bf16.msra.mxu0 0
  %2657 = vmatprep.subr.bf16.mxu0 0
  %2658 = vmatpush1.bf16.msra.mxu0 0
  %2659 = vmatprep.subr.bf16.mxu0 0
  %2660 = vmatpush1.bf16.msra.mxu0 0
  %2661 = vmatprep.subr.bf16.mxu0 0
  %2662 = vmatpush1.bf16.msra.mxu0 0
  %2663 = vmatprep.subr.bf16.mxu0 0
  %2664 = vmatpush1.bf16.msra.mxu0 0
  %2665 = vmatprep.subr.bf16.mxu0 0
  %2666 = vmatpush1.bf16.msra.mxu0 0
  %2667 = vmatprep.subr.bf16.mxu0 0
  %2668 = vmatpush1.bf16.msra.mxu0 0
  %2669 = vmatprep.mubr.bf16.mxu0 0
  %2670 = vmatmul.mubr.bf16.gmra.mrb[0].mxu0 %v2444
  %v2671 = vpop.f32.mrb[0].mxu0
  %v2672 = vadd.f32 0.0, %v2671
  %v2673 = vpop.f32.mrb[0].mxu0
  %v2674 = vadd.f32 0.0, %v2673
  %v2675 = vpop.f32.mrb[0].mxu0
  %v2676 = vadd.f32 0.0, %v2675
  %v2677 = vpop.f32.mrb[0].mxu0
  %v2678 = vadd.f32 0.0, %v2677
  %2679 = vdwg.mxu0
  %2680 = vmatprep.subr.bf16.mxu0 %v2576
  %2681 = vmatpush1.bf16.msra.mxu0 %v2575
  %2682 = vmatprep.subr.bf16.mxu0 %v2580
  %2683 = vmatpush1.bf16.msra.mxu0 %v2579
  %2684 = vmatprep.subr.bf16.mxu0 %v2584
  %2685 = vmatpush1.bf16.msra.mxu0 %v2583
  %2686 = vmatprep.subr.bf16.mxu0 %v2588
  %2687 = vmatpush1.bf16.msra.mxu0 %v2587
  %2688 = vmatprep.subr.bf16.mxu0 %v2592
  %2689 = vmatpush1.bf16.msra.mxu0 %v2591
  %2690 = vmatprep.subr.bf16.mxu0 %v2596
  %2691 = vmatpush1.bf16.msra.mxu0 %v2595
  %2692 = vmatprep.subr.bf16.mxu0 %v2600
  %2693 = vmatpush1.bf16.msra.mxu0 %v2599
  %2694 = vmatprep.subr.bf16.mxu0 %v2604
  %2695 = vmatpush1.bf16.msra.mxu0 %v2603
  %2696 = vmatprep.subr.bf16.mxu0 0
  %2697 = vmatpush1.bf16.msra.mxu0 0
  %2698 = vmatprep.subr.bf16.mxu0 0
  %2699 = vmatpush1.bf16.msra.mxu0 0
  %2700 = vmatprep.subr.bf16.mxu0 0
  %2701 = vmatpush1.bf16.msra.mxu0 0
  %2702 = vmatprep.subr.bf16.mxu0 0
  %2703 = vmatpush1.bf16.msra.mxu0 0
  %2704 = vmatprep.subr.bf16.mxu0 0
  %2705 = vmatpush1.bf16.msra.mxu0 0
  %2706 = vmatprep.subr.bf16.mxu0 0
  %2707 = vmatpush1.bf16.msra.mxu0 0
  %2708 = vmatprep.subr.bf16.mxu0 0
  %2709 = vmatpush1.bf16.msra.mxu0 0
  %2710 = vmatprep.subr.bf16.mxu0 0
  %2711 = vmatpush1.bf16.msra.mxu0 0
  %2712 = vmatprep.mubr.bf16.mxu0 0
  %2713 = vmatmul.mubr.bf16.gmra.mrb[0].mxu0 %v2444
  %v2714 = vpop.f32.mrb[0].mxu0
  %v2715 = vadd.f32 0.0, %v2714
  %v2716 = vpop.f32.mrb[0].mxu0
  %v2717 = vadd.f32 0.0, %v2716
  %v2718 = vpop.f32.mrb[0].mxu0
  %v2719 = vadd.f32 0.0, %v2718
  %v2720 = vpop.f32.mrb[0].mxu0
  %v2721 = vadd.f32 0.0, %v2720
  %2722 = vdwg.mxu0
  %v2723 = vadd.f32 %v2436, %v2672
  %v2724 = vadd.f32 %v2437, %v2674
  %v2725 = vadd.f32 %v2438, %v2715
  %v2726 = vadd.f32 %v2439, %v2717
  %v2727 = vadd.f32 %v2440, %v2676
  %v2728 = vadd.f32 %v2441, %v2678
  %v2729 = vadd.f32 %v2442, %v2719
  %v2730 = vadd.f32 %v2443, %v2721
  %v2731 = vxor.u32 %v2723, 2147483648
  %v2732 = vxor.u32 %v2727, 2147483648
  %v2733 = vmul.f32 %v2731, 1.442695
  %v2734 = vpow.pop %v2733
  %v2735 = vmul.f32 %v2732, 1.442695
  %v2736 = vpow.pop %v2735
  %v2737 = vadd.f32 %v2734, 1.0
  %v2738 = vadd.f32 %v2736, 1.0
  %v2739 = vrcp.pop %v2737
  %v2740 = vmul.f32 1.0, %v2739
  %v2741 = vrcp.pop %v2738
  %v2742 = vmul.f32 1.0, %v2741
  %v2743 = vxor.u32 %v2724, 2147483648
  %v2744 = vxor.u32 %v2728, 2147483648
  %v2745 = vmul.f32 %v2743, 1.442695
  %v2746 = vpow.pop %v2745
  %v2747 = vmul.f32 %v2744, 1.442695
  %v2748 = vpow.pop %v2747
  %v2749 = vadd.f32 %v2746, 1.0
  %v2750 = vadd.f32 %v2748, 1.0
  %v2751 = vrcp.pop %v2749
  %v2752 = vmul.f32 1.0, %v2751
  %v2753 = vrcp.pop %v2750
  %v2754 = vmul.f32 1.0, %v2753
  %v2755 = vtanh.pop %v2725
  %v2756 = vtanh.pop %v2729
  %v2757 = vxor.u32 %v2726, 2147483648
  %v2758 = vxor.u32 %v2730, 2147483648
  %v2759 = vmul.f32 %v2757, 1.442695
  %v2760 = vpow.pop %v2759
  %v2761 = vmul.f32 %v2758, 1.442695
  %v2762 = vpow.pop %v2761
  %v2763 = vadd.f32 %v2760, 1.0
  %v2764 = vadd.f32 %v2762, 1.0
  %v2765 = vrcp.pop %v2763
  %v2766 = vmul.f32 1.0, %v2765
  %v2767 = vrcp.pop %v2764
  %v2768 = vmul.f32 1.0, %v2767
  %v2769 = vmul.f32 %v2752, %v2429
  %v2770 = vmul.f32 %v2754, %v2430
  %v2771 = vmul.f32 %v2740, %v2755
  %v2772 = vmul.f32 %v2742, %v2756
  %v2773 = vadd.f32 %v2769, %v2771
  %v2774 = vadd.f32 %v2770, %v2772
  %v2775 = vtanh.pop %v2773
  %v2776 = vtanh.pop %v2774
  %v2777 = vmul.f32 %v2766, %v2775
  %v2778 = vmul.f32 %v2768, %v2776
  %2779 = vst [vmem:[#allocation2] sm:$0xff] %v2777
  %2780 = vst [vmem:[#allocation2 + $0x8] sm:$0xff] %v2778
  %2781 = vst [vmem:[#allocation3] sm:$0xff] %v2773
  %2782 = vst [vmem:[#allocation3 + $0x8] sm:$0xff] %v2774
  %v2783 = vpack.c.bf16 %v2778, %v2777
  %v2785 = vunpack.c.l.b16 %v2783
  %v2786 = vunpack.c.h.b16 %v2783
  %v2787 = vpack.c.b16 %v2785, %v2785
  %v2788 = vpack.c.b16 %v2786, %v2786
  %s2791 = scalar_lea.vmem %s4, 40
  %2792 = vst [vmem:[%s2791] sm:$0xf] %v2787
  %2793 = vst [vmem:[%s2791 + $0x4] sm:$0xf] %v2788
  %v2794 = vld [vmem:[#allocation2] sm:$0xff]
  %v2795 = vld [vmem:[#allocation2 + $0x8] sm:$0xff]
  %v2796 = vld [vmem:[#allocation3] sm:$0xff]
  %v2797 = vld [vmem:[#allocation3 + $0x8] sm:$0xff]
  %s2798 = scalar_lea.vmem [#allocation4], 192
  %v2799 = vld [vmem:[%s2798] sm:$0xff]
  %v2800 = vld [vmem:[%s2798 + $0x8] sm:$0xff]
  %v2801 = vld [vmem:[%s2798 + $0x10] sm:$0xff]
  %v2802 = vld [vmem:[%s2798 + $0x18] sm:$0xff]
  %v2803 = vunpack.c.l.bf16 %v2799
  %v2804 = vunpack.c.l.bf16 %v2800
  %v2805 = vunpack.c.l.bf16 %v2801
  %v2806 = vunpack.c.l.bf16 %v2802
  %v2807 = vunpack.c.h.bf16 %v2799
  %v2808 = vunpack.c.h.bf16 %v2800
  %v2809 = vunpack.c.h.bf16 %v2801
  %v2810 = vunpack.c.h.bf16 %v2802
  %v2811 = vpack.c.bf16 %v2795, %v2794
  %v2812 = vld [vmem:[%s2] sm:$0xff]
  %v2813 = vld [vmem:[%s2 + $0x8] sm:$0xff]
  %v2814 = vld [vmem:[%s2 + $0x10] sm:$0xff]
  %v2815 = vld [vmem:[%s2 + $0x18] sm:$0xff]
  %v2816 = vld [vmem:[%s2 + $0x20] sm:$0xff]
  %v2817 = vld [vmem:[%s2 + $0x28] sm:$0xff]
  %v2818 = vld [vmem:[%s2 + $0x30] sm:$0xff]
  %v2819 = vld [vmem:[%s2 + $0x38] sm:$0xff]
  %v2820 = vld [vmem:[%s2 + $0x40] sm:$0xff]
  %v2821 = vld [vmem:[%s2 + $0x48] sm:$0xff]
  %v2822 = vld [vmem:[%s2 + $0x50] sm:$0xff]
  %v2823 = vld [vmem:[%s2 + $0x58] sm:$0xff]
  %v2824 = vld [vmem:[%s2 + $0x60] sm:$0xff]
  %v2825 = vld [vmem:[%s2 + $0x68] sm:$0xff]
  %v2826 = vld [vmem:[%s2 + $0x70] sm:$0xff]
  %v2827 = vld [vmem:[%s2 + $0x78] sm:$0xff]
  %v2828 = vld [vmem:[%s2 + $0x80] sm:$0xff]
  %v2829 = vld [vmem:[%s2 + $0x88] sm:$0xff]
  %v2830 = vld [vmem:[%s2 + $0x90] sm:$0xff]
  %v2831 = vld [vmem:[%s2 + $0x98] sm:$0xff]
  %v2832 = vld [vmem:[%s2 + $0xa0] sm:$0xff]
  %v2833 = vld [vmem:[%s2 + $0xa8] sm:$0xff]
  %v2834 = vld [vmem:[%s2 + $0xb0] sm:$0xff]
  %v2835 = vld [vmem:[%s2 + $0xb8] sm:$0xff]
  %v2836 = vld [vmem:[%s2 + $0xc0] sm:$0xff]
  %v2837 = vld [vmem:[%s2 + $0xc8] sm:$0xff]
  %v2838 = vld [vmem:[%s2 + $0xd0] sm:$0xff]
  %v2839 = vld [vmem:[%s2 + $0xd8] sm:$0xff]
  %v2840 = vld [vmem:[%s2 + $0xe0] sm:$0xff]
  %v2841 = vld [vmem:[%s2 + $0xe8] sm:$0xff]
  %v2842 = vld [vmem:[%s2 + $0xf0] sm:$0xff]
  %v2843 = vld [vmem:[%s2 + $0xf8] sm:$0xff]
  %v2876 = vunpack.c.l.b16 %v2812
  %v2877 = vunpack.c.h.b16 %v2812
  %v2878 = vunpack.c.l.b16 %v2813
  %v2879 = vunpack.c.h.b16 %v2813
  %v2880 = vunpack.c.l.b16 %v2814
  %v2881 = vunpack.c.h.b16 %v2814
  %v2882 = vunpack.c.l.b16 %v2815
  %v2883 = vunpack.c.h.b16 %v2815
  %v2884 = vunpack.c.l.b16 %v2816
  %v2885 = vunpack.c.h.b16 %v2816
  %v2886 = vunpack.c.l.b16 %v2817
  %v2887 = vunpack.c.h.b16 %v2817
  %v2888 = vunpack.c.l.b16 %v2818
  %v2889 = vunpack.c.h.b16 %v2818
  %v2890 = vunpack.c.l.b16 %v2819
  %v2891 = vunpack.c.h.b16 %v2819
  %v2892 = vunpack.c.l.b16 %v2820
  %v2893 = vunpack.c.h.b16 %v2820
  %v2894 = vunpack.c.l.b16 %v2821
  %v2895 = vunpack.c.h.b16 %v2821
  %v2896 = vunpack.c.l.b16 %v2822
  %v2897 = vunpack.c.h.b16 %v2822
  %v2898 = vunpack.c.l.b16 %v2823
  %v2899 = vunpack.c.h.b16 %v2823
  %v2900 = vunpack.c.l.b16 %v2824
  %v2901 = vunpack.c.h.b16 %v2824
  %v2902 = vunpack.c.l.b16 %v2825
  %v2903 = vunpack.c.h.b16 %v2825
  %v2904 = vunpack.c.l.b16 %v2826
  %v2905 = vunpack.c.h.b16 %v2826
  %v2906 = vunpack.c.l.b16 %v2827
  %v2907 = vunpack.c.h.b16 %v2827
  %v2908 = vunpack.c.l.b16 %v2828
  %v2909 = vunpack.c.h.b16 %v2828
  %v2910 = vunpack.c.l.b16 %v2829
  %v2911 = vunpack.c.h.b16 %v2829
  %v2912 = vunpack.c.l.b16 %v2830
  %v2913 = vunpack.c.h.b16 %v2830
  %v2914 = vunpack.c.l.b16 %v2831
  %v2915 = vunpack.c.h.b16 %v2831
  %v2916 = vunpack.c.l.b16 %v2832
  %v2917 = vunpack.c.h.b16 %v2832
  %v2918 = vunpack.c.l.b16 %v2833
  %v2919 = vunpack.c.h.b16 %v2833
  %v2920 = vunpack.c.l.b16 %v2834
  %v2921 = vunpack.c.h.b16 %v2834
  %v2922 = vunpack.c.l.b16 %v2835
  %v2923 = vunpack.c.h.b16 %v2835
  %v2924 = vunpack.c.l.b16 %v2836
  %v2925 = vunpack.c.h.b16 %v2836
  %v2926 = vunpack.c.l.b16 %v2837
  %v2927 = vunpack.c.h.b16 %v2837
  %v2928 = vunpack.c.l.b16 %v2838
  %v2929 = vunpack.c.h.b16 %v2838
  %v2930 = vunpack.c.l.b16 %v2839
  %v2931 = vunpack.c.h.b16 %v2839
  %v2932 = vunpack.c.l.b16 %v2840
  %v2933 = vunpack.c.h.b16 %v2840
  %v2934 = vunpack.c.l.b16 %v2841
  %v2935 = vunpack.c.h.b16 %v2841
  %v2936 = vunpack.c.l.b16 %v2842
  %v2937 = vunpack.c.h.b16 %v2842
  %v2938 = vunpack.c.l.b16 %v2843
  %v2939 = vunpack.c.h.b16 %v2843
  %v2940 = vpack.c.b16 %v2880, %v2876
  %v2941 = vpack.c.b16 %v2881, %v2877
  %v2942 = vpack.c.b16 %v2882, %v2878
  %v2943 = vpack.c.b16 %v2883, %v2879
  %v2944 = vpack.c.b16 %v2888, %v2884
  %v2945 = vpack.c.b16 %v2889, %v2885
  %v2946 = vpack.c.b16 %v2890, %v2886
  %v2947 = vpack.c.b16 %v2891, %v2887
  %v2948 = vpack.c.b16 %v2896, %v2892
  %v2949 = vpack.c.b16 %v2897, %v2893
  %v2950 = vpack.c.b16 %v2898, %v2894
  %v2951 = vpack.c.b16 %v2899, %v2895
  %v2952 = vpack.c.b16 %v2904, %v2900
  %v2953 = vpack.c.b16 %v2905, %v2901
  %v2954 = vpack.c.b16 %v2906, %v2902
  %v2955 = vpack.c.b16 %v2907, %v2903
  %v2956 = vpack.c.b16 %v2912, %v2908
  %v2957 = vpack.c.b16 %v2913, %v2909
  %v2958 = vpack.c.b16 %v2914, %v2910
  %v2959 = vpack.c.b16 %v2915, %v2911
  %v2960 = vpack.c.b16 %v2920, %v2916
  %v2961 = vpack.c.b16 %v2921, %v2917
  %v2962 = vpack.c.b16 %v2922, %v2918
  %v2963 = vpack.c.b16 %v2923, %v2919
  %v2964 = vpack.c.b16 %v2928, %v2924
  %v2965 = vpack.c.b16 %v2929, %v2925
  %v2966 = vpack.c.b16 %v2930, %v2926
  %v2967 = vpack.c.b16 %v2931, %v2927
  %v2968 = vpack.c.b16 %v2936, %v2932
  %v2969 = vpack.c.b16 %v2937, %v2933
  %v2970 = vpack.c.b16 %v2938, %v2934
  %v2971 = vpack.c.b16 %v2939, %v2935
  %3004 = vmatprep.subr.bf16.mxu0 %v2941
  %3005 = vmatpush1.bf16.msra.mxu0 %v2940
  %3006 = vmatprep.subr.bf16.mxu0 %v2945
  %3007 = vmatpush1.bf16.msra.mxu0 %v2944
  %3008 = vmatprep.subr.bf16.mxu0 %v2949
  %3009 = vmatpush1.bf16.msra.mxu0 %v2948
  %3010 = vmatprep.subr.bf16.mxu0 %v2953
  %3011 = vmatpush1.bf16.msra.mxu0 %v2952
  %3012 = vmatprep.subr.bf16.mxu0 %v2957
  %3013 = vmatpush1.bf16.msra.mxu0 %v2956
  %3014 = vmatprep.subr.bf16.mxu0 %v2961
  %3015 = vmatpush1.bf16.msra.mxu0 %v2960
  %3016 = vmatprep.subr.bf16.mxu0 %v2965
  %3017 = vmatpush1.bf16.msra.mxu0 %v2964
  %3018 = vmatprep.subr.bf16.mxu0 %v2969
  %3019 = vmatpush1.bf16.msra.mxu0 %v2968
  %3020 = vmatprep.subr.bf16.mxu0 0
  %3021 = vmatpush1.bf16.msra.mxu0 0
  %3022 = vmatprep.subr.bf16.mxu0 0
  %3023 = vmatpush1.bf16.msra.mxu0 0
  %3024 = vmatprep.subr.bf16.mxu0 0
  %3025 = vmatpush1.bf16.msra.mxu0 0
  %3026 = vmatprep.subr.bf16.mxu0 0
  %3027 = vmatpush1.bf16.msra.mxu0 0
  %3028 = vmatprep.subr.bf16.mxu0 0
  %3029 = vmatpush1.bf16.msra.mxu0 0
  %3030 = vmatprep.subr.bf16.mxu0 0
  %3031 = vmatpush1.bf16.msra.mxu0 0
  %3032 = vmatprep.subr.bf16.mxu0 0
  %3033 = vmatpush1.bf16.msra.mxu0 0
  %3034 = vmatprep.subr.bf16.mxu0 0
  %3035 = vmatpush1.bf16.msra.mxu0 0
  %3036 = vmatprep.mubr.bf16.mxu0 0
  %3037 = vmatmul.mubr.bf16.gmra.mrb[0].mxu0 %v2811
  %v3038 = vpop.f32.mrb[0].mxu0
  %v3039 = vadd.f32 0.0, %v3038
  %v3040 = vpop.f32.mrb[0].mxu0
  %v3041 = vadd.f32 0.0, %v3040
  %v3042 = vpop.f32.mrb[0].mxu0
  %v3043 = vadd.f32 0.0, %v3042
  %v3044 = vpop.f32.mrb[0].mxu0
  %v3045 = vadd.f32 0.0, %v3044
  %3046 = vdwg.mxu0
  %3047 = vmatprep.subr.bf16.mxu0 %v2943
  %3048 = vmatpush1.bf16.msra.mxu0 %v2942
  %3049 = vmatprep.subr.bf16.mxu0 %v2947
  %3050 = vmatpush1.bf16.msra.mxu0 %v2946
  %3051 = vmatprep.subr.bf16.mxu0 %v2951
  %3052 = vmatpush1.bf16.msra.mxu0 %v2950
  %3053 = vmatprep.subr.bf16.mxu0 %v2955
  %3054 = vmatpush1.bf16.msra.mxu0 %v2954
  %3055 = vmatprep.subr.bf16.mxu0 %v2959
  %3056 = vmatpush1.bf16.msra.mxu0 %v2958
  %3057 = vmatprep.subr.bf16.mxu0 %v2963
  %3058 = vmatpush1.bf16.msra.mxu0 %v2962
  %3059 = vmatprep.subr.bf16.mxu0 %v2967
  %3060 = vmatpush1.bf16.msra.mxu0 %v2966
  %3061 = vmatprep.subr.bf16.mxu0 %v2971
  %3062 = vmatpush1.bf16.msra.mxu0 %v2970
  %3063 = vmatprep.subr.bf16.mxu0 0
  %3064 = vmatpush1.bf16.msra.mxu0 0
  %3065 = vmatprep.subr.bf16.mxu0 0
  %3066 = vmatpush1.bf16.msra.mxu0 0
  %3067 = vmatprep.subr.bf16.mxu0 0
  %3068 = vmatpush1.bf16.msra.mxu0 0
  %3069 = vmatprep.subr.bf16.mxu0 0
  %3070 = vmatpush1.bf16.msra.mxu0 0
  %3071 = vmatprep.subr.bf16.mxu0 0
  %3072 = vmatpush1.bf16.msra.mxu0 0
  %3073 = vmatprep.subr.bf16.mxu0 0
  %3074 = vmatpush1.bf16.msra.mxu0 0
  %3075 = vmatprep.subr.bf16.mxu0 0
  %3076 = vmatpush1.bf16.msra.mxu0 0
  %3077 = vmatprep.subr.bf16.mxu0 0
  %3078 = vmatpush1.bf16.msra.mxu0 0
  %3079 = vmatprep.mubr.bf16.mxu0 0
  %3080 = vmatmul.mubr.bf16.gmra.mrb[0].mxu0 %v2811
  %v3081 = vpop.f32.mrb[0].mxu0
  %v3082 = vadd.f32 0.0, %v3081
  %v3083 = vpop.f32.mrb[0].mxu0
  %v3084 = vadd.f32 0.0, %v3083
  %v3085 = vpop.f32.mrb[0].mxu0
  %v3086 = vadd.f32 0.0, %v3085
  %v3087 = vpop.f32.mrb[0].mxu0
  %v3088 = vadd.f32 0.0, %v3087
  %3089 = vdwg.mxu0
  %v3090 = vadd.f32 %v2803, %v3039
  %v3091 = vadd.f32 %v2804, %v3041
  %v3092 = vadd.f32 %v2805, %v3082
  %v3093 = vadd.f32 %v2806, %v3084
  %v3094 = vadd.f32 %v2807, %v3043
  %v3095 = vadd.f32 %v2808, %v3045
  %v3096 = vadd.f32 %v2809, %v3086
  %v3097 = vadd.f32 %v2810, %v3088
  %v3098 = vxor.u32 %v3090, 2147483648
  %v3099 = vxor.u32 %v3094, 2147483648
  %v3100 = vmul.f32 %v3098, 1.442695
  %v3101 = vpow.pop %v3100
  %v3102 = vmul.f32 %v3099, 1.442695
  %v3103 = vpow.pop %v3102
  %v3104 = vadd.f32 %v3101, 1.0
  %v3105 = vadd.f32 %v3103, 1.0
  %v3106 = vrcp.pop %v3104
  %v3107 = vmul.f32 1.0, %v3106
  %v3108 = vrcp.pop %v3105
  %v3109 = vmul.f32 1.0, %v3108
  %v3110 = vxor.u32 %v3091, 2147483648
  %v3111 = vxor.u32 %v3095, 2147483648
  %v3112 = vmul.f32 %v3110, 1.442695
  %v3113 = vpow.pop %v3112
  %v3114 = vmul.f32 %v3111, 1.442695
  %v3115 = vpow.pop %v3114
  %v3116 = vadd.f32 %v3113, 1.0
  %v3117 = vadd.f32 %v3115, 1.0
  %v3118 = vrcp.pop %v3116
  %v3119 = vmul.f32 1.0, %v3118
  %v3120 = vrcp.pop %v3117
  %v3121 = vmul.f32 1.0, %v3120
  %v3122 = vtanh.pop %v3092
  %v3123 = vtanh.pop %v3096
  %v3124 = vxor.u32 %v3093, 2147483648
  %v3125 = vxor.u32 %v3097, 2147483648
  %v3126 = vmul.f32 %v3124, 1.442695
  %v3127 = vpow.pop %v3126
  %v3128 = vmul.f32 %v3125, 1.442695
  %v3129 = vpow.pop %v3128
  %v3130 = vadd.f32 %v3127, 1.0
  %v3131 = vadd.f32 %v3129, 1.0
  %v3132 = vrcp.pop %v3130
  %v3133 = vmul.f32 1.0, %v3132
  %v3134 = vrcp.pop %v3131
  %v3135 = vmul.f32 1.0, %v3134
  %v3136 = vmul.f32 %v3119, %v2796
  %v3137 = vmul.f32 %v3121, %v2797
  %v3138 = vmul.f32 %v3107, %v3122
  %v3139 = vmul.f32 %v3109, %v3123
  %v3140 = vadd.f32 %v3136, %v3138
  %v3141 = vadd.f32 %v3137, %v3139
  %v3142 = vtanh.pop %v3140
  %v3143 = vtanh.pop %v3141
  %v3144 = vmul.f32 %v3133, %v3142
  %v3145 = vmul.f32 %v3135, %v3143
  %3146 = vst [vmem:[#allocation2] sm:$0xff] %v3144
  %3147 = vst [vmem:[#allocation2 + $0x8] sm:$0xff] %v3145
  %3148 = vst [vmem:[#allocation3] sm:$0xff] %v3140
  %3149 = vst [vmem:[#allocation3 + $0x8] sm:$0xff] %v3141
  %v3150 = vpack.c.bf16 %v3145, %v3144
  %v3152 = vunpack.c.l.b16 %v3150
  %v3153 = vunpack.c.h.b16 %v3150
  %v3154 = vpack.c.b16 %v3152, %v3152
  %v3155 = vpack.c.b16 %v3153, %v3153
  %s3158 = scalar_lea.vmem %s4, 48
  %3159 = vst [vmem:[%s3158] sm:$0xf] %v3154
  %3160 = vst [vmem:[%s3158 + $0x4] sm:$0xf] %v3155
  %v3161 = vld [vmem:[#allocation2] sm:$0xff]
  %v3162 = vld [vmem:[#allocation2 + $0x8] sm:$0xff]
  %v3163 = vld [vmem:[#allocation3] sm:$0xff]
  %v3164 = vld [vmem:[#allocation3 + $0x8] sm:$0xff]
  %s3165 = scalar_lea.vmem [#allocation4], 224
  %v3166 = vld [vmem:[%s3165] sm:$0xff]
  %v3167 = vld [vmem:[%s3165 + $0x8] sm:$0xff]
  %v3168 = vld [vmem:[%s3165 + $0x10] sm:$0xff]
  %v3169 = vld [vmem:[%s3165 + $0x18] sm:$0xff]
  %v3170 = vunpack.c.l.bf16 %v3166
  %v3171 = vunpack.c.l.bf16 %v3167
  %v3172 = vunpack.c.l.bf16 %v3168
  %v3173 = vunpack.c.l.bf16 %v3169
  %v3174 = vunpack.c.h.bf16 %v3166
  %v3175 = vunpack.c.h.bf16 %v3167
  %v3176 = vunpack.c.h.bf16 %v3168
  %v3177 = vunpack.c.h.bf16 %v3169
  %v3178 = vpack.c.bf16 %v3162, %v3161
  %v3179 = vld [vmem:[%s2] sm:$0xff]
  %v3180 = vld [vmem:[%s2 + $0x8] sm:$0xff]
  %v3181 = vld [vmem:[%s2 + $0x10] sm:$0xff]
  %v3182 = vld [vmem:[%s2 + $0x18] sm:$0xff]
  %v3183 = vld [vmem:[%s2 + $0x20] sm:$0xff]
  %v3184 = vld [vmem:[%s2 + $0x28] sm:$0xff]
  %v3185 = vld [vmem:[%s2 + $0x30] sm:$0xff]
  %v3186 = vld [vmem:[%s2 + $0x38] sm:$0xff]
  %v3187 = vld [vmem:[%s2 + $0x40] sm:$0xff]
  %v3188 = vld [vmem:[%s2 + $0x48] sm:$0xff]
  %v3189 = vld [vmem:[%s2 + $0x50] sm:$0xff]
  %v3190 = vld [vmem:[%s2 + $0x58] sm:$0xff]
  %v3191 = vld [vmem:[%s2 + $0x60] sm:$0xff]
  %v3192 = vld [vmem:[%s2 + $0x68] sm:$0xff]
  %v3193 = vld [vmem:[%s2 + $0x70] sm:$0xff]
  %v3194 = vld [vmem:[%s2 + $0x78] sm:$0xff]
  %v3195 = vld [vmem:[%s2 + $0x80] sm:$0xff]
  %v3196 = vld [vmem:[%s2 + $0x88] sm:$0xff]
  %v3197 = vld [vmem:[%s2 + $0x90] sm:$0xff]
  %v3198 = vld [vmem:[%s2 + $0x98] sm:$0xff]
  %v3199 = vld [vmem:[%s2 + $0xa0] sm:$0xff]
  %v3200 = vld [vmem:[%s2 + $0xa8] sm:$0xff]
  %v3201 = vld [vmem:[%s2 + $0xb0] sm:$0xff]
  %v3202 = vld [vmem:[%s2 + $0xb8] sm:$0xff]
  %v3203 = vld [vmem:[%s2 + $0xc0] sm:$0xff]
  %v3204 = vld [vmem:[%s2 + $0xc8] sm:$0xff]
  %v3205 = vld [vmem:[%s2 + $0xd0] sm:$0xff]
  %v3206 = vld [vmem:[%s2 + $0xd8] sm:$0xff]
  %v3207 = vld [vmem:[%s2 + $0xe0] sm:$0xff]
  %v3208 = vld [vmem:[%s2 + $0xe8] sm:$0xff]
  %v3209 = vld [vmem:[%s2 + $0xf0] sm:$0xff]
  %v3210 = vld [vmem:[%s2 + $0xf8] sm:$0xff]
  %v3243 = vunpack.c.l.b16 %v3179
  %v3244 = vunpack.c.h.b16 %v3179
  %v3245 = vunpack.c.l.b16 %v3180
  %v3246 = vunpack.c.h.b16 %v3180
  %v3247 = vunpack.c.l.b16 %v3181
  %v3248 = vunpack.c.h.b16 %v3181
  %v3249 = vunpack.c.l.b16 %v3182
  %v3250 = vunpack.c.h.b16 %v3182
  %v3251 = vunpack.c.l.b16 %v3183
  %v3252 = vunpack.c.h.b16 %v3183
  %v3253 = vunpack.c.l.b16 %v3184
  %v3254 = vunpack.c.h.b16 %v3184
  %v3255 = vunpack.c.l.b16 %v3185
  %v3256 = vunpack.c.h.b16 %v3185
  %v3257 = vunpack.c.l.b16 %v3186
  %v3258 = vunpack.c.h.b16 %v3186
  %v3259 = vunpack.c.l.b16 %v3187
  %v3260 = vunpack.c.h.b16 %v3187
  %v3261 = vunpack.c.l.b16 %v3188
  %v3262 = vunpack.c.h.b16 %v3188
  %v3263 = vunpack.c.l.b16 %v3189
  %v3264 = vunpack.c.h.b16 %v3189
  %v3265 = vunpack.c.l.b16 %v3190
  %v3266 = vunpack.c.h.b16 %v3190
  %v3267 = vunpack.c.l.b16 %v3191
  %v3268 = vunpack.c.h.b16 %v3191
  %v3269 = vunpack.c.l.b16 %v3192
  %v3270 = vunpack.c.h.b16 %v3192
  %v3271 = vunpack.c.l.b16 %v3193
  %v3272 = vunpack.c.h.b16 %v3193
  %v3273 = vunpack.c.l.b16 %v3194
  %v3274 = vunpack.c.h.b16 %v3194
  %v3275 = vunpack.c.l.b16 %v3195
  %v3276 = vunpack.c.h.b16 %v3195
  %v3277 = vunpack.c.l.b16 %v3196
  %v3278 = vunpack.c.h.b16 %v3196
  %v3279 = vunpack.c.l.b16 %v3197
  %v3280 = vunpack.c.h.b16 %v3197
  %v3281 = vunpack.c.l.b16 %v3198
  %v3282 = vunpack.c.h.b16 %v3198
  %v3283 = vunpack.c.l.b16 %v3199
  %v3284 = vunpack.c.h.b16 %v3199
  %v3285 = vunpack.c.l.b16 %v3200
  %v3286 = vunpack.c.h.b16 %v3200
  %v3287 = vunpack.c.l.b16 %v3201
  %v3288 = vunpack.c.h.b16 %v3201
  %v3289 = vunpack.c.l.b16 %v3202
  %v3290 = vunpack.c.h.b16 %v3202
  %v3291 = vunpack.c.l.b16 %v3203
  %v3292 = vunpack.c.h.b16 %v3203
  %v3293 = vunpack.c.l.b16 %v3204
  %v3294 = vunpack.c.h.b16 %v3204
  %v3295 = vunpack.c.l.b16 %v3205
  %v3296 = vunpack.c.h.b16 %v3205
  %v3297 = vunpack.c.l.b16 %v3206
  %v3298 = vunpack.c.h.b16 %v3206
  %v3299 = vunpack.c.l.b16 %v3207
  %v3300 = vunpack.c.h.b16 %v3207
  %v3301 = vunpack.c.l.b16 %v3208
  %v3302 = vunpack.c.h.b16 %v3208
  %v3303 = vunpack.c.l.b16 %v3209
  %v3304 = vunpack.c.h.b16 %v3209
  %v3305 = vunpack.c.l.b16 %v3210
  %v3306 = vunpack.c.h.b16 %v3210
  %v3307 = vpack.c.b16 %v3247, %v3243
  %v3308 = vpack.c.b16 %v3248, %v3244
  %v3309 = vpack.c.b16 %v3249, %v3245
  %v3310 = vpack.c.b16 %v3250, %v3246
  %v3311 = vpack.c.b16 %v3255, %v3251
  %v3312 = vpack.c.b16 %v3256, %v3252
  %v3313 = vpack.c.b16 %v3257, %v3253
  %v3314 = vpack.c.b16 %v3258, %v3254
  %v3315 = vpack.c.b16 %v3263, %v3259
  %v3316 = vpack.c.b16 %v3264, %v3260
  %v3317 = vpack.c.b16 %v3265, %v3261
  %v3318 = vpack.c.b16 %v3266, %v3262
  %v3319 = vpack.c.b16 %v3271, %v3267
  %v3320 = vpack.c.b16 %v3272, %v3268
  %v3321 = vpack.c.b16 %v3273, %v3269
  %v3322 = vpack.c.b16 %v3274, %v3270
  %v3323 = vpack.c.b16 %v3279, %v3275
  %v3324 = vpack.c.b16 %v3280, %v3276
  %v3325 = vpack.c.b16 %v3281, %v3277
  %v3326 = vpack.c.b16 %v3282, %v3278
  %v3327 = vpack.c.b16 %v3287, %v3283
  %v3328 = vpack.c.b16 %v3288, %v3284
  %v3329 = vpack.c.b16 %v3289, %v3285
  %v3330 = vpack.c.b16 %v3290, %v3286
  %v3331 = vpack.c.b16 %v3295, %v3291
  %v3332 = vpack.c.b16 %v3296, %v3292
  %v3333 = vpack.c.b16 %v3297, %v3293
  %v3334 = vpack.c.b16 %v3298, %v3294
  %v3335 = vpack.c.b16 %v3303, %v3299
  %v3336 = vpack.c.b16 %v3304, %v3300
  %v3337 = vpack.c.b16 %v3305, %v3301
  %v3338 = vpack.c.b16 %v3306, %v3302
  %3371 = vmatprep.subr.bf16.mxu0 %v3308
  %3372 = vmatpush1.bf16.msra.mxu0 %v3307
  %3373 = vmatprep.subr.bf16.mxu0 %v3312
  %3374 = vmatpush1.bf16.msra.mxu0 %v3311
  %3375 = vmatprep.subr.bf16.mxu0 %v3316
  %3376 = vmatpush1.bf16.msra.mxu0 %v3315
  %3377 = vmatprep.subr.bf16.mxu0 %v3320
  %3378 = vmatpush1.bf16.msra.mxu0 %v3319
  %3379 = vmatprep.subr.bf16.mxu0 %v3324
  %3380 = vmatpush1.bf16.msra.mxu0 %v3323
  %3381 = vmatprep.subr.bf16.mxu0 %v3328
  %3382 = vmatpush1.bf16.msra.mxu0 %v3327
  %3383 = vmatprep.subr.bf16.mxu0 %v3332
  %3384 = vmatpush1.bf16.msra.mxu0 %v3331
  %3385 = vmatprep.subr.bf16.mxu0 %v3336
  %3386 = vmatpush1.bf16.msra.mxu0 %v3335
  %3387 = vmatprep.subr.bf16.mxu0 0
  %3388 = vmatpush1.bf16.msra.mxu0 0
  %3389 = vmatprep.subr.bf16.mxu0 0
  %3390 = vmatpush1.bf16.msra.mxu0 0
  %3391 = vmatprep.subr.bf16.mxu0 0
  %3392 = vmatpush1.bf16.msra.mxu0 0
  %3393 = vmatprep.subr.bf16.mxu0 0
  %3394 = vmatpush1.bf16.msra.mxu0 0
  %3395 = vmatprep.subr.bf16.mxu0 0
  %3396 = vmatpush1.bf16.msra.mxu0 0
  %3397 = vmatprep.subr.bf16.mxu0 0
  %3398 = vmatpush1.bf16.msra.mxu0 0
  %3399 = vmatprep.subr.bf16.mxu0 0
  %3400 = vmatpush1.bf16.msra.mxu0 0
  %3401 = vmatprep.subr.bf16.mxu0 0
  %3402 = vmatpush1.bf16.msra.mxu0 0
  %3403 = vmatprep.mubr.bf16.mxu0 0
  %3404 = vmatmul.mubr.bf16.gmra.mrb[0].mxu0 %v3178
  %v3405 = vpop.f32.mrb[0].mxu0
  %v3406 = vadd.f32 0.0, %v3405
  %v3407 = vpop.f32.mrb[0].mxu0
  %v3408 = vadd.f32 0.0, %v3407
  %v3409 = vpop.f32.mrb[0].mxu0
  %v3410 = vadd.f32 0.0, %v3409
  %v3411 = vpop.f32.mrb[0].mxu0
  %v3412 = vadd.f32 0.0, %v3411
  %3413 = vdwg.mxu0
  %3414 = vmatprep.subr.bf16.mxu0 %v3310
  %3415 = vmatpush1.bf16.msra.mxu0 %v3309
  %3416 = vmatprep.subr.bf16.mxu0 %v3314
  %3417 = vmatpush1.bf16.msra.mxu0 %v3313
  %3418 = vmatprep.subr.bf16.mxu0 %v3318
  %3419 = vmatpush1.bf16.msra.mxu0 %v3317
  %3420 = vmatprep.subr.bf16.mxu0 %v3322
  %3421 = vmatpush1.bf16.msra.mxu0 %v3321
  %3422 = vmatprep.subr.bf16.mxu0 %v3326
  %3423 = vmatpush1.bf16.msra.mxu0 %v3325
  %3424 = vmatprep.subr.bf16.mxu0 %v3330
  %3425 = vmatpush1.bf16.msra.mxu0 %v3329
  %3426 = vmatprep.subr.bf16.mxu0 %v3334
  %3427 = vmatpush1.bf16.msra.mxu0 %v3333
  %3428 = vmatprep.subr.bf16.mxu0 %v3338
  %3429 = vmatpush1.bf16.msra.mxu0 %v3337
  %3430 = vmatprep.subr.bf16.mxu0 0
  %3431 = vmatpush1.bf16.msra.mxu0 0
  %3432 = vmatprep.subr.bf16.mxu0 0
  %3433 = vmatpush1.bf16.msra.mxu0 0
  %3434 = vmatprep.subr.bf16.mxu0 0
  %3435 = vmatpush1.bf16.msra.mxu0 0
  %3436 = vmatprep.subr.bf16.mxu0 0
  %3437 = vmatpush1.bf16.msra.mxu0 0
  %3438 = vmatprep.subr.bf16.mxu0 0
  %3439 = vmatpush1.bf16.msra.mxu0 0
  %3440 = vmatprep.subr.bf16.mxu0 0
  %3441 = vmatpush1.bf16.msra.mxu0 0
  %3442 = vmatprep.subr.bf16.mxu0 0
  %3443 = vmatpush1.bf16.msra.mxu0 0
  %3444 = vmatprep.subr.bf16.mxu0 0
  %3445 = vmatpush1.bf16.msra.mxu0 0
  %3446 = vmatprep.mubr.bf16.mxu0 0
  %3447 = vmatmul.mubr.bf16.gmra.mrb[0].mxu0 %v3178
  %v3448 = vpop.f32.mrb[0].mxu0
  %v3449 = vadd.f32 0.0, %v3448
  %v3450 = vpop.f32.mrb[0].mxu0
  %v3451 = vadd.f32 0.0, %v3450
  %v3452 = vpop.f32.mrb[0].mxu0
  %v3453 = vadd.f32 0.0, %v3452
  %v3454 = vpop.f32.mrb[0].mxu0
  %v3455 = vadd.f32 0.0, %v3454
  %3456 = vdwg.mxu0
  %v3457 = vadd.f32 %v3170, %v3406
  %v3458 = vadd.f32 %v3171, %v3408
  %v3459 = vadd.f32 %v3172, %v3449
  %v3460 = vadd.f32 %v3173, %v3451
  %v3461 = vadd.f32 %v3174, %v3410
  %v3462 = vadd.f32 %v3175, %v3412
  %v3463 = vadd.f32 %v3176, %v3453
  %v3464 = vadd.f32 %v3177, %v3455
  %v3465 = vxor.u32 %v3457, 2147483648
  %v3466 = vxor.u32 %v3461, 2147483648
  %v3467 = vmul.f32 %v3465, 1.442695
  %v3468 = vpow.pop %v3467
  %v3469 = vmul.f32 %v3466, 1.442695
  %v3470 = vpow.pop %v3469
  %v3471 = vadd.f32 %v3468, 1.0
  %v3472 = vadd.f32 %v3470, 1.0
  %v3473 = vrcp.pop %v3471
  %v3474 = vmul.f32 1.0, %v3473
  %v3475 = vrcp.pop %v3472
  %v3476 = vmul.f32 1.0, %v3475
  %v3477 = vxor.u32 %v3458, 2147483648
  %v3478 = vxor.u32 %v3462, 2147483648
  %v3479 = vmul.f32 %v3477, 1.442695
  %v3480 = vpow.pop %v3479
  %v3481 = vmul.f32 %v3478, 1.442695
  %v3482 = vpow.pop %v3481
  %v3483 = vadd.f32 %v3480, 1.0
  %v3484 = vadd.f32 %v3482, 1.0
  %v3485 = vrcp.pop %v3483
  %v3486 = vmul.f32 1.0, %v3485
  %v3487 = vrcp.pop %v3484
  %v3488 = vmul.f32 1.0, %v3487
  %v3489 = vtanh.pop %v3459
  %v3490 = vtanh.pop %v3463
  %v3491 = vxor.u32 %v3460, 2147483648
  %v3492 = vxor.u32 %v3464, 2147483648
  %v3493 = vmul.f32 %v3491, 1.442695
  %v3494 = vpow.pop %v3493
  %v3495 = vmul.f32 %v3492, 1.442695
  %v3496 = vpow.pop %v3495
  %v3497 = vadd.f32 %v3494, 1.0
  %v3498 = vadd.f32 %v3496, 1.0
  %v3499 = vrcp.pop %v3497
  %v3500 = vmul.f32 1.0, %v3499
  %v3501 = vrcp.pop %v3498
  %v3502 = vmul.f32 1.0, %v3501
  %v3503 = vmul.f32 %v3486, %v3163
  %v3504 = vmul.f32 %v3488, %v3164
  %v3505 = vmul.f32 %v3474, %v3489
  %v3506 = vmul.f32 %v3476, %v3490
  %v3507 = vadd.f32 %v3503, %v3505
  %v3508 = vadd.f32 %v3504, %v3506
  %v3509 = vtanh.pop %v3507
  %v3510 = vtanh.pop %v3508
  %v3511 = vmul.f32 %v3500, %v3509
  %v3512 = vmul.f32 %v3502, %v3510
  %3513 = vst [vmem:[#allocation2] sm:$0xff] %v3511
  %3514 = vst [vmem:[#allocation2 + $0x8] sm:$0xff] %v3512
  %3515 = vst [vmem:[#allocation3] sm:$0xff] %v3507
  %3516 = vst [vmem:[#allocation3 + $0x8] sm:$0xff] %v3508
  %v3517 = vpack.c.bf16 %v3512, %v3511
  %v3519 = vunpack.c.l.b16 %v3517
  %v3520 = vunpack.c.h.b16 %v3517
  %v3521 = vpack.c.b16 %v3519, %v3519
  %v3522 = vpack.c.b16 %v3520, %v3520
  %s3525 = scalar_lea.vmem %s4, 56
  %3526 = vst [vmem:[%s3525] sm:$0xf] %v3521
  %3527 = vst [vmem:[%s3525 + $0x4] sm:$0xf] %v3522
  // Predicated region
  $region22: #{lstm_model_forward.2} parent=0 // pred_check
    _
  $region23: #{lstm_model_forward.2} parent=0 // pred_check_branch
    %3529 = sbr.rel (0) target = $region25
  $region24: #{lstm_model_forward.2} parent=0 // pred_region
    _
  $region25: #{lstm_model_forward.2} parent=0 // pred_fallthru
    _
  // Predicated region
  $region26: #{lstm_model_forward.2} parent=0 // pred_check
    _
  $region27: #{lstm_model_forward.2} parent=0 // pred_check_branch
    %3531 = sbr.rel (0) target = $region29
  $region28: #{lstm_model_forward.2} parent=0 // pred_region
    _
  $region29: #{lstm_model_forward.2} parent=0 // pred_fallthru
    _

// kernel: lstm_model_forward.3
$region0: #{lstm_model_forward.3}
  #allocation0 [shape = 'u32[]', space=smem, size = 0x4, offset = 0x4, fixed_abs, tag = 'smem constant byte address 0x4 - core index']
  #allocation1 [shape = 'u32[144,128]{1,0:T(1,128)}', space=vmem, size = 0x12000, scoped, tag = 'internal scratch']
  #allocation2 [shape = 'f32[16,128]{1,0:T(8,128)}', space=vmem, size = 0x2000, scoped, tag = 'scratch operand']
  #allocation3 [shape = 'f32[16,128]{1,0:T(8,128)}', space=vmem, size = 0x2000, scoped, tag = 'scratch operand']
  #allocation4 [shape = 'bf16[8,16,512]{2,1,0:T(16,128)(2,1)}', space=vmem, size = 0x20000, scoped, tag = 'scratch operand']
  %s0 = inlined_call_operand.vmem [shape: bf16[8,16,128], index: 0, kind: input, shape index: {}]
  %s1 = inlined_call_operand.vmem [shape: bf16[128,512], index: 1, kind: input, shape index: {}]
  %s2 = inlined_call_operand.vmem [shape: bf16[128,512], index: 2, kind: input, shape index: {}]
  %s3 = inlined_call_operand.vmem [shape: f32[1,512], index: 3, kind: input, shape index: {}]
  %s4 = inlined_call_operand.vmem [shape: bf16[128,128], index: 4, kind: input, shape index: {}]
  %s5 = inlined_call_operand.vmem [shape: f32[1,128], index: 5, kind: input, shape index: {}]
  %s6 = inlined_call_operand.vmem [shape: f32[16,128], index: 6, kind: output, shape index: {}]
  %s7 = sld [smem:[#allocation0]]
  $region42: #{lstm_model_forward.3} parent=0
    _
  %s9 = ssub.s32 1, %s7
  %s10 = scalar_select 0, %s9, %s7
  // Predicated region
  $region2: #{lstm_model_forward.3} parent=0 // pred_check
    _
  $region3: #{lstm_model_forward.3} parent=0 // pred_check_branch
    %12 = sbr.rel (0) target = $region5
  $region4: #{lstm_model_forward.3} parent=0 // pred_region
    _
  $region5: #{lstm_model_forward.3} parent=0 // pred_fallthru
    _
  // Predicated region
  $region6: #{lstm_model_forward.3} parent=0 // pred_check
    _
  $region7: #{lstm_model_forward.3} parent=0 // pred_check_branch
    %14 = sbr.rel (0) target = $region9
  $region8: #{lstm_model_forward.3} parent=0 // pred_region
    _
  $region9: #{lstm_model_forward.3} parent=0 // pred_fallthru
    _
  // Predicated region
  $region10: #{lstm_model_forward.3} parent=0 // pred_check
    _
  $region11: #{lstm_model_forward.3} parent=0 // pred_check_branch
    %16 = sbr.rel (0) target = $region13
  $region12: #{lstm_model_forward.3} parent=0 // pred_region
    _
  $region13: #{lstm_model_forward.3} parent=0 // pred_fallthru
    _
  // Predicated region
  $region14: #{lstm_model_forward.3} parent=0 // pred_check
    _
  $region15: #{lstm_model_forward.3} parent=0 // pred_check_branch
    %18 = sbr.rel (0) target = $region17
  $region16: #{lstm_model_forward.3} parent=0 // pred_region
    _
  $region17: #{lstm_model_forward.3} parent=0 // pred_fallthru
    _
  // Predicated region
  $region18: #{lstm_model_forward.3} parent=0 // pred_check
    _
  $region19: #{lstm_model_forward.3} parent=0 // pred_check_branch
    %20 = sbr.rel (0) target = $region21
  $region20: #{lstm_model_forward.3} parent=0 // pred_region
    _
  $region21: #{lstm_model_forward.3} parent=0 // pred_fallthru
    _
  // Predicated region
  $region22: #{lstm_model_forward.3} parent=0 // pred_check
    _
  $region23: #{lstm_model_forward.3} parent=0 // pred_check_branch
    %22 = sbr.rel (0) target = $region25
  $region24: #{lstm_model_forward.3} parent=0 // pred_region
    _
  $region25: #{lstm_model_forward.3} parent=0 // pred_fallthru
    _
  %p24 = scmp.eq.s32.totalorder 0, 0
  // Predicated region
  $region26: #{lstm_model_forward.3} parent=0 // pred_check
    %p25 = pneg %p24
  $region27: #{lstm_model_forward.3} parent=0 // pred_check_branch
    %27 = sbr.rel (%p25) target = $region29
  $region28: #{lstm_model_forward.3} parent=0 // pred_region
    %28 = vst [vmem:[#allocation2] sm:$0xff] 0.0
    %29 = vst [vmem:[#allocation2 + $0x8] sm:$0xff] 0.0
    %30 = vst [vmem:[#allocation3] sm:$0xff] 0.0
    %31 = vst [vmem:[#allocation3 + $0x8] sm:$0xff] 0.0
  $region29: #{lstm_model_forward.3} parent=0 // pred_fallthru
    _
  %v32 = vld [vmem:[%s0] sm:$0xf]
  %v33 = vld [vmem:[%s0 + $0x4] sm:$0xf]
  %v34 = vld [vmem:[%s0 + $0x8] sm:$0xf]
  %v35 = vld [vmem:[%s0 + $0xc] sm:$0xf]
  %v36 = vld [vmem:[%s0 + $0x10] sm:$0xf]
  %v37 = vld [vmem:[%s0 + $0x14] sm:$0xf]
  %v38 = vld [vmem:[%s0 + $0x18] sm:$0xf]
  %v39 = vld [vmem:[%s0 + $0x1c] sm:$0xf]
  %v40 = vld [vmem:[%s0 + $0x20] sm:$0xf]
  %v41 = vld [vmem:[%s0 + $0x24] sm:$0xf]
  %v42 = vld [vmem:[%s0 + $0x28] sm:$0xf]
  %v43 = vld [vmem:[%s0 + $0x2c] sm:$0xf]
  %v44 = vld [vmem:[%s0 + $0x30] sm:$0xf]
  %v45 = vld [vmem:[%s0 + $0x34] sm:$0xf]
  %v46 = vld [vmem:[%s0 + $0x38] sm:$0xf]
  %v47 = vld [vmem:[%s0 + $0x3c] sm:$0xf]
  %v48 = vld [vmem:[%s1] sm:$0xff]
  %v49 = vld [vmem:[%s1 + $0x8] sm:$0xff]
  %v50 = vld [vmem:[%s1 + $0x10] sm:$0xff]
  %v51 = vld [vmem:[%s1 + $0x18] sm:$0xff]
  %v52 = vld [vmem:[%s1 + $0x20] sm:$0xff]
  %v53 = vld [vmem:[%s1 + $0x28] sm:$0xff]
  %v54 = vld [vmem:[%s1 + $0x30] sm:$0xff]
  %v55 = vld [vmem:[%s1 + $0x38] sm:$0xff]
  %v56 = vld [vmem:[%s1 + $0x40] sm:$0xff]
  %v57 = vld [vmem:[%s1 + $0x48] sm:$0xff]
  %v58 = vld [vmem:[%s1 + $0x50] sm:$0xff]
  %v59 = vld [vmem:[%s1 + $0x58] sm:$0xff]
  %v60 = vld [vmem:[%s1 + $0x60] sm:$0xff]
  %v61 = vld [vmem:[%s1 + $0x68] sm:$0xff]
  %v62 = vld [vmem:[%s1 + $0x70] sm:$0xff]
  %v63 = vld [vmem:[%s1 + $0x78] sm:$0xff]
  %v64 = vld [vmem:[%s1 + $0x80] sm:$0xff]
  %v65 = vld [vmem:[%s1 + $0x88] sm:$0xff]
  %v66 = vld [vmem:[%s1 + $0x90] sm:$0xff]
  %v67 = vld [vmem:[%s1 + $0x98] sm:$0xff]
  %v68 = vld [vmem:[%s1 + $0xa0] sm:$0xff]
  %v69 = vld [vmem:[%s1 + $0xa8] sm:$0xff]
  %v70 = vld [vmem:[%s1 + $0xb0] sm:$0xff]
  %v71 = vld [vmem:[%s1 + $0xb8] sm:$0xff]
  %v72 = vld [vmem:[%s1 + $0xc0] sm:$0xff]
  %v73 = vld [vmem:[%s1 + $0xc8] sm:$0xff]
  %v74 = vld [vmem:[%s1 + $0xd0] sm:$0xff]
  %v75 = vld [vmem:[%s1 + $0xd8] sm:$0xff]
  %v76 = vld [vmem:[%s1 + $0xe0] sm:$0xff]
  %v77 = vld [vmem:[%s1 + $0xe8] sm:$0xff]
  %v78 = vld [vmem:[%s1 + $0xf0] sm:$0xff]
  %v79 = vld [vmem:[%s1 + $0xf8] sm:$0xff]
  %v80 = vld [vmem:[%s3] sm:$0xf]
  %v82 = vlaneseq
  %v83 = vshrl.u32 %v82, 7
  %v84 = vsub.s32 0, %v83
  %v85 = vrot.slane %v80, %v84
  %v86 = vlaneseq
  %v87 = vshrl.u32 %v86, 7
  %v88 = vsub.s32 1, %v87
  %v89 = vrot.slane %v80, %v88
  %v90 = vlaneseq
  %v91 = vshrl.u32 %v90, 7
  %v92 = vsub.s32 2, %v91
  %v93 = vrot.slane %v80, %v92
  %v94 = vlaneseq
  %v95 = vshrl.u32 %v94, 7
  %v96 = vsub.s32 3, %v95
  %v97 = vrot.slane %v80, %v96
  %v118 = vunpack.c.l.b16 %v32
  %v119 = vunpack.c.l.b16 %v33
  %v120 = vunpack.c.l.b16 %v34
  %v121 = vunpack.c.l.b16 %v35
  %v122 = vunpack.c.l.b16 %v36
  %v123 = vunpack.c.l.b16 %v37
  %v124 = vunpack.c.l.b16 %v38
  %v125 = vunpack.c.l.b16 %v39
  %v126 = vunpack.c.l.b16 %v40
  %v127 = vunpack.c.l.b16 %v41
  %v128 = vunpack.c.l.b16 %v42
  %v129 = vunpack.c.l.b16 %v43
  %v130 = vunpack.c.l.b16 %v44
  %v131 = vunpack.c.l.b16 %v45
  %v132 = vunpack.c.l.b16 %v46
  %v133 = vunpack.c.l.b16 %v47
  %v134 = vpack.c.b16 %v119, %v118
  %v135 = vpack.c.b16 %v121, %v120
  %v136 = vpack.c.b16 %v123, %v122
  %v137 = vpack.c.b16 %v125, %v124
  %v138 = vpack.c.b16 %v127, %v126
  %v139 = vpack.c.b16 %v129, %v128
  %v140 = vpack.c.b16 %v131, %v130
  %v141 = vpack.c.b16 %v133, %v132
  %v182 = vunpack.c.l.b16 %v48
  %v183 = vunpack.c.h.b16 %v48
  %v184 = vunpack.c.l.b16 %v49
  %v185 = vunpack.c.h.b16 %v49
  %v186 = vunpack.c.l.b16 %v50
  %v187 = vunpack.c.h.b16 %v50
  %v188 = vunpack.c.l.b16 %v51
  %v189 = vunpack.c.h.b16 %v51
  %v190 = vunpack.c.l.b16 %v52
  %v191 = vunpack.c.h.b16 %v52
  %v192 = vunpack.c.l.b16 %v53
  %v193 = vunpack.c.h.b16 %v53
  %v194 = vunpack.c.l.b16 %v54
  %v195 = vunpack.c.h.b16 %v54
  %v196 = vunpack.c.l.b16 %v55
  %v197 = vunpack.c.h.b16 %v55
  %v198 = vunpack.c.l.b16 %v56
  %v199 = vunpack.c.h.b16 %v56
  %v200 = vunpack.c.l.b16 %v57
  %v201 = vunpack.c.h.b16 %v57
  %v202 = vunpack.c.l.b16 %v58
  %v203 = vunpack.c.h.b16 %v58
  %v204 = vunpack.c.l.b16 %v59
  %v205 = vunpack.c.h.b16 %v59
  %v206 = vunpack.c.l.b16 %v60
  %v207 = vunpack.c.h.b16 %v60
  %v208 = vunpack.c.l.b16 %v61
  %v209 = vunpack.c.h.b16 %v61
  %v210 = vunpack.c.l.b16 %v62
  %v211 = vunpack.c.h.b16 %v62
  %v212 = vunpack.c.l.b16 %v63
  %v213 = vunpack.c.h.b16 %v63
  %v214 = vunpack.c.l.b16 %v64
  %v215 = vunpack.c.h.b16 %v64
  %v216 = vunpack.c.l.b16 %v65
  %v217 = vunpack.c.h.b16 %v65
  %v218 = vunpack.c.l.b16 %v66
  %v219 = vunpack.c.h.b16 %v66
  %v220 = vunpack.c.l.b16 %v67
  %v221 = vunpack.c.h.b16 %v67
  %v222 = vunpack.c.l.b16 %v68
  %v223 = vunpack.c.h.b16 %v68
  %v224 = vunpack.c.l.b16 %v69
  %v225 = vunpack.c.h.b16 %v69
  %v226 = vunpack.c.l.b16 %v70
  %v227 = vunpack.c.h.b16 %v70
  %v228 = vunpack.c.l.b16 %v71
  %v229 = vunpack.c.h.b16 %v71
  %v230 = vunpack.c.l.b16 %v72
  %v231 = vunpack.c.h.b16 %v72
  %v232 = vunpack.c.l.b16 %v73
  %v233 = vunpack.c.h.b16 %v73
  %v234 = vunpack.c.l.b16 %v74
  %v235 = vunpack.c.h.b16 %v74
  %v236 = vunpack.c.l.b16 %v75
  %v237 = vunpack.c.h.b16 %v75
  %v238 = vunpack.c.l.b16 %v76
  %v239 = vunpack.c.h.b16 %v76
  %v240 = vunpack.c.l.b16 %v77
  %v241 = vunpack.c.h.b16 %v77
  %v242 = vunpack.c.l.b16 %v78
  %v243 = vunpack.c.h.b16 %v78
  %v244 = vunpack.c.l.b16 %v79
  %v245 = vunpack.c.h.b16 %v79
  %v246 = vpack.c.b16 %v186, %v182
  %v247 = vpack.c.b16 %v187, %v183
  %v248 = vpack.c.b16 %v188, %v184
  %v249 = vpack.c.b16 %v189, %v185
  %v250 = vpack.c.b16 %v194, %v190
  %v251 = vpack.c.b16 %v195, %v191
  %v252 = vpack.c.b16 %v196, %v192
  %v253 = vpack.c.b16 %v197, %v193
  %v254 = vpack.c.b16 %v202, %v198
  %v255 = vpack.c.b16 %v203, %v199
  %v256 = vpack.c.b16 %v204, %v200
  %v257 = vpack.c.b16 %v205, %v201
  %v258 = vpack.c.b16 %v210, %v206
  %v259 = vpack.c.b16 %v211, %v207
  %v260 = vpack.c.b16 %v212, %v208
  %v261 = vpack.c.b16 %v213, %v209
  %v262 = vpack.c.b16 %v218, %v214
  %v263 = vpack.c.b16 %v219, %v215
  %v264 = vpack.c.b16 %v220, %v216
  %v265 = vpack.c.b16 %v221, %v217
  %v266 = vpack.c.b16 %v226, %v222
  %v267 = vpack.c.b16 %v227, %v223
  %v268 = vpack.c.b16 %v228, %v224
  %v269 = vpack.c.b16 %v229, %v225
  %v270 = vpack.c.b16 %v234, %v230
  %v271 = vpack.c.b16 %v235, %v231
  %v272 = vpack.c.b16 %v236, %v232
  %v273 = vpack.c.b16 %v237, %v233
  %v274 = vpack.c.b16 %v242, %v238
  %v275 = vpack.c.b16 %v243, %v239
  %v276 = vpack.c.b16 %v244, %v240
  %v277 = vpack.c.b16 %v245, %v241
  %310 = vmatprep.subr.bf16.mxu0 %v247
  %311 = vmatpush1.bf16.msra.mxu0 %v246
  %312 = vmatprep.subr.bf16.mxu0 %v251
  %313 = vmatpush1.bf16.msra.mxu0 %v250
  %314 = vmatprep.subr.bf16.mxu0 %v255
  %315 = vmatpush1.bf16.msra.mxu0 %v254
  %316 = vmatprep.subr.bf16.mxu0 %v259
  %317 = vmatpush1.bf16.msra.mxu0 %v258
  %318 = vmatprep.subr.bf16.mxu0 %v263
  %319 = vmatpush1.bf16.msra.mxu0 %v262
  %320 = vmatprep.subr.bf16.mxu0 %v267
  %321 = vmatpush1.bf16.msra.mxu0 %v266
  %322 = vmatprep.subr.bf16.mxu0 %v271
  %323 = vmatpush1.bf16.msra.mxu0 %v270
  %324 = vmatprep.subr.bf16.mxu0 %v275
  %325 = vmatpush1.bf16.msra.mxu0 %v274
  %326 = vmatprep.subr.bf16.mxu0 0
  %327 = vmatpush1.bf16.msra.mxu0 0
  %328 = vmatprep.subr.bf16.mxu0 0
  %329 = vmatpush1.bf16.msra.mxu0 0
  %330 = vmatprep.subr.bf16.mxu0 0
  %331 = vmatpush1.bf16.msra.mxu0 0
  %332 = vmatprep.subr.bf16.mxu0 0
  %333 = vmatpush1.bf16.msra.mxu0 0
  %334 = vmatprep.subr.bf16.mxu0 0
  %335 = vmatpush1.bf16.msra.mxu0 0
  %336 = vmatprep.subr.bf16.mxu0 0
  %337 = vmatpush1.bf16.msra.mxu0 0
  %338 = vmatprep.subr.bf16.mxu0 0
  %339 = vmatpush1.bf16.msra.mxu0 0
  %340 = vmatprep.subr.bf16.mxu0 0
  %341 = vmatpush1.bf16.msra.mxu0 0
  %342 = vmatprep.mubr.bf16.mxu0 0
  %343 = vmatmul.mubr.bf16.gmra.mrb[0].mxu0 %v134
  %v344 = vpop.f32.mrb[0].mxu0
  %v345 = vadd.f32 %v85, %v344
  %v346 = vpop.f32.mrb[0].mxu0
  %v347 = vadd.f32 %v89, %v346
  %v348 = vpop.f32.mrb[0].mxu0
  %v349 = vadd.f32 %v85, %v348
  %v350 = vpop.f32.mrb[0].mxu0
  %v351 = vadd.f32 %v89, %v350
  %352 = vmatprep.mubr.bf16.mxu0 0
  %353 = vmatmul.mubr.bf16.gmra.mrb[0].mxu0 %v135
  %v354 = vpop.f32.mrb[0].mxu0
  %v355 = vadd.f32 %v85, %v354
  %v356 = vpop.f32.mrb[0].mxu0
  %v357 = vadd.f32 %v89, %v356
  %v358 = vpop.f32.mrb[0].mxu0
  %v359 = vadd.f32 %v85, %v358
  %v360 = vpop.f32.mrb[0].mxu0
  %v361 = vadd.f32 %v89, %v360
  %362 = vmatprep.mubr.bf16.mxu0 0
  %363 = vmatmul.mubr.bf16.gmra.mrb[0].mxu0 %v136
  %v364 = vpop.f32.mrb[0].mxu0
  %v365 = vadd.f32 %v85, %v364
  %v366 = vpop.f32.mrb[0].mxu0
  %v367 = vadd.f32 %v89, %v366
  %v368 = vpop.f32.mrb[0].mxu0
  %v369 = vadd.f32 %v85, %v368
  %v370 = vpop.f32.mrb[0].mxu0
  %v371 = vadd.f32 %v89, %v370
  %372 = vmatprep.mubr.bf16.mxu0 0
  %373 = vmatmul.mubr.bf16.gmra.mrb[0].mxu0 %v137
  %v374 = vpop.f32.mrb[0].mxu0
  %v375 = vadd.f32 %v85, %v374
  %v376 = vpop.f32.mrb[0].mxu0
  %v377 = vadd.f32 %v89, %v376
  %v378 = vpop.f32.mrb[0].mxu0
  %v379 = vadd.f32 %v85, %v378
  %v380 = vpop.f32.mrb[0].mxu0
  %v381 = vadd.f32 %v89, %v380
  %382 = vmatprep.mubr.bf16.mxu0 0
  %383 = vmatmul.mubr.bf16.gmra.mrb[0].mxu0 %v138
  %v384 = vpop.f32.mrb[0].mxu0
  %v385 = vadd.f32 %v85, %v384
  %v386 = vpop.f32.mrb[0].mxu0
  %v387 = vadd.f32 %v89, %v386
  %v388 = vpop.f32.mrb[0].mxu0
  %v389 = vadd.f32 %v85, %v388
  %v390 = vpop.f32.mrb[0].mxu0
  %v391 = vadd.f32 %v89, %v390
  %392 = vmatprep.mubr.bf16.mxu0 0
  %393 = vmatmul.mubr.bf16.gmra.mrb[0].mxu0 %v139
  %v394 = vpop.f32.mrb[0].mxu0
  %v395 = vadd.f32 %v85, %v394
  %v396 = vpop.f32.mrb[0].mxu0
  %v397 = vadd.f32 %v89, %v396
  %v398 = vpop.f32.mrb[0].mxu0
  %v399 = vadd.f32 %v85, %v398
  %v400 = vpop.f32.mrb[0].mxu0
  %v401 = vadd.f32 %v89, %v400
  %402 = vmatprep.mubr.bf16.mxu0 0
  %403 = vmatmul.mubr.bf16.gmra.mrb[0].mxu0 %v140
  %v404 = vpop.f32.mrb[0].mxu0
  %v405 = vadd.f32 %v85, %v404
  %v406 = vpop.f32.mrb[0].mxu0
  %v407 = vadd.f32 %v89, %v406
  %v408 = vpop.f32.mrb[0].mxu0
  %v409 = vadd.f32 %v85, %v408
  %v410 = vpop.f32.mrb[0].mxu0
  %v411 = vadd.f32 %v89, %v410
  %412 = vmatprep.mubr.bf16.mxu0 0
  %413 = vmatmul.mubr.bf16.gmra.mrb[0].mxu0 %v141
  %v414 = vpop.f32.mrb[0].mxu0
  %v415 = vadd.f32 %v85, %v414
  %v416 = vpop.f32.mrb[0].mxu0
  %v417 = vadd.f32 %v89, %v416
  %v418 = vpop.f32.mrb[0].mxu0
  %v419 = vadd.f32 %v85, %v418
  %v420 = vpop.f32.mrb[0].mxu0
  %v421 = vadd.f32 %v89, %v420
  %422 = vdwg.mxu0
  %423 = vmatprep.subr.bf16.mxu0 %v249
  %424 = vmatpush1.bf16.msra.mxu0 %v248
  %425 = vmatprep.subr.bf16.mxu0 %v253
  %426 = vmatpush1.bf16.msra.mxu0 %v252
  %427 = vmatprep.subr.bf16.mxu0 %v257
  %428 = vmatpush1.bf16.msra.mxu0 %v256
  %429 = vmatprep.subr.bf16.mxu0 %v261
  %430 = vmatpush1.bf16.msra.mxu0 %v260
  %431 = vmatprep.subr.bf16.mxu0 %v265
  %432 = vmatpush1.bf16.msra.mxu0 %v264
  %433 = vmatprep.subr.bf16.mxu0 %v269
  %434 = vmatpush1.bf16.msra.mxu0 %v268
  %435 = vmatprep.subr.bf16.mxu0 %v273
  %436 = vmatpush1.bf16.msra.mxu0 %v272
  %437 = vmatprep.subr.bf16.mxu0 %v277
  %438 = vmatpush1.bf16.msra.mxu0 %v276
  %439 = vmatprep.subr.bf16.mxu0 0
  %440 = vmatpush1.bf16.msra.mxu0 0
  %441 = vmatprep.subr.bf16.mxu0 0
  %442 = vmatpush1.bf16.msra.mxu0 0
  %443 = vmatprep.subr.bf16.mxu0 0
  %444 = vmatpush1.bf16.msra.mxu0 0
  %445 = vmatprep.subr.bf16.mxu0 0
  %446 = vmatpush1.bf16.msra.mxu0 0
  %447 = vmatprep.subr.bf16.mxu0 0
  %448 = vmatpush1.bf16.msra.mxu0 0
  %449 = vmatprep.subr.bf16.mxu0 0
  %450 = vmatpush1.bf16.msra.mxu0 0
  %451 = vmatprep.subr.bf16.mxu0 0
  %452 = vmatpush1.bf16.msra.mxu0 0
  %453 = vmatprep.subr.bf16.mxu0 0
  %454 = vmatpush1.bf16.msra.mxu0 0
  %455 = vmatprep.mubr.bf16.mxu0 0
  %456 = vmatmul.mubr.bf16.gmra.mrb[0].mxu0 %v134
  %v457 = vpop.f32.mrb[0].mxu0
  %v458 = vadd.f32 %v93, %v457
  %v459 = vpop.f32.mrb[0].mxu0
  %v460 = vadd.f32 %v97, %v459
  %v461 = vpop.f32.mrb[0].mxu0
  %v462 = vadd.f32 %v93, %v461
  %v463 = vpop.f32.mrb[0].mxu0
  %v464 = vadd.f32 %v97, %v463
  %465 = vmatprep.mubr.bf16.mxu0 0
  %466 = vmatmul.mubr.bf16.gmra.mrb[0].mxu0 %v135
  %v467 = vpop.f32.mrb[0].mxu0
  %v468 = vadd.f32 %v93, %v467
  %v469 = vpop.f32.mrb[0].mxu0
  %v470 = vadd.f32 %v97, %v469
  %v471 = vpop.f32.mrb[0].mxu0
  %v472 = vadd.f32 %v93, %v471
  %v473 = vpop.f32.mrb[0].mxu0
  %v474 = vadd.f32 %v97, %v473
  %475 = vmatprep.mubr.bf16.mxu0 0
  %476 = vmatmul.mubr.bf16.gmra.mrb[0].mxu0 %v136
  %v477 = vpop.f32.mrb[0].mxu0
  %v478 = vadd.f32 %v93, %v477
  %v479 = vpop.f32.mrb[0].mxu0
  %v480 = vadd.f32 %v97, %v479
  %v481 = vpop.f32.mrb[0].mxu0
  %v482 = vadd.f32 %v93, %v481
  %v483 = vpop.f32.mrb[0].mxu0
  %v484 = vadd.f32 %v97, %v483
  %485 = vmatprep.mubr.bf16.mxu0 0
  %486 = vmatmul.mubr.bf16.gmra.mrb[0].mxu0 %v137
  %v487 = vpop.f32.mrb[0].mxu0
  %v488 = vadd.f32 %v93, %v487
  %v489 = vpop.f32.mrb[0].mxu0
  %v490 = vadd.f32 %v97, %v489
  %v491 = vpop.f32.mrb[0].mxu0
  %v492 = vadd.f32 %v93, %v491
  %v493 = vpop.f32.mrb[0].mxu0
  %v494 = vadd.f32 %v97, %v493
  %495 = vmatprep.mubr.bf16.mxu0 0
  %496 = vmatmul.mubr.bf16.gmra.mrb[0].mxu0 %v138
  %v497 = vpop.f32.mrb[0].mxu0
  %v498 = vadd.f32 %v93, %v497
  %v499 = vpop.f32.mrb[0].mxu0
  %v500 = vadd.f32 %v97, %v499
  %v501 = vpop.f32.mrb[0].mxu0
  %v502 = vadd.f32 %v93, %v501
  %v503 = vpop.f32.mrb[0].mxu0
  %v504 = vadd.f32 %v97, %v503
  %505 = vmatprep.mubr.bf16.mxu0 0
  %506 = vmatmul.mubr.bf16.gmra.mrb[0].mxu0 %v139
  %v507 = vpop.f32.mrb[0].mxu0
  %v508 = vadd.f32 %v93, %v507
  %v509 = vpop.f32.mrb[0].mxu0
  %v510 = vadd.f32 %v97, %v509
  %v511 = vpop.f32.mrb[0].mxu0
  %v512 = vadd.f32 %v93, %v511
  %v513 = vpop.f32.mrb[0].mxu0
  %v514 = vadd.f32 %v97, %v513
  %515 = vmatprep.mubr.bf16.mxu0 0
  %516 = vmatmul.mubr.bf16.gmra.mrb[0].mxu0 %v140
  %v517 = vpop.f32.mrb[0].mxu0
  %v518 = vadd.f32 %v93, %v517
  %v519 = vpop.f32.mrb[0].mxu0
  %v520 = vadd.f32 %v97, %v519
  %v521 = vpop.f32.mrb[0].mxu0
  %v522 = vadd.f32 %v93, %v521
  %v523 = vpop.f32.mrb[0].mxu0
  %v524 = vadd.f32 %v97, %v523
  %525 = vmatprep.mubr.bf16.mxu0 0
  %526 = vmatmul.mubr.bf16.gmra.mrb[0].mxu0 %v141
  %v527 = vpop.f32.mrb[0].mxu0
  %v528 = vadd.f32 %v93, %v527
  %v529 = vpop.f32.mrb[0].mxu0
  %v530 = vadd.f32 %v97, %v529
  %v531 = vpop.f32.mrb[0].mxu0
  %v532 = vadd.f32 %v93, %v531
  %v533 = vpop.f32.mrb[0].mxu0
  %v534 = vadd.f32 %v97, %v533
  %535 = vdwg.mxu0
  %v536 = vpack.c.bf16 %v349, %v345
  %v537 = vpack.c.bf16 %v351, %v347
  %v538 = vpack.c.bf16 %v462, %v458
  %v539 = vpack.c.bf16 %v464, %v460
  %v540 = vpack.c.bf16 %v359, %v355
  %v541 = vpack.c.bf16 %v361, %v357
  %v542 = vpack.c.bf16 %v472, %v468
  %v543 = vpack.c.bf16 %v474, %v470
  %v544 = vpack.c.bf16 %v369, %v365
  %v545 = vpack.c.bf16 %v371, %v367
  %v546 = vpack.c.bf16 %v482, %v478
  %v547 = vpack.c.bf16 %v484, %v480
  %v548 = vpack.c.bf16 %v379, %v375
  %v549 = vpack.c.bf16 %v381, %v377
  %v550 = vpack.c.bf16 %v492, %v488
  %v551 = vpack.c.bf16 %v494, %v490
  %v552 = vpack.c.bf16 %v389, %v385
  %v553 = vpack.c.bf16 %v391, %v387
  %v554 = vpack.c.bf16 %v502, %v498
  %v555 = vpack.c.bf16 %v504, %v500
  %v556 = vpack.c.bf16 %v399, %v395
  %v557 = vpack.c.bf16 %v401, %v397
  %v558 = vpack.c.bf16 %v512, %v508
  %v559 = vpack.c.bf16 %v514, %v510
  %v560 = vpack.c.bf16 %v409, %v405
  %v561 = vpack.c.bf16 %v411, %v407
  %v562 = vpack.c.bf16 %v522, %v518
  %v563 = vpack.c.bf16 %v524, %v520
  %v564 = vpack.c.bf16 %v419, %v415
  %v565 = vpack.c.bf16 %v421, %v417
  %v566 = vpack.c.bf16 %v532, %v528
  %v567 = vpack.c.bf16 %v534, %v530
  %568 = vst [vmem:[#allocation4] sm:$0xff] %v536
  %569 = vst [vmem:[#allocation4 + $0x8] sm:$0xff] %v537
  %570 = vst [vmem:[#allocation4 + $0x10] sm:$0xff] %v538
  %571 = vst [vmem:[#allocation4 + $0x18] sm:$0xff] %v539
  %572 = vst [vmem:[#allocation4 + $0x20] sm:$0xff] %v540
  %573 = vst [vmem:[#allocation4 + $0x28] sm:$0xff] %v541
  %574 = vst [vmem:[#allocation4 + $0x30] sm:$0xff] %v542
  %575 = vst [vmem:[#allocation4 + $0x38] sm:$0xff] %v543
  %576 = vst [vmem:[#allocation4 + $0x40] sm:$0xff] %v544
  %577 = vst [vmem:[#allocation4 + $0x48] sm:$0xff] %v545
  %578 = vst [vmem:[#allocation4 + $0x50] sm:$0xff] %v546
  %579 = vst [vmem:[#allocation4 + $0x58] sm:$0xff] %v547
  %580 = vst [vmem:[#allocation4 + $0x60] sm:$0xff] %v548
  %581 = vst [vmem:[#allocation4 + $0x68] sm:$0xff] %v549
  %582 = vst [vmem:[#allocation4 + $0x70] sm:$0xff] %v550
  %583 = vst [vmem:[#allocation4 + $0x78] sm:$0xff] %v551
  %584 = vst [vmem:[#allocation4 + $0x80] sm:$0xff] %v552
  %585 = vst [vmem:[#allocation4 + $0x88] sm:$0xff] %v553
  %586 = vst [vmem:[#allocation4 + $0x90] sm:$0xff] %v554
  %587 = vst [vmem:[#allocation4 + $0x98] sm:$0xff] %v555
  %588 = vst [vmem:[#allocation4 + $0xa0] sm:$0xff] %v556
  %589 = vst [vmem:[#allocation4 + $0xa8] sm:$0xff] %v557
  %590 = vst [vmem:[#allocation4 + $0xb0] sm:$0xff] %v558
  %591 = vst [vmem:[#allocation4 + $0xb8] sm:$0xff] %v559
  %592 = vst [vmem:[#allocation4 + $0xc0] sm:$0xff] %v560
  %593 = vst [vmem:[#allocation4 + $0xc8] sm:$0xff] %v561
  %594 = vst [vmem:[#allocation4 + $0xd0] sm:$0xff] %v562
  %595 = vst [vmem:[#allocation4 + $0xd8] sm:$0xff] %v563
  %596 = vst [vmem:[#allocation4 + $0xe0] sm:$0xff] %v564
  %597 = vst [vmem:[#allocation4 + $0xe8] sm:$0xff] %v565
  %598 = vst [vmem:[#allocation4 + $0xf0] sm:$0xff] %v566
  %599 = vst [vmem:[#allocation4 + $0xf8] sm:$0xff] %v567
  %v600 = vld [vmem:[#allocation2] sm:$0xff]
  %v601 = vld [vmem:[#allocation2 + $0x8] sm:$0xff]
  %v602 = vld [vmem:[#allocation3] sm:$0xff]
  %v603 = vld [vmem:[#allocation3 + $0x8] sm:$0xff]
  %v604 = vld [vmem:[#allocation4] sm:$0xff]
  %v605 = vld [vmem:[#allocation4 + $0x8] sm:$0xff]
  %v606 = vld [vmem:[#allocation4 + $0x10] sm:$0xff]
  %v607 = vld [vmem:[#allocation4 + $0x18] sm:$0xff]
  %v608 = vunpack.c.l.bf16 %v604
  %v609 = vunpack.c.l.bf16 %v605
  %v610 = vunpack.c.l.bf16 %v606
  %v611 = vunpack.c.l.bf16 %v607
  %v612 = vunpack.c.h.bf16 %v604
  %v613 = vunpack.c.h.bf16 %v605
  %v614 = vunpack.c.h.bf16 %v606
  %v615 = vunpack.c.h.bf16 %v607
  %v616 = vpack.c.bf16 %v601, %v600
  %v617 = vld [vmem:[%s2] sm:$0xff]
  %v618 = vld [vmem:[%s2 + $0x8] sm:$0xff]
  %v619 = vld [vmem:[%s2 + $0x10] sm:$0xff]
  %v620 = vld [vmem:[%s2 + $0x18] sm:$0xff]
  %v621 = vld [vmem:[%s2 + $0x20] sm:$0xff]
  %v622 = vld [vmem:[%s2 + $0x28] sm:$0xff]
  %v623 = vld [vmem:[%s2 + $0x30] sm:$0xff]
  %v624 = vld [vmem:[%s2 + $0x38] sm:$0xff]
  %v625 = vld [vmem:[%s2 + $0x40] sm:$0xff]
  %v626 = vld [vmem:[%s2 + $0x48] sm:$0xff]
  %v627 = vld [vmem:[%s2 + $0x50] sm:$0xff]
  %v628 = vld [vmem:[%s2 + $0x58] sm:$0xff]
  %v629 = vld [vmem:[%s2 + $0x60] sm:$0xff]
  %v630 = vld [vmem:[%s2 + $0x68] sm:$0xff]
  %v631 = vld [vmem:[%s2 + $0x70] sm:$0xff]
  %v632 = vld [vmem:[%s2 + $0x78] sm:$0xff]
  %v633 = vld [vmem:[%s2 + $0x80] sm:$0xff]
  %v634 = vld [vmem:[%s2 + $0x88] sm:$0xff]
  %v635 = vld [vmem:[%s2 + $0x90] sm:$0xff]
  %v636 = vld [vmem:[%s2 + $0x98] sm:$0xff]
  %v637 = vld [vmem:[%s2 + $0xa0] sm:$0xff]
  %v638 = vld [vmem:[%s2 + $0xa8] sm:$0xff]
  %v639 = vld [vmem:[%s2 + $0xb0] sm:$0xff]
  %v640 = vld [vmem:[%s2 + $0xb8] sm:$0xff]
  %v641 = vld [vmem:[%s2 + $0xc0] sm:$0xff]
  %v642 = vld [vmem:[%s2 + $0xc8] sm:$0xff]
  %v643 = vld [vmem:[%s2 + $0xd0] sm:$0xff]
  %v644 = vld [vmem:[%s2 + $0xd8] sm:$0xff]
  %v645 = vld [vmem:[%s2 + $0xe0] sm:$0xff]
  %v646 = vld [vmem:[%s2 + $0xe8] sm:$0xff]
  %v647 = vld [vmem:[%s2 + $0xf0] sm:$0xff]
  %v648 = vld [vmem:[%s2 + $0xf8] sm:$0xff]
  %v681 = vunpack.c.l.b16 %v617
  %v682 = vunpack.c.h.b16 %v617
  %v683 = vunpack.c.l.b16 %v618
  %v684 = vunpack.c.h.b16 %v618
  %v685 = vunpack.c.l.b16 %v619
  %v686 = vunpack.c.h.b16 %v619
  %v687 = vunpack.c.l.b16 %v620
  %v688 = vunpack.c.h.b16 %v620
  %v689 = vunpack.c.l.b16 %v621
  %v690 = vunpack.c.h.b16 %v621
  %v691 = vunpack.c.l.b16 %v622
  %v692 = vunpack.c.h.b16 %v622
  %v693 = vunpack.c.l.b16 %v623
  %v694 = vunpack.c.h.b16 %v623
  %v695 = vunpack.c.l.b16 %v624
  %v696 = vunpack.c.h.b16 %v624
  %v697 = vunpack.c.l.b16 %v625
  %v698 = vunpack.c.h.b16 %v625
  %v699 = vunpack.c.l.b16 %v626
  %v700 = vunpack.c.h.b16 %v626
  %v701 = vunpack.c.l.b16 %v627
  %v702 = vunpack.c.h.b16 %v627
  %v703 = vunpack.c.l.b16 %v628
  %v704 = vunpack.c.h.b16 %v628
  %v705 = vunpack.c.l.b16 %v629
  %v706 = vunpack.c.h.b16 %v629
  %v707 = vunpack.c.l.b16 %v630
  %v708 = vunpack.c.h.b16 %v630
  %v709 = vunpack.c.l.b16 %v631
  %v710 = vunpack.c.h.b16 %v631
  %v711 = vunpack.c.l.b16 %v632
  %v712 = vunpack.c.h.b16 %v632
  %v713 = vunpack.c.l.b16 %v633
  %v714 = vunpack.c.h.b16 %v633
  %v715 = vunpack.c.l.b16 %v634
  %v716 = vunpack.c.h.b16 %v634
  %v717 = vunpack.c.l.b16 %v635
  %v718 = vunpack.c.h.b16 %v635
  %v719 = vunpack.c.l.b16 %v636
  %v720 = vunpack.c.h.b16 %v636
  %v721 = vunpack.c.l.b16 %v637
  %v722 = vunpack.c.h.b16 %v637
  %v723 = vunpack.c.l.b16 %v638
  %v724 = vunpack.c.h.b16 %v638
  %v725 = vunpack.c.l.b16 %v639
  %v726 = vunpack.c.h.b16 %v639
  %v727 = vunpack.c.l.b16 %v640
  %v728 = vunpack.c.h.b16 %v640
  %v729 = vunpack.c.l.b16 %v641
  %v730 = vunpack.c.h.b16 %v641
  %v731 = vunpack.c.l.b16 %v642
  %v732 = vunpack.c.h.b16 %v642
  %v733 = vunpack.c.l.b16 %v643
  %v734 = vunpack.c.h.b16 %v643
  %v735 = vunpack.c.l.b16 %v644
  %v736 = vunpack.c.h.b16 %v644
  %v737 = vunpack.c.l.b16 %v645
  %v738 = vunpack.c.h.b16 %v645
  %v739 = vunpack.c.l.b16 %v646
  %v740 = vunpack.c.h.b16 %v646
  %v741 = vunpack.c.l.b16 %v647
  %v742 = vunpack.c.h.b16 %v647
  %v743 = vunpack.c.l.b16 %v648
  %v744 = vunpack.c.h.b16 %v648
  %v745 = vpack.c.b16 %v685, %v681
  %v746 = vpack.c.b16 %v686, %v682
  %v747 = vpack.c.b16 %v687, %v683
  %v748 = vpack.c.b16 %v688, %v684
  %v749 = vpack.c.b16 %v693, %v689
  %v750 = vpack.c.b16 %v694, %v690
  %v751 = vpack.c.b16 %v695, %v691
  %v752 = vpack.c.b16 %v696, %v692
  %v753 = vpack.c.b16 %v701, %v697
  %v754 = vpack.c.b16 %v702, %v698
  %v755 = vpack.c.b16 %v703, %v699
  %v756 = vpack.c.b16 %v704, %v700
  %v757 = vpack.c.b16 %v709, %v705
  %v758 = vpack.c.b16 %v710, %v706
  %v759 = vpack.c.b16 %v711, %v707
  %v760 = vpack.c.b16 %v712, %v708
  %v761 = vpack.c.b16 %v717, %v713
  %v762 = vpack.c.b16 %v718, %v714
  %v763 = vpack.c.b16 %v719, %v715
  %v764 = vpack.c.b16 %v720, %v716
  %v765 = vpack.c.b16 %v725, %v721
  %v766 = vpack.c.b16 %v726, %v722
  %v767 = vpack.c.b16 %v727, %v723
  %v768 = vpack.c.b16 %v728, %v724
  %v769 = vpack.c.b16 %v733, %v729
  %v770 = vpack.c.b16 %v734, %v730
  %v771 = vpack.c.b16 %v735, %v731
  %v772 = vpack.c.b16 %v736, %v732
  %v773 = vpack.c.b16 %v741, %v737
  %v774 = vpack.c.b16 %v742, %v738
  %v775 = vpack.c.b16 %v743, %v739
  %v776 = vpack.c.b16 %v744, %v740
  %809 = vmatprep.subr.bf16.mxu0 %v746
  %810 = vmatpush1.bf16.msra.mxu0 %v745
  %811 = vmatprep.subr.bf16.mxu0 %v750
  %812 = vmatpush1.bf16.msra.mxu0 %v749
  %813 = vmatprep.subr.bf16.mxu0 %v754
  %814 = vmatpush1.bf16.msra.mxu0 %v753
  %815 = vmatprep.subr.bf16.mxu0 %v758
  %816 = vmatpush1.bf16.msra.mxu0 %v757
  %817 = vmatprep.subr.bf16.mxu0 %v762
  %818 = vmatpush1.bf16.msra.mxu0 %v761
  %819 = vmatprep.subr.bf16.mxu0 %v766
  %820 = vmatpush1.bf16.msra.mxu0 %v765
  %821 = vmatprep.subr.bf16.mxu0 %v770
  %822 = vmatpush1.bf16.msra.mxu0 %v769
  %823 = vmatprep.subr.bf16.mxu0 %v774
  %824 = vmatpush1.bf16.msra.mxu0 %v773
  %825 = vmatprep.subr.bf16.mxu0 0
  %826 = vmatpush1.bf16.msra.mxu0 0
  %827 = vmatprep.subr.bf16.mxu0 0
  %828 = vmatpush1.bf16.msra.mxu0 0
  %829 = vmatprep.subr.bf16.mxu0 0
  %830 = vmatpush1.bf16.msra.mxu0 0
  %831 = vmatprep.subr.bf16.mxu0 0
  %832 = vmatpush1.bf16.msra.mxu0 0
  %833 = vmatprep.subr.bf16.mxu0 0
  %834 = vmatpush1.bf16.msra.mxu0 0
  %835 = vmatprep.subr.bf16.mxu0 0
  %836 = vmatpush1.bf16.msra.mxu0 0
  %837 = vmatprep.subr.bf16.mxu0 0
  %838 = vmatpush1.bf16.msra.mxu0 0
  %839 = vmatprep.subr.bf16.mxu0 0
  %840 = vmatpush1.bf16.msra.mxu0 0
  %841 = vmatprep.mubr.bf16.mxu0 0
  %842 = vmatmul.mubr.bf16.gmra.mrb[0].mxu0 %v616
  %v843 = vpop.f32.mrb[0].mxu0
  %v844 = vadd.f32 0.0, %v843
  %v845 = vpop.f32.mrb[0].mxu0
  %v846 = vadd.f32 0.0, %v845
  %v847 = vpop.f32.mrb[0].mxu0
  %v848 = vadd.f32 0.0, %v847
  %v849 = vpop.f32.mrb[0].mxu0
  %v850 = vadd.f32 0.0, %v849
  %851 = vdwg.mxu0
  %852 = vmatprep.subr.bf16.mxu0 %v748
  %853 = vmatpush1.bf16.msra.mxu0 %v747
  %854 = vmatprep.subr.bf16.mxu0 %v752
  %855 = vmatpush1.bf16.msra.mxu0 %v751
  %856 = vmatprep.subr.bf16.mxu0 %v756
  %857 = vmatpush1.bf16.msra.mxu0 %v755
  %858 = vmatprep.subr.bf16.mxu0 %v760
  %859 = vmatpush1.bf16.msra.mxu0 %v759
  %860 = vmatprep.subr.bf16.mxu0 %v764
  %861 = vmatpush1.bf16.msra.mxu0 %v763
  %862 = vmatprep.subr.bf16.mxu0 %v768
  %863 = vmatpush1.bf16.msra.mxu0 %v767
  %864 = vmatprep.subr.bf16.mxu0 %v772
  %865 = vmatpush1.bf16.msra.mxu0 %v771
  %866 = vmatprep.subr.bf16.mxu0 %v776
  %867 = vmatpush1.bf16.msra.mxu0 %v775
  %868 = vmatprep.subr.bf16.mxu0 0
  %869 = vmatpush1.bf16.msra.mxu0 0
  %870 = vmatprep.subr.bf16.mxu0 0
  %871 = vmatpush1.bf16.msra.mxu0 0
  %872 = vmatprep.subr.bf16.mxu0 0
  %873 = vmatpush1.bf16.msra.mxu0 0
  %874 = vmatprep.subr.bf16.mxu0 0
  %875 = vmatpush1.bf16.msra.mxu0 0
  %876 = vmatprep.subr.bf16.mxu0 0
  %877 = vmatpush1.bf16.msra.mxu0 0
  %878 = vmatprep.subr.bf16.mxu0 0
  %879 = vmatpush1.bf16.msra.mxu0 0
  %880 = vmatprep.subr.bf16.mxu0 0
  %881 = vmatpush1.bf16.msra.mxu0 0
  %882 = vmatprep.subr.bf16.mxu0 0
  %883 = vmatpush1.bf16.msra.mxu0 0
  %884 = vmatprep.mubr.bf16.mxu0 0
  %885 = vmatmul.mubr.bf16.gmra.mrb[0].mxu0 %v616
  %v886 = vpop.f32.mrb[0].mxu0
  %v887 = vadd.f32 0.0, %v886
  %v888 = vpop.f32.mrb[0].mxu0
  %v889 = vadd.f32 0.0, %v888
  %v890 = vpop.f32.mrb[0].mxu0
  %v891 = vadd.f32 0.0, %v890
  %v892 = vpop.f32.mrb[0].mxu0
  %v893 = vadd.f32 0.0, %v892
  %894 = vdwg.mxu0
  %v895 = vadd.f32 %v608, %v844
  %v896 = vadd.f32 %v609, %v846
  %v897 = vadd.f32 %v610, %v887
  %v898 = vadd.f32 %v611, %v889
  %v899 = vadd.f32 %v612, %v848
  %v900 = vadd.f32 %v613, %v850
  %v901 = vadd.f32 %v614, %v891
  %v902 = vadd.f32 %v615, %v893
  %v903 = vxor.u32 %v895, 2147483648
  %v904 = vxor.u32 %v899, 2147483648
  %v905 = vmul.f32 %v903, 1.442695
  %v906 = vpow.pop %v905
  %v907 = vmul.f32 %v904, 1.442695
  %v908 = vpow.pop %v907
  %v909 = vadd.f32 %v906, 1.0
  %v910 = vadd.f32 %v908, 1.0
  %v911 = vrcp.pop %v909
  %v912 = vmul.f32 1.0, %v911
  %v913 = vrcp.pop %v910
  %v914 = vmul.f32 1.0, %v913
  %v915 = vxor.u32 %v896, 2147483648
  %v916 = vxor.u32 %v900, 2147483648
  %v917 = vmul.f32 %v915, 1.442695
  %v918 = vpow.pop %v917
  %v919 = vmul.f32 %v916, 1.442695
  %v920 = vpow.pop %v919
  %v921 = vadd.f32 %v918, 1.0
  %v922 = vadd.f32 %v920, 1.0
  %v923 = vrcp.pop %v921
  %v924 = vmul.f32 1.0, %v923
  %v925 = vrcp.pop %v922
  %v926 = vmul.f32 1.0, %v925
  %v927 = vtanh.pop %v897
  %v928 = vtanh.pop %v901
  %v929 = vxor.u32 %v898, 2147483648
  %v930 = vxor.u32 %v902, 2147483648
  %v931 = vmul.f32 %v929, 1.442695
  %v932 = vpow.pop %v931
  %v933 = vmul.f32 %v930, 1.442695
  %v934 = vpow.pop %v933
  %v935 = vadd.f32 %v932, 1.0
  %v936 = vadd.f32 %v934, 1.0
  %v937 = vrcp.pop %v935
  %v938 = vmul.f32 1.0, %v937
  %v939 = vrcp.pop %v936
  %v940 = vmul.f32 1.0, %v939
  %v941 = vmul.f32 %v924, %v602
  %v942 = vmul.f32 %v926, %v603
  %v943 = vmul.f32 %v912, %v927
  %v944 = vmul.f32 %v914, %v928
  %v945 = vadd.f32 %v941, %v943
  %v946 = vadd.f32 %v942, %v944
  %v947 = vtanh.pop %v945
  %v948 = vtanh.pop %v946
  %v949 = vmul.f32 %v938, %v947
  %v950 = vmul.f32 %v940, %v948
  %951 = vst [vmem:[#allocation2] sm:$0xff] %v949
  %952 = vst [vmem:[#allocation2 + $0x8] sm:$0xff] %v950
  %953 = vst [vmem:[#allocation3] sm:$0xff] %v945
  %954 = vst [vmem:[#allocation3 + $0x8] sm:$0xff] %v946
  %v955 = vld [vmem:[#allocation2] sm:$0xff]
  %v956 = vld [vmem:[#allocation2 + $0x8] sm:$0xff]
  %v957 = vld [vmem:[#allocation3] sm:$0xff]
  %v958 = vld [vmem:[#allocation3 + $0x8] sm:$0xff]
  %s959 = scalar_lea.vmem [#allocation4], 32
  %v960 = vld [vmem:[%s959] sm:$0xff]
  %v961 = vld [vmem:[%s959 + $0x8] sm:$0xff]
  %v962 = vld [vmem:[%s959 + $0x10] sm:$0xff]
  %v963 = vld [vmem:[%s959 + $0x18] sm:$0xff]
  %v964 = vunpack.c.l.bf16 %v960
  %v965 = vunpack.c.l.bf16 %v961
  %v966 = vunpack.c.l.bf16 %v962
  %v967 = vunpack.c.l.bf16 %v963
  %v968 = vunpack.c.h.bf16 %v960
  %v969 = vunpack.c.h.bf16 %v961
  %v970 = vunpack.c.h.bf16 %v962
  %v971 = vunpack.c.h.bf16 %v963
  %v972 = vpack.c.bf16 %v956, %v955
  %v973 = vld [vmem:[%s2] sm:$0xff]
  %v974 = vld [vmem:[%s2 + $0x8] sm:$0xff]
  %v975 = vld [vmem:[%s2 + $0x10] sm:$0xff]
  %v976 = vld [vmem:[%s2 + $0x18] sm:$0xff]
  %v977 = vld [vmem:[%s2 + $0x20] sm:$0xff]
  %v978 = vld [vmem:[%s2 + $0x28] sm:$0xff]
  %v979 = vld [vmem:[%s2 + $0x30] sm:$0xff]
  %v980 = vld [vmem:[%s2 + $0x38] sm:$0xff]
  %v981 = vld [vmem:[%s2 + $0x40] sm:$0xff]
  %v982 = vld [vmem:[%s2 + $0x48] sm:$0xff]
  %v983 = vld [vmem:[%s2 + $0x50] sm:$0xff]
  %v984 = vld [vmem:[%s2 + $0x58] sm:$0xff]
  %v985 = vld [vmem:[%s2 + $0x60] sm:$0xff]
  %v986 = vld [vmem:[%s2 + $0x68] sm:$0xff]
  %v987 = vld [vmem:[%s2 + $0x70] sm:$0xff]
  %v988 = vld [vmem:[%s2 + $0x78] sm:$0xff]
  %v989 = vld [vmem:[%s2 + $0x80] sm:$0xff]
  %v990 = vld [vmem:[%s2 + $0x88] sm:$0xff]
  %v991 = vld [vmem:[%s2 + $0x90] sm:$0xff]
  %v992 = vld [vmem:[%s2 + $0x98] sm:$0xff]
  %v993 = vld [vmem:[%s2 + $0xa0] sm:$0xff]
  %v994 = vld [vmem:[%s2 + $0xa8] sm:$0xff]
  %v995 = vld [vmem:[%s2 + $0xb0] sm:$0xff]
  %v996 = vld [vmem:[%s2 + $0xb8] sm:$0xff]
  %v997 = vld [vmem:[%s2 + $0xc0] sm:$0xff]
  %v998 = vld [vmem:[%s2 + $0xc8] sm:$0xff]
  %v999 = vld [vmem:[%s2 + $0xd0] sm:$0xff]
  %v1000 = vld [vmem:[%s2 + $0xd8] sm:$0xff]
  %v1001 = vld [vmem:[%s2 + $0xe0] sm:$0xff]
  %v1002 = vld [vmem:[%s2 + $0xe8] sm:$0xff]
  %v1003 = vld [vmem:[%s2 + $0xf0] sm:$0xff]
  %v1004 = vld [vmem:[%s2 + $0xf8] sm:$0xff]
  %v1037 = vunpack.c.l.b16 %v973
  %v1038 = vunpack.c.h.b16 %v973
  %v1039 = vunpack.c.l.b16 %v974
  %v1040 = vunpack.c.h.b16 %v974
  %v1041 = vunpack.c.l.b16 %v975
  %v1042 = vunpack.c.h.b16 %v975
  %v1043 = vunpack.c.l.b16 %v976
  %v1044 = vunpack.c.h.b16 %v976
  %v1045 = vunpack.c.l.b16 %v977
  %v1046 = vunpack.c.h.b16 %v977
  %v1047 = vunpack.c.l.b16 %v978
  %v1048 = vunpack.c.h.b16 %v978
  %v1049 = vunpack.c.l.b16 %v979
  %v1050 = vunpack.c.h.b16 %v979
  %v1051 = vunpack.c.l.b16 %v980
  %v1052 = vunpack.c.h.b16 %v980
  %v1053 = vunpack.c.l.b16 %v981
  %v1054 = vunpack.c.h.b16 %v981
  %v1055 = vunpack.c.l.b16 %v982
  %v1056 = vunpack.c.h.b16 %v982
  %v1057 = vunpack.c.l.b16 %v983
  %v1058 = vunpack.c.h.b16 %v983
  %v1059 = vunpack.c.l.b16 %v984
  %v1060 = vunpack.c.h.b16 %v984
  %v1061 = vunpack.c.l.b16 %v985
  %v1062 = vunpack.c.h.b16 %v985
  %v1063 = vunpack.c.l.b16 %v986
  %v1064 = vunpack.c.h.b16 %v986
  %v1065 = vunpack.c.l.b16 %v987
  %v1066 = vunpack.c.h.b16 %v987
  %v1067 = vunpack.c.l.b16 %v988
  %v1068 = vunpack.c.h.b16 %v988
  %v1069 = vunpack.c.l.b16 %v989
  %v1070 = vunpack.c.h.b16 %v989
  %v1071 = vunpack.c.l.b16 %v990
  %v1072 = vunpack.c.h.b16 %v990
  %v1073 = vunpack.c.l.b16 %v991
  %v1074 = vunpack.c.h.b16 %v991
  %v1075 = vunpack.c.l.b16 %v992
  %v1076 = vunpack.c.h.b16 %v992
  %v1077 = vunpack.c.l.b16 %v993
  %v1078 = vunpack.c.h.b16 %v993
  %v1079 = vunpack.c.l.b16 %v994
  %v1080 = vunpack.c.h.b16 %v994
  %v1081 = vunpack.c.l.b16 %v995
  %v1082 = vunpack.c.h.b16 %v995
  %v1083 = vunpack.c.l.b16 %v996
  %v1084 = vunpack.c.h.b16 %v996
  %v1085 = vunpack.c.l.b16 %v997
  %v1086 = vunpack.c.h.b16 %v997
  %v1087 = vunpack.c.l.b16 %v998
  %v1088 = vunpack.c.h.b16 %v998
  %v1089 = vunpack.c.l.b16 %v999
  %v1090 = vunpack.c.h.b16 %v999
  %v1091 = vunpack.c.l.b16 %v1000
  %v1092 = vunpack.c.h.b16 %v1000
  %v1093 = vunpack.c.l.b16 %v1001
  %v1094 = vunpack.c.h.b16 %v1001
  %v1095 = vunpack.c.l.b16 %v1002
  %v1096 = vunpack.c.h.b16 %v1002
  %v1097 = vunpack.c.l.b16 %v1003
  %v1098 = vunpack.c.h.b16 %v1003
  %v1099 = vunpack.c.l.b16 %v1004
  %v1100 = vunpack.c.h.b16 %v1004
  %v1101 = vpack.c.b16 %v1041, %v1037
  %v1102 = vpack.c.b16 %v1042, %v1038
  %v1103 = vpack.c.b16 %v1043, %v1039
  %v1104 = vpack.c.b16 %v1044, %v1040
  %v1105 = vpack.c.b16 %v1049, %v1045
  %v1106 = vpack.c.b16 %v1050, %v1046
  %v1107 = vpack.c.b16 %v1051, %v1047
  %v1108 = vpack.c.b16 %v1052, %v1048
  %v1109 = vpack.c.b16 %v1057, %v1053
  %v1110 = vpack.c.b16 %v1058, %v1054
  %v1111 = vpack.c.b16 %v1059, %v1055
  %v1112 = vpack.c.b16 %v1060, %v1056
  %v1113 = vpack.c.b16 %v1065, %v1061
  %v1114 = vpack.c.b16 %v1066, %v1062
  %v1115 = vpack.c.b16 %v1067, %v1063
  %v1116 = vpack.c.b16 %v1068, %v1064
  %v1117 = vpack.c.b16 %v1073, %v1069
  %v1118 = vpack.c.b16 %v1074, %v1070
  %v1119 = vpack.c.b16 %v1075, %v1071
  %v1120 = vpack.c.b16 %v1076, %v1072
  %v1121 = vpack.c.b16 %v1081, %v1077
  %v1122 = vpack.c.b16 %v1082, %v1078
  %v1123 = vpack.c.b16 %v1083, %v1079
  %v1124 = vpack.c.b16 %v1084, %v1080
  %v1125 = vpack.c.b16 %v1089, %v1085
  %v1126 = vpack.c.b16 %v1090, %v1086
  %v1127 = vpack.c.b16 %v1091, %v1087
  %v1128 = vpack.c.b16 %v1092, %v1088
  %v1129 = vpack.c.b16 %v1097, %v1093
  %v1130 = vpack.c.b16 %v1098, %v1094
  %v1131 = vpack.c.b16 %v1099, %v1095
  %v1132 = vpack.c.b16 %v1100, %v1096
  %1165 = vmatprep.subr.bf16.mxu0 %v1102
  %1166 = vmatpush1.bf16.msra.mxu0 %v1101
  %1167 = vmatprep.subr.bf16.mxu0 %v1106
  %1168 = vmatpush1.bf16.msra.mxu0 %v1105
  %1169 = vmatprep.subr.bf16.mxu0 %v1110
  %1170 = vmatpush1.bf16.msra.mxu0 %v1109
  %1171 = vmatprep.subr.bf16.mxu0 %v1114
  %1172 = vmatpush1.bf16.msra.mxu0 %v1113
  %1173 = vmatprep.subr.bf16.mxu0 %v1118
  %1174 = vmatpush1.bf16.msra.mxu0 %v1117
  %1175 = vmatprep.subr.bf16.mxu0 %v1122
  %1176 = vmatpush1.bf16.msra.mxu0 %v1121
  %1177 = vmatprep.subr.bf16.mxu0 %v1126
  %1178 = vmatpush1.bf16.msra.mxu0 %v1125
  %1179 = vmatprep.subr.bf16.mxu0 %v1130
  %1180 = vmatpush1.bf16.msra.mxu0 %v1129
  %1181 = vmatprep.subr.bf16.mxu0 0
  %1182 = vmatpush1.bf16.msra.mxu0 0
  %1183 = vmatprep.subr.bf16.mxu0 0
  %1184 = vmatpush1.bf16.msra.mxu0 0
  %1185 = vmatprep.subr.bf16.mxu0 0
  %1186 = vmatpush1.bf16.msra.mxu0 0
  %1187 = vmatprep.subr.bf16.mxu0 0
  %1188 = vmatpush1.bf16.msra.mxu0 0
  %1189 = vmatprep.subr.bf16.mxu0 0
  %1190 = vmatpush1.bf16.msra.mxu0 0
  %1191 = vmatprep.subr.bf16.mxu0 0
  %1192 = vmatpush1.bf16.msra.mxu0 0
  %1193 = vmatprep.subr.bf16.mxu0 0
  %1194 = vmatpush1.bf16.msra.mxu0 0
  %1195 = vmatprep.subr.bf16.mxu0 0
  %1196 = vmatpush1.bf16.msra.mxu0 0
  %1197 = vmatprep.mubr.bf16.mxu0 0
  %1198 = vmatmul.mubr.bf16.gmra.mrb[0].mxu0 %v972
  %v1199 = vpop.f32.mrb[0].mxu0
  %v1200 = vadd.f32 0.0, %v1199
  %v1201 = vpop.f32.mrb[0].mxu0
  %v1202 = vadd.f32 0.0, %v1201
  %v1203 = vpop.f32.mrb[0].mxu0
  %v1204 = vadd.f32 0.0, %v1203
  %v1205 = vpop.f32.mrb[0].mxu0
  %v1206 = vadd.f32 0.0, %v1205
  %1207 = vdwg.mxu0
  %1208 = vmatprep.subr.bf16.mxu0 %v1104
  %1209 = vmatpush1.bf16.msra.mxu0 %v1103
  %1210 = vmatprep.subr.bf16.mxu0 %v1108
  %1211 = vmatpush1.bf16.msra.mxu0 %v1107
  %1212 = vmatprep.subr.bf16.mxu0 %v1112
  %1213 = vmatpush1.bf16.msra.mxu0 %v1111
  %1214 = vmatprep.subr.bf16.mxu0 %v1116
  %1215 = vmatpush1.bf16.msra.mxu0 %v1115
  %1216 = vmatprep.subr.bf16.mxu0 %v1120
  %1217 = vmatpush1.bf16.msra.mxu0 %v1119
  %1218 = vmatprep.subr.bf16.mxu0 %v1124
  %1219 = vmatpush1.bf16.msra.mxu0 %v1123
  %1220 = vmatprep.subr.bf16.mxu0 %v1128
  %1221 = vmatpush1.bf16.msra.mxu0 %v1127
  %1222 = vmatprep.subr.bf16.mxu0 %v1132
  %1223 = vmatpush1.bf16.msra.mxu0 %v1131
  %1224 = vmatprep.subr.bf16.mxu0 0
  %1225 = vmatpush1.bf16.msra.mxu0 0
  %1226 = vmatprep.subr.bf16.mxu0 0
  %1227 = vmatpush1.bf16.msra.mxu0 0
  %1228 = vmatprep.subr.bf16.mxu0 0
  %1229 = vmatpush1.bf16.msra.mxu0 0
  %1230 = vmatprep.subr.bf16.mxu0 0
  %1231 = vmatpush1.bf16.msra.mxu0 0
  %1232 = vmatprep.subr.bf16.mxu0 0
  %1233 = vmatpush1.bf16.msra.mxu0 0
  %1234 = vmatprep.subr.bf16.mxu0 0
  %1235 = vmatpush1.bf16.msra.mxu0 0
  %1236 = vmatprep.subr.bf16.mxu0 0
  %1237 = vmatpush1.bf16.msra.mxu0 0
  %1238 = vmatprep.subr.bf16.mxu0 0
  %1239 = vmatpush1.bf16.msra.mxu0 0
  %1240 = vmatprep.mubr.bf16.mxu0 0
  %1241 = vmatmul.mubr.bf16.gmra.mrb[0].mxu0 %v972
  %v1242 = vpop.f32.mrb[0].mxu0
  %v1243 = vadd.f32 0.0, %v1242
  %v1244 = vpop.f32.mrb[0].mxu0
  %v1245 = vadd.f32 0.0, %v1244
  %v1246 = vpop.f32.mrb[0].mxu0
  %v1247 = vadd.f32 0.0, %v1246
  %v1248 = vpop.f32.mrb[0].mxu0
  %v1249 = vadd.f32 0.0, %v1248
  %1250 = vdwg.mxu0
  %v1251 = vadd.f32 %v964, %v1200
  %v1252 = vadd.f32 %v965, %v1202
  %v1253 = vadd.f32 %v966, %v1243
  %v1254 = vadd.f32 %v967, %v1245
  %v1255 = vadd.f32 %v968, %v1204
  %v1256 = vadd.f32 %v969, %v1206
  %v1257 = vadd.f32 %v970, %v1247
  %v1258 = vadd.f32 %v971, %v1249
  %v1259 = vxor.u32 %v1251, 2147483648
  %v1260 = vxor.u32 %v1255, 2147483648
  %v1261 = vmul.f32 %v1259, 1.442695
  %v1262 = vpow.pop %v1261
  %v1263 = vmul.f32 %v1260, 1.442695
  %v1264 = vpow.pop %v1263
  %v1265 = vadd.f32 %v1262, 1.0
  %v1266 = vadd.f32 %v1264, 1.0
  %v1267 = vrcp.pop %v1265
  %v1268 = vmul.f32 1.0, %v1267
  %v1269 = vrcp.pop %v1266
  %v1270 = vmul.f32 1.0, %v1269
  %v1271 = vxor.u32 %v1252, 2147483648
  %v1272 = vxor.u32 %v1256, 2147483648
  %v1273 = vmul.f32 %v1271, 1.442695
  %v1274 = vpow.pop %v1273
  %v1275 = vmul.f32 %v1272, 1.442695
  %v1276 = vpow.pop %v1275
  %v1277 = vadd.f32 %v1274, 1.0
  %v1278 = vadd.f32 %v1276, 1.0
  %v1279 = vrcp.pop %v1277
  %v1280 = vmul.f32 1.0, %v1279
  %v1281 = vrcp.pop %v1278
  %v1282 = vmul.f32 1.0, %v1281
  %v1283 = vtanh.pop %v1253
  %v1284 = vtanh.pop %v1257
  %v1285 = vxor.u32 %v1254, 2147483648
  %v1286 = vxor.u32 %v1258, 2147483648
  %v1287 = vmul.f32 %v1285, 1.442695
  %v1288 = vpow.pop %v1287
  %v1289 = vmul.f32 %v1286, 1.442695
  %v1290 = vpow.pop %v1289
  %v1291 = vadd.f32 %v1288, 1.0
  %v1292 = vadd.f32 %v1290, 1.0
  %v1293 = vrcp.pop %v1291
  %v1294 = vmul.f32 1.0, %v1293
  %v1295 = vrcp.pop %v1292
  %v1296 = vmul.f32 1.0, %v1295
  %v1297 = vmul.f32 %v1280, %v957
  %v1298 = vmul.f32 %v1282, %v958
  %v1299 = vmul.f32 %v1268, %v1283
  %v1300 = vmul.f32 %v1270, %v1284
  %v1301 = vadd.f32 %v1297, %v1299
  %v1302 = vadd.f32 %v1298, %v1300
  %v1303 = vtanh.pop %v1301
  %v1304 = vtanh.pop %v1302
  %v1305 = vmul.f32 %v1294, %v1303
  %v1306 = vmul.f32 %v1296, %v1304
  %1307 = vst [vmem:[#allocation2] sm:$0xff] %v1305
  %1308 = vst [vmem:[#allocation2 + $0x8] sm:$0xff] %v1306
  %1309 = vst [vmem:[#allocation3] sm:$0xff] %v1301
  %1310 = vst [vmem:[#allocation3 + $0x8] sm:$0xff] %v1302
  %v1311 = vld [vmem:[#allocation2] sm:$0xff]
  %v1312 = vld [vmem:[#allocation2 + $0x8] sm:$0xff]
  %v1313 = vld [vmem:[#allocation3] sm:$0xff]
  %v1314 = vld [vmem:[#allocation3 + $0x8] sm:$0xff]
  %s1315 = scalar_lea.vmem [#allocation4], 64
  %v1316 = vld [vmem:[%s1315] sm:$0xff]
  %v1317 = vld [vmem:[%s1315 + $0x8] sm:$0xff]
  %v1318 = vld [vmem:[%s1315 + $0x10] sm:$0xff]
  %v1319 = vld [vmem:[%s1315 + $0x18] sm:$0xff]
  %v1320 = vunpack.c.l.bf16 %v1316
  %v1321 = vunpack.c.l.bf16 %v1317
  %v1322 = vunpack.c.l.bf16 %v1318
  %v1323 = vunpack.c.l.bf16 %v1319
  %v1324 = vunpack.c.h.bf16 %v1316
  %v1325 = vunpack.c.h.bf16 %v1317
  %v1326 = vunpack.c.h.bf16 %v1318
  %v1327 = vunpack.c.h.bf16 %v1319
  %v1328 = vpack.c.bf16 %v1312, %v1311
  %v1329 = vld [vmem:[%s2] sm:$0xff]
  %v1330 = vld [vmem:[%s2 + $0x8] sm:$0xff]
  %v1331 = vld [vmem:[%s2 + $0x10] sm:$0xff]
  %v1332 = vld [vmem:[%s2 + $0x18] sm:$0xff]
  %v1333 = vld [vmem:[%s2 + $0x20] sm:$0xff]
  %v1334 = vld [vmem:[%s2 + $0x28] sm:$0xff]
  %v1335 = vld [vmem:[%s2 + $0x30] sm:$0xff]
  %v1336 = vld [vmem:[%s2 + $0x38] sm:$0xff]
  %v1337 = vld [vmem:[%s2 + $0x40] sm:$0xff]
  %v1338 = vld [vmem:[%s2 + $0x48] sm:$0xff]
  %v1339 = vld [vmem:[%s2 + $0x50] sm:$0xff]
  %v1340 = vld [vmem:[%s2 + $0x58] sm:$0xff]
  %v1341 = vld [vmem:[%s2 + $0x60] sm:$0xff]
  %v1342 = vld [vmem:[%s2 + $0x68] sm:$0xff]
  %v1343 = vld [vmem:[%s2 + $0x70] sm:$0xff]
  %v1344 = vld [vmem:[%s2 + $0x78] sm:$0xff]
  %v1345 = vld [vmem:[%s2 + $0x80] sm:$0xff]
  %v1346 = vld [vmem:[%s2 + $0x88] sm:$0xff]
  %v1347 = vld [vmem:[%s2 + $0x90] sm:$0xff]
  %v1348 = vld [vmem:[%s2 + $0x98] sm:$0xff]
  %v1349 = vld [vmem:[%s2 + $0xa0] sm:$0xff]
  %v1350 = vld [vmem:[%s2 + $0xa8] sm:$0xff]
  %v1351 = vld [vmem:[%s2 + $0xb0] sm:$0xff]
  %v1352 = vld [vmem:[%s2 + $0xb8] sm:$0xff]
  %v1353 = vld [vmem:[%s2 + $0xc0] sm:$0xff]
  %v1354 = vld [vmem:[%s2 + $0xc8] sm:$0xff]
  %v1355 = vld [vmem:[%s2 + $0xd0] sm:$0xff]
  %v1356 = vld [vmem:[%s2 + $0xd8] sm:$0xff]
  %v1357 = vld [vmem:[%s2 + $0xe0] sm:$0xff]
  %v1358 = vld [vmem:[%s2 + $0xe8] sm:$0xff]
  %v1359 = vld [vmem:[%s2 + $0xf0] sm:$0xff]
  %v1360 = vld [vmem:[%s2 + $0xf8] sm:$0xff]
  %v1393 = vunpack.c.l.b16 %v1329
  %v1394 = vunpack.c.h.b16 %v1329
  %v1395 = vunpack.c.l.b16 %v1330
  %v1396 = vunpack.c.h.b16 %v1330
  %v1397 = vunpack.c.l.b16 %v1331
  %v1398 = vunpack.c.h.b16 %v1331
  %v1399 = vunpack.c.l.b16 %v1332
  %v1400 = vunpack.c.h.b16 %v1332
  %v1401 = vunpack.c.l.b16 %v1333
  %v1402 = vunpack.c.h.b16 %v1333
  %v1403 = vunpack.c.l.b16 %v1334
  %v1404 = vunpack.c.h.b16 %v1334
  %v1405 = vunpack.c.l.b16 %v1335
  %v1406 = vunpack.c.h.b16 %v1335
  %v1407 = vunpack.c.l.b16 %v1336
  %v1408 = vunpack.c.h.b16 %v1336
  %v1409 = vunpack.c.l.b16 %v1337
  %v1410 = vunpack.c.h.b16 %v1337
  %v1411 = vunpack.c.l.b16 %v1338
  %v1412 = vunpack.c.h.b16 %v1338
  %v1413 = vunpack.c.l.b16 %v1339
  %v1414 = vunpack.c.h.b16 %v1339
  %v1415 = vunpack.c.l.b16 %v1340
  %v1416 = vunpack.c.h.b16 %v1340
  %v1417 = vunpack.c.l.b16 %v1341
  %v1418 = vunpack.c.h.b16 %v1341
  %v1419 = vunpack.c.l.b16 %v1342
  %v1420 = vunpack.c.h.b16 %v1342
  %v1421 = vunpack.c.l.b16 %v1343
  %v1422 = vunpack.c.h.b16 %v1343
  %v1423 = vunpack.c.l.b16 %v1344
  %v1424 = vunpack.c.h.b16 %v1344
  %v1425 = vunpack.c.l.b16 %v1345
  %v1426 = vunpack.c.h.b16 %v1345
  %v1427 = vunpack.c.l.b16 %v1346
  %v1428 = vunpack.c.h.b16 %v1346
  %v1429 = vunpack.c.l.b16 %v1347
  %v1430 = vunpack.c.h.b16 %v1347
  %v1431 = vunpack.c.l.b16 %v1348
  %v1432 = vunpack.c.h.b16 %v1348
  %v1433 = vunpack.c.l.b16 %v1349
  %v1434 = vunpack.c.h.b16 %v1349
  %v1435 = vunpack.c.l.b16 %v1350
  %v1436 = vunpack.c.h.b16 %v1350
  %v1437 = vunpack.c.l.b16 %v1351
  %v1438 = vunpack.c.h.b16 %v1351
  %v1439 = vunpack.c.l.b16 %v1352
  %v1440 = vunpack.c.h.b16 %v1352
  %v1441 = vunpack.c.l.b16 %v1353
  %v1442 = vunpack.c.h.b16 %v1353
  %v1443 = vunpack.c.l.b16 %v1354
  %v1444 = vunpack.c.h.b16 %v1354
  %v1445 = vunpack.c.l.b16 %v1355
  %v1446 = vunpack.c.h.b16 %v1355
  %v1447 = vunpack.c.l.b16 %v1356
  %v1448 = vunpack.c.h.b16 %v1356
  %v1449 = vunpack.c.l.b16 %v1357
  %v1450 = vunpack.c.h.b16 %v1357
  %v1451 = vunpack.c.l.b16 %v1358
  %v1452 = vunpack.c.h.b16 %v1358
  %v1453 = vunpack.c.l.b16 %v1359
  %v1454 = vunpack.c.h.b16 %v1359
  %v1455 = vunpack.c.l.b16 %v1360
  %v1456 = vunpack.c.h.b16 %v1360
  %v1457 = vpack.c.b16 %v1397, %v1393
  %v1458 = vpack.c.b16 %v1398, %v1394
  %v1459 = vpack.c.b16 %v1399, %v1395
  %v1460 = vpack.c.b16 %v1400, %v1396
  %v1461 = vpack.c.b16 %v1405, %v1401
  %v1462 = vpack.c.b16 %v1406, %v1402
  %v1463 = vpack.c.b16 %v1407, %v1403
  %v1464 = vpack.c.b16 %v1408, %v1404
  %v1465 = vpack.c.b16 %v1413, %v1409
  %v1466 = vpack.c.b16 %v1414, %v1410
  %v1467 = vpack.c.b16 %v1415, %v1411
  %v1468 = vpack.c.b16 %v1416, %v1412
  %v1469 = vpack.c.b16 %v1421, %v1417
  %v1470 = vpack.c.b16 %v1422, %v1418
  %v1471 = vpack.c.b16 %v1423, %v1419
  %v1472 = vpack.c.b16 %v1424, %v1420
  %v1473 = vpack.c.b16 %v1429, %v1425
  %v1474 = vpack.c.b16 %v1430, %v1426
  %v1475 = vpack.c.b16 %v1431, %v1427
  %v1476 = vpack.c.b16 %v1432, %v1428
  %v1477 = vpack.c.b16 %v1437, %v1433
  %v1478 = vpack.c.b16 %v1438, %v1434
  %v1479 = vpack.c.b16 %v1439, %v1435
  %v1480 = vpack.c.b16 %v1440, %v1436
  %v1481 = vpack.c.b16 %v1445, %v1441
  %v1482 = vpack.c.b16 %v1446, %v1442
  %v1483 = vpack.c.b16 %v1447, %v1443
  %v1484 = vpack.c.b16 %v1448, %v1444
  %v1485 = vpack.c.b16 %v1453, %v1449
  %v1486 = vpack.c.b16 %v1454, %v1450
  %v1487 = vpack.c.b16 %v1455, %v1451
  %v1488 = vpack.c.b16 %v1456, %v1452
  %1521 = vmatprep.subr.bf16.mxu0 %v1458
  %1522 = vmatpush1.bf16.msra.mxu0 %v1457
  %1523 = vmatprep.subr.bf16.mxu0 %v1462
  %1524 = vmatpush1.bf16.msra.mxu0 %v1461
  %1525 = vmatprep.subr.bf16.mxu0 %v1466
  %1526 = vmatpush1.bf16.msra.mxu0 %v1465
  %1527 = vmatprep.subr.bf16.mxu0 %v1470
  %1528 = vmatpush1.bf16.msra.mxu0 %v1469
  %1529 = vmatprep.subr.bf16.mxu0 %v1474
  %1530 = vmatpush1.bf16.msra.mxu0 %v1473
  %1531 = vmatprep.subr.bf16.mxu0 %v1478
  %1532 = vmatpush1.bf16.msra.mxu0 %v1477
  %1533 = vmatprep.subr.bf16.mxu0 %v1482
  %1534 = vmatpush1.bf16.msra.mxu0 %v1481
  %1535 = vmatprep.subr.bf16.mxu0 %v1486
  %1536 = vmatpush1.bf16.msra.mxu0 %v1485
  %1537 = vmatprep.subr.bf16.mxu0 0
  %1538 = vmatpush1.bf16.msra.mxu0 0
  %1539 = vmatprep.subr.bf16.mxu0 0
  %1540 = vmatpush1.bf16.msra.mxu0 0
  %1541 = vmatprep.subr.bf16.mxu0 0
  %1542 = vmatpush1.bf16.msra.mxu0 0
  %1543 = vmatprep.subr.bf16.mxu0 0
  %1544 = vmatpush1.bf16.msra.mxu0 0
  %1545 = vmatprep.subr.bf16.mxu0 0
  %1546 = vmatpush1.bf16.msra.mxu0 0
  %1547 = vmatprep.subr.bf16.mxu0 0
  %1548 = vmatpush1.bf16.msra.mxu0 0
  %1549 = vmatprep.subr.bf16.mxu0 0
  %1550 = vmatpush1.bf16.msra.mxu0 0
  %1551 = vmatprep.subr.bf16.mxu0 0
  %1552 = vmatpush1.bf16.msra.mxu0 0
  %1553 = vmatprep.mubr.bf16.mxu0 0
  %1554 = vmatmul.mubr.bf16.gmra.mrb[0].mxu0 %v1328
  %v1555 = vpop.f32.mrb[0].mxu0
  %v1556 = vadd.f32 0.0, %v1555
  %v1557 = vpop.f32.mrb[0].mxu0
  %v1558 = vadd.f32 0.0, %v1557
  %v1559 = vpop.f32.mrb[0].mxu0
  %v1560 = vadd.f32 0.0, %v1559
  %v1561 = vpop.f32.mrb[0].mxu0
  %v1562 = vadd.f32 0.0, %v1561
  %1563 = vdwg.mxu0
  %1564 = vmatprep.subr.bf16.mxu0 %v1460
  %1565 = vmatpush1.bf16.msra.mxu0 %v1459
  %1566 = vmatprep.subr.bf16.mxu0 %v1464
  %1567 = vmatpush1.bf16.msra.mxu0 %v1463
  %1568 = vmatprep.subr.bf16.mxu0 %v1468
  %1569 = vmatpush1.bf16.msra.mxu0 %v1467
  %1570 = vmatprep.subr.bf16.mxu0 %v1472
  %1571 = vmatpush1.bf16.msra.mxu0 %v1471
  %1572 = vmatprep.subr.bf16.mxu0 %v1476
  %1573 = vmatpush1.bf16.msra.mxu0 %v1475
  %1574 = vmatprep.subr.bf16.mxu0 %v1480
  %1575 = vmatpush1.bf16.msra.mxu0 %v1479
  %1576 = vmatprep.subr.bf16.mxu0 %v1484
  %1577 = vmatpush1.bf16.msra.mxu0 %v1483
  %1578 = vmatprep.subr.bf16.mxu0 %v1488
  %1579 = vmatpush1.bf16.msra.mxu0 %v1487
  %1580 = vmatprep.subr.bf16.mxu0 0
  %1581 = vmatpush1.bf16.msra.mxu0 0
  %1582 = vmatprep.subr.bf16.mxu0 0
  %1583 = vmatpush1.bf16.msra.mxu0 0
  %1584 = vmatprep.subr.bf16.mxu0 0
  %1585 = vmatpush1.bf16.msra.mxu0 0
  %1586 = vmatprep.subr.bf16.mxu0 0
  %1587 = vmatpush1.bf16.msra.mxu0 0
  %1588 = vmatprep.subr.bf16.mxu0 0
  %1589 = vmatpush1.bf16.msra.mxu0 0
  %1590 = vmatprep.subr.bf16.mxu0 0
  %1591 = vmatpush1.bf16.msra.mxu0 0
  %1592 = vmatprep.subr.bf16.mxu0 0
  %1593 = vmatpush1.bf16.msra.mxu0 0
  %1594 = vmatprep.subr.bf16.mxu0 0
  %1595 = vmatpush1.bf16.msra.mxu0 0
  %1596 = vmatprep.mubr.bf16.mxu0 0
  %1597 = vmatmul.mubr.bf16.gmra.mrb[0].mxu0 %v1328
  %v1598 = vpop.f32.mrb[0].mxu0
  %v1599 = vadd.f32 0.0, %v1598
  %v1600 = vpop.f32.mrb[0].mxu0
  %v1601 = vadd.f32 0.0, %v1600
  %v1602 = vpop.f32.mrb[0].mxu0
  %v1603 = vadd.f32 0.0, %v1602
  %v1604 = vpop.f32.mrb[0].mxu0
  %v1605 = vadd.f32 0.0, %v1604
  %1606 = vdwg.mxu0
  %v1607 = vadd.f32 %v1320, %v1556
  %v1608 = vadd.f32 %v1321, %v1558
  %v1609 = vadd.f32 %v1322, %v1599
  %v1610 = vadd.f32 %v1323, %v1601
  %v1611 = vadd.f32 %v1324, %v1560
  %v1612 = vadd.f32 %v1325, %v1562
  %v1613 = vadd.f32 %v1326, %v1603
  %v1614 = vadd.f32 %v1327, %v1605
  %v1615 = vxor.u32 %v1607, 2147483648
  %v1616 = vxor.u32 %v1611, 2147483648
  %v1617 = vmul.f32 %v1615, 1.442695
  %v1618 = vpow.pop %v1617
  %v1619 = vmul.f32 %v1616, 1.442695
  %v1620 = vpow.pop %v1619
  %v1621 = vadd.f32 %v1618, 1.0
  %v1622 = vadd.f32 %v1620, 1.0
  %v1623 = vrcp.pop %v1621
  %v1624 = vmul.f32 1.0, %v1623
  %v1625 = vrcp.pop %v1622
  %v1626 = vmul.f32 1.0, %v1625
  %v1627 = vxor.u32 %v1608, 2147483648
  %v1628 = vxor.u32 %v1612, 2147483648
  %v1629 = vmul.f32 %v1627, 1.442695
  %v1630 = vpow.pop %v1629
  %v1631 = vmul.f32 %v1628, 1.442695
  %v1632 = vpow.pop %v1631
  %v1633 = vadd.f32 %v1630, 1.0
  %v1634 = vadd.f32 %v1632, 1.0
  %v1635 = vrcp.pop %v1633
  %v1636 = vmul.f32 1.0, %v1635
  %v1637 = vrcp.pop %v1634
  %v1638 = vmul.f32 1.0, %v1637
  %v1639 = vtanh.pop %v1609
  %v1640 = vtanh.pop %v1613
  %v1641 = vxor.u32 %v1610, 2147483648
  %v1642 = vxor.u32 %v1614, 2147483648
  %v1643 = vmul.f32 %v1641, 1.442695
  %v1644 = vpow.pop %v1643
  %v1645 = vmul.f32 %v1642, 1.442695
  %v1646 = vpow.pop %v1645
  %v1647 = vadd.f32 %v1644, 1.0
  %v1648 = vadd.f32 %v1646, 1.0
  %v1649 = vrcp.pop %v1647
  %v1650 = vmul.f32 1.0, %v1649
  %v1651 = vrcp.pop %v1648
  %v1652 = vmul.f32 1.0, %v1651
  %v1653 = vmul.f32 %v1636, %v1313
  %v1654 = vmul.f32 %v1638, %v1314
  %v1655 = vmul.f32 %v1624, %v1639
  %v1656 = vmul.f32 %v1626, %v1640
  %v1657 = vadd.f32 %v1653, %v1655
  %v1658 = vadd.f32 %v1654, %v1656
  %v1659 = vtanh.pop %v1657
  %v1660 = vtanh.pop %v1658
  %v1661 = vmul.f32 %v1650, %v1659
  %v1662 = vmul.f32 %v1652, %v1660
  %1663 = vst [vmem:[#allocation2] sm:$0xff] %v1661
  %1664 = vst [vmem:[#allocation2 + $0x8] sm:$0xff] %v1662
  %1665 = vst [vmem:[#allocation3] sm:$0xff] %v1657
  %1666 = vst [vmem:[#allocation3 + $0x8] sm:$0xff] %v1658
  %v1667 = vld [vmem:[#allocation2] sm:$0xff]
  %v1668 = vld [vmem:[#allocation2 + $0x8] sm:$0xff]
  %v1669 = vld [vmem:[#allocation3] sm:$0xff]
  %v1670 = vld [vmem:[#allocation3 + $0x8] sm:$0xff]
  %s1671 = scalar_lea.vmem [#allocation4], 96
  %v1672 = vld [vmem:[%s1671] sm:$0xff]
  %v1673 = vld [vmem:[%s1671 + $0x8] sm:$0xff]
  %v1674 = vld [vmem:[%s1671 + $0x10] sm:$0xff]
  %v1675 = vld [vmem:[%s1671 + $0x18] sm:$0xff]
  %v1676 = vunpack.c.l.bf16 %v1672
  %v1677 = vunpack.c.l.bf16 %v1673
  %v1678 = vunpack.c.l.bf16 %v1674
  %v1679 = vunpack.c.l.bf16 %v1675
  %v1680 = vunpack.c.h.bf16 %v1672
  %v1681 = vunpack.c.h.bf16 %v1673
  %v1682 = vunpack.c.h.bf16 %v1674
  %v1683 = vunpack.c.h.bf16 %v1675
  %v1684 = vpack.c.bf16 %v1668, %v1667
  %v1685 = vld [vmem:[%s2] sm:$0xff]
  %v1686 = vld [vmem:[%s2 + $0x8] sm:$0xff]
  %v1687 = vld [vmem:[%s2 + $0x10] sm:$0xff]
  %v1688 = vld [vmem:[%s2 + $0x18] sm:$0xff]
  %v1689 = vld [vmem:[%s2 + $0x20] sm:$0xff]
  %v1690 = vld [vmem:[%s2 + $0x28] sm:$0xff]
  %v1691 = vld [vmem:[%s2 + $0x30] sm:$0xff]
  %v1692 = vld [vmem:[%s2 + $0x38] sm:$0xff]
  %v1693 = vld [vmem:[%s2 + $0x40] sm:$0xff]
  %v1694 = vld [vmem:[%s2 + $0x48] sm:$0xff]
  %v1695 = vld [vmem:[%s2 + $0x50] sm:$0xff]
  %v1696 = vld [vmem:[%s2 + $0x58] sm:$0xff]
  %v1697 = vld [vmem:[%s2 + $0x60] sm:$0xff]
  %v1698 = vld [vmem:[%s2 + $0x68] sm:$0xff]
  %v1699 = vld [vmem:[%s2 + $0x70] sm:$0xff]
  %v1700 = vld [vmem:[%s2 + $0x78] sm:$0xff]
  %v1701 = vld [vmem:[%s2 + $0x80] sm:$0xff]
  %v1702 = vld [vmem:[%s2 + $0x88] sm:$0xff]
  %v1703 = vld [vmem:[%s2 + $0x90] sm:$0xff]
  %v1704 = vld [vmem:[%s2 + $0x98] sm:$0xff]
  %v1705 = vld [vmem:[%s2 + $0xa0] sm:$0xff]
  %v1706 = vld [vmem:[%s2 + $0xa8] sm:$0xff]
  %v1707 = vld [vmem:[%s2 + $0xb0] sm:$0xff]
  %v1708 = vld [vmem:[%s2 + $0xb8] sm:$0xff]
  %v1709 = vld [vmem:[%s2 + $0xc0] sm:$0xff]
  %v1710 = vld [vmem:[%s2 + $0xc8] sm:$0xff]
  %v1711 = vld [vmem:[%s2 + $0xd0] sm:$0xff]
  %v1712 = vld [vmem:[%s2 + $0xd8] sm:$0xff]
  %v1713 = vld [vmem:[%s2 + $0xe0] sm:$0xff]
  %v1714 = vld [vmem:[%s2 + $0xe8] sm:$0xff]
  %v1715 = vld [vmem:[%s2 + $0xf0] sm:$0xff]
  %v1716 = vld [vmem:[%s2 + $0xf8] sm:$0xff]
  %v1749 = vunpack.c.l.b16 %v1685
  %v1750 = vunpack.c.h.b16 %v1685
  %v1751 = vunpack.c.l.b16 %v1686
  %v1752 = vunpack.c.h.b16 %v1686
  %v1753 = vunpack.c.l.b16 %v1687
  %v1754 = vunpack.c.h.b16 %v1687
  %v1755 = vunpack.c.l.b16 %v1688
  %v1756 = vunpack.c.h.b16 %v1688
  %v1757 = vunpack.c.l.b16 %v1689
  %v1758 = vunpack.c.h.b16 %v1689
  %v1759 = vunpack.c.l.b16 %v1690
  %v1760 = vunpack.c.h.b16 %v1690
  %v1761 = vunpack.c.l.b16 %v1691
  %v1762 = vunpack.c.h.b16 %v1691
  %v1763 = vunpack.c.l.b16 %v1692
  %v1764 = vunpack.c.h.b16 %v1692
  %v1765 = vunpack.c.l.b16 %v1693
  %v1766 = vunpack.c.h.b16 %v1693
  %v1767 = vunpack.c.l.b16 %v1694
  %v1768 = vunpack.c.h.b16 %v1694
  %v1769 = vunpack.c.l.b16 %v1695
  %v1770 = vunpack.c.h.b16 %v1695
  %v1771 = vunpack.c.l.b16 %v1696
  %v1772 = vunpack.c.h.b16 %v1696
  %v1773 = vunpack.c.l.b16 %v1697
  %v1774 = vunpack.c.h.b16 %v1697
  %v1775 = vunpack.c.l.b16 %v1698
  %v1776 = vunpack.c.h.b16 %v1698
  %v1777 = vunpack.c.l.b16 %v1699
  %v1778 = vunpack.c.h.b16 %v1699
  %v1779 = vunpack.c.l.b16 %v1700
  %v1780 = vunpack.c.h.b16 %v1700
  %v1781 = vunpack.c.l.b16 %v1701
  %v1782 = vunpack.c.h.b16 %v1701
  %v1783 = vunpack.c.l.b16 %v1702
  %v1784 = vunpack.c.h.b16 %v1702
  %v1785 = vunpack.c.l.b16 %v1703
  %v1786 = vunpack.c.h.b16 %v1703
  %v1787 = vunpack.c.l.b16 %v1704
  %v1788 = vunpack.c.h.b16 %v1704
  %v1789 = vunpack.c.l.b16 %v1705
  %v1790 = vunpack.c.h.b16 %v1705
  %v1791 = vunpack.c.l.b16 %v1706
  %v1792 = vunpack.c.h.b16 %v1706
  %v1793 = vunpack.c.l.b16 %v1707
  %v1794 = vunpack.c.h.b16 %v1707
  %v1795 = vunpack.c.l.b16 %v1708
  %v1796 = vunpack.c.h.b16 %v1708
  %v1797 = vunpack.c.l.b16 %v1709
  %v1798 = vunpack.c.h.b16 %v1709
  %v1799 = vunpack.c.l.b16 %v1710
  %v1800 = vunpack.c.h.b16 %v1710
  %v1801 = vunpack.c.l.b16 %v1711
  %v1802 = vunpack.c.h.b16 %v1711
  %v1803 = vunpack.c.l.b16 %v1712
  %v1804 = vunpack.c.h.b16 %v1712
  %v1805 = vunpack.c.l.b16 %v1713
  %v1806 = vunpack.c.h.b16 %v1713
  %v1807 = vunpack.c.l.b16 %v1714
  %v1808 = vunpack.c.h.b16 %v1714
  %v1809 = vunpack.c.l.b16 %v1715
  %v1810 = vunpack.c.h.b16 %v1715
  %v1811 = vunpack.c.l.b16 %v1716
  %v1812 = vunpack.c.h.b16 %v1716
  %v1813 = vpack.c.b16 %v1753, %v1749
  %v1814 = vpack.c.b16 %v1754, %v1750
  %v1815 = vpack.c.b16 %v1755, %v1751
  %v1816 = vpack.c.b16 %v1756, %v1752
  %v1817 = vpack.c.b16 %v1761, %v1757
  %v1818 = vpack.c.b16 %v1762, %v1758
  %v1819 = vpack.c.b16 %v1763, %v1759
  %v1820 = vpack.c.b16 %v1764, %v1760
  %v1821 = vpack.c.b16 %v1769, %v1765
  %v1822 = vpack.c.b16 %v1770, %v1766
  %v1823 = vpack.c.b16 %v1771, %v1767
  %v1824 = vpack.c.b16 %v1772, %v1768
  %v1825 = vpack.c.b16 %v1777, %v1773
  %v1826 = vpack.c.b16 %v1778, %v1774
  %v1827 = vpack.c.b16 %v1779, %v1775
  %v1828 = vpack.c.b16 %v1780, %v1776
  %v1829 = vpack.c.b16 %v1785, %v1781
  %v1830 = vpack.c.b16 %v1786, %v1782
  %v1831 = vpack.c.b16 %v1787, %v1783
  %v1832 = vpack.c.b16 %v1788, %v1784
  %v1833 = vpack.c.b16 %v1793, %v1789
  %v1834 = vpack.c.b16 %v1794, %v1790
  %v1835 = vpack.c.b16 %v1795, %v1791
  %v1836 = vpack.c.b16 %v1796, %v1792
  %v1837 = vpack.c.b16 %v1801, %v1797
  %v1838 = vpack.c.b16 %v1802, %v1798
  %v1839 = vpack.c.b16 %v1803, %v1799
  %v1840 = vpack.c.b16 %v1804, %v1800
  %v1841 = vpack.c.b16 %v1809, %v1805
  %v1842 = vpack.c.b16 %v1810, %v1806
  %v1843 = vpack.c.b16 %v1811, %v1807
  %v1844 = vpack.c.b16 %v1812, %v1808
  %1877 = vmatprep.subr.bf16.mxu0 %v1814
  %1878 = vmatpush1.bf16.msra.mxu0 %v1813
  %1879 = vmatprep.subr.bf16.mxu0 %v1818
  %1880 = vmatpush1.bf16.msra.mxu0 %v1817
  %1881 = vmatprep.subr.bf16.mxu0 %v1822
  %1882 = vmatpush1.bf16.msra.mxu0 %v1821
  %1883 = vmatprep.subr.bf16.mxu0 %v1826
  %1884 = vmatpush1.bf16.msra.mxu0 %v1825
  %1885 = vmatprep.subr.bf16.mxu0 %v1830
  %1886 = vmatpush1.bf16.msra.mxu0 %v1829
  %1887 = vmatprep.subr.bf16.mxu0 %v1834
  %1888 = vmatpush1.bf16.msra.mxu0 %v1833
  %1889 = vmatprep.subr.bf16.mxu0 %v1838
  %1890 = vmatpush1.bf16.msra.mxu0 %v1837
  %1891 = vmatprep.subr.bf16.mxu0 %v1842
  %1892 = vmatpush1.bf16.msra.mxu0 %v1841
  %1893 = vmatprep.subr.bf16.mxu0 0
  %1894 = vmatpush1.bf16.msra.mxu0 0
  %1895 = vmatprep.subr.bf16.mxu0 0
  %1896 = vmatpush1.bf16.msra.mxu0 0
  %1897 = vmatprep.subr.bf16.mxu0 0
  %1898 = vmatpush1.bf16.msra.mxu0 0
  %1899 = vmatprep.subr.bf16.mxu0 0
  %1900 = vmatpush1.bf16.msra.mxu0 0
  %1901 = vmatprep.subr.bf16.mxu0 0
  %1902 = vmatpush1.bf16.msra.mxu0 0
  %1903 = vmatprep.subr.bf16.mxu0 0
  %1904 = vmatpush1.bf16.msra.mxu0 0
  %1905 = vmatprep.subr.bf16.mxu0 0
  %1906 = vmatpush1.bf16.msra.mxu0 0
  %1907 = vmatprep.subr.bf16.mxu0 0
  %1908 = vmatpush1.bf16.msra.mxu0 0
  %1909 = vmatprep.mubr.bf16.mxu0 0
  %1910 = vmatmul.mubr.bf16.gmra.mrb[0].mxu0 %v1684
  %v1911 = vpop.f32.mrb[0].mxu0
  %v1912 = vadd.f32 0.0, %v1911
  %v1913 = vpop.f32.mrb[0].mxu0
  %v1914 = vadd.f32 0.0, %v1913
  %v1915 = vpop.f32.mrb[0].mxu0
  %v1916 = vadd.f32 0.0, %v1915
  %v1917 = vpop.f32.mrb[0].mxu0
  %v1918 = vadd.f32 0.0, %v1917
  %1919 = vdwg.mxu0
  %1920 = vmatprep.subr.bf16.mxu0 %v1816
  %1921 = vmatpush1.bf16.msra.mxu0 %v1815
  %1922 = vmatprep.subr.bf16.mxu0 %v1820
  %1923 = vmatpush1.bf16.msra.mxu0 %v1819
  %1924 = vmatprep.subr.bf16.mxu0 %v1824
  %1925 = vmatpush1.bf16.msra.mxu0 %v1823
  %1926 = vmatprep.subr.bf16.mxu0 %v1828
  %1927 = vmatpush1.bf16.msra.mxu0 %v1827
  %1928 = vmatprep.subr.bf16.mxu0 %v1832
  %1929 = vmatpush1.bf16.msra.mxu0 %v1831
  %1930 = vmatprep.subr.bf16.mxu0 %v1836
  %1931 = vmatpush1.bf16.msra.mxu0 %v1835
  %1932 = vmatprep.subr.bf16.mxu0 %v1840
  %1933 = vmatpush1.bf16.msra.mxu0 %v1839
  %1934 = vmatprep.subr.bf16.mxu0 %v1844
  %1935 = vmatpush1.bf16.msra.mxu0 %v1843
  %1936 = vmatprep.subr.bf16.mxu0 0
  %1937 = vmatpush1.bf16.msra.mxu0 0
  %1938 = vmatprep.subr.bf16.mxu0 0
  %1939 = vmatpush1.bf16.msra.mxu0 0
  %1940 = vmatprep.subr.bf16.mxu0 0
  %1941 = vmatpush1.bf16.msra.mxu0 0
  %1942 = vmatprep.subr.bf16.mxu0 0
  %1943 = vmatpush1.bf16.msra.mxu0 0
  %1944 = vmatprep.subr.bf16.mxu0 0
  %1945 = vmatpush1.bf16.msra.mxu0 0
  %1946 = vmatprep.subr.bf16.mxu0 0
  %1947 = vmatpush1.bf16.msra.mxu0 0
  %1948 = vmatprep.subr.bf16.mxu0 0
  %1949 = vmatpush1.bf16.msra.mxu0 0
  %1950 = vmatprep.subr.bf16.mxu0 0
  %1951 = vmatpush1.bf16.msra.mxu0 0
  %1952 = vmatprep.mubr.bf16.mxu0 0
  %1953 = vmatmul.mubr.bf16.gmra.mrb[0].mxu0 %v1684
  %v1954 = vpop.f32.mrb[0].mxu0
  %v1955 = vadd.f32 0.0, %v1954
  %v1956 = vpop.f32.mrb[0].mxu0
  %v1957 = vadd.f32 0.0, %v1956
  %v1958 = vpop.f32.mrb[0].mxu0
  %v1959 = vadd.f32 0.0, %v1958
  %v1960 = vpop.f32.mrb[0].mxu0
  %v1961 = vadd.f32 0.0, %v1960
  %1962 = vdwg.mxu0
  %v1963 = vadd.f32 %v1676, %v1912
  %v1964 = vadd.f32 %v1677, %v1914
  %v1965 = vadd.f32 %v1678, %v1955
  %v1966 = vadd.f32 %v1679, %v1957
  %v1967 = vadd.f32 %v1680, %v1916
  %v1968 = vadd.f32 %v1681, %v1918
  %v1969 = vadd.f32 %v1682, %v1959
  %v1970 = vadd.f32 %v1683, %v1961
  %v1971 = vxor.u32 %v1963, 2147483648
  %v1972 = vxor.u32 %v1967, 2147483648
  %v1973 = vmul.f32 %v1971, 1.442695
  %v1974 = vpow.pop %v1973
  %v1975 = vmul.f32 %v1972, 1.442695
  %v1976 = vpow.pop %v1975
  %v1977 = vadd.f32 %v1974, 1.0
  %v1978 = vadd.f32 %v1976, 1.0
  %v1979 = vrcp.pop %v1977
  %v1980 = vmul.f32 1.0, %v1979
  %v1981 = vrcp.pop %v1978
  %v1982 = vmul.f32 1.0, %v1981
  %v1983 = vxor.u32 %v1964, 2147483648
  %v1984 = vxor.u32 %v1968, 2147483648
  %v1985 = vmul.f32 %v1983, 1.442695
  %v1986 = vpow.pop %v1985
  %v1987 = vmul.f32 %v1984, 1.442695
  %v1988 = vpow.pop %v1987
  %v1989 = vadd.f32 %v1986, 1.0
  %v1990 = vadd.f32 %v1988, 1.0
  %v1991 = vrcp.pop %v1989
  %v1992 = vmul.f32 1.0, %v1991
  %v1993 = vrcp.pop %v1990
  %v1994 = vmul.f32 1.0, %v1993
  %v1995 = vtanh.pop %v1965
  %v1996 = vtanh.pop %v1969
  %v1997 = vxor.u32 %v1966, 2147483648
  %v1998 = vxor.u32 %v1970, 2147483648
  %v1999 = vmul.f32 %v1997, 1.442695
  %v2000 = vpow.pop %v1999
  %v2001 = vmul.f32 %v1998, 1.442695
  %v2002 = vpow.pop %v2001
  %v2003 = vadd.f32 %v2000, 1.0
  %v2004 = vadd.f32 %v2002, 1.0
  %v2005 = vrcp.pop %v2003
  %v2006 = vmul.f32 1.0, %v2005
  %v2007 = vrcp.pop %v2004
  %v2008 = vmul.f32 1.0, %v2007
  %v2009 = vmul.f32 %v1992, %v1669
  %v2010 = vmul.f32 %v1994, %v1670
  %v2011 = vmul.f32 %v1980, %v1995
  %v2012 = vmul.f32 %v1982, %v1996
  %v2013 = vadd.f32 %v2009, %v2011
  %v2014 = vadd.f32 %v2010, %v2012
  %v2015 = vtanh.pop %v2013
  %v2016 = vtanh.pop %v2014
  %v2017 = vmul.f32 %v2006, %v2015
  %v2018 = vmul.f32 %v2008, %v2016
  %2019 = vst [vmem:[#allocation2] sm:$0xff] %v2017
  %2020 = vst [vmem:[#allocation2 + $0x8] sm:$0xff] %v2018
  %2021 = vst [vmem:[#allocation3] sm:$0xff] %v2013
  %2022 = vst [vmem:[#allocation3 + $0x8] sm:$0xff] %v2014
  %v2023 = vld [vmem:[#allocation2] sm:$0xff]
  %v2024 = vld [vmem:[#allocation2 + $0x8] sm:$0xff]
  %v2025 = vld [vmem:[#allocation3] sm:$0xff]
  %v2026 = vld [vmem:[#allocation3 + $0x8] sm:$0xff]
  %s2027 = scalar_lea.vmem [#allocation4], 128
  %v2028 = vld [vmem:[%s2027] sm:$0xff]
  %v2029 = vld [vmem:[%s2027 + $0x8] sm:$0xff]
  %v2030 = vld [vmem:[%s2027 + $0x10] sm:$0xff]
  %v2031 = vld [vmem:[%s2027 + $0x18] sm:$0xff]
  %v2032 = vunpack.c.l.bf16 %v2028
  %v2033 = vunpack.c.l.bf16 %v2029
  %v2034 = vunpack.c.l.bf16 %v2030
  %v2035 = vunpack.c.l.bf16 %v2031
  %v2036 = vunpack.c.h.bf16 %v2028
  %v2037 = vunpack.c.h.bf16 %v2029
  %v2038 = vunpack.c.h.bf16 %v2030
  %v2039 = vunpack.c.h.bf16 %v2031
  %v2040 = vpack.c.bf16 %v2024, %v2023
  %v2041 = vld [vmem:[%s2] sm:$0xff]
  %v2042 = vld [vmem:[%s2 + $0x8] sm:$0xff]
  %v2043 = vld [vmem:[%s2 + $0x10] sm:$0xff]
  %v2044 = vld [vmem:[%s2 + $0x18] sm:$0xff]
  %v2045 = vld [vmem:[%s2 + $0x20] sm:$0xff]
  %v2046 = vld [vmem:[%s2 + $0x28] sm:$0xff]
  %v2047 = vld [vmem:[%s2 + $0x30] sm:$0xff]
  %v2048 = vld [vmem:[%s2 + $0x38] sm:$0xff]
  %v2049 = vld [vmem:[%s2 + $0x40] sm:$0xff]
  %v2050 = vld [vmem:[%s2 + $0x48] sm:$0xff]
  %v2051 = vld [vmem:[%s2 + $0x50] sm:$0xff]
  %v2052 = vld [vmem:[%s2 + $0x58] sm:$0xff]
  %v2053 = vld [vmem:[%s2 + $0x60] sm:$0xff]
  %v2054 = vld [vmem:[%s2 + $0x68] sm:$0xff]
  %v2055 = vld [vmem:[%s2 + $0x70] sm:$0xff]
  %v2056 = vld [vmem:[%s2 + $0x78] sm:$0xff]
  %v2057 = vld [vmem:[%s2 + $0x80] sm:$0xff]
  %v2058 = vld [vmem:[%s2 + $0x88] sm:$0xff]
  %v2059 = vld [vmem:[%s2 + $0x90] sm:$0xff]
  %v2060 = vld [vmem:[%s2 + $0x98] sm:$0xff]
  %v2061 = vld [vmem:[%s2 + $0xa0] sm:$0xff]
  %v2062 = vld [vmem:[%s2 + $0xa8] sm:$0xff]
  %v2063 = vld [vmem:[%s2 + $0xb0] sm:$0xff]
  %v2064 = vld [vmem:[%s2 + $0xb8] sm:$0xff]
  %v2065 = vld [vmem:[%s2 + $0xc0] sm:$0xff]
  %v2066 = vld [vmem:[%s2 + $0xc8] sm:$0xff]
  %v2067 = vld [vmem:[%s2 + $0xd0] sm:$0xff]
  %v2068 = vld [vmem:[%s2 + $0xd8] sm:$0xff]
  %v2069 = vld [vmem:[%s2 + $0xe0] sm:$0xff]
  %v2070 = vld [vmem:[%s2 + $0xe8] sm:$0xff]
  %v2071 = vld [vmem:[%s2 + $0xf0] sm:$0xff]
  %v2072 = vld [vmem:[%s2 + $0xf8] sm:$0xff]
  %v2105 = vunpack.c.l.b16 %v2041
  %v2106 = vunpack.c.h.b16 %v2041
  %v2107 = vunpack.c.l.b16 %v2042
  %v2108 = vunpack.c.h.b16 %v2042
  %v2109 = vunpack.c.l.b16 %v2043
  %v2110 = vunpack.c.h.b16 %v2043
  %v2111 = vunpack.c.l.b16 %v2044
  %v2112 = vunpack.c.h.b16 %v2044
  %v2113 = vunpack.c.l.b16 %v2045
  %v2114 = vunpack.c.h.b16 %v2045
  %v2115 = vunpack.c.l.b16 %v2046
  %v2116 = vunpack.c.h.b16 %v2046
  %v2117 = vunpack.c.l.b16 %v2047
  %v2118 = vunpack.c.h.b16 %v2047
  %v2119 = vunpack.c.l.b16 %v2048
  %v2120 = vunpack.c.h.b16 %v2048
  %v2121 = vunpack.c.l.b16 %v2049
  %v2122 = vunpack.c.h.b16 %v2049
  %v2123 = vunpack.c.l.b16 %v2050
  %v2124 = vunpack.c.h.b16 %v2050
  %v2125 = vunpack.c.l.b16 %v2051
  %v2126 = vunpack.c.h.b16 %v2051
  %v2127 = vunpack.c.l.b16 %v2052
  %v2128 = vunpack.c.h.b16 %v2052
  %v2129 = vunpack.c.l.b16 %v2053
  %v2130 = vunpack.c.h.b16 %v2053
  %v2131 = vunpack.c.l.b16 %v2054
  %v2132 = vunpack.c.h.b16 %v2054
  %v2133 = vunpack.c.l.b16 %v2055
  %v2134 = vunpack.c.h.b16 %v2055
  %v2135 = vunpack.c.l.b16 %v2056
  %v2136 = vunpack.c.h.b16 %v2056
  %v2137 = vunpack.c.l.b16 %v2057
  %v2138 = vunpack.c.h.b16 %v2057
  %v2139 = vunpack.c.l.b16 %v2058
  %v2140 = vunpack.c.h.b16 %v2058
  %v2141 = vunpack.c.l.b16 %v2059
  %v2142 = vunpack.c.h.b16 %v2059
  %v2143 = vunpack.c.l.b16 %v2060
  %v2144 = vunpack.c.h.b16 %v2060
  %v2145 = vunpack.c.l.b16 %v2061
  %v2146 = vunpack.c.h.b16 %v2061
  %v2147 = vunpack.c.l.b16 %v2062
  %v2148 = vunpack.c.h.b16 %v2062
  %v2149 = vunpack.c.l.b16 %v2063
  %v2150 = vunpack.c.h.b16 %v2063
  %v2151 = vunpack.c.l.b16 %v2064
  %v2152 = vunpack.c.h.b16 %v2064
  %v2153 = vunpack.c.l.b16 %v2065
  %v2154 = vunpack.c.h.b16 %v2065
  %v2155 = vunpack.c.l.b16 %v2066
  %v2156 = vunpack.c.h.b16 %v2066
  %v2157 = vunpack.c.l.b16 %v2067
  %v2158 = vunpack.c.h.b16 %v2067
  %v2159 = vunpack.c.l.b16 %v2068
  %v2160 = vunpack.c.h.b16 %v2068
  %v2161 = vunpack.c.l.b16 %v2069
  %v2162 = vunpack.c.h.b16 %v2069
  %v2163 = vunpack.c.l.b16 %v2070
  %v2164 = vunpack.c.h.b16 %v2070
  %v2165 = vunpack.c.l.b16 %v2071
  %v2166 = vunpack.c.h.b16 %v2071
  %v2167 = vunpack.c.l.b16 %v2072
  %v2168 = vunpack.c.h.b16 %v2072
  %v2169 = vpack.c.b16 %v2109, %v2105
  %v2170 = vpack.c.b16 %v2110, %v2106
  %v2171 = vpack.c.b16 %v2111, %v2107
  %v2172 = vpack.c.b16 %v2112, %v2108
  %v2173 = vpack.c.b16 %v2117, %v2113
  %v2174 = vpack.c.b16 %v2118, %v2114
  %v2175 = vpack.c.b16 %v2119, %v2115
  %v2176 = vpack.c.b16 %v2120, %v2116
  %v2177 = vpack.c.b16 %v2125, %v2121
  %v2178 = vpack.c.b16 %v2126, %v2122
  %v2179 = vpack.c.b16 %v2127, %v2123
  %v2180 = vpack.c.b16 %v2128, %v2124
  %v2181 = vpack.c.b16 %v2133, %v2129
  %v2182 = vpack.c.b16 %v2134, %v2130
  %v2183 = vpack.c.b16 %v2135, %v2131
  %v2184 = vpack.c.b16 %v2136, %v2132
  %v2185 = vpack.c.b16 %v2141, %v2137
  %v2186 = vpack.c.b16 %v2142, %v2138
  %v2187 = vpack.c.b16 %v2143, %v2139
  %v2188 = vpack.c.b16 %v2144, %v2140
  %v2189 = vpack.c.b16 %v2149, %v2145
  %v2190 = vpack.c.b16 %v2150, %v2146
  %v2191 = vpack.c.b16 %v2151, %v2147
  %v2192 = vpack.c.b16 %v2152, %v2148
  %v2193 = vpack.c.b16 %v2157, %v2153
  %v2194 = vpack.c.b16 %v2158, %v2154
  %v2195 = vpack.c.b16 %v2159, %v2155
  %v2196 = vpack.c.b16 %v2160, %v2156
  %v2197 = vpack.c.b16 %v2165, %v2161
  %v2198 = vpack.c.b16 %v2166, %v2162
  %v2199 = vpack.c.b16 %v2167, %v2163
  %v2200 = vpack.c.b16 %v2168, %v2164
  %2233 = vmatprep.subr.bf16.mxu0 %v2170
  %2234 = vmatpush1.bf16.msra.mxu0 %v2169
  %2235 = vmatprep.subr.bf16.mxu0 %v2174
  %2236 = vmatpush1.bf16.msra.mxu0 %v2173
  %2237 = vmatprep.subr.bf16.mxu0 %v2178
  %2238 = vmatpush1.bf16.msra.mxu0 %v2177
  %2239 = vmatprep.subr.bf16.mxu0 %v2182
  %2240 = vmatpush1.bf16.msra.mxu0 %v2181
  %2241 = vmatprep.subr.bf16.mxu0 %v2186
  %2242 = vmatpush1.bf16.msra.mxu0 %v2185
  %2243 = vmatprep.subr.bf16.mxu0 %v2190
  %2244 = vmatpush1.bf16.msra.mxu0 %v2189
  %2245 = vmatprep.subr.bf16.mxu0 %v2194
  %2246 = vmatpush1.bf16.msra.mxu0 %v2193
  %2247 = vmatprep.subr.bf16.mxu0 %v2198
  %2248 = vmatpush1.bf16.msra.mxu0 %v2197
  %2249 = vmatprep.subr.bf16.mxu0 0
  %2250 = vmatpush1.bf16.msra.mxu0 0
  %2251 = vmatprep.subr.bf16.mxu0 0
  %2252 = vmatpush1.bf16.msra.mxu0 0
  %2253 = vmatprep.subr.bf16.mxu0 0
  %2254 = vmatpush1.bf16.msra.mxu0 0
  %2255 = vmatprep.subr.bf16.mxu0 0
  %2256 = vmatpush1.bf16.msra.mxu0 0
  %2257 = vmatprep.subr.bf16.mxu0 0
  %2258 = vmatpush1.bf16.msra.mxu0 0
  %2259 = vmatprep.subr.bf16.mxu0 0
  %2260 = vmatpush1.bf16.msra.mxu0 0
  %2261 = vmatprep.subr.bf16.mxu0 0
  %2262 = vmatpush1.bf16.msra.mxu0 0
  %2263 = vmatprep.subr.bf16.mxu0 0
  %2264 = vmatpush1.bf16.msra.mxu0 0
  %2265 = vmatprep.mubr.bf16.mxu0 0
  %2266 = vmatmul.mubr.bf16.gmra.mrb[0].mxu0 %v2040
  %v2267 = vpop.f32.mrb[0].mxu0
  %v2268 = vadd.f32 0.0, %v2267
  %v2269 = vpop.f32.mrb[0].mxu0
  %v2270 = vadd.f32 0.0, %v2269
  %v2271 = vpop.f32.mrb[0].mxu0
  %v2272 = vadd.f32 0.0, %v2271
  %v2273 = vpop.f32.mrb[0].mxu0
  %v2274 = vadd.f32 0.0, %v2273
  %2275 = vdwg.mxu0
  %2276 = vmatprep.subr.bf16.mxu0 %v2172
  %2277 = vmatpush1.bf16.msra.mxu0 %v2171
  %2278 = vmatprep.subr.bf16.mxu0 %v2176
  %2279 = vmatpush1.bf16.msra.mxu0 %v2175
  %2280 = vmatprep.subr.bf16.mxu0 %v2180
  %2281 = vmatpush1.bf16.msra.mxu0 %v2179
  %2282 = vmatprep.subr.bf16.mxu0 %v2184
  %2283 = vmatpush1.bf16.msra.mxu0 %v2183
  %2284 = vmatprep.subr.bf16.mxu0 %v2188
  %2285 = vmatpush1.bf16.msra.mxu0 %v2187
  %2286 = vmatprep.subr.bf16.mxu0 %v2192
  %2287 = vmatpush1.bf16.msra.mxu0 %v2191
  %2288 = vmatprep.subr.bf16.mxu0 %v2196
  %2289 = vmatpush1.bf16.msra.mxu0 %v2195
  %2290 = vmatprep.subr.bf16.mxu0 %v2200
  %2291 = vmatpush1.bf16.msra.mxu0 %v2199
  %2292 = vmatprep.subr.bf16.mxu0 0
  %2293 = vmatpush1.bf16.msra.mxu0 0
  %2294 = vmatprep.subr.bf16.mxu0 0
  %2295 = vmatpush1.bf16.msra.mxu0 0
  %2296 = vmatprep.subr.bf16.mxu0 0
  %2297 = vmatpush1.bf16.msra.mxu0 0
  %2298 = vmatprep.subr.bf16.mxu0 0
  %2299 = vmatpush1.bf16.msra.mxu0 0
  %2300 = vmatprep.subr.bf16.mxu0 0
  %2301 = vmatpush1.bf16.msra.mxu0 0
  %2302 = vmatprep.subr.bf16.mxu0 0
  %2303 = vmatpush1.bf16.msra.mxu0 0
  %2304 = vmatprep.subr.bf16.mxu0 0
  %2305 = vmatpush1.bf16.msra.mxu0 0
  %2306 = vmatprep.subr.bf16.mxu0 0
  %2307 = vmatpush1.bf16.msra.mxu0 0
  %2308 = vmatprep.mubr.bf16.mxu0 0
  %2309 = vmatmul.mubr.bf16.gmra.mrb[0].mxu0 %v2040
  %v2310 = vpop.f32.mrb[0].mxu0
  %v2311 = vadd.f32 0.0, %v2310
  %v2312 = vpop.f32.mrb[0].mxu0
  %v2313 = vadd.f32 0.0, %v2312
  %v2314 = vpop.f32.mrb[0].mxu0
  %v2315 = vadd.f32 0.0, %v2314
  %v2316 = vpop.f32.mrb[0].mxu0
  %v2317 = vadd.f32 0.0, %v2316
  %2318 = vdwg.mxu0
  %v2319 = vadd.f32 %v2032, %v2268
  %v2320 = vadd.f32 %v2033, %v2270
  %v2321 = vadd.f32 %v2034, %v2311
  %v2322 = vadd.f32 %v2035, %v2313
  %v2323 = vadd.f32 %v2036, %v2272
  %v2324 = vadd.f32 %v2037, %v2274
  %v2325 = vadd.f32 %v2038, %v2315
  %v2326 = vadd.f32 %v2039, %v2317
  %v2327 = vxor.u32 %v2319, 2147483648
  %v2328 = vxor.u32 %v2323, 2147483648
  %v2329 = vmul.f32 %v2327, 1.442695
  %v2330 = vpow.pop %v2329
  %v2331 = vmul.f32 %v2328, 1.442695
  %v2332 = vpow.pop %v2331
  %v2333 = vadd.f32 %v2330, 1.0
  %v2334 = vadd.f32 %v2332, 1.0
  %v2335 = vrcp.pop %v2333
  %v2336 = vmul.f32 1.0, %v2335
  %v2337 = vrcp.pop %v2334
  %v2338 = vmul.f32 1.0, %v2337
  %v2339 = vxor.u32 %v2320, 2147483648
  %v2340 = vxor.u32 %v2324, 2147483648
  %v2341 = vmul.f32 %v2339, 1.442695
  %v2342 = vpow.pop %v2341
  %v2343 = vmul.f32 %v2340, 1.442695
  %v2344 = vpow.pop %v2343
  %v2345 = vadd.f32 %v2342, 1.0
  %v2346 = vadd.f32 %v2344, 1.0
  %v2347 = vrcp.pop %v2345
  %v2348 = vmul.f32 1.0, %v2347
  %v2349 = vrcp.pop %v2346
  %v2350 = vmul.f32 1.0, %v2349
  %v2351 = vtanh.pop %v2321
  %v2352 = vtanh.pop %v2325
  %v2353 = vxor.u32 %v2322, 2147483648
  %v2354 = vxor.u32 %v2326, 2147483648
  %v2355 = vmul.f32 %v2353, 1.442695
  %v2356 = vpow.pop %v2355
  %v2357 = vmul.f32 %v2354, 1.442695
  %v2358 = vpow.pop %v2357
  %v2359 = vadd.f32 %v2356, 1.0
  %v2360 = vadd.f32 %v2358, 1.0
  %v2361 = vrcp.pop %v2359
  %v2362 = vmul.f32 1.0, %v2361
  %v2363 = vrcp.pop %v2360
  %v2364 = vmul.f32 1.0, %v2363
  %v2365 = vmul.f32 %v2348, %v2025
  %v2366 = vmul.f32 %v2350, %v2026
  %v2367 = vmul.f32 %v2336, %v2351
  %v2368 = vmul.f32 %v2338, %v2352
  %v2369 = vadd.f32 %v2365, %v2367
  %v2370 = vadd.f32 %v2366, %v2368
  %v2371 = vtanh.pop %v2369
  %v2372 = vtanh.pop %v2370
  %v2373 = vmul.f32 %v2362, %v2371
  %v2374 = vmul.f32 %v2364, %v2372
  %2375 = vst [vmem:[#allocation2] sm:$0xff] %v2373
  %2376 = vst [vmem:[#allocation2 + $0x8] sm:$0xff] %v2374
  %2377 = vst [vmem:[#allocation3] sm:$0xff] %v2369
  %2378 = vst [vmem:[#allocation3 + $0x8] sm:$0xff] %v2370
  %v2379 = vld [vmem:[#allocation2] sm:$0xff]
  %v2380 = vld [vmem:[#allocation2 + $0x8] sm:$0xff]
  %v2381 = vld [vmem:[#allocation3] sm:$0xff]
  %v2382 = vld [vmem:[#allocation3 + $0x8] sm:$0xff]
  %s2383 = scalar_lea.vmem [#allocation4], 160
  %v2384 = vld [vmem:[%s2383] sm:$0xff]
  %v2385 = vld [vmem:[%s2383 + $0x8] sm:$0xff]
  %v2386 = vld [vmem:[%s2383 + $0x10] sm:$0xff]
  %v2387 = vld [vmem:[%s2383 + $0x18] sm:$0xff]
  %v2388 = vunpack.c.l.bf16 %v2384
  %v2389 = vunpack.c.l.bf16 %v2385
  %v2390 = vunpack.c.l.bf16 %v2386
  %v2391 = vunpack.c.l.bf16 %v2387
  %v2392 = vunpack.c.h.bf16 %v2384
  %v2393 = vunpack.c.h.bf16 %v2385
  %v2394 = vunpack.c.h.bf16 %v2386
  %v2395 = vunpack.c.h.bf16 %v2387
  %v2396 = vpack.c.bf16 %v2380, %v2379
  %v2397 = vld [vmem:[%s2] sm:$0xff]
  %v2398 = vld [vmem:[%s2 + $0x8] sm:$0xff]
  %v2399 = vld [vmem:[%s2 + $0x10] sm:$0xff]
  %v2400 = vld [vmem:[%s2 + $0x18] sm:$0xff]
  %v2401 = vld [vmem:[%s2 + $0x20] sm:$0xff]
  %v2402 = vld [vmem:[%s2 + $0x28] sm:$0xff]
  %v2403 = vld [vmem:[%s2 + $0x30] sm:$0xff]
  %v2404 = vld [vmem:[%s2 + $0x38] sm:$0xff]
  %v2405 = vld [vmem:[%s2 + $0x40] sm:$0xff]
  %v2406 = vld [vmem:[%s2 + $0x48] sm:$0xff]
  %v2407 = vld [vmem:[%s2 + $0x50] sm:$0xff]
  %v2408 = vld [vmem:[%s2 + $0x58] sm:$0xff]
  %v2409 = vld [vmem:[%s2 + $0x60] sm:$0xff]
  %v2410 = vld [vmem:[%s2 + $0x68] sm:$0xff]
  %v2411 = vld [vmem:[%s2 + $0x70] sm:$0xff]
  %v2412 = vld [vmem:[%s2 + $0x78] sm:$0xff]
  %v2413 = vld [vmem:[%s2 + $0x80] sm:$0xff]
  %v2414 = vld [vmem:[%s2 + $0x88] sm:$0xff]
  %v2415 = vld [vmem:[%s2 + $0x90] sm:$0xff]
  %v2416 = vld [vmem:[%s2 + $0x98] sm:$0xff]
  %v2417 = vld [vmem:[%s2 + $0xa0] sm:$0xff]
  %v2418 = vld [vmem:[%s2 + $0xa8] sm:$0xff]
  %v2419 = vld [vmem:[%s2 + $0xb0] sm:$0xff]
  %v2420 = vld [vmem:[%s2 + $0xb8] sm:$0xff]
  %v2421 = vld [vmem:[%s2 + $0xc0] sm:$0xff]
  %v2422 = vld [vmem:[%s2 + $0xc8] sm:$0xff]
  %v2423 = vld [vmem:[%s2 + $0xd0] sm:$0xff]
  %v2424 = vld [vmem:[%s2 + $0xd8] sm:$0xff]
  %v2425 = vld [vmem:[%s2 + $0xe0] sm:$0xff]
  %v2426 = vld [vmem:[%s2 + $0xe8] sm:$0xff]
  %v2427 = vld [vmem:[%s2 + $0xf0] sm:$0xff]
  %v2428 = vld [vmem:[%s2 + $0xf8] sm:$0xff]
  %v2461 = vunpack.c.l.b16 %v2397
  %v2462 = vunpack.c.h.b16 %v2397
  %v2463 = vunpack.c.l.b16 %v2398
  %v2464 = vunpack.c.h.b16 %v2398
  %v2465 = vunpack.c.l.b16 %v2399
  %v2466 = vunpack.c.h.b16 %v2399
  %v2467 = vunpack.c.l.b16 %v2400
  %v2468 = vunpack.c.h.b16 %v2400
  %v2469 = vunpack.c.l.b16 %v2401
  %v2470 = vunpack.c.h.b16 %v2401
  %v2471 = vunpack.c.l.b16 %v2402
  %v2472 = vunpack.c.h.b16 %v2402
  %v2473 = vunpack.c.l.b16 %v2403
  %v2474 = vunpack.c.h.b16 %v2403
  %v2475 = vunpack.c.l.b16 %v2404
  %v2476 = vunpack.c.h.b16 %v2404
  %v2477 = vunpack.c.l.b16 %v2405
  %v2478 = vunpack.c.h.b16 %v2405
  %v2479 = vunpack.c.l.b16 %v2406
  %v2480 = vunpack.c.h.b16 %v2406
  %v2481 = vunpack.c.l.b16 %v2407
  %v2482 = vunpack.c.h.b16 %v2407
  %v2483 = vunpack.c.l.b16 %v2408
  %v2484 = vunpack.c.h.b16 %v2408
  %v2485 = vunpack.c.l.b16 %v2409
  %v2486 = vunpack.c.h.b16 %v2409
  %v2487 = vunpack.c.l.b16 %v2410
  %v2488 = vunpack.c.h.b16 %v2410
  %v2489 = vunpack.c.l.b16 %v2411
  %v2490 = vunpack.c.h.b16 %v2411
  %v2491 = vunpack.c.l.b16 %v2412
  %v2492 = vunpack.c.h.b16 %v2412
  %v2493 = vunpack.c.l.b16 %v2413
  %v2494 = vunpack.c.h.b16 %v2413
  %v2495 = vunpack.c.l.b16 %v2414
  %v2496 = vunpack.c.h.b16 %v2414
  %v2497 = vunpack.c.l.b16 %v2415
  %v2498 = vunpack.c.h.b16 %v2415
  %v2499 = vunpack.c.l.b16 %v2416
  %v2500 = vunpack.c.h.b16 %v2416
  %v2501 = vunpack.c.l.b16 %v2417
  %v2502 = vunpack.c.h.b16 %v2417
  %v2503 = vunpack.c.l.b16 %v2418
  %v2504 = vunpack.c.h.b16 %v2418
  %v2505 = vunpack.c.l.b16 %v2419
  %v2506 = vunpack.c.h.b16 %v2419
  %v2507 = vunpack.c.l.b16 %v2420
  %v2508 = vunpack.c.h.b16 %v2420
  %v2509 = vunpack.c.l.b16 %v2421
  %v2510 = vunpack.c.h.b16 %v2421
  %v2511 = vunpack.c.l.b16 %v2422
  %v2512 = vunpack.c.h.b16 %v2422
  %v2513 = vunpack.c.l.b16 %v2423
  %v2514 = vunpack.c.h.b16 %v2423
  %v2515 = vunpack.c.l.b16 %v2424
  %v2516 = vunpack.c.h.b16 %v2424
  %v2517 = vunpack.c.l.b16 %v2425
  %v2518 = vunpack.c.h.b16 %v2425
  %v2519 = vunpack.c.l.b16 %v2426
  %v2520 = vunpack.c.h.b16 %v2426
  %v2521 = vunpack.c.l.b16 %v2427
  %v2522 = vunpack.c.h.b16 %v2427
  %v2523 = vunpack.c.l.b16 %v2428
  %v2524 = vunpack.c.h.b16 %v2428
  %v2525 = vpack.c.b16 %v2465, %v2461
  %v2526 = vpack.c.b16 %v2466, %v2462
  %v2527 = vpack.c.b16 %v2467, %v2463
  %v2528 = vpack.c.b16 %v2468, %v2464
  %v2529 = vpack.c.b16 %v2473, %v2469
  %v2530 = vpack.c.b16 %v2474, %v2470
  %v2531 = vpack.c.b16 %v2475, %v2471
  %v2532 = vpack.c.b16 %v2476, %v2472
  %v2533 = vpack.c.b16 %v2481, %v2477
  %v2534 = vpack.c.b16 %v2482, %v2478
  %v2535 = vpack.c.b16 %v2483, %v2479
  %v2536 = vpack.c.b16 %v2484, %v2480
  %v2537 = vpack.c.b16 %v2489, %v2485
  %v2538 = vpack.c.b16 %v2490, %v2486
  %v2539 = vpack.c.b16 %v2491, %v2487
  %v2540 = vpack.c.b16 %v2492, %v2488
  %v2541 = vpack.c.b16 %v2497, %v2493
  %v2542 = vpack.c.b16 %v2498, %v2494
  %v2543 = vpack.c.b16 %v2499, %v2495
  %v2544 = vpack.c.b16 %v2500, %v2496
  %v2545 = vpack.c.b16 %v2505, %v2501
  %v2546 = vpack.c.b16 %v2506, %v2502
  %v2547 = vpack.c.b16 %v2507, %v2503
  %v2548 = vpack.c.b16 %v2508, %v2504
  %v2549 = vpack.c.b16 %v2513, %v2509
  %v2550 = vpack.c.b16 %v2514, %v2510
  %v2551 = vpack.c.b16 %v2515, %v2511
  %v2552 = vpack.c.b16 %v2516, %v2512
  %v2553 = vpack.c.b16 %v2521, %v2517
  %v2554 = vpack.c.b16 %v2522, %v2518
  %v2555 = vpack.c.b16 %v2523, %v2519
  %v2556 = vpack.c.b16 %v2524, %v2520
  %2589 = vmatprep.subr.bf16.mxu0 %v2526
  %2590 = vmatpush1.bf16.msra.mxu0 %v2525
  %2591 = vmatprep.subr.bf16.mxu0 %v2530
  %2592 = vmatpush1.bf16.msra.mxu0 %v2529
  %2593 = vmatprep.subr.bf16.mxu0 %v2534
  %2594 = vmatpush1.bf16.msra.mxu0 %v2533
  %2595 = vmatprep.subr.bf16.mxu0 %v2538
  %2596 = vmatpush1.bf16.msra.mxu0 %v2537
  %2597 = vmatprep.subr.bf16.mxu0 %v2542
  %2598 = vmatpush1.bf16.msra.mxu0 %v2541
  %2599 = vmatprep.subr.bf16.mxu0 %v2546
  %2600 = vmatpush1.bf16.msra.mxu0 %v2545
  %2601 = vmatprep.subr.bf16.mxu0 %v2550
  %2602 = vmatpush1.bf16.msra.mxu0 %v2549
  %2603 = vmatprep.subr.bf16.mxu0 %v2554
  %2604 = vmatpush1.bf16.msra.mxu0 %v2553
  %2605 = vmatprep.subr.bf16.mxu0 0
  %2606 = vmatpush1.bf16.msra.mxu0 0
  %2607 = vmatprep.subr.bf16.mxu0 0
  %2608 = vmatpush1.bf16.msra.mxu0 0
  %2609 = vmatprep.subr.bf16.mxu0 0
  %2610 = vmatpush1.bf16.msra.mxu0 0
  %2611 = vmatprep.subr.bf16.mxu0 0
  %2612 = vmatpush1.bf16.msra.mxu0 0
  %2613 = vmatprep.subr.bf16.mxu0 0
  %2614 = vmatpush1.bf16.msra.mxu0 0
  %2615 = vmatprep.subr.bf16.mxu0 0
  %2616 = vmatpush1.bf16.msra.mxu0 0
  %2617 = vmatprep.subr.bf16.mxu0 0
  %2618 = vmatpush1.bf16.msra.mxu0 0
  %2619 = vmatprep.subr.bf16.mxu0 0
  %2620 = vmatpush1.bf16.msra.mxu0 0
  %2621 = vmatprep.mubr.bf16.mxu0 0
  %2622 = vmatmul.mubr.bf16.gmra.mrb[0].mxu0 %v2396
  %v2623 = vpop.f32.mrb[0].mxu0
  %v2624 = vadd.f32 0.0, %v2623
  %v2625 = vpop.f32.mrb[0].mxu0
  %v2626 = vadd.f32 0.0, %v2625
  %v2627 = vpop.f32.mrb[0].mxu0
  %v2628 = vadd.f32 0.0, %v2627
  %v2629 = vpop.f32.mrb[0].mxu0
  %v2630 = vadd.f32 0.0, %v2629
  %2631 = vdwg.mxu0
  %2632 = vmatprep.subr.bf16.mxu0 %v2528
  %2633 = vmatpush1.bf16.msra.mxu0 %v2527
  %2634 = vmatprep.subr.bf16.mxu0 %v2532
  %2635 = vmatpush1.bf16.msra.mxu0 %v2531
  %2636 = vmatprep.subr.bf16.mxu0 %v2536
  %2637 = vmatpush1.bf16.msra.mxu0 %v2535
  %2638 = vmatprep.subr.bf16.mxu0 %v2540
  %2639 = vmatpush1.bf16.msra.mxu0 %v2539
  %2640 = vmatprep.subr.bf16.mxu0 %v2544
  %2641 = vmatpush1.bf16.msra.mxu0 %v2543
  %2642 = vmatprep.subr.bf16.mxu0 %v2548
  %2643 = vmatpush1.bf16.msra.mxu0 %v2547
  %2644 = vmatprep.subr.bf16.mxu0 %v2552
  %2645 = vmatpush1.bf16.msra.mxu0 %v2551
  %2646 = vmatprep.subr.bf16.mxu0 %v2556
  %2647 = vmatpush1.bf16.msra.mxu0 %v2555
  %2648 = vmatprep.subr.bf16.mxu0 0
  %2649 = vmatpush1.bf16.msra.mxu0 0
  %2650 = vmatprep.subr.bf16.mxu0 0
  %2651 = vmatpush1.bf16.msra.mxu0 0
  %2652 = vmatprep.subr.bf16.mxu0 0
  %2653 = vmatpush1.bf16.msra.mxu0 0
  %2654 = vmatprep.subr.bf16.mxu0 0
  %2655 = vmatpush1.bf16.msra.mxu0 0
  %2656 = vmatprep.subr.bf16.mxu0 0
  %2657 = vmatpush1.bf16.msra.mxu0 0
  %2658 = vmatprep.subr.bf16.mxu0 0
  %2659 = vmatpush1.bf16.msra.mxu0 0
  %2660 = vmatprep.subr.bf16.mxu0 0
  %2661 = vmatpush1.bf16.msra.mxu0 0
  %2662 = vmatprep.subr.bf16.mxu0 0
  %2663 = vmatpush1.bf16.msra.mxu0 0
  %2664 = vmatprep.mubr.bf16.mxu0 0
  %2665 = vmatmul.mubr.bf16.gmra.mrb[0].mxu0 %v2396
  %v2666 = vpop.f32.mrb[0].mxu0
  %v2667 = vadd.f32 0.0, %v2666
  %v2668 = vpop.f32.mrb[0].mxu0
  %v2669 = vadd.f32 0.0, %v2668
  %v2670 = vpop.f32.mrb[0].mxu0
  %v2671 = vadd.f32 0.0, %v2670
  %v2672 = vpop.f32.mrb[0].mxu0
  %v2673 = vadd.f32 0.0, %v2672
  %2674 = vdwg.mxu0
  %v2675 = vadd.f32 %v2388, %v2624
  %v2676 = vadd.f32 %v2389, %v2626
  %v2677 = vadd.f32 %v2390, %v2667
  %v2678 = vadd.f32 %v2391, %v2669
  %v2679 = vadd.f32 %v2392, %v2628
  %v2680 = vadd.f32 %v2393, %v2630
  %v2681 = vadd.f32 %v2394, %v2671
  %v2682 = vadd.f32 %v2395, %v2673
  %v2683 = vxor.u32 %v2675, 2147483648
  %v2684 = vxor.u32 %v2679, 2147483648
  %v2685 = vmul.f32 %v2683, 1.442695
  %v2686 = vpow.pop %v2685
  %v2687 = vmul.f32 %v2684, 1.442695
  %v2688 = vpow.pop %v2687
  %v2689 = vadd.f32 %v2686, 1.0
  %v2690 = vadd.f32 %v2688, 1.0
  %v2691 = vrcp.pop %v2689
  %v2692 = vmul.f32 1.0, %v2691
  %v2693 = vrcp.pop %v2690
  %v2694 = vmul.f32 1.0, %v2693
  %v2695 = vxor.u32 %v2676, 2147483648
  %v2696 = vxor.u32 %v2680, 2147483648
  %v2697 = vmul.f32 %v2695, 1.442695
  %v2698 = vpow.pop %v2697
  %v2699 = vmul.f32 %v2696, 1.442695
  %v2700 = vpow.pop %v2699
  %v2701 = vadd.f32 %v2698, 1.0
  %v2702 = vadd.f32 %v2700, 1.0
  %v2703 = vrcp.pop %v2701
  %v2704 = vmul.f32 1.0, %v2703
  %v2705 = vrcp.pop %v2702
  %v2706 = vmul.f32 1.0, %v2705
  %v2707 = vtanh.pop %v2677
  %v2708 = vtanh.pop %v2681
  %v2709 = vxor.u32 %v2678, 2147483648
  %v2710 = vxor.u32 %v2682, 2147483648
  %v2711 = vmul.f32 %v2709, 1.442695
  %v2712 = vpow.pop %v2711
  %v2713 = vmul.f32 %v2710, 1.442695
  %v2714 = vpow.pop %v2713
  %v2715 = vadd.f32 %v2712, 1.0
  %v2716 = vadd.f32 %v2714, 1.0
  %v2717 = vrcp.pop %v2715
  %v2718 = vmul.f32 1.0, %v2717
  %v2719 = vrcp.pop %v2716
  %v2720 = vmul.f32 1.0, %v2719
  %v2721 = vmul.f32 %v2704, %v2381
  %v2722 = vmul.f32 %v2706, %v2382
  %v2723 = vmul.f32 %v2692, %v2707
  %v2724 = vmul.f32 %v2694, %v2708
  %v2725 = vadd.f32 %v2721, %v2723
  %v2726 = vadd.f32 %v2722, %v2724
  %v2727 = vtanh.pop %v2725
  %v2728 = vtanh.pop %v2726
  %v2729 = vmul.f32 %v2718, %v2727
  %v2730 = vmul.f32 %v2720, %v2728
  %2731 = vst [vmem:[#allocation2] sm:$0xff] %v2729
  %2732 = vst [vmem:[#allocation2 + $0x8] sm:$0xff] %v2730
  %2733 = vst [vmem:[#allocation3] sm:$0xff] %v2725
  %2734 = vst [vmem:[#allocation3 + $0x8] sm:$0xff] %v2726
  %v2735 = vld [vmem:[#allocation2] sm:$0xff]
  %v2736 = vld [vmem:[#allocation2 + $0x8] sm:$0xff]
  %v2737 = vld [vmem:[#allocation3] sm:$0xff]
  %v2738 = vld [vmem:[#allocation3 + $0x8] sm:$0xff]
  %s2739 = scalar_lea.vmem [#allocation4], 192
  %v2740 = vld [vmem:[%s2739] sm:$0xff]
  %v2741 = vld [vmem:[%s2739 + $0x8] sm:$0xff]
  %v2742 = vld [vmem:[%s2739 + $0x10] sm:$0xff]
  %v2743 = vld [vmem:[%s2739 + $0x18] sm:$0xff]
  %v2744 = vunpack.c.l.bf16 %v2740
  %v2745 = vunpack.c.l.bf16 %v2741
  %v2746 = vunpack.c.l.bf16 %v2742
  %v2747 = vunpack.c.l.bf16 %v2743
  %v2748 = vunpack.c.h.bf16 %v2740
  %v2749 = vunpack.c.h.bf16 %v2741
  %v2750 = vunpack.c.h.bf16 %v2742
  %v2751 = vunpack.c.h.bf16 %v2743
  %v2752 = vpack.c.bf16 %v2736, %v2735
  %v2753 = vld [vmem:[%s2] sm:$0xff]
  %v2754 = vld [vmem:[%s2 + $0x8] sm:$0xff]
  %v2755 = vld [vmem:[%s2 + $0x10] sm:$0xff]
  %v2756 = vld [vmem:[%s2 + $0x18] sm:$0xff]
  %v2757 = vld [vmem:[%s2 + $0x20] sm:$0xff]
  %v2758 = vld [vmem:[%s2 + $0x28] sm:$0xff]
  %v2759 = vld [vmem:[%s2 + $0x30] sm:$0xff]
  %v2760 = vld [vmem:[%s2 + $0x38] sm:$0xff]
  %v2761 = vld [vmem:[%s2 + $0x40] sm:$0xff]
  %v2762 = vld [vmem:[%s2 + $0x48] sm:$0xff]
  %v2763 = vld [vmem:[%s2 + $0x50] sm:$0xff]
  %v2764 = vld [vmem:[%s2 + $0x58] sm:$0xff]
  %v2765 = vld [vmem:[%s2 + $0x60] sm:$0xff]
  %v2766 = vld [vmem:[%s2 + $0x68] sm:$0xff]
  %v2767 = vld [vmem:[%s2 + $0x70] sm:$0xff]
  %v2768 = vld [vmem:[%s2 + $0x78] sm:$0xff]
  %v2769 = vld [vmem:[%s2 + $0x80] sm:$0xff]
  %v2770 = vld [vmem:[%s2 + $0x88] sm:$0xff]
  %v2771 = vld [vmem:[%s2 + $0x90] sm:$0xff]
  %v2772 = vld [vmem:[%s2 + $0x98] sm:$0xff]
  %v2773 = vld [vmem:[%s2 + $0xa0] sm:$0xff]
  %v2774 = vld [vmem:[%s2 + $0xa8] sm:$0xff]
  %v2775 = vld [vmem:[%s2 + $0xb0] sm:$0xff]
  %v2776 = vld [vmem:[%s2 + $0xb8] sm:$0xff]
  %v2777 = vld [vmem:[%s2 + $0xc0] sm:$0xff]
  %v2778 = vld [vmem:[%s2 + $0xc8] sm:$0xff]
  %v2779 = vld [vmem:[%s2 + $0xd0] sm:$0xff]
  %v2780 = vld [vmem:[%s2 + $0xd8] sm:$0xff]
  %v2781 = vld [vmem:[%s2 + $0xe0] sm:$0xff]
  %v2782 = vld [vmem:[%s2 + $0xe8] sm:$0xff]
  %v2783 = vld [vmem:[%s2 + $0xf0] sm:$0xff]
  %v2784 = vld [vmem:[%s2 + $0xf8] sm:$0xff]
  %v2817 = vunpack.c.l.b16 %v2753
  %v2818 = vunpack.c.h.b16 %v2753
  %v2819 = vunpack.c.l.b16 %v2754
  %v2820 = vunpack.c.h.b16 %v2754
  %v2821 = vunpack.c.l.b16 %v2755
  %v2822 = vunpack.c.h.b16 %v2755
  %v2823 = vunpack.c.l.b16 %v2756
  %v2824 = vunpack.c.h.b16 %v2756
  %v2825 = vunpack.c.l.b16 %v2757
  %v2826 = vunpack.c.h.b16 %v2757
  %v2827 = vunpack.c.l.b16 %v2758
  %v2828 = vunpack.c.h.b16 %v2758
  %v2829 = vunpack.c.l.b16 %v2759
  %v2830 = vunpack.c.h.b16 %v2759
  %v2831 = vunpack.c.l.b16 %v2760
  %v2832 = vunpack.c.h.b16 %v2760
  %v2833 = vunpack.c.l.b16 %v2761
  %v2834 = vunpack.c.h.b16 %v2761
  %v2835 = vunpack.c.l.b16 %v2762
  %v2836 = vunpack.c.h.b16 %v2762
  %v2837 = vunpack.c.l.b16 %v2763
  %v2838 = vunpack.c.h.b16 %v2763
  %v2839 = vunpack.c.l.b16 %v2764
  %v2840 = vunpack.c.h.b16 %v2764
  %v2841 = vunpack.c.l.b16 %v2765
  %v2842 = vunpack.c.h.b16 %v2765
  %v2843 = vunpack.c.l.b16 %v2766
  %v2844 = vunpack.c.h.b16 %v2766
  %v2845 = vunpack.c.l.b16 %v2767
  %v2846 = vunpack.c.h.b16 %v2767
  %v2847 = vunpack.c.l.b16 %v2768
  %v2848 = vunpack.c.h.b16 %v2768
  %v2849 = vunpack.c.l.b16 %v2769
  %v2850 = vunpack.c.h.b16 %v2769
  %v2851 = vunpack.c.l.b16 %v2770
  %v2852 = vunpack.c.h.b16 %v2770
  %v2853 = vunpack.c.l.b16 %v2771
  %v2854 = vunpack.c.h.b16 %v2771
  %v2855 = vunpack.c.l.b16 %v2772
  %v2856 = vunpack.c.h.b16 %v2772
  %v2857 = vunpack.c.l.b16 %v2773
  %v2858 = vunpack.c.h.b16 %v2773
  %v2859 = vunpack.c.l.b16 %v2774
  %v2860 = vunpack.c.h.b16 %v2774
  %v2861 = vunpack.c.l.b16 %v2775
  %v2862 = vunpack.c.h.b16 %v2775
  %v2863 = vunpack.c.l.b16 %v2776
  %v2864 = vunpack.c.h.b16 %v2776
  %v2865 = vunpack.c.l.b16 %v2777
  %v2866 = vunpack.c.h.b16 %v2777
  %v2867 = vunpack.c.l.b16 %v2778
  %v2868 = vunpack.c.h.b16 %v2778
  %v2869 = vunpack.c.l.b16 %v2779
  %v2870 = vunpack.c.h.b16 %v2779
  %v2871 = vunpack.c.l.b16 %v2780
  %v2872 = vunpack.c.h.b16 %v2780
  %v2873 = vunpack.c.l.b16 %v2781
  %v2874 = vunpack.c.h.b16 %v2781
  %v2875 = vunpack.c.l.b16 %v2782
  %v2876 = vunpack.c.h.b16 %v2782
  %v2877 = vunpack.c.l.b16 %v2783
  %v2878 = vunpack.c.h.b16 %v2783
  %v2879 = vunpack.c.l.b16 %v2784
  %v2880 = vunpack.c.h.b16 %v2784
  %v2881 = vpack.c.b16 %v2821, %v2817
  %v2882 = vpack.c.b16 %v2822, %v2818
  %v2883 = vpack.c.b16 %v2823, %v2819
  %v2884 = vpack.c.b16 %v2824, %v2820
  %v2885 = vpack.c.b16 %v2829, %v2825
  %v2886 = vpack.c.b16 %v2830, %v2826
  %v2887 = vpack.c.b16 %v2831, %v2827
  %v2888 = vpack.c.b16 %v2832, %v2828
  %v2889 = vpack.c.b16 %v2837, %v2833
  %v2890 = vpack.c.b16 %v2838, %v2834
  %v2891 = vpack.c.b16 %v2839, %v2835
  %v2892 = vpack.c.b16 %v2840, %v2836
  %v2893 = vpack.c.b16 %v2845, %v2841
  %v2894 = vpack.c.b16 %v2846, %v2842
  %v2895 = vpack.c.b16 %v2847, %v2843
  %v2896 = vpack.c.b16 %v2848, %v2844
  %v2897 = vpack.c.b16 %v2853, %v2849
  %v2898 = vpack.c.b16 %v2854, %v2850
  %v2899 = vpack.c.b16 %v2855, %v2851
  %v2900 = vpack.c.b16 %v2856, %v2852
  %v2901 = vpack.c.b16 %v2861, %v2857
  %v2902 = vpack.c.b16 %v2862, %v2858
  %v2903 = vpack.c.b16 %v2863, %v2859
  %v2904 = vpack.c.b16 %v2864, %v2860
  %v2905 = vpack.c.b16 %v2869, %v2865
  %v2906 = vpack.c.b16 %v2870, %v2866
  %v2907 = vpack.c.b16 %v2871, %v2867
  %v2908 = vpack.c.b16 %v2872, %v2868
  %v2909 = vpack.c.b16 %v2877, %v2873
  %v2910 = vpack.c.b16 %v2878, %v2874
  %v2911 = vpack.c.b16 %v2879, %v2875
  %v2912 = vpack.c.b16 %v2880, %v2876
  %2945 = vmatprep.subr.bf16.mxu0 %v2882
  %2946 = vmatpush1.bf16.msra.mxu0 %v2881
  %2947 = vmatprep.subr.bf16.mxu0 %v2886
  %2948 = vmatpush1.bf16.msra.mxu0 %v2885
  %2949 = vmatprep.subr.bf16.mxu0 %v2890
  %2950 = vmatpush1.bf16.msra.mxu0 %v2889
  %2951 = vmatprep.subr.bf16.mxu0 %v2894
  %2952 = vmatpush1.bf16.msra.mxu0 %v2893
  %2953 = vmatprep.subr.bf16.mxu0 %v2898
  %2954 = vmatpush1.bf16.msra.mxu0 %v2897
  %2955 = vmatprep.subr.bf16.mxu0 %v2902
  %2956 = vmatpush1.bf16.msra.mxu0 %v2901
  %2957 = vmatprep.subr.bf16.mxu0 %v2906
  %2958 = vmatpush1.bf16.msra.mxu0 %v2905
  %2959 = vmatprep.subr.bf16.mxu0 %v2910
  %2960 = vmatpush1.bf16.msra.mxu0 %v2909
  %2961 = vmatprep.subr.bf16.mxu0 0
  %2962 = vmatpush1.bf16.msra.mxu0 0
  %2963 = vmatprep.subr.bf16.mxu0 0
  %2964 = vmatpush1.bf16.msra.mxu0 0
  %2965 = vmatprep.subr.bf16.mxu0 0
  %2966 = vmatpush1.bf16.msra.mxu0 0
  %2967 = vmatprep.subr.bf16.mxu0 0
  %2968 = vmatpush1.bf16.msra.mxu0 0
  %2969 = vmatprep.subr.bf16.mxu0 0
  %2970 = vmatpush1.bf16.msra.mxu0 0
  %2971 = vmatprep.subr.bf16.mxu0 0
  %2972 = vmatpush1.bf16.msra.mxu0 0
  %2973 = vmatprep.subr.bf16.mxu0 0
  %2974 = vmatpush1.bf16.msra.mxu0 0
  %2975 = vmatprep.subr.bf16.mxu0 0
  %2976 = vmatpush1.bf16.msra.mxu0 0
  %2977 = vmatprep.mubr.bf16.mxu0 0
  %2978 = vmatmul.mubr.bf16.gmra.mrb[0].mxu0 %v2752
  %v2979 = vpop.f32.mrb[0].mxu0
  %v2980 = vadd.f32 0.0, %v2979
  %v2981 = vpop.f32.mrb[0].mxu0
  %v2982 = vadd.f32 0.0, %v2981
  %v2983 = vpop.f32.mrb[0].mxu0
  %v2984 = vadd.f32 0.0, %v2983
  %v2985 = vpop.f32.mrb[0].mxu0
  %v2986 = vadd.f32 0.0, %v2985
  %2987 = vdwg.mxu0
  %2988 = vmatprep.subr.bf16.mxu0 %v2884
  %2989 = vmatpush1.bf16.msra.mxu0 %v2883
  %2990 = vmatprep.subr.bf16.mxu0 %v2888
  %2991 = vmatpush1.bf16.msra.mxu0 %v2887
  %2992 = vmatprep.subr.bf16.mxu0 %v2892
  %2993 = vmatpush1.bf16.msra.mxu0 %v2891
  %2994 = vmatprep.subr.bf16.mxu0 %v2896
  %2995 = vmatpush1.bf16.msra.mxu0 %v2895
  %2996 = vmatprep.subr.bf16.mxu0 %v2900
  %2997 = vmatpush1.bf16.msra.mxu0 %v2899
  %2998 = vmatprep.subr.bf16.mxu0 %v2904
  %2999 = vmatpush1.bf16.msra.mxu0 %v2903
  %3000 = vmatprep.subr.bf16.mxu0 %v2908
  %3001 = vmatpush1.bf16.msra.mxu0 %v2907
  %3002 = vmatprep.subr.bf16.mxu0 %v2912
  %3003 = vmatpush1.bf16.msra.mxu0 %v2911
  %3004 = vmatprep.subr.bf16.mxu0 0
  %3005 = vmatpush1.bf16.msra.mxu0 0
  %3006 = vmatprep.subr.bf16.mxu0 0
  %3007 = vmatpush1.bf16.msra.mxu0 0
  %3008 = vmatprep.subr.bf16.mxu0 0
  %3009 = vmatpush1.bf16.msra.mxu0 0
  %3010 = vmatprep.subr.bf16.mxu0 0
  %3011 = vmatpush1.bf16.msra.mxu0 0
  %3012 = vmatprep.subr.bf16.mxu0 0
  %3013 = vmatpush1.bf16.msra.mxu0 0
  %3014 = vmatprep.subr.bf16.mxu0 0
  %3015 = vmatpush1.bf16.msra.mxu0 0
  %3016 = vmatprep.subr.bf16.mxu0 0
  %3017 = vmatpush1.bf16.msra.mxu0 0
  %3018 = vmatprep.subr.bf16.mxu0 0
  %3019 = vmatpush1.bf16.msra.mxu0 0
  %3020 = vmatprep.mubr.bf16.mxu0 0
  %3021 = vmatmul.mubr.bf16.gmra.mrb[0].mxu0 %v2752
  %v3022 = vpop.f32.mrb[0].mxu0
  %v3023 = vadd.f32 0.0, %v3022
  %v3024 = vpop.f32.mrb[0].mxu0
  %v3025 = vadd.f32 0.0, %v3024
  %v3026 = vpop.f32.mrb[0].mxu0
  %v3027 = vadd.f32 0.0, %v3026
  %v3028 = vpop.f32.mrb[0].mxu0
  %v3029 = vadd.f32 0.0, %v3028
  %3030 = vdwg.mxu0
  %v3031 = vadd.f32 %v2744, %v2980
  %v3032 = vadd.f32 %v2745, %v2982
  %v3033 = vadd.f32 %v2746, %v3023
  %v3034 = vadd.f32 %v2747, %v3025
  %v3035 = vadd.f32 %v2748, %v2984
  %v3036 = vadd.f32 %v2749, %v2986
  %v3037 = vadd.f32 %v2750, %v3027
  %v3038 = vadd.f32 %v2751, %v3029
  %v3039 = vxor.u32 %v3031, 2147483648
  %v3040 = vxor.u32 %v3035, 2147483648
  %v3041 = vmul.f32 %v3039, 1.442695
  %v3042 = vpow.pop %v3041
  %v3043 = vmul.f32 %v3040, 1.442695
  %v3044 = vpow.pop %v3043
  %v3045 = vadd.f32 %v3042, 1.0
  %v3046 = vadd.f32 %v3044, 1.0
  %v3047 = vrcp.pop %v3045
  %v3048 = vmul.f32 1.0, %v3047
  %v3049 = vrcp.pop %v3046
  %v3050 = vmul.f32 1.0, %v3049
  %v3051 = vxor.u32 %v3032, 2147483648
  %v3052 = vxor.u32 %v3036, 2147483648
  %v3053 = vmul.f32 %v3051, 1.442695
  %v3054 = vpow.pop %v3053
  %v3055 = vmul.f32 %v3052, 1.442695
  %v3056 = vpow.pop %v3055
  %v3057 = vadd.f32 %v3054, 1.0
  %v3058 = vadd.f32 %v3056, 1.0
  %v3059 = vrcp.pop %v3057
  %v3060 = vmul.f32 1.0, %v3059
  %v3061 = vrcp.pop %v3058
  %v3062 = vmul.f32 1.0, %v3061
  %v3063 = vtanh.pop %v3033
  %v3064 = vtanh.pop %v3037
  %v3065 = vxor.u32 %v3034, 2147483648
  %v3066 = vxor.u32 %v3038, 2147483648
  %v3067 = vmul.f32 %v3065, 1.442695
  %v3068 = vpow.pop %v3067
  %v3069 = vmul.f32 %v3066, 1.442695
  %v3070 = vpow.pop %v3069
  %v3071 = vadd.f32 %v3068, 1.0
  %v3072 = vadd.f32 %v3070, 1.0
  %v3073 = vrcp.pop %v3071
  %v3074 = vmul.f32 1.0, %v3073
  %v3075 = vrcp.pop %v3072
  %v3076 = vmul.f32 1.0, %v3075
  %v3077 = vmul.f32 %v3060, %v2737
  %v3078 = vmul.f32 %v3062, %v2738
  %v3079 = vmul.f32 %v3048, %v3063
  %v3080 = vmul.f32 %v3050, %v3064
  %v3081 = vadd.f32 %v3077, %v3079
  %v3082 = vadd.f32 %v3078, %v3080
  %v3083 = vtanh.pop %v3081
  %v3084 = vtanh.pop %v3082
  %v3085 = vmul.f32 %v3074, %v3083
  %v3086 = vmul.f32 %v3076, %v3084
  %3087 = vst [vmem:[#allocation2] sm:$0xff] %v3085
  %3088 = vst [vmem:[#allocation2 + $0x8] sm:$0xff] %v3086
  %3089 = vst [vmem:[#allocation3] sm:$0xff] %v3081
  %3090 = vst [vmem:[#allocation3 + $0x8] sm:$0xff] %v3082
  %v3091 = vld [vmem:[#allocation2] sm:$0xff]
  %v3092 = vld [vmem:[#allocation2 + $0x8] sm:$0xff]
  %v3093 = vld [vmem:[#allocation3] sm:$0xff]
  %v3094 = vld [vmem:[#allocation3 + $0x8] sm:$0xff]
  %s3095 = scalar_lea.vmem [#allocation4], 224
  %v3096 = vld [vmem:[%s3095] sm:$0xff]
  %v3097 = vld [vmem:[%s3095 + $0x8] sm:$0xff]
  %v3098 = vld [vmem:[%s3095 + $0x10] sm:$0xff]
  %v3099 = vld [vmem:[%s3095 + $0x18] sm:$0xff]
  %v3100 = vunpack.c.l.bf16 %v3096
  %v3101 = vunpack.c.l.bf16 %v3097
  %v3102 = vunpack.c.l.bf16 %v3098
  %v3103 = vunpack.c.l.bf16 %v3099
  %v3104 = vunpack.c.h.bf16 %v3096
  %v3105 = vunpack.c.h.bf16 %v3097
  %v3106 = vunpack.c.h.bf16 %v3098
  %v3107 = vunpack.c.h.bf16 %v3099
  %v3108 = vpack.c.bf16 %v3092, %v3091
  %v3109 = vld [vmem:[%s2] sm:$0xff]
  %v3110 = vld [vmem:[%s2 + $0x8] sm:$0xff]
  %v3111 = vld [vmem:[%s2 + $0x10] sm:$0xff]
  %v3112 = vld [vmem:[%s2 + $0x18] sm:$0xff]
  %v3113 = vld [vmem:[%s2 + $0x20] sm:$0xff]
  %v3114 = vld [vmem:[%s2 + $0x28] sm:$0xff]
  %v3115 = vld [vmem:[%s2 + $0x30] sm:$0xff]
  %v3116 = vld [vmem:[%s2 + $0x38] sm:$0xff]
  %v3117 = vld [vmem:[%s2 + $0x40] sm:$0xff]
  %v3118 = vld [vmem:[%s2 + $0x48] sm:$0xff]
  %v3119 = vld [vmem:[%s2 + $0x50] sm:$0xff]
  %v3120 = vld [vmem:[%s2 + $0x58] sm:$0xff]
  %v3121 = vld [vmem:[%s2 + $0x60] sm:$0xff]
  %v3122 = vld [vmem:[%s2 + $0x68] sm:$0xff]
  %v3123 = vld [vmem:[%s2 + $0x70] sm:$0xff]
  %v3124 = vld [vmem:[%s2 + $0x78] sm:$0xff]
  %v3125 = vld [vmem:[%s2 + $0x80] sm:$0xff]
  %v3126 = vld [vmem:[%s2 + $0x88] sm:$0xff]
  %v3127 = vld [vmem:[%s2 + $0x90] sm:$0xff]
  %v3128 = vld [vmem:[%s2 + $0x98] sm:$0xff]
  %v3129 = vld [vmem:[%s2 + $0xa0] sm:$0xff]
  %v3130 = vld [vmem:[%s2 + $0xa8] sm:$0xff]
  %v3131 = vld [vmem:[%s2 + $0xb0] sm:$0xff]
  %v3132 = vld [vmem:[%s2 + $0xb8] sm:$0xff]
  %v3133 = vld [vmem:[%s2 + $0xc0] sm:$0xff]
  %v3134 = vld [vmem:[%s2 + $0xc8] sm:$0xff]
  %v3135 = vld [vmem:[%s2 + $0xd0] sm:$0xff]
  %v3136 = vld [vmem:[%s2 + $0xd8] sm:$0xff]
  %v3137 = vld [vmem:[%s2 + $0xe0] sm:$0xff]
  %v3138 = vld [vmem:[%s2 + $0xe8] sm:$0xff]
  %v3139 = vld [vmem:[%s2 + $0xf0] sm:$0xff]
  %v3140 = vld [vmem:[%s2 + $0xf8] sm:$0xff]
  %v3173 = vunpack.c.l.b16 %v3109
  %v3174 = vunpack.c.h.b16 %v3109
  %v3175 = vunpack.c.l.b16 %v3110
  %v3176 = vunpack.c.h.b16 %v3110
  %v3177 = vunpack.c.l.b16 %v3111
  %v3178 = vunpack.c.h.b16 %v3111
  %v3179 = vunpack.c.l.b16 %v3112
  %v3180 = vunpack.c.h.b16 %v3112
  %v3181 = vunpack.c.l.b16 %v3113
  %v3182 = vunpack.c.h.b16 %v3113
  %v3183 = vunpack.c.l.b16 %v3114
  %v3184 = vunpack.c.h.b16 %v3114
  %v3185 = vunpack.c.l.b16 %v3115
  %v3186 = vunpack.c.h.b16 %v3115
  %v3187 = vunpack.c.l.b16 %v3116
  %v3188 = vunpack.c.h.b16 %v3116
  %v3189 = vunpack.c.l.b16 %v3117
  %v3190 = vunpack.c.h.b16 %v3117
  %v3191 = vunpack.c.l.b16 %v3118
  %v3192 = vunpack.c.h.b16 %v3118
  %v3193 = vunpack.c.l.b16 %v3119
  %v3194 = vunpack.c.h.b16 %v3119
  %v3195 = vunpack.c.l.b16 %v3120
  %v3196 = vunpack.c.h.b16 %v3120
  %v3197 = vunpack.c.l.b16 %v3121
  %v3198 = vunpack.c.h.b16 %v3121
  %v3199 = vunpack.c.l.b16 %v3122
  %v3200 = vunpack.c.h.b16 %v3122
  %v3201 = vunpack.c.l.b16 %v3123
  %v3202 = vunpack.c.h.b16 %v3123
  %v3203 = vunpack.c.l.b16 %v3124
  %v3204 = vunpack.c.h.b16 %v3124
  %v3205 = vunpack.c.l.b16 %v3125
  %v3206 = vunpack.c.h.b16 %v3125
  %v3207 = vunpack.c.l.b16 %v3126
  %v3208 = vunpack.c.h.b16 %v3126
  %v3209 = vunpack.c.l.b16 %v3127
  %v3210 = vunpack.c.h.b16 %v3127
  %v3211 = vunpack.c.l.b16 %v3128
  %v3212 = vunpack.c.h.b16 %v3128
  %v3213 = vunpack.c.l.b16 %v3129
  %v3214 = vunpack.c.h.b16 %v3129
  %v3215 = vunpack.c.l.b16 %v3130
  %v3216 = vunpack.c.h.b16 %v3130
  %v3217 = vunpack.c.l.b16 %v3131
  %v3218 = vunpack.c.h.b16 %v3131
  %v3219 = vunpack.c.l.b16 %v3132
  %v3220 = vunpack.c.h.b16 %v3132
  %v3221 = vunpack.c.l.b16 %v3133
  %v3222 = vunpack.c.h.b16 %v3133
  %v3223 = vunpack.c.l.b16 %v3134
  %v3224 = vunpack.c.h.b16 %v3134
  %v3225 = vunpack.c.l.b16 %v3135
  %v3226 = vunpack.c.h.b16 %v3135
  %v3227 = vunpack.c.l.b16 %v3136
  %v3228 = vunpack.c.h.b16 %v3136
  %v3229 = vunpack.c.l.b16 %v3137
  %v3230 = vunpack.c.h.b16 %v3137
  %v3231 = vunpack.c.l.b16 %v3138
  %v3232 = vunpack.c.h.b16 %v3138
  %v3233 = vunpack.c.l.b16 %v3139
  %v3234 = vunpack.c.h.b16 %v3139
  %v3235 = vunpack.c.l.b16 %v3140
  %v3236 = vunpack.c.h.b16 %v3140
  %v3237 = vpack.c.b16 %v3177, %v3173
  %v3238 = vpack.c.b16 %v3178, %v3174
  %v3239 = vpack.c.b16 %v3179, %v3175
  %v3240 = vpack.c.b16 %v3180, %v3176
  %v3241 = vpack.c.b16 %v3185, %v3181
  %v3242 = vpack.c.b16 %v3186, %v3182
  %v3243 = vpack.c.b16 %v3187, %v3183
  %v3244 = vpack.c.b16 %v3188, %v3184
  %v3245 = vpack.c.b16 %v3193, %v3189
  %v3246 = vpack.c.b16 %v3194, %v3190
  %v3247 = vpack.c.b16 %v3195, %v3191
  %v3248 = vpack.c.b16 %v3196, %v3192
  %v3249 = vpack.c.b16 %v3201, %v3197
  %v3250 = vpack.c.b16 %v3202, %v3198
  %v3251 = vpack.c.b16 %v3203, %v3199
  %v3252 = vpack.c.b16 %v3204, %v3200
  %v3253 = vpack.c.b16 %v3209, %v3205
  %v3254 = vpack.c.b16 %v3210, %v3206
  %v3255 = vpack.c.b16 %v3211, %v3207
  %v3256 = vpack.c.b16 %v3212, %v3208
  %v3257 = vpack.c.b16 %v3217, %v3213
  %v3258 = vpack.c.b16 %v3218, %v3214
  %v3259 = vpack.c.b16 %v3219, %v3215
  %v3260 = vpack.c.b16 %v3220, %v3216
  %v3261 = vpack.c.b16 %v3225, %v3221
  %v3262 = vpack.c.b16 %v3226, %v3222
  %v3263 = vpack.c.b16 %v3227, %v3223
  %v3264 = vpack.c.b16 %v3228, %v3224
  %v3265 = vpack.c.b16 %v3233, %v3229
  %v3266 = vpack.c.b16 %v3234, %v3230
  %v3267 = vpack.c.b16 %v3235, %v3231
  %v3268 = vpack.c.b16 %v3236, %v3232
  %3301 = vmatprep.subr.bf16.mxu0 %v3238
  %3302 = vmatpush1.bf16.msra.mxu0 %v3237
  %3303 = vmatprep.subr.bf16.mxu0 %v3242
  %3304 = vmatpush1.bf16.msra.mxu0 %v3241
  %3305 = vmatprep.subr.bf16.mxu0 %v3246
  %3306 = vmatpush1.bf16.msra.mxu0 %v3245
  %3307 = vmatprep.subr.bf16.mxu0 %v3250
  %3308 = vmatpush1.bf16.msra.mxu0 %v3249
  %3309 = vmatprep.subr.bf16.mxu0 %v3254
  %3310 = vmatpush1.bf16.msra.mxu0 %v3253
  %3311 = vmatprep.subr.bf16.mxu0 %v3258
  %3312 = vmatpush1.bf16.msra.mxu0 %v3257
  %3313 = vmatprep.subr.bf16.mxu0 %v3262
  %3314 = vmatpush1.bf16.msra.mxu0 %v3261
  %3315 = vmatprep.subr.bf16.mxu0 %v3266
  %3316 = vmatpush1.bf16.msra.mxu0 %v3265
  %3317 = vmatprep.subr.bf16.mxu0 0
  %3318 = vmatpush1.bf16.msra.mxu0 0
  %3319 = vmatprep.subr.bf16.mxu0 0
  %3320 = vmatpush1.bf16.msra.mxu0 0
  %3321 = vmatprep.subr.bf16.mxu0 0
  %3322 = vmatpush1.bf16.msra.mxu0 0
  %3323 = vmatprep.subr.bf16.mxu0 0
  %3324 = vmatpush1.bf16.msra.mxu0 0
  %3325 = vmatprep.subr.bf16.mxu0 0
  %3326 = vmatpush1.bf16.msra.mxu0 0
  %3327 = vmatprep.subr.bf16.mxu0 0
  %3328 = vmatpush1.bf16.msra.mxu0 0
  %3329 = vmatprep.subr.bf16.mxu0 0
  %3330 = vmatpush1.bf16.msra.mxu0 0
  %3331 = vmatprep.subr.bf16.mxu0 0
  %3332 = vmatpush1.bf16.msra.mxu0 0
  %3333 = vmatprep.mubr.bf16.mxu0 0
  %3334 = vmatmul.mubr.bf16.gmra.mrb[0].mxu0 %v3108
  %v3335 = vpop.f32.mrb[0].mxu0
  %v3336 = vadd.f32 0.0, %v3335
  %v3337 = vpop.f32.mrb[0].mxu0
  %v3338 = vadd.f32 0.0, %v3337
  %v3339 = vpop.f32.mrb[0].mxu0
  %v3340 = vadd.f32 0.0, %v3339
  %v3341 = vpop.f32.mrb[0].mxu0
  %v3342 = vadd.f32 0.0, %v3341
  %3343 = vdwg.mxu0
  %3344 = vmatprep.subr.bf16.mxu0 %v3240
  %3345 = vmatpush1.bf16.msra.mxu0 %v3239
  %3346 = vmatprep.subr.bf16.mxu0 %v3244
  %3347 = vmatpush1.bf16.msra.mxu0 %v3243
  %3348 = vmatprep.subr.bf16.mxu0 %v3248
  %3349 = vmatpush1.bf16.msra.mxu0 %v3247
  %3350 = vmatprep.subr.bf16.mxu0 %v3252
  %3351 = vmatpush1.bf16.msra.mxu0 %v3251
  %3352 = vmatprep.subr.bf16.mxu0 %v3256
  %3353 = vmatpush1.bf16.msra.mxu0 %v3255
  %3354 = vmatprep.subr.bf16.mxu0 %v3260
  %3355 = vmatpush1.bf16.msra.mxu0 %v3259
  %3356 = vmatprep.subr.bf16.mxu0 %v3264
  %3357 = vmatpush1.bf16.msra.mxu0 %v3263
  %3358 = vmatprep.subr.bf16.mxu0 %v3268
  %3359 = vmatpush1.bf16.msra.mxu0 %v3267
  %3360 = vmatprep.subr.bf16.mxu0 0
  %3361 = vmatpush1.bf16.msra.mxu0 0
  %3362 = vmatprep.subr.bf16.mxu0 0
  %3363 = vmatpush1.bf16.msra.mxu0 0
  %3364 = vmatprep.subr.bf16.mxu0 0
  %3365 = vmatpush1.bf16.msra.mxu0 0
  %3366 = vmatprep.subr.bf16.mxu0 0
  %3367 = vmatpush1.bf16.msra.mxu0 0
  %3368 = vmatprep.subr.bf16.mxu0 0
  %3369 = vmatpush1.bf16.msra.mxu0 0
  %3370 = vmatprep.subr.bf16.mxu0 0
  %3371 = vmatpush1.bf16.msra.mxu0 0
  %3372 = vmatprep.subr.bf16.mxu0 0
  %3373 = vmatpush1.bf16.msra.mxu0 0
  %3374 = vmatprep.subr.bf16.mxu0 0
  %3375 = vmatpush1.bf16.msra.mxu0 0
  %3376 = vmatprep.mubr.bf16.mxu0 0
  %3377 = vmatmul.mubr.bf16.gmra.mrb[0].mxu0 %v3108
  %v3378 = vpop.f32.mrb[0].mxu0
  %v3379 = vadd.f32 0.0, %v3378
  %v3380 = vpop.f32.mrb[0].mxu0
  %v3381 = vadd.f32 0.0, %v3380
  %v3382 = vpop.f32.mrb[0].mxu0
  %v3383 = vadd.f32 0.0, %v3382
  %v3384 = vpop.f32.mrb[0].mxu0
  %v3385 = vadd.f32 0.0, %v3384
  %3386 = vdwg.mxu0
  %v3387 = vadd.f32 %v3100, %v3336
  %v3388 = vadd.f32 %v3101, %v3338
  %v3389 = vadd.f32 %v3102, %v3379
  %v3390 = vadd.f32 %v3103, %v3381
  %v3391 = vadd.f32 %v3104, %v3340
  %v3392 = vadd.f32 %v3105, %v3342
  %v3393 = vadd.f32 %v3106, %v3383
  %v3394 = vadd.f32 %v3107, %v3385
  %v3395 = vxor.u32 %v3387, 2147483648
  %v3396 = vxor.u32 %v3391, 2147483648
  %v3397 = vmul.f32 %v3395, 1.442695
  %v3398 = vpow.pop %v3397
  %v3399 = vmul.f32 %v3396, 1.442695
  %v3400 = vpow.pop %v3399
  %v3401 = vadd.f32 %v3398, 1.0
  %v3402 = vadd.f32 %v3400, 1.0
  %v3403 = vrcp.pop %v3401
  %v3404 = vmul.f32 1.0, %v3403
  %v3405 = vrcp.pop %v3402
  %v3406 = vmul.f32 1.0, %v3405
  %v3407 = vxor.u32 %v3388, 2147483648
  %v3408 = vxor.u32 %v3392, 2147483648
  %v3409 = vmul.f32 %v3407, 1.442695
  %v3410 = vpow.pop %v3409
  %v3411 = vmul.f32 %v3408, 1.442695
  %v3412 = vpow.pop %v3411
  %v3413 = vadd.f32 %v3410, 1.0
  %v3414 = vadd.f32 %v3412, 1.0
  %v3415 = vrcp.pop %v3413
  %v3416 = vmul.f32 1.0, %v3415
  %v3417 = vrcp.pop %v3414
  %v3418 = vmul.f32 1.0, %v3417
  %v3419 = vtanh.pop %v3389
  %v3420 = vtanh.pop %v3393
  %v3421 = vxor.u32 %v3390, 2147483648
  %v3422 = vxor.u32 %v3394, 2147483648
  %v3423 = vmul.f32 %v3421, 1.442695
  %v3424 = vpow.pop %v3423
  %v3425 = vmul.f32 %v3422, 1.442695
  %v3426 = vpow.pop %v3425
  %v3427 = vadd.f32 %v3424, 1.0
  %v3428 = vadd.f32 %v3426, 1.0
  %v3429 = vrcp.pop %v3427
  %v3430 = vmul.f32 1.0, %v3429
  %v3431 = vrcp.pop %v3428
  %v3432 = vmul.f32 1.0, %v3431
  %v3433 = vmul.f32 %v3416, %v3093
  %v3434 = vmul.f32 %v3418, %v3094
  %v3435 = vmul.f32 %v3404, %v3419
  %v3436 = vmul.f32 %v3406, %v3420
  %v3437 = vadd.f32 %v3433, %v3435
  %v3438 = vadd.f32 %v3434, %v3436
  %v3439 = vtanh.pop %v3437
  %v3440 = vtanh.pop %v3438
  %v3441 = vmul.f32 %v3430, %v3439
  %v3442 = vmul.f32 %v3432, %v3440
  %3443 = vst [vmem:[#allocation2] sm:$0xff] %v3441
  %3444 = vst [vmem:[#allocation2 + $0x8] sm:$0xff] %v3442
  %3445 = vst [vmem:[#allocation3] sm:$0xff] %v3437
  %3446 = vst [vmem:[#allocation3 + $0x8] sm:$0xff] %v3438
  // Predicated region
  $region30: #{lstm_model_forward.3} parent=0 // pred_check
    %p3447 = pneg %p24
  $region31: #{lstm_model_forward.3} parent=0 // pred_check_branch
    %3449 = sbr.rel (%p3447) target = $region33
  $region32: #{lstm_model_forward.3} parent=0 // pred_region
    %v3450 = vld [vmem:[#allocation2] sm:$0xff]
    %v3451 = vld [vmem:[#allocation2 + $0x8] sm:$0xff]
    %v3452 = vpack.c.bf16 %v3451, %v3450
    %v3453 = vld [vmem:[%s4] sm:$0xf]
    %v3454 = vld [vmem:[%s4 + $0x4] sm:$0xf]
    %v3455 = vld [vmem:[%s4 + $0x8] sm:$0xf]
    %v3456 = vld [vmem:[%s4 + $0xc] sm:$0xf]
    %v3457 = vld [vmem:[%s4 + $0x10] sm:$0xf]
    %v3458 = vld [vmem:[%s4 + $0x14] sm:$0xf]
    %v3459 = vld [vmem:[%s4 + $0x18] sm:$0xf]
    %v3460 = vld [vmem:[%s4 + $0x1c] sm:$0xf]
    %v3461 = vld [vmem:[%s4 + $0x20] sm:$0xf]
    %v3462 = vld [vmem:[%s4 + $0x24] sm:$0xf]
    %v3463 = vld [vmem:[%s4 + $0x28] sm:$0xf]
    %v3464 = vld [vmem:[%s4 + $0x2c] sm:$0xf]
    %v3465 = vld [vmem:[%s4 + $0x30] sm:$0xf]
    %v3466 = vld [vmem:[%s4 + $0x34] sm:$0xf]
    %v3467 = vld [vmem:[%s4 + $0x38] sm:$0xf]
    %v3468 = vld [vmem:[%s4 + $0x3c] sm:$0xf]
    %v3469 = vld [vmem:[%s5] sm:$0x1]
    %v3471 = vlaneseq
    %v3472 = vshrl.u32 %v3471, 7
    %v3473 = vsub.s32 0, %v3472
    %v3474 = vrot.slane %v3469, %v3473
    %v3492 = vunpack.c.l.b16 %v3453
    %v3493 = vunpack.c.l.b16 %v3454
    %v3494 = vunpack.c.l.b16 %v3455
    %v3495 = vunpack.c.l.b16 %v3456
    %v3496 = vunpack.c.l.b16 %v3457
    %v3497 = vunpack.c.l.b16 %v3458
    %v3498 = vunpack.c.l.b16 %v3459
    %v3499 = vunpack.c.l.b16 %v3460
    %v3500 = vunpack.c.l.b16 %v3461
    %v3501 = vunpack.c.l.b16 %v3462
    %v3502 = vunpack.c.l.b16 %v3463
    %v3503 = vunpack.c.l.b16 %v3464
    %v3504 = vunpack.c.l.b16 %v3465
    %v3505 = vunpack.c.l.b16 %v3466
    %v3506 = vunpack.c.l.b16 %v3467
    %v3507 = vunpack.c.l.b16 %v3468
    %v3508 = vpack.c.b16 %v3493, %v3492
    %v3509 = vpack.c.b16 %v3495, %v3494
    %v3510 = vpack.c.b16 %v3497, %v3496
    %v3511 = vpack.c.b16 %v3499, %v3498
    %v3512 = vpack.c.b16 %v3501, %v3500
    %v3513 = vpack.c.b16 %v3503, %v3502
    %v3514 = vpack.c.b16 %v3505, %v3504
    %v3515 = vpack.c.b16 %v3507, %v3506
    %3524 = vmatprep.subr.bf16.mxu0 0
    %3525 = vmatpush1.bf16.msra.mxu0 %v3508
    %3526 = vmatprep.subr.bf16.mxu0 0
    %3527 = vmatpush1.bf16.msra.mxu0 %v3509
    %3528 = vmatprep.subr.bf16.mxu0 0
    %3529 = vmatpush1.bf16.msra.mxu0 %v3510
    %3530 = vmatprep.subr.bf16.mxu0 0
    %3531 = vmatpush1.bf16.msra.mxu0 %v3511
    %3532 = vmatprep.subr.bf16.mxu0 0
    %3533 = vmatpush1.bf16.msra.mxu0 %v3512
    %3534 = vmatprep.subr.bf16.mxu0 0
    %3535 = vmatpush1.bf16.msra.mxu0 %v3513
    %3536 = vmatprep.subr.bf16.mxu0 0
    %3537 = vmatpush1.bf16.msra.mxu0 %v3514
    %3538 = vmatprep.subr.bf16.mxu0 0
    %3539 = vmatpush1.bf16.msra.mxu0 %v3515
    %3540 = vmatprep.subr.bf16.mxu0 0
    %3541 = vmatpush1.bf16.msra.mxu0 0
    %3542 = vmatprep.subr.bf16.mxu0 0
    %3543 = vmatpush1.bf16.msra.mxu0 0
    %3544 = vmatprep.subr.bf16.mxu0 0
    %3545 = vmatpush1.bf16.msra.mxu0 0
    %3546 = vmatprep.subr.bf16.mxu0 0
    %3547 = vmatpush1.bf16.msra.mxu0 0
    %3548 = vmatprep.subr.bf16.mxu0 0
    %3549 = vmatpush1.bf16.msra.mxu0 0
    %3550 = vmatprep.subr.bf16.mxu0 0
    %3551 = vmatpush1.bf16.msra.mxu0 0
    %3552 = vmatprep.subr.bf16.mxu0 0
    %3553 = vmatpush1.bf16.msra.mxu0 0
    %3554 = vmatprep.subr.bf16.mxu0 0
    %3555 = vmatpush1.bf16.msra.mxu0 0
    %3556 = vmatprep.mubr.bf16.mxu0 0
    %3557 = vmatmul.mubr.bf16.gmra.mrb[0].mxu0 %v3452
    %v3558 = vpop.f32.mrb[0].mxu0
    %v3559 = vadd.f32 %v3474, %v3558
    %v3560 = vpop.f32.mrb[0].mxu0
    %v3561 = vpop.f32.mrb[0].mxu0
    %v3562 = vadd.f32 %v3474, %v3561
    %v3563 = vpop.f32.mrb[0].mxu0
    %3564 = vdwg.mxu0
    %3565 = vst [vmem:[%s6] sm:$0xff] %v3559
    %3566 = vst [vmem:[%s6 + $0x8] sm:$0xff] %v3562
  $region33: #{lstm_model_forward.3} parent=0 // pred_fallthru
    _
  // Predicated region
  $region34: #{lstm_model_forward.3} parent=0 // pred_check
    _
  $region35: #{lstm_model_forward.3} parent=0 // pred_check_branch
    %3568 = sbr.rel (0) target = $region37
  $region36: #{lstm_model_forward.3} parent=0 // pred_region
    _
  $region37: #{lstm_model_forward.3} parent=0 // pred_fallthru
    _
  // Predicated region
  $region38: #{lstm_model_forward.3} parent=0 // pred_check
    _
  $region39: #{lstm_model_forward.3} parent=0 // pred_check_branch
    %3570 = sbr.rel (0) target = $region41
  $region40: #{lstm_model_forward.3} parent=0 // pred_region
    _
  $region41: #{lstm_model_forward.3} parent=0 // pred_fallthru
    _

</llo_original>
